<compile_context>
chip_gen: v7x
topology: tpu7x:2x2x1
jax: 0.10.0
libtpu: 0.0.40
codegen_flags: <defaults>
</compile_context>

<pallas_src>
import functools

import jax
import jax.numpy as jnp
from jax.experimental import pallas as pl
from jax.experimental.pallas import tpu as pltpu


# ----------------------------------------------------------------------------
# in-kernel helpers (f32 math, bf16 MXU inputs)
# ----------------------------------------------------------------------------
def _layer_norm(x, g, b, eps):
    mu = jnp.mean(x, axis=-1, keepdims=True)
    xc = x - mu
    var = jnp.mean(xc * xc, axis=-1, keepdims=True)
    return xc * jax.lax.rsqrt(var + eps) * g + b


def _gelu_tanh(x):
    c = jnp.float32(0.7978845608028654)
    return 0.5 * x * (1.0 + jnp.tanh(c * (x + 0.044715 * x * x * x)))


def _row(ref, *idx):
    """Load one packed bias/LN row from a flattened (..., N) slab as (1, N)."""
    return ref[idx][None, :]


def _attention(x, mask_bias, l, wqkv_ref, bqkv_ref, wo_ref, *, B, S, nhead):
    """Multi-head self-attention on (B*S, H) rows -> (B*S, H) f32 (no out bias)."""
    H = x.shape[-1]
    dh = H // nhead
    xb = x.astype(jnp.bfloat16)
    scale = 1.0 / (dh ** 0.5)
    attn = None
    # Static head loop (nhead=2).  Head split lives in the wrapper-side weight
    # layout: no in-kernel lane slicing / head concat; the output projection is
    # applied per head and summed (mathematically == concat(heads) @ Wo).
    for h in range(nhead):
        q = jnp.dot(xb, wqkv_ref[l, 0, h], preferred_element_type=jnp.float32) \
            + _row(bqkv_ref, l, 0 * nhead + h)
        k = jnp.dot(xb, wqkv_ref[l, 1, h], preferred_element_type=jnp.float32) \
            + _row(bqkv_ref, l, 1 * nhead + h)
        v = jnp.dot(xb, wqkv_ref[l, 2, h], preferred_element_type=jnp.float32) \
            + _row(bqkv_ref, l, 2 * nhead + h)
        q3 = q.reshape(B, S, dh).astype(jnp.bfloat16)
        k3 = k.reshape(B, S, dh).astype(jnp.bfloat16)
        v3 = v.reshape(B, S, dh).astype(jnp.bfloat16)
        s = jnp.einsum("bqd,bkd->bqk", q3, k3,
                       preferred_element_type=jnp.float32) * scale        # (B,S,S)
        if mask_bias is not None:
            # NOTE: a fully-masked query row gives a uniform distribution over
            # masked keys (PyTorch would produce NaN); never hit in this model.
            s = s + mask_bias
        s = s - jnp.max(s, axis=-1, keepdims=True)
        e = jnp.exp(s)
        p = e * pl.reciprocal(jnp.sum(e, axis=-1, keepdims=True), approx=True)
        ctx = jnp.einsum("bqk,bkd->bqd", p.astype(jnp.bfloat16), v3,
                         preferred_element_type=jnp.float32)              # (B,S,dh)
        part = jnp.dot(ctx.reshape(B * S, dh).astype(jnp.bfloat16), wo_ref[l, h],
                       preferred_element_type=jnp.float32)                # (B*S,H)
        attn = part if attn is None else attn + part
    return attn


def _encoder_layer(x, mask_bias, l, wqkv_ref, bqkv_ref, wo_ref, vecs_ref, ffn_fn,
                   *, B, S, nhead, eps):
    """Post-norm transformer encoder layer (PyTorch semantics) on (B*S, H) rows.
    ffn_fn(y) returns the FFN output WITHOUT its final bias (bias lives in vecs)."""
    attn = _attention(x, mask_bias, l, wqkv_ref, bqkv_ref, wo_ref,
                      B=B, S=S, nhead=nhead)
    bo, ln1_g, ln1_b = _row(vecs_ref, l, 0), _row(vecs_ref, l, 1), _row(vecs_ref, l, 2)
    b2, ln2_g, ln2_b = _row(vecs_ref, l, 3), _row(vecs_ref, l, 4), _row(vecs_ref, l, 5)
    y = _layer_norm(x + attn + bo, ln1_g, ln1_b, eps)
    h2 = ffn_fn(y) + b2
    return _layer_norm(y + h2, ln2_g, ln2_b, eps)


# ----------------------------------------------------------------------------
# ONE fused kernel: branch-weight DMA -> BERT stack -> intent/emotion branches
# ----------------------------------------------------------------------------
def _fused_kernel(
    # ---- BERT operands (resident VMEM) ----
    xb_ref, maskb_ref, embln_ref,
    bw_qkv, bb_qkv, bw_o, bvecs, bw1, bb1, bw2,
    # ---- intent/emotion branch operands (small, resident VMEM) ----
    xr_ref, rw_qkv, rb_qkv, rw_o, rvecs, rb1, rs1, rs2, clsw_ref, clsb_ref,
    # ---- intent/emotion big FFN weights (int8, HBM; manual DMA) ----
    rw1q_hbm, rw2q_hbm,
    # ---- outputs ----
    enc_ref, feat_ref, cls_ref,
    # ---- scratch ----
    w1_buf, w2_buf, dma_sem,
    *, B, Sb, Sr, nhead, n_bert_layers, nbr, ffn_chunk, eps_bert, eps_branch):
    # 1) Kick off the only large DMA (branch FFN weights, ~256 KB int8) first so
    #    it overlaps with the entire BERT compute below.
    cp_w1 = pltpu.make_async_copy(rw1q_hbm, w1_buf, dma_sem.at[0])
    cp_w2 = pltpu.make_async_copy(rw2q_hbm, w2_buf, dma_sem.at[1])
    cp_w1.start()
    cp_w2.start()

    # 2) Synthetic-BERT encoder: embedding LayerNorm + all layers, fully unrolled.
    x = xb_ref[...].astype(jnp.float32)                                   # (B*Sb, Hb)
    x = _layer_norm(x, embln_ref[0][None, :], embln_ref[1][None, :], eps_bert)
    mask_bias = maskb_ref[...]                                            # (B, 1, Sb)
    for l in range(n_bert_layers):
        def bert_ffn(y, l=l):
            h1 = jnp.dot(y.astype(jnp.bfloat16), bw1[l],
                         preferred_element_type=jnp.float32) + _row(bb1, l)
            h1 = _gelu_tanh(h1)
            return jnp.dot(h1.astype(jnp.bfloat16), bw2[l],
                           preferred_element_type=jnp.float32)
        x = _encoder_layer(x, mask_bias, l, bw_qkv, bb_qkv, bw_o, bvecs, bert_ffn,
                           B=B, S=Sb, nhead=nhead, eps=eps_bert)
    enc_ref[...] = x.astype(enc_ref.dtype)

    # 3) Branch FFN weights have landed by now (DMA hidden under BERT compute).
    cp_w1.wait()
    cp_w2.wait()

    # 4) Intent / emotion encoder layers (+ emotion classifier), statically
    #    unrolled so every ref index stays static.
    H = xr_ref.shape[-1]
    Dff = w1_buf.shape[-1]
    for b in range(nbr):
        def branch_ffn(y, b=b):
            # dff=2048 FFN chunked: never materializes the full (B*Sr, 2048) f32
            # intermediate.  int8 weights are dequantized chunk-wise to bf16
            # (exact, |q|<=127); per-output-channel scales fold into the f32
            # epilogue of each matmul.
            yb = y.astype(jnp.bfloat16)
            acc = jnp.zeros((y.shape[0], H), jnp.float32)
            for c in range(0, Dff, ffn_chunk):
                w1c = w1_buf[b, :, c:c + ffn_chunk].astype(jnp.float32).astype(jnp.bfloat16)
                h1 = jnp.dot(yb, w1c, preferred_element_type=jnp.float32)
                h1 = h1 * rs1[b, c:c + ffn_chunk][None, :] + rb1[b, c:c + ffn_chunk][None, :]
                h1 = jnp.maximum(h1, 0.0)        # ReLU (nn.TransformerEncoderLayer default)
                w2c = w2_buf[b, c:c + ffn_chunk, :].astype(jnp.float32).astype(jnp.bfloat16)
                acc = acc + jnp.dot(h1.astype(jnp.bfloat16), w2c,
                                    preferred_element_type=jnp.float32)
            return acc * rs2[b][None, :]

        z = _encoder_layer(xr_ref[b].astype(jnp.float32), None, b,
                           rw_qkv, rb_qkv, rw_o, rvecs, branch_ffn,
                           B=B, S=Sr, nhead=nhead, eps=eps_branch)
        last = z.reshape(B, Sr, H)[:, Sr - 1, :]            # == output[-1] (seq-major)
        feat_ref[b] = last.astype(feat_ref.dtype)
        if b == nbr - 1:
            # Classifier only on the emotion branch; EXACT sigmoid (stays in [0,1]).
            logit = jnp.dot(last.astype(jnp.bfloat16), clsw_ref[...],
                            preferred_element_type=jnp.float32) + clsb_ref[...]
            cls_ref[...] = (1.0 / (1.0 + jnp.exp(-logit))).astype(cls_ref.dtype)


def fused_multi_source_call(x_bert, mask_bias, emb_ln, bert_layers,
                            x_branch, branch_layers, cls_w, cls_b,
                            *, B, Sb, Sr, nhead):
    Hb = x_bert.shape[-1]
    nbr, _, H = x_branch.shape
    Lb = bert_layers["wqkv"].shape[0]
    Dff = branch_layers["w1_q"].shape[-1]
    ffn_chunk = Dff if Dff <= 512 else 512
    assert Dff % ffn_chunk == 0

    kernel = functools.partial(
        _fused_kernel, B=B, Sb=Sb, Sr=Sr, nhead=nhead, n_bert_layers=Lb, nbr=nbr,
        ffn_chunk=ffn_chunk, eps_bert=1e-12, eps_branch=1e-5)

    vmem = pl.BlockSpec(memory_space=pltpu.MemorySpace.VMEM)   # whole-array, auto-DMA
    hbm = pl.BlockSpec(memory_space=pl.ANY)                    # raw HBM ref, manual DMA
    in_specs = [vmem] * 20 + [hbm, hbm]

    out_shape = (jax.ShapeDtypeStruct((B * Sb, Hb), jnp.float32),   # encoded output
                 jax.ShapeDtypeStruct((nbr, B, H), jnp.float32),    # branch features
                 jax.ShapeDtypeStruct((B, 128), jnp.float32))       # lane-padded sigmoid

    scratch_shapes = [pltpu.VMEM((nbr, H, Dff), jnp.int8),
                      pltpu.VMEM((nbr, Dff, H), jnp.int8),
                      pltpu.SemaphoreType.DMA((2,))]

    return pl.pallas_call(
        kernel,
        out_shape=out_shape,
        in_specs=in_specs,
        scratch_shapes=scratch_shapes,
    )(x_bert, mask_bias, emb_ln,
      bert_layers["wqkv"], bert_layers["bqkv"], bert_layers["wo"],
      bert_layers["vecs"], bert_layers["w1"], bert_layers["b1"], bert_layers["w2"],
      x_branch,
      branch_layers["wqkv"], branch_layers["bqkv"], branch_layers["wo"],
      branch_layers["vecs"], branch_layers["b1"], branch_layers["s1"],
      branch_layers["s2"], cls_w, cls_b,
      branch_layers["w1_q"], branch_layers["w2_q"])


# ----------------------------------------------------------------------------
# deterministic parameter construction + kernel-friendly packing
# ----------------------------------------------------------------------------
def _init(key, shape, scale=0.02):
    return scale * jax.random.normal(key, shape, dtype=jnp.float32)


def make_layer_params(key, hidden, dff):
    ks = jax.random.split(key, 6)
    z = lambda s: jnp.zeros(s, jnp.float32)
    o = lambda s: jnp.ones(s, jnp.float32)
    return dict(
        wq=_init(ks[0], (hidden, hidden)), bq=z((hidden,)),
        wk=_init(ks[1], (hidden, hidden)), bk=z((hidden,)),
        wv=_init(ks[2], (hidden, hidden)), bv=z((hidden,)),
        wo=_init(ks[3], (hidden, hidden)), bo=z((hidden,)),
        ln1_g=o((hidden,)), ln1_b=z((hidden,)),
        w1=_init(ks[4], (hidden, dff)), b1=z((dff,)),
        w2=_init(ks[5], (dff, hidden)), b2=z((hidden,)),
        ln2_g=o((hidden,)), ln2_b=z((hidden,)),
    )


def pack_layer_common(p, nhead, wdtype=jnp.bfloat16):
    """Per-head bf16 attention weights + flattened f32 bias/LN slabs.  All the
    head splitting / transposing happens here (outside the kernel)."""
    H = p["wq"].shape[0]
    dh = H // nhead
    split = lambda w: w.reshape(H, nhead, dh).transpose(1, 0, 2)       # (nh, H, dh)
    return dict(
        wqkv=jnp.stack([split(p["wq"]), split(p["wk"]), split(p["wv"])], 0).astype(wdtype),
        bqkv=jnp.stack([p["bq"], p["bk"], p["bv"]], 0).reshape(3 * nhead, dh),
        wo=p["wo"].reshape(nhead, dh, H).astype(wdtype),
        vecs=jnp.stack([p["bo"], p["ln1_g"], p["ln1_b"],
                        p["b2"], p["ln2_g"], p["ln2_b"]], 0),          # (6, H)
        b1=p["b1"],                                                    # (Dff,)
    )


def pack_bert_layer(p, nhead):
    d = pack_layer_common(p, nhead)
    d.update(w1=p["w1"].astype(jnp.bfloat16), w2=p["w2"].astype(jnp.bfloat16))
    return d


def _quantize_per_col(w):
    """Symmetric per-output-channel int8 (exactly representable in bf16)."""
    amax = jnp.max(jnp.abs(w), axis=0)
    scale = jnp.maximum(amax, 1e-8) / 127.0
    q = jnp.clip(jnp.round(w / scale[None, :]), -127.0, 127.0).astype(jnp.int8)
    return q, scale.astype(jnp.float32)


def pack_branch_layer(p, nhead):
    d = pack_layer_common(p, nhead)
    w1_q, s1 = _quantize_per_col(p["w1"])
    w2_q, s2 = _quantize_per_col(p["w2"])
    d.update(w1_q=w1_q, s1=s1, w2_q=w2_q, s2=s2)
    return d


def stack_packed(packed):
    return {k: jnp.stack([p[k] for p in packed], 0) for k in packed[0]}


def make_params(key, *, vocab, max_pos, type_vocab, bert_hidden, bert_layers,
                bert_ff, intent_vocab, emotion_vocab, hidden, dff, nhead=2):
    ks = jax.random.split(key, 8 + bert_layers)
    bert = dict(
        word_emb=_init(ks[0], (vocab, bert_hidden)),
        pos_emb=_init(ks[1], (max_pos, bert_hidden)),
        type_emb=_init(ks[2], (type_vocab, bert_hidden)),
        emb_ln=jnp.stack([jnp.ones((bert_hidden,), jnp.float32),
                          jnp.zeros((bert_hidden,), jnp.float32)], 0),   # (2, H)
        layers=stack_packed(
            [pack_bert_layer(make_layer_params(ks[8 + i], bert_hidden, bert_ff), nhead)
             for i in range(bert_layers)]),
    )
    cls_w = _init(ks[7], (hidden, 1))
    return dict(
        bert=bert,
        intent_emb=_init(ks[3], (intent_vocab, hidden)),
        emotion_emb=_init(ks[4], (emotion_vocab, hidden)),
        branches=stack_packed(
            [pack_branch_layer(make_layer_params(ks[5], hidden, dff), nhead),   # intent
             pack_branch_layer(make_layer_params(ks[6], hidden, dff), nhead)]), # emotion
        cls_w_pad=jnp.zeros((hidden, 128), jnp.bfloat16)
                     .at[:, :1].set(cls_w.astype(jnp.bfloat16)),
        cls_b_pad=jnp.zeros((1, 128), jnp.float32),   # nn.Linear bias (zero-init)
    )


# ----------------------------------------------------------------------------
# MultiSourceEncoder.forward
# ----------------------------------------------------------------------------
def multi_source_encoder_forward(params, input_ids, attention_mask, token_type_ids,
                                 intent_ids, emotion_ids, *, nhead=2):
    B, Sb = input_ids.shape
    bp = params["bert"]
    Hb = bp["word_emb"].shape[-1]

    # Embedding gathers stay in JAX (tiny; no Pallas win at this size).
    x = (bp["word_emb"][input_ids]
         + bp["pos_emb"][:Sb][None, :, :]
         + bp["type_emb"][token_type_ids])                               # (B, Sb, Hb)
    mask_bias = ((attention_mask.astype(jnp.float32) - 1.0) * 1e9).reshape(B, 1, Sb)

    intent_emb = params["intent_emb"][intent_ids]                        # (B, Sr, H)
    emotion_emb = params["emotion_emb"][emotion_ids]                     # (B, Sr, H)
    assert intent_emb.shape == emotion_emb.shape, "fused kernel assumes matching branch shapes"
    # TODO(synk): unequal intent/emotion sequence lengths would need key padding
    # plus a per-branch last-token index; not required by this module's usage.
    Bi, Sr, H = intent_emb.shape
    x_branch = jnp.stack([intent_emb.reshape(Bi * Sr, H),
                          emotion_emb.reshape(Bi * Sr, H)], 0)           # (2, B*Sr, H)

    enc, feat, cls = fused_multi_source_call(
        x.reshape(B * Sb, Hb), mask_bias, bp["emb_ln"], bp["layers"],
        x_branch, params["branches"], params["cls_w_pad"], params["cls_b_pad"],
        B=B, Sb=Sb, Sr=Sr, nhead=nhead)

    encoded_output = enc.reshape(B, Sb, Hb)
    intent_feature = feat[0]                                             # (B, H)
    emotion_feature = cls[:, 0].squeeze()     # matches PyTorch .squeeze() semantics
    return encoded_output, intent_feature, emotion_feature


# ----------------------------------------------------------------------------
if __name__ == "__main__":
    root = jax.random.PRNGKey(0)
    pkey, ikey = jax.random.split(root)

    B, S_bert, S_branch = 2, 16, 8
    hidden = 32
    vocab, intent_vocab, emotion_vocab = 100, 10, 10

    params = make_params(
        pkey, vocab=vocab, max_pos=64, type_vocab=2,
        bert_hidden=hidden, bert_layers=2, bert_ff=4 * hidden,
        intent_vocab=intent_vocab, emotion_vocab=emotion_vocab,
        hidden=hidden, dff=2048)   # 2048 = nn.TransformerEncoderLayer default dim_feedforward

    k0, k1, k2 = jax.random.split(ikey, 3)
    input_ids = jax.random.randint(k0, (B, S_bert), 0, vocab, dtype=jnp.int32)
    attention_mask = jnp.ones((B, S_bert), jnp.int32).at[1, 12:].set(0)
    token_type_ids = jnp.concatenate(
        [jnp.zeros((B, S_bert // 2), jnp.int32),
         jnp.ones((B, S_bert // 2), jnp.int32)], axis=1)
    intent_ids = jax.random.randint(k1, (B, S_branch), 0, intent_vocab, dtype=jnp.int32)
    emotion_ids = jax.random.randint(k2, (B, S_branch), 0, emotion_vocab, dtype=jnp.int32)

    fwd = jax.jit(multi_source_encoder_forward)
    enc, intent_f, emo_f = fwd(params, input_ids, attention_mask, token_type_ids,
                               intent_ids, emotion_ids)
    jax.block_until_ready((enc, intent_f, emo_f))

    assert enc.shape == (B, S_bert, hidden)
    assert intent_f.shape == (B, hidden)
    assert emo_f.shape == (B,)
    assert bool(jnp.all(jnp.isfinite(enc)))
    assert bool(jnp.all(jnp.isfinite(intent_f)))
    assert bool(jnp.all((emo_f >= 0.0) & (emo_f <= 1.0)))
    print("KERNEL_OK")
</pallas_src>

<mosaic_0001>
module attributes {stable_mosaic.version = 11 : i64} {
  func.func @_fused_kernel(%arg0: memref<32x32xf32, #tpu.memory_space<vmem>>, %arg1: memref<2x1x16xf32, #tpu.memory_space<vmem>>, %arg2: memref<2x32xf32, #tpu.memory_space<vmem>>, %arg3: memref<2x3x2x32x16xbf16, #tpu.memory_space<vmem>>, %arg4: memref<2x6x16xf32, #tpu.memory_space<vmem>>, %arg5: memref<2x2x16x32xbf16, #tpu.memory_space<vmem>>, %arg6: memref<2x6x32xf32, #tpu.memory_space<vmem>>, %arg7: memref<2x32x128xbf16, #tpu.memory_space<vmem>>, %arg8: memref<2x128xf32, #tpu.memory_space<vmem>>, %arg9: memref<2x128x32xbf16, #tpu.memory_space<vmem>>, %arg10: memref<2x16x32xf32, #tpu.memory_space<vmem>>, %arg11: memref<2x3x2x32x16xbf16, #tpu.memory_space<vmem>>, %arg12: memref<2x6x16xf32, #tpu.memory_space<vmem>>, %arg13: memref<2x2x16x32xbf16, #tpu.memory_space<vmem>>, %arg14: memref<2x6x32xf32, #tpu.memory_space<vmem>>, %arg15: memref<2x2048xf32, #tpu.memory_space<vmem>>, %arg16: memref<2x2048xf32, #tpu.memory_space<vmem>>, %arg17: memref<2x32xf32, #tpu.memory_space<vmem>>, %arg18: memref<32x128xbf16, #tpu.memory_space<vmem>>, %arg19: memref<1x128xf32, #tpu.memory_space<vmem>>, %arg20: memref<2x32x2048xi8, #tpu.memory_space<any>>, %arg21: memref<2x2048x32xi8, #tpu.memory_space<any>>, %arg22: memref<32x32xf32, #tpu.memory_space<vmem>>, %arg23: memref<2x2x32xf32, #tpu.memory_space<vmem>>, %arg24: memref<2x128xf32, #tpu.memory_space<vmem>>, %arg25: memref<2x32x2048xi8, #tpu.memory_space<vmem>>, %arg26: memref<2x2048x32xi8, #tpu.memory_space<vmem>>, %arg27: memref<2x!tpu.dma_semaphore, #tpu.memory_space<semaphore_mem>>) attributes {dimension_semantics = [], scalar_prefetch = 0 : i64, scratch_operands = 3 : i64, tpu.core_type = #tpu.core_type<tc>} {
    %c0_i32 = arith.constant 0 : i32
    %0 = tpu.memref_slice %arg27[%c0_i32] : memref<2x!tpu.dma_semaphore, #tpu.memory_space<semaphore_mem>> -> memref<1x!tpu.dma_semaphore, #tpu.memory_space<semaphore_mem>>
    %1 = tpu.memref_squeeze %0 : memref<1x!tpu.dma_semaphore, #tpu.memory_space<semaphore_mem>> -> memref<!tpu.dma_semaphore, #tpu.memory_space<semaphore_mem>>
    tpu.enqueue_dma source(%arg20 : memref<2x32x2048xi8, #tpu.memory_space<any>>) target(%arg25 : memref<2x32x2048xi8, #tpu.memory_space<vmem>>) target_semaphore(%1 : memref<!tpu.dma_semaphore, #tpu.memory_space<semaphore_mem>>)
    %c1_i32 = arith.constant 1 : i32
    %2 = tpu.memref_slice %arg27[%c1_i32] : memref<2x!tpu.dma_semaphore, #tpu.memory_space<semaphore_mem>> -> memref<1x!tpu.dma_semaphore, #tpu.memory_space<semaphore_mem>>
    %3 = tpu.memref_squeeze %2 : memref<1x!tpu.dma_semaphore, #tpu.memory_space<semaphore_mem>> -> memref<!tpu.dma_semaphore, #tpu.memory_space<semaphore_mem>>
    tpu.enqueue_dma source(%arg21 : memref<2x2048x32xi8, #tpu.memory_space<any>>) target(%arg26 : memref<2x2048x32xi8, #tpu.memory_space<vmem>>) target_semaphore(%3 : memref<!tpu.dma_semaphore, #tpu.memory_space<semaphore_mem>>)
    %c0 = arith.constant 0 : index
    %c0_0 = arith.constant 0 : index
    %4 = vector.load %arg0[%c0, %c0_0] : memref<32x32xf32, #tpu.memory_space<vmem>>, vector<32x32xf32>
    %c0_1 = arith.constant 0 : index
    %c0_2 = arith.constant 0 : index
    %5 = vector.load %arg2[%c0_1, %c0_2] : memref<2x32xf32, #tpu.memory_space<vmem>>, vector<1x32xf32>
    %6 = vector.shape_cast %5 : vector<1x32xf32> to vector<32xf32>
    %7 = vector.shape_cast %6 : vector<32xf32> to vector<1x32xf32>
    %c1 = arith.constant 1 : index
    %c0_3 = arith.constant 0 : index
    %8 = vector.load %arg2[%c1, %c0_3] : memref<2x32xf32, #tpu.memory_space<vmem>>, vector<1x32xf32>
    %9 = vector.shape_cast %8 : vector<1x32xf32> to vector<32xf32>
    %10 = vector.shape_cast %9 : vector<32xf32> to vector<1x32xf32>
    %cst = arith.constant dense<0.000000e+00> : vector<32xf32>
    %11 = vector.multi_reduction <add>, %4, %cst [1] : vector<32x32xf32> to vector<32xf32>
    %12 = vector.shape_cast %11 : vector<32xf32> to vector<32x1xf32>
    %cst_4 = arith.constant 3.200000e+01 : f32
    %13 = vector.broadcast %cst_4 : f32 to vector<32x1xf32>
    %14 = arith.divf %12, %13 : vector<32x1xf32>
    %15 = vector.broadcast %14 : vector<32x1xf32> to vector<32x32xf32>
    %16 = arith.subf %4, %15 : vector<32x32xf32>
    %17 = arith.mulf %16, %16 : vector<32x32xf32>
    %cst_5 = arith.constant dense<0.000000e+00> : vector<32xf32>
    %18 = vector.multi_reduction <add>, %17, %cst_5 [1] : vector<32x32xf32> to vector<32xf32>
    %19 = vector.shape_cast %18 : vector<32xf32> to vector<32x1xf32>
    %cst_6 = arith.constant 3.200000e+01 : f32
    %20 = vector.broadcast %cst_6 : f32 to vector<32x1xf32>
    %21 = arith.divf %19, %20 : vector<32x1xf32>
    %cst_7 = arith.constant 9.99999996E-13 : f32
    %22 = vector.broadcast %cst_7 : f32 to vector<32x1xf32>
    %23 = arith.addf %21, %22 : vector<32x1xf32>
    %24 = math.rsqrt %23 : vector<32x1xf32>
    %25 = vector.broadcast %24 : vector<32x1xf32> to vector<32x32xf32>
    %26 = arith.mulf %16, %25 : vector<32x32xf32>
    %27 = vector.broadcast %7 : vector<1x32xf32> to vector<32x32xf32>
    %28 = arith.mulf %26, %27 : vector<32x32xf32>
    %29 = vector.broadcast %10 : vector<1x32xf32> to vector<32x32xf32>
    %30 = arith.addf %28, %29 : vector<32x32xf32>
    %c0_8 = arith.constant 0 : index
    %c0_9 = arith.constant 0 : index
    %c0_10 = arith.constant 0 : index
    %31 = vector.load %arg1[%c0_8, %c0_9, %c0_10] : memref<2x1x16xf32, #tpu.memory_space<vmem>>, vector<2x1x16xf32>
    %32 = arith.truncf %30 : vector<32x32xf32> to vector<32x32xbf16>
    %c0_11 = arith.constant 0 : index
    %c0_12 = arith.constant 0 : index
    %c0_13 = arith.constant 0 : index
    %c0_14 = arith.constant 0 : index
    %c0_15 = arith.constant 0 : index
    %33 = vector.load %arg3[%c0_11, %c0_12, %c0_13, %c0_14, %c0_15] : memref<2x3x2x32x16xbf16, #tpu.memory_space<vmem>>, vector<1x1x1x32x16xbf16>
    %34 = vector.shape_cast %33 : vector<1x1x1x32x16xbf16> to vector<32x16xbf16>
    %cst_16 = arith.constant dense<0.000000e+00> : vector<32x16xf32>
    %35 = tpu.matmul %32, %34, %cst_16 {dimension_numbers = #tpu.dot_dimension_numbers<[1], [0], [0], [1], [0, 0, 1, 1], [], []>} : vector<32x32xbf16>, vector<32x16xbf16>, vector<32x16xf32> -> vector<32x16xf32>
    %c0_17 = arith.constant 0 : index
    %c0_18 = arith.constant 0 : index
    %c0_19 = arith.constant 0 : index
    %36 = vector.load %arg4[%c0_17, %c0_18, %c0_19] : memref<2x6x16xf32, #tpu.memory_space<vmem>>, vector<1x1x16xf32>
    %37 = vector.shape_cast %36 : vector<1x1x16xf32> to vector<16xf32>
    %38 = vector.shape_cast %37 : vector<16xf32> to vector<1x16xf32>
    %39 = vector.broadcast %38 : vector<1x16xf32> to vector<32x16xf32>
    %40 = arith.addf %35, %39 : vector<32x16xf32>
    %c0_20 = arith.constant 0 : index
    %c1_21 = arith.constant 1 : index
    %c0_22 = arith.constant 0 : index
    %c0_23 = arith.constant 0 : index
    %c0_24 = arith.constant 0 : index
    %41 = vector.load %arg3[%c0_20, %c1_21, %c0_22, %c0_23, %c0_24] : memref<2x3x2x32x16xbf16, #tpu.memory_space<vmem>>, vector<1x1x1x32x16xbf16>
    %42 = vector.shape_cast %41 : vector<1x1x1x32x16xbf16> to vector<32x16xbf16>
    %cst_25 = arith.constant dense<0.000000e+00> : vector<32x16xf32>
    %43 = tpu.matmul %32, %42, %cst_25 {dimension_numbers = #tpu.dot_dimension_numbers<[1], [0], [0], [1], [0, 0, 1, 1], [], []>} : vector<32x32xbf16>, vector<32x16xbf16>, vector<32x16xf32> -> vector<32x16xf32>
    %c0_26 = arith.constant 0 : index
    %c2 = arith.constant 2 : index
    %c0_27 = arith.constant 0 : index
    %44 = vector.load %arg4[%c0_26, %c2, %c0_27] : memref<2x6x16xf32, #tpu.memory_space<vmem>>, vector<1x1x16xf32>
    %45 = vector.shape_cast %44 : vector<1x1x16xf32> to vector<16xf32>
    %46 = vector.shape_cast %45 : vector<16xf32> to vector<1x16xf32>
    %47 = vector.broadcast %46 : vector<1x16xf32> to vector<32x16xf32>
    %48 = arith.addf %43, %47 : vector<32x16xf32>
    %c0_28 = arith.constant 0 : index
    %c2_29 = arith.constant 2 : index
    %c0_30 = arith.constant 0 : index
    %c0_31 = arith.constant 0 : index
    %c0_32 = arith.constant 0 : index
    %49 = vector.load %arg3[%c0_28, %c2_29, %c0_30, %c0_31, %c0_32] : memref<2x3x2x32x16xbf16, #tpu.memory_space<vmem>>, vector<1x1x1x32x16xbf16>
    %50 = vector.shape_cast %49 : vector<1x1x1x32x16xbf16> to vector<32x16xbf16>
    %cst_33 = arith.constant dense<0.000000e+00> : vector<32x16xf32>
    %51 = tpu.matmul %32, %50, %cst_33 {dimension_numbers = #tpu.dot_dimension_numbers<[1], [0], [0], [1], [0, 0, 1, 1], [], []>} : vector<32x32xbf16>, vector<32x16xbf16>, vector<32x16xf32> -> vector<32x16xf32>
    %c0_34 = arith.constant 0 : index
    %c4 = arith.constant 4 : index
    %c0_35 = arith.constant 0 : index
    %52 = vector.load %arg4[%c0_34, %c4, %c0_35] : memref<2x6x16xf32, #tpu.memory_space<vmem>>, vector<1x1x16xf32>
    %53 = vector.shape_cast %52 : vector<1x1x16xf32> to vector<16xf32>
    %54 = vector.shape_cast %53 : vector<16xf32> to vector<1x16xf32>
    %55 = vector.broadcast %54 : vector<1x16xf32> to vector<32x16xf32>
    %56 = arith.addf %51, %55 : vector<32x16xf32>
    %57 = vector.shape_cast %40 : vector<32x16xf32> to vector<2x16x16xf32>
    %58 = arith.truncf %57 : vector<2x16x16xf32> to vector<2x16x16xbf16>
    %59 = vector.shape_cast %48 : vector<32x16xf32> to vector<2x16x16xf32>
    %60 = arith.truncf %59 : vector<2x16x16xf32> to vector<2x16x16xbf16>
    %61 = vector.shape_cast %56 : vector<32x16xf32> to vector<2x16x16xf32>
    %62 = arith.truncf %61 : vector<2x16x16xf32> to vector<2x16x16xbf16>
    "tpu.trace_start"() <{level = 10 : i32, message = "bqd,bkd->bqk"}> : () -> ()
    %cst_36 = arith.constant dense<0.000000e+00> : vector<2x16x16xf32>
    %63 = tpu.matmul %58, %60, %cst_36 {dimension_numbers = #tpu.dot_dimension_numbers<[2], [2], [1], [1], [0, 0, 0, 1, 1, 1], [0], [0]>} : vector<2x16x16xbf16>, vector<2x16x16xbf16>, vector<2x16x16xf32> -> vector<2x16x16xf32>
    "tpu.trace_stop"() : () -> ()
    %cst_37 = arith.constant 2.500000e-01 : f32
    %64 = vector.broadcast %cst_37 : f32 to vector<2x16x16xf32>
    %65 = arith.mulf %63, %64 : vector<2x16x16xf32>
    %66 = vector.broadcast %31 : vector<2x1x16xf32> to vector<2x16x16xf32>
    %67 = arith.addf %65, %66 : vector<2x16x16xf32>
    %cst_38 = arith.constant dense<0xFF800000> : vector<2x16xf32>
    %68 = vector.multi_reduction <maximumf>, %67, %cst_38 [2] : vector<2x16x16xf32> to vector<2x16xf32>
    %69 = vector.shape_cast %68 : vector<2x16xf32> to vector<2x16x1xf32>
    %70 = vector.broadcast %69 : vector<2x16x1xf32> to vector<2x16x16xf32>
    %71 = arith.subf %67, %70 : vector<2x16x16xf32>
    %72 = math.exp %71 : vector<2x16x16xf32>
    %cst_39 = arith.constant dense<0.000000e+00> : vector<2x16xf32>
    %73 = vector.multi_reduction <add>, %72, %cst_39 [2] : vector<2x16x16xf32> to vector<2x16xf32>
    %74 = vector.shape_cast %73 : vector<2x16xf32> to vector<2x16x1xf32>
    %75 = tpu.reciprocal %74 {approx = true} : vector<2x16x1xf32> -> vector<2x16x1xf32>
    %76 = vector.broadcast %75 : vector<2x16x1xf32> to vector<2x16x16xf32>
    %77 = arith.mulf %72, %76 : vector<2x16x16xf32>
    %78 = arith.truncf %77 : vector<2x16x16xf32> to vector<2x16x16xbf16>
    "tpu.trace_start"() <{level = 10 : i32, message = "bqk,bkd->bqd"}> : () -> ()
    %cst_40 = arith.constant dense<0.000000e+00> : vector<2x16x16xf32>
    %79 = tpu.matmul %78, %62, %cst_40 {dimension_numbers = #tpu.dot_dimension_numbers<[2], [1], [1], [2], [0, 0, 0, 1, 1, 2], [0], [0]>} : vector<2x16x16xbf16>, vector<2x16x16xbf16>, vector<2x16x16xf32> -> vector<2x16x16xf32>
    "tpu.trace_stop"() : () -> ()
    %80 = vector.shape_cast %79 : vector<2x16x16xf32> to vector<32x16xf32>
    %81 = arith.truncf %80 : vector<32x16xf32> to vector<32x16xbf16>
    %c0_41 = arith.constant 0 : index
    %c0_42 = arith.constant 0 : index
    %c0_43 = arith.constant 0 : index
    %c0_44 = arith.constant 0 : index
    %82 = vector.load %arg5[%c0_41, %c0_42, %c0_43, %c0_44] : memref<2x2x16x32xbf16, #tpu.memory_space<vmem>>, vector<1x1x16x32xbf16>
    %83 = vector.shape_cast %82 : vector<1x1x16x32xbf16> to vector<16x32xbf16>
    %cst_45 = arith.constant dense<0.000000e+00> : vector<32x32xf32>
    %84 = tpu.matmul %81, %83, %cst_45 {dimension_numbers = #tpu.dot_dimension_numbers<[1], [0], [0], [1], [0, 0, 1, 1], [], []>} : vector<32x16xbf16>, vector<16x32xbf16>, vector<32x32xf32> -> vector<32x32xf32>
    %c0_46 = arith.constant 0 : index
    %c0_47 = arith.constant 0 : index
    %c1_48 = arith.constant 1 : index
    %c0_49 = arith.constant 0 : index
    %c0_50 = arith.constant 0 : index
    %85 = vector.load %arg3[%c0_46, %c0_47, %c1_48, %c0_49, %c0_50] : memref<2x3x2x32x16xbf16, #tpu.memory_space<vmem>>, vector<1x1x1x32x16xbf16>
    %86 = vector.shape_cast %85 : vector<1x1x1x32x16xbf16> to vector<32x16xbf16>
    %cst_51 = arith.constant dense<0.000000e+00> : vector<32x16xf32>
    %87 = tpu.matmul %32, %86, %cst_51 {dimension_numbers = #tpu.dot_dimension_numbers<[1], [0], [0], [1], [0, 0, 1, 1], [], []>} : vector<32x32xbf16>, vector<32x16xbf16>, vector<32x16xf32> -> vector<32x16xf32>
    %c0_52 = arith.constant 0 : index
    %c1_53 = arith.constant 1 : index
    %c0_54 = arith.constant 0 : index
    %88 = vector.load %arg4[%c0_52, %c1_53, %c0_54] : memref<2x6x16xf32, #tpu.memory_space<vmem>>, vector<1x1x16xf32>
    %89 = vector.shape_cast %88 : vector<1x1x16xf32> to vector<16xf32>
    %90 = vector.shape_cast %89 : vector<16xf32> to vector<1x16xf32>
    %91 = vector.broadcast %90 : vector<1x16xf32> to vector<32x16xf32>
    %92 = arith.addf %87, %91 : vector<32x16xf32>
    %c0_55 = arith.constant 0 : index
    %c1_56 = arith.constant 1 : index
    %c1_57 = arith.constant 1 : index
    %c0_58 = arith.constant 0 : index
    %c0_59 = arith.constant 0 : index
    %93 = vector.load %arg3[%c0_55, %c1_56, %c1_57, %c0_58, %c0_59] : memref<2x3x2x32x16xbf16, #tpu.memory_space<vmem>>, vector<1x1x1x32x16xbf16>
    %94 = vector.shape_cast %93 : vector<1x1x1x32x16xbf16> to vector<32x16xbf16>
    %cst_60 = arith.constant dense<0.000000e+00> : vector<32x16xf32>
    %95 = tpu.matmul %32, %94, %cst_60 {dimension_numbers = #tpu.dot_dimension_numbers<[1], [0], [0], [1], [0, 0, 1, 1], [], []>} : vector<32x32xbf16>, vector<32x16xbf16>, vector<32x16xf32> -> vector<32x16xf32>
    %c0_61 = arith.constant 0 : index
    %c3 = arith.constant 3 : index
    %c0_62 = arith.constant 0 : index
    %96 = vector.load %arg4[%c0_61, %c3, %c0_62] : memref<2x6x16xf32, #tpu.memory_space<vmem>>, vector<1x1x16xf32>
    %97 = vector.shape_cast %96 : vector<1x1x16xf32> to vector<16xf32>
    %98 = vector.shape_cast %97 : vector<16xf32> to vector<1x16xf32>
    %99 = vector.broadcast %98 : vector<1x16xf32> to vector<32x16xf32>
    %100 = arith.addf %95, %99 : vector<32x16xf32>
    %c0_63 = arith.constant 0 : index
    %c2_64 = arith.constant 2 : index
    %c1_65 = arith.constant 1 : index
    %c0_66 = arith.constant 0 : index
    %c0_67 = arith.constant 0 : index
    %101 = vector.load %arg3[%c0_63, %c2_64, %c1_65, %c0_66, %c0_67] : memref<2x3x2x32x16xbf16, #tpu.memory_space<vmem>>, vector<1x1x1x32x16xbf16>
    %102 = vector.shape_cast %101 : vector<1x1x1x32x16xbf16> to vector<32x16xbf16>
    %cst_68 = arith.constant dense<0.000000e+00> : vector<32x16xf32>
    %103 = tpu.matmul %32, %102, %cst_68 {dimension_numbers = #tpu.dot_dimension_numbers<[1], [0], [0], [1], [0, 0, 1, 1], [], []>} : vector<32x32xbf16>, vector<32x16xbf16>, vector<32x16xf32> -> vector<32x16xf32>
    %c0_69 = arith.constant 0 : index
    %c5 = arith.constant 5 : index
    %c0_70 = arith.constant 0 : index
    %104 = vector.load %arg4[%c0_69, %c5, %c0_70] : memref<2x6x16xf32, #tpu.memory_space<vmem>>, vector<1x1x16xf32>
    %105 = vector.shape_cast %104 : vector<1x1x16xf32> to vector<16xf32>
    %106 = vector.shape_cast %105 : vector<16xf32> to vector<1x16xf32>
    %107 = vector.broadcast %106 : vector<1x16xf32> to vector<32x16xf32>
    %108 = arith.addf %103, %107 : vector<32x16xf32>
    %109 = vector.shape_cast %92 : vector<32x16xf32> to vector<2x16x16xf32>
    %110 = arith.truncf %109 : vector<2x16x16xf32> to vector<2x16x16xbf16>
    %111 = vector.shape_cast %100 : vector<32x16xf32> to vector<2x16x16xf32>
    %112 = arith.truncf %111 : vector<2x16x16xf32> to vector<2x16x16xbf16>
    %113 = vector.shape_cast %108 : vector<32x16xf32> to vector<2x16x16xf32>
    %114 = arith.truncf %113 : vector<2x16x16xf32> to vector<2x16x16xbf16>
    "tpu.trace_start"() <{level = 10 : i32, message = "bqd,bkd->bqk"}> : () -> ()
    %cst_71 = arith.constant dense<0.000000e+00> : vector<2x16x16xf32>
    %115 = tpu.matmul %110, %112, %cst_71 {dimension_numbers = #tpu.dot_dimension_numbers<[2], [2], [1], [1], [0, 0, 0, 1, 1, 1], [0], [0]>} : vector<2x16x16xbf16>, vector<2x16x16xbf16>, vector<2x16x16xf32> -> vector<2x16x16xf32>
    "tpu.trace_stop"() : () -> ()
    %cst_72 = arith.constant 2.500000e-01 : f32
    %116 = vector.broadcast %cst_72 : f32 to vector<2x16x16xf32>
    %117 = arith.mulf %115, %116 : vector<2x16x16xf32>
    %118 = vector.broadcast %31 : vector<2x1x16xf32> to vector<2x16x16xf32>
    %119 = arith.addf %117, %118 : vector<2x16x16xf32>
    %cst_73 = arith.constant dense<0xFF800000> : vector<2x16xf32>
    %120 = vector.multi_reduction <maximumf>, %119, %cst_73 [2] : vector<2x16x16xf32> to vector<2x16xf32>
    %121 = vector.shape_cast %120 : vector<2x16xf32> to vector<2x16x1xf32>
    %122 = vector.broadcast %121 : vector<2x16x1xf32> to vector<2x16x16xf32>
    %123 = arith.subf %119, %122 : vector<2x16x16xf32>
    %124 = math.exp %123 : vector<2x16x16xf32>
    %cst_74 = arith.constant dense<0.000000e+00> : vector<2x16xf32>
    %125 = vector.multi_reduction <add>, %124, %cst_74 [2] : vector<2x16x16xf32> to vector<2x16xf32>
    %126 = vector.shape_cast %125 : vector<2x16xf32> to vector<2x16x1xf32>
    %127 = tpu.reciprocal %126 {approx = true} : vector<2x16x1xf32> -> vector<2x16x1xf32>
    %128 = vector.broadcast %127 : vector<2x16x1xf32> to vector<2x16x16xf32>
    %129 = arith.mulf %124, %128 : vector<2x16x16xf32>
    %130 = arith.truncf %129 : vector<2x16x16xf32> to vector<2x16x16xbf16>
    "tpu.trace_start"() <{level = 10 : i32, message = "bqk,bkd->bqd"}> : () -> ()
    %cst_75 = arith.constant dense<0.000000e+00> : vector<2x16x16xf32>
    %131 = tpu.matmul %130, %114, %cst_75 {dimension_numbers = #tpu.dot_dimension_numbers<[2], [1], [1], [2], [0, 0, 0, 1, 1, 2], [0], [0]>} : vector<2x16x16xbf16>, vector<2x16x16xbf16>, vector<2x16x16xf32> -> vector<2x16x16xf32>
    "tpu.trace_stop"() : () -> ()
    %132 = vector.shape_cast %131 : vector<2x16x16xf32> to vector<32x16xf32>
    %133 = arith.truncf %132 : vector<32x16xf32> to vector<32x16xbf16>
    %c0_76 = arith.constant 0 : index
    %c1_77 = arith.constant 1 : index
    %c0_78 = arith.constant 0 : index
    %c0_79 = arith.constant 0 : index
    %134 = vector.load %arg5[%c0_76, %c1_77, %c0_78, %c0_79] : memref<2x2x16x32xbf16, #tpu.memory_space<vmem>>, vector<1x1x16x32xbf16>
    %135 = vector.shape_cast %134 : vector<1x1x16x32xbf16> to vector<16x32xbf16>
    %cst_80 = arith.constant dense<0.000000e+00> : vector<32x32xf32>
    %136 = tpu.matmul %133, %135, %cst_80 {dimension_numbers = #tpu.dot_dimension_numbers<[1], [0], [0], [1], [0, 0, 1, 1], [], []>} : vector<32x16xbf16>, vector<16x32xbf16>, vector<32x32xf32> -> vector<32x32xf32>
    %137 = arith.addf %84, %136 : vector<32x32xf32>
    %c0_81 = arith.constant 0 : index
    %c0_82 = arith.constant 0 : index
    %c0_83 = arith.constant 0 : index
    %138 = vector.load %arg6[%c0_81, %c0_82, %c0_83] : memref<2x6x32xf32, #tpu.memory_space<vmem>>, vector<1x1x32xf32>
    %139 = vector.shape_cast %138 : vector<1x1x32xf32> to vector<32xf32>
    %140 = vector.shape_cast %139 : vector<32xf32> to vector<1x32xf32>
    %c0_84 = arith.constant 0 : index
    %c1_85 = arith.constant 1 : index
    %c0_86 = arith.constant 0 : index
    %141 = vector.load %arg6[%c0_84, %c1_85, %c0_86] : memref<2x6x32xf32, #tpu.memory_space<vmem>>, vector<1x1x32xf32>
    %142 = vector.shape_cast %141 : vector<1x1x32xf32> to vector<32xf32>
    %143 = vector.shape_cast %142 : vector<32xf32> to vector<1x32xf32>
    %c0_87 = arith.constant 0 : index
    %c2_88 = arith.constant 2 : index
    %c0_89 = arith.constant 0 : index
    %144 = vector.load %arg6[%c0_87, %c2_88, %c0_89] : memref<2x6x32xf32, #tpu.memory_space<vmem>>, vector<1x1x32xf32>
    %145 = vector.shape_cast %144 : vector<1x1x32xf32> to vector<32xf32>
    %146 = vector.shape_cast %145 : vector<32xf32> to vector<1x32xf32>
    %c0_90 = arith.constant 0 : index
    %c3_91 = arith.constant 3 : index
    %c0_92 = arith.constant 0 : index
    %147 = vector.load %arg6[%c0_90, %c3_91, %c0_92] : memref<2x6x32xf32, #tpu.memory_space<vmem>>, vector<1x1x32xf32>
    %148 = vector.shape_cast %147 : vector<1x1x32xf32> to vector<32xf32>
    %149 = vector.shape_cast %148 : vector<32xf32> to vector<1x32xf32>
    %c0_93 = arith.constant 0 : index
    %c4_94 = arith.constant 4 : index
    %c0_95 = arith.constant 0 : index
    %150 = vector.load %arg6[%c0_93, %c4_94, %c0_95] : memref<2x6x32xf32, #tpu.memory_space<vmem>>, vector<1x1x32xf32>
    %151 = vector.shape_cast %150 : vector<1x1x32xf32> to vector<32xf32>
    %152 = vector.shape_cast %151 : vector<32xf32> to vector<1x32xf32>
    %c0_96 = arith.constant 0 : index
    %c5_97 = arith.constant 5 : index
    %c0_98 = arith.constant 0 : index
    %153 = vector.load %arg6[%c0_96, %c5_97, %c0_98] : memref<2x6x32xf32, #tpu.memory_space<vmem>>, vector<1x1x32xf32>
    %154 = vector.shape_cast %153 : vector<1x1x32xf32> to vector<32xf32>
    %155 = vector.shape_cast %154 : vector<32xf32> to vector<1x32xf32>
    %156 = arith.addf %30, %137 : vector<32x32xf32>
    %157 = vector.broadcast %140 : vector<1x32xf32> to vector<32x32xf32>
    %158 = arith.addf %156, %157 : vector<32x32xf32>
    %cst_99 = arith.constant dense<0.000000e+00> : vector<32xf32>
    %159 = vector.multi_reduction <add>, %158, %cst_99 [1] : vector<32x32xf32> to vector<32xf32>
    %160 = vector.shape_cast %159 : vector<32xf32> to vector<32x1xf32>
    %cst_100 = arith.constant 3.200000e+01 : f32
    %161 = vector.broadcast %cst_100 : f32 to vector<32x1xf32>
    %162 = arith.divf %160, %161 : vector<32x1xf32>
    %163 = vector.broadcast %162 : vector<32x1xf32> to vector<32x32xf32>
    %164 = arith.subf %158, %163 : vector<32x32xf32>
    %165 = arith.mulf %164, %164 : vector<32x32xf32>
    %cst_101 = arith.constant dense<0.000000e+00> : vector<32xf32>
    %166 = vector.multi_reduction <add>, %165, %cst_101 [1] : vector<32x32xf32> to vector<32xf32>
    %167 = vector.shape_cast %166 : vector<32xf32> to vector<32x1xf32>
    %cst_102 = arith.constant 3.200000e+01 : f32
    %168 = vector.broadcast %cst_102 : f32 to vector<32x1xf32>
    %169 = arith.divf %167, %168 : vector<32x1xf32>
    %cst_103 = arith.constant 9.99999996E-13 : f32
    %170 = vector.broadcast %cst_103 : f32 to vector<32x1xf32>
    %171 = arith.addf %169, %170 : vector<32x1xf32>
    %172 = math.rsqrt %171 : vector<32x1xf32>
    %173 = vector.broadcast %172 : vector<32x1xf32> to vector<32x32xf32>
    %174 = arith.mulf %164, %173 : vector<32x32xf32>
    %175 = vector.broadcast %143 : vector<1x32xf32> to vector<32x32xf32>
    %176 = arith.mulf %174, %175 : vector<32x32xf32>
    %177 = vector.broadcast %146 : vector<1x32xf32> to vector<32x32xf32>
    %178 = arith.addf %176, %177 : vector<32x32xf32>
    %179 = arith.truncf %178 : vector<32x32xf32> to vector<32x32xbf16>
    %c0_104 = arith.constant 0 : index
    %c0_105 = arith.constant 0 : index
    %c0_106 = arith.constant 0 : index
    %180 = vector.load %arg7[%c0_104, %c0_105, %c0_106] : memref<2x32x128xbf16, #tpu.memory_space<vmem>>, vector<1x32x128xbf16>
    %181 = vector.shape_cast %180 : vector<1x32x128xbf16> to vector<32x128xbf16>
    %cst_107 = arith.constant dense<0.000000e+00> : vector<32x128xf32>
    %182 = tpu.matmul %179, %181, %cst_107 {dimension_numbers = #tpu.dot_dimension_numbers<[1], [0], [0], [1], [0, 0, 1, 1], [], []>} : vector<32x32xbf16>, vector<32x128xbf16>, vector<32x128xf32> -> vector<32x128xf32>
    %c0_108 = arith.constant 0 : index
    %c0_109 = arith.constant 0 : index
    %183 = vector.load %arg8[%c0_108, %c0_109] : memref<2x128xf32, #tpu.memory_space<vmem>>, vector<1x128xf32>
    %184 = vector.shape_cast %183 : vector<1x128xf32> to vector<128xf32>
    %185 = vector.shape_cast %184 : vector<128xf32> to vector<1x128xf32>
    %186 = vector.broadcast %185 : vector<1x128xf32> to vector<32x128xf32>
    %187 = arith.addf %182, %186 : vector<32x128xf32>
    %cst_110 = arith.constant 5.000000e-01 : f32
    %188 = vector.broadcast %cst_110 : f32 to vector<32x128xf32>
    %189 = arith.mulf %188, %187 : vector<32x128xf32>
    %cst_111 = arith.constant 4.471500e-02 : f32
    %190 = vector.broadcast %cst_111 : f32 to vector<32x128xf32>
    %191 = arith.mulf %190, %187 : vector<32x128xf32>
    %192 = arith.mulf %191, %187 : vector<32x128xf32>
    %193 = arith.mulf %192, %187 : vector<32x128xf32>
    %194 = arith.addf %187, %193 : vector<32x128xf32>
    %cst_112 = arith.constant 0.797884583 : f32
    %195 = vector.broadcast %cst_112 : f32 to vector<32x128xf32>
    %196 = arith.mulf %195, %194 : vector<32x128xf32>
    %197 = math.tanh %196 : vector<32x128xf32>
    %cst_113 = arith.constant 1.000000e+00 : f32
    %198 = vector.broadcast %cst_113 : f32 to vector<32x128xf32>
    %199 = arith.addf %198, %197 : vector<32x128xf32>
    %200 = arith.mulf %189, %199 : vector<32x128xf32>
    %201 = arith.truncf %200 : vector<32x128xf32> to vector<32x128xbf16>
    %c0_114 = arith.constant 0 : index
    %c0_115 = arith.constant 0 : index
    %c0_116 = arith.constant 0 : index
    %202 = vector.load %arg9[%c0_114, %c0_115, %c0_116] : memref<2x128x32xbf16, #tpu.memory_space<vmem>>, vector<1x128x32xbf16>
    %203 = vector.shape_cast %202 : vector<1x128x32xbf16> to vector<128x32xbf16>
    %cst_117 = arith.constant dense<0.000000e+00> : vector<32x32xf32>
    %204 = tpu.matmul %201, %203, %cst_117 {dimension_numbers = #tpu.dot_dimension_numbers<[1], [0], [0], [1], [0, 0, 1, 1], [], []>} : vector<32x128xbf16>, vector<128x32xbf16>, vector<32x32xf32> -> vector<32x32xf32>
    %205 = vector.broadcast %149 : vector<1x32xf32> to vector<32x32xf32>
    %206 = arith.addf %204, %205 : vector<32x32xf32>
    %207 = arith.addf %178, %206 : vector<32x32xf32>
    %cst_118 = arith.constant dense<0.000000e+00> : vector<32xf32>
    %208 = vector.multi_reduction <add>, %207, %cst_118 [1] : vector<32x32xf32> to vector<32xf32>
    %209 = vector.shape_cast %208 : vector<32xf32> to vector<32x1xf32>
    %cst_119 = arith.constant 3.200000e+01 : f32
    %210 = vector.broadcast %cst_119 : f32 to vector<32x1xf32>
    %211 = arith.divf %209, %210 : vector<32x1xf32>
    %212 = vector.broadcast %211 : vector<32x1xf32> to vector<32x32xf32>
    %213 = arith.subf %207, %212 : vector<32x32xf32>
    %214 = arith.mulf %213, %213 : vector<32x32xf32>
    %cst_120 = arith.constant dense<0.000000e+00> : vector<32xf32>
    %215 = vector.multi_reduction <add>, %214, %cst_120 [1] : vector<32x32xf32> to vector<32xf32>
    %216 = vector.shape_cast %215 : vector<32xf32> to vector<32x1xf32>
    %cst_121 = arith.constant 3.200000e+01 : f32
    %217 = vector.broadcast %cst_121 : f32 to vector<32x1xf32>
    %218 = arith.divf %216, %217 : vector<32x1xf32>
    %cst_122 = arith.constant 9.99999996E-13 : f32
    %219 = vector.broadcast %cst_122 : f32 to vector<32x1xf32>
    %220 = arith.addf %218, %219 : vector<32x1xf32>
    %221 = math.rsqrt %220 : vector<32x1xf32>
    %222 = vector.broadcast %221 : vector<32x1xf32> to vector<32x32xf32>
    %223 = arith.mulf %213, %222 : vector<32x32xf32>
    %224 = vector.broadcast %152 : vector<1x32xf32> to vector<32x32xf32>
    %225 = arith.mulf %223, %224 : vector<32x32xf32>
    %226 = vector.broadcast %155 : vector<1x32xf32> to vector<32x32xf32>
    %227 = arith.addf %225, %226 : vector<32x32xf32>
    %228 = arith.truncf %227 : vector<32x32xf32> to vector<32x32xbf16>
    %c1_123 = arith.constant 1 : index
    %c0_124 = arith.constant 0 : index
    %c0_125 = arith.constant 0 : index
    %c0_126 = arith.constant 0 : index
    %c0_127 = arith.constant 0 : index
    %229 = vector.load %arg3[%c1_123, %c0_124, %c0_125, %c0_126, %c0_127] : memref<2x3x2x32x16xbf16, #tpu.memory_space<vmem>>, vector<1x1x1x32x16xbf16>
    %230 = vector.shape_cast %229 : vector<1x1x1x32x16xbf16> to vector<32x16xbf16>
    %cst_128 = arith.constant dense<0.000000e+00> : vector<32x16xf32>
    %231 = tpu.matmul %228, %230, %cst_128 {dimension_numbers = #tpu.dot_dimension_numbers<[1], [0], [0], [1], [0, 0, 1, 1], [], []>} : vector<32x32xbf16>, vector<32x16xbf16>, vector<32x16xf32> -> vector<32x16xf32>
    %c1_129 = arith.constant 1 : index
    %c0_130 = arith.constant 0 : index
    %c0_131 = arith.constant 0 : index
    %232 = vector.load %arg4[%c1_129, %c0_130, %c0_131] : memref<2x6x16xf32, #tpu.memory_space<vmem>>, vector<1x1x16xf32>
    %233 = vector.shape_cast %232 : vector<1x1x16xf32> to vector<16xf32>
    %234 = vector.shape_cast %233 : vector<16xf32> to vector<1x16xf32>
    %235 = vector.broadcast %234 : vector<1x16xf32> to vector<32x16xf32>
    %236 = arith.addf %231, %235 : vector<32x16xf32>
    %c1_132 = arith.constant 1 : index
    %c1_133 = arith.constant 1 : index
    %c0_134 = arith.constant 0 : index
    %c0_135 = arith.constant 0 : index
    %c0_136 = arith.constant 0 : index
    %237 = vector.load %arg3[%c1_132, %c1_133, %c0_134, %c0_135, %c0_136] : memref<2x3x2x32x16xbf16, #tpu.memory_space<vmem>>, vector<1x1x1x32x16xbf16>
    %238 = vector.shape_cast %237 : vector<1x1x1x32x16xbf16> to vector<32x16xbf16>
    %cst_137 = arith.constant dense<0.000000e+00> : vector<32x16xf32>
    %239 = tpu.matmul %228, %238, %cst_137 {dimension_numbers = #tpu.dot_dimension_numbers<[1], [0], [0], [1], [0, 0, 1, 1], [], []>} : vector<32x32xbf16>, vector<32x16xbf16>, vector<32x16xf32> -> vector<32x16xf32>
    %c1_138 = arith.constant 1 : index
    %c2_139 = arith.constant 2 : index
    %c0_140 = arith.constant 0 : index
    %240 = vector.load %arg4[%c1_138, %c2_139, %c0_140] : memref<2x6x16xf32, #tpu.memory_space<vmem>>, vector<1x1x16xf32>
    %241 = vector.shape_cast %240 : vector<1x1x16xf32> to vector<16xf32>
    %242 = vector.shape_cast %241 : vector<16xf32> to vector<1x16xf32>
    %243 = vector.broadcast %242 : vector<1x16xf32> to vector<32x16xf32>
    %244 = arith.addf %239, %243 : vector<32x16xf32>
    %c1_141 = arith.constant 1 : index
    %c2_142 = arith.constant 2 : index
    %c0_143 = arith.constant 0 : index
    %c0_144 = arith.constant 0 : index
    %c0_145 = arith.constant 0 : index
    %245 = vector.load %arg3[%c1_141, %c2_142, %c0_143, %c0_144, %c0_145] : memref<2x3x2x32x16xbf16, #tpu.memory_space<vmem>>, vector<1x1x1x32x16xbf16>
    %246 = vector.shape_cast %245 : vector<1x1x1x32x16xbf16> to vector<32x16xbf16>
    %cst_146 = arith.constant dense<0.000000e+00> : vector<32x16xf32>
    %247 = tpu.matmul %228, %246, %cst_146 {dimension_numbers = #tpu.dot_dimension_numbers<[1], [0], [0], [1], [0, 0, 1, 1], [], []>} : vector<32x32xbf16>, vector<32x16xbf16>, vector<32x16xf32> -> vector<32x16xf32>
    %c1_147 = arith.constant 1 : index
    %c4_148 = arith.constant 4 : index
    %c0_149 = arith.constant 0 : index
    %248 = vector.load %arg4[%c1_147, %c4_148, %c0_149] : memref<2x6x16xf32, #tpu.memory_space<vmem>>, vector<1x1x16xf32>
    %249 = vector.shape_cast %248 : vector<1x1x16xf32> to vector<16xf32>
    %250 = vector.shape_cast %249 : vector<16xf32> to vector<1x16xf32>
    %251 = vector.broadcast %250 : vector<1x16xf32> to vector<32x16xf32>
    %252 = arith.addf %247, %251 : vector<32x16xf32>
    %253 = vector.shape_cast %236 : vector<32x16xf32> to vector<2x16x16xf32>
    %254 = arith.truncf %253 : vector<2x16x16xf32> to vector<2x16x16xbf16>
    %255 = vector.shape_cast %244 : vector<32x16xf32> to vector<2x16x16xf32>
    %256 = arith.truncf %255 : vector<2x16x16xf32> to vector<2x16x16xbf16>
    %257 = vector.shape_cast %252 : vector<32x16xf32> to vector<2x16x16xf32>
    %258 = arith.truncf %257 : vector<2x16x16xf32> to vector<2x16x16xbf16>
    "tpu.trace_start"() <{level = 10 : i32, message = "bqd,bkd->bqk"}> : () -> ()
    %cst_150 = arith.constant dense<0.000000e+00> : vector<2x16x16xf32>
    %259 = tpu.matmul %254, %256, %cst_150 {dimension_numbers = #tpu.dot_dimension_numbers<[2], [2], [1], [1], [0, 0, 0, 1, 1, 1], [0], [0]>} : vector<2x16x16xbf16>, vector<2x16x16xbf16>, vector<2x16x16xf32> -> vector<2x16x16xf32>
    "tpu.trace_stop"() : () -> ()
    %cst_151 = arith.constant 2.500000e-01 : f32
    %260 = vector.broadcast %cst_151 : f32 to vector<2x16x16xf32>
    %261 = arith.mulf %259, %260 : vector<2x16x16xf32>
    %262 = vector.broadcast %31 : vector<2x1x16xf32> to vector<2x16x16xf32>
    %263 = arith.addf %261, %262 : vector<2x16x16xf32>
    %cst_152 = arith.constant dense<0xFF800000> : vector<2x16xf32>
    %264 = vector.multi_reduction <maximumf>, %263, %cst_152 [2] : vector<2x16x16xf32> to vector<2x16xf32>
    %265 = vector.shape_cast %264 : vector<2x16xf32> to vector<2x16x1xf32>
    %266 = vector.broadcast %265 : vector<2x16x1xf32> to vector<2x16x16xf32>
    %267 = arith.subf %263, %266 : vector<2x16x16xf32>
    %268 = math.exp %267 : vector<2x16x16xf32>
    %cst_153 = arith.constant dense<0.000000e+00> : vector<2x16xf32>
    %269 = vector.multi_reduction <add>, %268, %cst_153 [2] : vector<2x16x16xf32> to vector<2x16xf32>
    %270 = vector.shape_cast %269 : vector<2x16xf32> to vector<2x16x1xf32>
    %271 = tpu.reciprocal %270 {approx = true} : vector<2x16x1xf32> -> vector<2x16x1xf32>
    %272 = vector.broadcast %271 : vector<2x16x1xf32> to vector<2x16x16xf32>
    %273 = arith.mulf %268, %272 : vector<2x16x16xf32>
    %274 = arith.truncf %273 : vector<2x16x16xf32> to vector<2x16x16xbf16>
    "tpu.trace_start"() <{level = 10 : i32, message = "bqk,bkd->bqd"}> : () -> ()
    %cst_154 = arith.constant dense<0.000000e+00> : vector<2x16x16xf32>
    %275 = tpu.matmul %274, %258, %cst_154 {dimension_numbers = #tpu.dot_dimension_numbers<[2], [1], [1], [2], [0, 0, 0, 1, 1, 2], [0], [0]>} : vector<2x16x16xbf16>, vector<2x16x16xbf16>, vector<2x16x16xf32> -> vector<2x16x16xf32>
    "tpu.trace_stop"() : () -> ()
    %276 = vector.shape_cast %275 : vector<2x16x16xf32> to vector<32x16xf32>
    %277 = arith.truncf %276 : vector<32x16xf32> to vector<32x16xbf16>
    %c1_155 = arith.constant 1 : index
    %c0_156 = arith.constant 0 : index
    %c0_157 = arith.constant 0 : index
    %c0_158 = arith.constant 0 : index
    %278 = vector.load %arg5[%c1_155, %c0_156, %c0_157, %c0_158] : memref<2x2x16x32xbf16, #tpu.memory_space<vmem>>, vector<1x1x16x32xbf16>
    %279 = vector.shape_cast %278 : vector<1x1x16x32xbf16> to vector<16x32xbf16>
    %cst_159 = arith.constant dense<0.000000e+00> : vector<32x32xf32>
    %280 = tpu.matmul %277, %279, %cst_159 {dimension_numbers = #tpu.dot_dimension_numbers<[1], [0], [0], [1], [0, 0, 1, 1], [], []>} : vector<32x16xbf16>, vector<16x32xbf16>, vector<32x32xf32> -> vector<32x32xf32>
    %c1_160 = arith.constant 1 : index
    %c0_161 = arith.constant 0 : index
    %c1_162 = arith.constant 1 : index
    %c0_163 = arith.constant 0 : index
    %c0_164 = arith.constant 0 : index
    %281 = vector.load %arg3[%c1_160, %c0_161, %c1_162, %c0_163, %c0_164] : memref<2x3x2x32x16xbf16, #tpu.memory_space<vmem>>, vector<1x1x1x32x16xbf16>
    %282 = vector.shape_cast %281 : vector<1x1x1x32x16xbf16> to vector<32x16xbf16>
    %cst_165 = arith.constant dense<0.000000e+00> : vector<32x16xf32>
    %283 = tpu.matmul %228, %282, %cst_165 {dimension_numbers = #tpu.dot_dimension_numbers<[1], [0], [0], [1], [0, 0, 1, 1], [], []>} : vector<32x32xbf16>, vector<32x16xbf16>, vector<32x16xf32> -> vector<32x16xf32>
    %c1_166 = arith.constant 1 : index
    %c1_167 = arith.constant 1 : index
    %c0_168 = arith.constant 0 : index
    %284 = vector.load %arg4[%c1_166, %c1_167, %c0_168] : memref<2x6x16xf32, #tpu.memory_space<vmem>>, vector<1x1x16xf32>
    %285 = vector.shape_cast %284 : vector<1x1x16xf32> to vector<16xf32>
    %286 = vector.shape_cast %285 : vector<16xf32> to vector<1x16xf32>
    %287 = vector.broadcast %286 : vector<1x16xf32> to vector<32x16xf32>
    %288 = arith.addf %283, %287 : vector<32x16xf32>
    %c1_169 = arith.constant 1 : index
    %c1_170 = arith.constant 1 : index
    %c1_171 = arith.constant 1 : index
    %c0_172 = arith.constant 0 : index
    %c0_173 = arith.constant 0 : index
    %289 = vector.load %arg3[%c1_169, %c1_170, %c1_171, %c0_172, %c0_173] : memref<2x3x2x32x16xbf16, #tpu.memory_space<vmem>>, vector<1x1x1x32x16xbf16>
    %290 = vector.shape_cast %289 : vector<1x1x1x32x16xbf16> to vector<32x16xbf16>
    %cst_174 = arith.constant dense<0.000000e+00> : vector<32x16xf32>
    %291 = tpu.matmul %228, %290, %cst_174 {dimension_numbers = #tpu.dot_dimension_numbers<[1], [0], [0], [1], [0, 0, 1, 1], [], []>} : vector<32x32xbf16>, vector<32x16xbf16>, vector<32x16xf32> -> vector<32x16xf32>
    %c1_175 = arith.constant 1 : index
    %c3_176 = arith.constant 3 : index
    %c0_177 = arith.constant 0 : index
    %292 = vector.load %arg4[%c1_175, %c3_176, %c0_177] : memref<2x6x16xf32, #tpu.memory_space<vmem>>, vector<1x1x16xf32>
    %293 = vector.shape_cast %292 : vector<1x1x16xf32> to vector<16xf32>
    %294 = vector.shape_cast %293 : vector<16xf32> to vector<1x16xf32>
    %295 = vector.broadcast %294 : vector<1x16xf32> to vector<32x16xf32>
    %296 = arith.addf %291, %295 : vector<32x16xf32>
    %c1_178 = arith.constant 1 : index
    %c2_179 = arith.constant 2 : index
    %c1_180 = arith.constant 1 : index
    %c0_181 = arith.constant 0 : index
    %c0_182 = arith.constant 0 : index
    %297 = vector.load %arg3[%c1_178, %c2_179, %c1_180, %c0_181, %c0_182] : memref<2x3x2x32x16xbf16, #tpu.memory_space<vmem>>, vector<1x1x1x32x16xbf16>
    %298 = vector.shape_cast %297 : vector<1x1x1x32x16xbf16> to vector<32x16xbf16>
    %cst_183 = arith.constant dense<0.000000e+00> : vector<32x16xf32>
    %299 = tpu.matmul %228, %298, %cst_183 {dimension_numbers = #tpu.dot_dimension_numbers<[1], [0], [0], [1], [0, 0, 1, 1], [], []>} : vector<32x32xbf16>, vector<32x16xbf16>, vector<32x16xf32> -> vector<32x16xf32>
    %c1_184 = arith.constant 1 : index
    %c5_185 = arith.constant 5 : index
    %c0_186 = arith.constant 0 : index
    %300 = vector.load %arg4[%c1_184, %c5_185, %c0_186] : memref<2x6x16xf32, #tpu.memory_space<vmem>>, vector<1x1x16xf32>
    %301 = vector.shape_cast %300 : vector<1x1x16xf32> to vector<16xf32>
    %302 = vector.shape_cast %301 : vector<16xf32> to vector<1x16xf32>
    %303 = vector.broadcast %302 : vector<1x16xf32> to vector<32x16xf32>
    %304 = arith.addf %299, %303 : vector<32x16xf32>
    %305 = vector.shape_cast %288 : vector<32x16xf32> to vector<2x16x16xf32>
    %306 = arith.truncf %305 : vector<2x16x16xf32> to vector<2x16x16xbf16>
    %307 = vector.shape_cast %296 : vector<32x16xf32> to vector<2x16x16xf32>
    %308 = arith.truncf %307 : vector<2x16x16xf32> to vector<2x16x16xbf16>
    %309 = vector.shape_cast %304 : vector<32x16xf32> to vector<2x16x16xf32>
    %310 = arith.truncf %309 : vector<2x16x16xf32> to vector<2x16x16xbf16>
    "tpu.trace_start"() <{level = 10 : i32, message = "bqd,bkd->bqk"}> : () -> ()
    %cst_187 = arith.constant dense<0.000000e+00> : vector<2x16x16xf32>
    %311 = tpu.matmul %306, %308, %cst_187 {dimension_numbers = #tpu.dot_dimension_numbers<[2], [2], [1], [1], [0, 0, 0, 1, 1, 1], [0], [0]>} : vector<2x16x16xbf16>, vector<2x16x16xbf16>, vector<2x16x16xf32> -> vector<2x16x16xf32>
    "tpu.trace_stop"() : () -> ()
    %cst_188 = arith.constant 2.500000e-01 : f32
    %312 = vector.broadcast %cst_188 : f32 to vector<2x16x16xf32>
    %313 = arith.mulf %311, %312 : vector<2x16x16xf32>
    %314 = vector.broadcast %31 : vector<2x1x16xf32> to vector<2x16x16xf32>
    %315 = arith.addf %313, %314 : vector<2x16x16xf32>
    %cst_189 = arith.constant dense<0xFF800000> : vector<2x16xf32>
    %316 = vector.multi_reduction <maximumf>, %315, %cst_189 [2] : vector<2x16x16xf32> to vector<2x16xf32>
    %317 = vector.shape_cast %316 : vector<2x16xf32> to vector<2x16x1xf32>
    %318 = vector.broadcast %317 : vector<2x16x1xf32> to vector<2x16x16xf32>
    %319 = arith.subf %315, %318 : vector<2x16x16xf32>
    %320 = math.exp %319 : vector<2x16x16xf32>
    %cst_190 = arith.constant dense<0.000000e+00> : vector<2x16xf32>
    %321 = vector.multi_reduction <add>, %320, %cst_190 [2] : vector<2x16x16xf32> to vector<2x16xf32>
    %322 = vector.shape_cast %321 : vector<2x16xf32> to vector<2x16x1xf32>
    %323 = tpu.reciprocal %322 {approx = true} : vector<2x16x1xf32> -> vector<2x16x1xf32>
    %324 = vector.broadcast %323 : vector<2x16x1xf32> to vector<2x16x16xf32>
    %325 = arith.mulf %320, %324 : vector<2x16x16xf32>
    %326 = arith.truncf %325 : vector<2x16x16xf32> to vector<2x16x16xbf16>
    "tpu.trace_start"() <{level = 10 : i32, message = "bqk,bkd->bqd"}> : () -> ()
    %cst_191 = arith.constant dense<0.000000e+00> : vector<2x16x16xf32>
    %327 = tpu.matmul %326, %310, %cst_191 {dimension_numbers = #tpu.dot_dimension_numbers<[2], [1], [1], [2], [0, 0, 0, 1, 1, 2], [0], [0]>} : vector<2x16x16xbf16>, vector<2x16x16xbf16>, vector<2x16x16xf32> -> vector<2x16x16xf32>
    "tpu.trace_stop"() : () -> ()
    %328 = vector.shape_cast %327 : vector<2x16x16xf32> to vector<32x16xf32>
    %329 = arith.truncf %328 : vector<32x16xf32> to vector<32x16xbf16>
    %c1_192 = arith.constant 1 : index
    %c1_193 = arith.constant 1 : index
    %c0_194 = arith.constant 0 : index
    %c0_195 = arith.constant 0 : index
    %330 = vector.load %arg5[%c1_192, %c1_193, %c0_194, %c0_195] : memref<2x2x16x32xbf16, #tpu.memory_space<vmem>>, vector<1x1x16x32xbf16>
    %331 = vector.shape_cast %330 : vector<1x1x16x32xbf16> to vector<16x32xbf16>
    %cst_196 = arith.constant dense<0.000000e+00> : vector<32x32xf32>
    %332 = tpu.matmul %329, %331, %cst_196 {dimension_numbers = #tpu.dot_dimension_numbers<[1], [0], [0], [1], [0, 0, 1, 1], [], []>} : vector<32x16xbf16>, vector<16x32xbf16>, vector<32x32xf32> -> vector<32x32xf32>
    %333 = arith.addf %280, %332 : vector<32x32xf32>
    %c1_197 = arith.constant 1 : index
    %c0_198 = arith.constant 0 : index
    %c0_199 = arith.constant 0 : index
    %334 = vector.load %arg6[%c1_197, %c0_198, %c0_199] : memref<2x6x32xf32, #tpu.memory_space<vmem>>, vector<1x1x32xf32>
    %335 = vector.shape_cast %334 : vector<1x1x32xf32> to vector<32xf32>
    %336 = vector.shape_cast %335 : vector<32xf32> to vector<1x32xf32>
    %c1_200 = arith.constant 1 : index
    %c1_201 = arith.constant 1 : index
    %c0_202 = arith.constant 0 : index
    %337 = vector.load %arg6[%c1_200, %c1_201, %c0_202] : memref<2x6x32xf32, #tpu.memory_space<vmem>>, vector<1x1x32xf32>
    %338 = vector.shape_cast %337 : vector<1x1x32xf32> to vector<32xf32>
    %339 = vector.shape_cast %338 : vector<32xf32> to vector<1x32xf32>
    %c1_203 = arith.constant 1 : index
    %c2_204 = arith.constant 2 : index
    %c0_205 = arith.constant 0 : index
    %340 = vector.load %arg6[%c1_203, %c2_204, %c0_205] : memref<2x6x32xf32, #tpu.memory_space<vmem>>, vector<1x1x32xf32>
    %341 = vector.shape_cast %340 : vector<1x1x32xf32> to vector<32xf32>
    %342 = vector.shape_cast %341 : vector<32xf32> to vector<1x32xf32>
    %c1_206 = arith.constant 1 : index
    %c3_207 = arith.constant 3 : index
    %c0_208 = arith.constant 0 : index
    %343 = vector.load %arg6[%c1_206, %c3_207, %c0_208] : memref<2x6x32xf32, #tpu.memory_space<vmem>>, vector<1x1x32xf32>
    %344 = vector.shape_cast %343 : vector<1x1x32xf32> to vector<32xf32>
    %345 = vector.shape_cast %344 : vector<32xf32> to vector<1x32xf32>
    %c1_209 = arith.constant 1 : index
    %c4_210 = arith.constant 4 : index
    %c0_211 = arith.constant 0 : index
    %346 = vector.load %arg6[%c1_209, %c4_210, %c0_211] : memref<2x6x32xf32, #tpu.memory_space<vmem>>, vector<1x1x32xf32>
    %347 = vector.shape_cast %346 : vector<1x1x32xf32> to vector<32xf32>
    %348 = vector.shape_cast %347 : vector<32xf32> to vector<1x32xf32>
    %c1_212 = arith.constant 1 : index
    %c5_213 = arith.constant 5 : index
    %c0_214 = arith.constant 0 : index
    %349 = vector.load %arg6[%c1_212, %c5_213, %c0_214] : memref<2x6x32xf32, #tpu.memory_space<vmem>>, vector<1x1x32xf32>
    %350 = vector.shape_cast %349 : vector<1x1x32xf32> to vector<32xf32>
    %351 = vector.shape_cast %350 : vector<32xf32> to vector<1x32xf32>
    %352 = arith.addf %227, %333 : vector<32x32xf32>
    %353 = vector.broadcast %336 : vector<1x32xf32> to vector<32x32xf32>
    %354 = arith.addf %352, %353 : vector<32x32xf32>
    %cst_215 = arith.constant dense<0.000000e+00> : vector<32xf32>
    %355 = vector.multi_reduction <add>, %354, %cst_215 [1] : vector<32x32xf32> to vector<32xf32>
    %356 = vector.shape_cast %355 : vector<32xf32> to vector<32x1xf32>
    %cst_216 = arith.constant 3.200000e+01 : f32
    %357 = vector.broadcast %cst_216 : f32 to vector<32x1xf32>
    %358 = arith.divf %356, %357 : vector<32x1xf32>
    %359 = vector.broadcast %358 : vector<32x1xf32> to vector<32x32xf32>
    %360 = arith.subf %354, %359 : vector<32x32xf32>
    %361 = arith.mulf %360, %360 : vector<32x32xf32>
    %cst_217 = arith.constant dense<0.000000e+00> : vector<32xf32>
    %362 = vector.multi_reduction <add>, %361, %cst_217 [1] : vector<32x32xf32> to vector<32xf32>
    %363 = vector.shape_cast %362 : vector<32xf32> to vector<32x1xf32>
    %cst_218 = arith.constant 3.200000e+01 : f32
    %364 = vector.broadcast %cst_218 : f32 to vector<32x1xf32>
    %365 = arith.divf %363, %364 : vector<32x1xf32>
    %cst_219 = arith.constant 9.99999996E-13 : f32
    %366 = vector.broadcast %cst_219 : f32 to vector<32x1xf32>
    %367 = arith.addf %365, %366 : vector<32x1xf32>
    %368 = math.rsqrt %367 : vector<32x1xf32>
    %369 = vector.broadcast %368 : vector<32x1xf32> to vector<32x32xf32>
    %370 = arith.mulf %360, %369 : vector<32x32xf32>
    %371 = vector.broadcast %339 : vector<1x32xf32> to vector<32x32xf32>
    %372 = arith.mulf %370, %371 : vector<32x32xf32>
    %373 = vector.broadcast %342 : vector<1x32xf32> to vector<32x32xf32>
    %374 = arith.addf %372, %373 : vector<32x32xf32>
    %375 = arith.truncf %374 : vector<32x32xf32> to vector<32x32xbf16>
    %c1_220 = arith.constant 1 : index
    %c0_221 = arith.constant 0 : index
    %c0_222 = arith.constant 0 : index
    %376 = vector.load %arg7[%c1_220, %c0_221, %c0_222] : memref<2x32x128xbf16, #tpu.memory_space<vmem>>, vector<1x32x128xbf16>
    %377 = vector.shape_cast %376 : vector<1x32x128xbf16> to vector<32x128xbf16>
    %cst_223 = arith.constant dense<0.000000e+00> : vector<32x128xf32>
    %378 = tpu.matmul %375, %377, %cst_223 {dimension_numbers = #tpu.dot_dimension_numbers<[1], [0], [0], [1], [0, 0, 1, 1], [], []>} : vector<32x32xbf16>, vector<32x128xbf16>, vector<32x128xf32> -> vector<32x128xf32>
    %c1_224 = arith.constant 1 : index
    %c0_225 = arith.constant 0 : index
    %379 = vector.load %arg8[%c1_224, %c0_225] : memref<2x128xf32, #tpu.memory_space<vmem>>, vector<1x128xf32>
    %380 = vector.shape_cast %379 : vector<1x128xf32> to vector<128xf32>
    %381 = vector.shape_cast %380 : vector<128xf32> to vector<1x128xf32>
    %382 = vector.broadcast %381 : vector<1x128xf32> to vector<32x128xf32>
    %383 = arith.addf %378, %382 : vector<32x128xf32>
    %cst_226 = arith.constant 5.000000e-01 : f32
    %384 = vector.broadcast %cst_226 : f32 to vector<32x128xf32>
    %385 = arith.mulf %384, %383 : vector<32x128xf32>
    %cst_227 = arith.constant 4.471500e-02 : f32
    %386 = vector.broadcast %cst_227 : f32 to vector<32x128xf32>
    %387 = arith.mulf %386, %383 : vector<32x128xf32>
    %388 = arith.mulf %387, %383 : vector<32x128xf32>
    %389 = arith.mulf %388, %383 : vector<32x128xf32>
    %390 = arith.addf %383, %389 : vector<32x128xf32>
    %cst_228 = arith.constant 0.797884583 : f32
    %391 = vector.broadcast %cst_228 : f32 to vector<32x128xf32>
    %392 = arith.mulf %391, %390 : vector<32x128xf32>
    %393 = math.tanh %392 : vector<32x128xf32>
    %cst_229 = arith.constant 1.000000e+00 : f32
    %394 = vector.broadcast %cst_229 : f32 to vector<32x128xf32>
    %395 = arith.addf %394, %393 : vector<32x128xf32>
    %396 = arith.mulf %385, %395 : vector<32x128xf32>
    %397 = arith.truncf %396 : vector<32x128xf32> to vector<32x128xbf16>
    %c1_230 = arith.constant 1 : index
    %c0_231 = arith.constant 0 : index
    %c0_232 = arith.constant 0 : index
    %398 = vector.load %arg9[%c1_230, %c0_231, %c0_232] : memref<2x128x32xbf16, #tpu.memory_space<vmem>>, vector<1x128x32xbf16>
    %399 = vector.shape_cast %398 : vector<1x128x32xbf16> to vector<128x32xbf16>
    %cst_233 = arith.constant dense<0.000000e+00> : vector<32x32xf32>
    %400 = tpu.matmul %397, %399, %cst_233 {dimension_numbers = #tpu.dot_dimension_numbers<[1], [0], [0], [1], [0, 0, 1, 1], [], []>} : vector<32x128xbf16>, vector<128x32xbf16>, vector<32x32xf32> -> vector<32x32xf32>
    %401 = vector.broadcast %345 : vector<1x32xf32> to vector<32x32xf32>
    %402 = arith.addf %400, %401 : vector<32x32xf32>
    %403 = arith.addf %374, %402 : vector<32x32xf32>
    %cst_234 = arith.constant dense<0.000000e+00> : vector<32xf32>
    %404 = vector.multi_reduction <add>, %403, %cst_234 [1] : vector<32x32xf32> to vector<32xf32>
    %405 = vector.shape_cast %404 : vector<32xf32> to vector<32x1xf32>
    %cst_235 = arith.constant 3.200000e+01 : f32
    %406 = vector.broadcast %cst_235 : f32 to vector<32x1xf32>
    %407 = arith.divf %405, %406 : vector<32x1xf32>
    %408 = vector.broadcast %407 : vector<32x1xf32> to vector<32x32xf32>
    %409 = arith.subf %403, %408 : vector<32x32xf32>
    %410 = arith.mulf %409, %409 : vector<32x32xf32>
    %cst_236 = arith.constant dense<0.000000e+00> : vector<32xf32>
    %411 = vector.multi_reduction <add>, %410, %cst_236 [1] : vector<32x32xf32> to vector<32xf32>
    %412 = vector.shape_cast %411 : vector<32xf32> to vector<32x1xf32>
    %cst_237 = arith.constant 3.200000e+01 : f32
    %413 = vector.broadcast %cst_237 : f32 to vector<32x1xf32>
    %414 = arith.divf %412, %413 : vector<32x1xf32>
    %cst_238 = arith.constant 9.99999996E-13 : f32
    %415 = vector.broadcast %cst_238 : f32 to vector<32x1xf32>
    %416 = arith.addf %414, %415 : vector<32x1xf32>
    %417 = math.rsqrt %416 : vector<32x1xf32>
    %418 = vector.broadcast %417 : vector<32x1xf32> to vector<32x32xf32>
    %419 = arith.mulf %409, %418 : vector<32x32xf32>
    %420 = vector.broadcast %348 : vector<1x32xf32> to vector<32x32xf32>
    %421 = arith.mulf %419, %420 : vector<32x32xf32>
    %422 = vector.broadcast %351 : vector<1x32xf32> to vector<32x32xf32>
    %423 = arith.addf %421, %422 : vector<32x32xf32>
    %c0_239 = arith.constant 0 : index
    %c0_240 = arith.constant 0 : index
    %424 = vector.load %arg22[%c0_239, %c0_240] : memref<32x32xf32, #tpu.memory_space<vmem>>, vector<32x32xf32>
    tpu.vector_store %arg22[%c0_239, %c0_240], %423 {strides = array<i32>} : memref<32x32xf32, #tpu.memory_space<vmem>>, vector<32x32xf32>,
    %c0_i32_241 = arith.constant 0 : i32
    %425 = tpu.memref_slice %arg27[%c0_i32_241] : memref<2x!tpu.dma_semaphore, #tpu.memory_space<semaphore_mem>> -> memref<1x!tpu.dma_semaphore, #tpu.memory_space<semaphore_mem>>
    %426 = tpu.memref_squeeze %425 : memref<1x!tpu.dma_semaphore, #tpu.memory_space<semaphore_mem>> -> memref<!tpu.dma_semaphore, #tpu.memory_space<semaphore_mem>>
    tpu.wait_dma2 semaphore(%426 : memref<!tpu.dma_semaphore, #tpu.memory_space<semaphore_mem>>) src(%arg20 : memref<2x32x2048xi8, #tpu.memory_space<any>>) dst(%arg25 : memref<2x32x2048xi8, #tpu.memory_space<vmem>>)
    %c1_i32_242 = arith.constant 1 : i32
    %427 = tpu.memref_slice %arg27[%c1_i32_242] : memref<2x!tpu.dma_semaphore, #tpu.memory_space<semaphore_mem>> -> memref<1x!tpu.dma_semaphore, #tpu.memory_space<semaphore_mem>>
    %428 = tpu.memref_squeeze %427 : memref<1x!tpu.dma_semaphore, #tpu.memory_space<semaphore_mem>> -> memref<!tpu.dma_semaphore, #tpu.memory_space<semaphore_mem>>
    tpu.wait_dma2 semaphore(%428 : memref<!tpu.dma_semaphore, #tpu.memory_space<semaphore_mem>>) src(%arg21 : memref<2x2048x32xi8, #tpu.memory_space<any>>) dst(%arg26 : memref<2x2048x32xi8, #tpu.memory_space<vmem>>)
    %c0_243 = arith.constant 0 : index
    %c0_244 = arith.constant 0 : index
    %c0_245 = arith.constant 0 : index
    %429 = vector.load %arg10[%c0_243, %c0_244, %c0_245] : memref<2x16x32xf32, #tpu.memory_space<vmem>>, vector<1x16x32xf32>
    %430 = vector.shape_cast %429 : vector<1x16x32xf32> to vector<16x32xf32>
    %431 = arith.truncf %430 : vector<16x32xf32> to vector<16x32xbf16>
    %c0_246 = arith.constant 0 : index
    %c0_247 = arith.constant 0 : index
    %c0_248 = arith.constant 0 : index
    %c0_249 = arith.constant 0 : index
    %c0_250 = arith.constant 0 : index
    %432 = vector.load %arg11[%c0_246, %c0_247, %c0_248, %c0_249, %c0_250] : memref<2x3x2x32x16xbf16, #tpu.memory_space<vmem>>, vector<1x1x1x32x16xbf16>
    %433 = vector.shape_cast %432 : vector<1x1x1x32x16xbf16> to vector<32x16xbf16>
    %cst_251 = arith.constant dense<0.000000e+00> : vector<16x16xf32>
    %434 = tpu.matmul %431, %433, %cst_251 {dimension_numbers = #tpu.dot_dimension_numbers<[1], [0], [0], [1], [0, 0, 1, 1], [], []>} : vector<16x32xbf16>, vector<32x16xbf16>, vector<16x16xf32> -> vector<16x16xf32>
    %c0_252 = arith.constant 0 : index
    %c0_253 = arith.constant 0 : index
    %c0_254 = arith.constant 0 : index
    %435 = vector.load %arg12[%c0_252, %c0_253, %c0_254] : memref<2x6x16xf32, #tpu.memory_space<vmem>>, vector<1x1x16xf32>
    %436 = vector.shape_cast %435 : vector<1x1x16xf32> to vector<16xf32>
    %437 = vector.shape_cast %436 : vector<16xf32> to vector<1x16xf32>
    %438 = vector.broadcast %437 : vector<1x16xf32> to vector<16x16xf32>
    %439 = arith.addf %434, %438 : vector<16x16xf32>
    %c0_255 = arith.constant 0 : index
    %c1_256 = arith.constant 1 : index
    %c0_257 = arith.constant 0 : index
    %c0_258 = arith.constant 0 : index
    %c0_259 = arith.constant 0 : index
    %440 = vector.load %arg11[%c0_255, %c1_256, %c0_257, %c0_258, %c0_259] : memref<2x3x2x32x16xbf16, #tpu.memory_space<vmem>>, vector<1x1x1x32x16xbf16>
    %441 = vector.shape_cast %440 : vector<1x1x1x32x16xbf16> to vector<32x16xbf16>
    %cst_260 = arith.constant dense<0.000000e+00> : vector<16x16xf32>
    %442 = tpu.matmul %431, %441, %cst_260 {dimension_numbers = #tpu.dot_dimension_numbers<[1], [0], [0], [1], [0, 0, 1, 1], [], []>} : vector<16x32xbf16>, vector<32x16xbf16>, vector<16x16xf32> -> vector<16x16xf32>
    %c0_261 = arith.constant 0 : index
    %c2_262 = arith.constant 2 : index
    %c0_263 = arith.constant 0 : index
    %443 = vector.load %arg12[%c0_261, %c2_262, %c0_263] : memref<2x6x16xf32, #tpu.memory_space<vmem>>, vector<1x1x16xf32>
    %444 = vector.shape_cast %443 : vector<1x1x16xf32> to vector<16xf32>
    %445 = vector.shape_cast %444 : vector<16xf32> to vector<1x16xf32>
    %446 = vector.broadcast %445 : vector<1x16xf32> to vector<16x16xf32>
    %447 = arith.addf %442, %446 : vector<16x16xf32>
    %c0_264 = arith.constant 0 : index
    %c2_265 = arith.constant 2 : index
    %c0_266 = arith.constant 0 : index
    %c0_267 = arith.constant 0 : index
    %c0_268 = arith.constant 0 : index
    %448 = vector.load %arg11[%c0_264, %c2_265, %c0_266, %c0_267, %c0_268] : memref<2x3x2x32x16xbf16, #tpu.memory_space<vmem>>, vector<1x1x1x32x16xbf16>
    %449 = vector.shape_cast %448 : vector<1x1x1x32x16xbf16> to vector<32x16xbf16>
    %cst_269 = arith.constant dense<0.000000e+00> : vector<16x16xf32>
    %450 = tpu.matmul %431, %449, %cst_269 {dimension_numbers = #tpu.dot_dimension_numbers<[1], [0], [0], [1], [0, 0, 1, 1], [], []>} : vector<16x32xbf16>, vector<32x16xbf16>, vector<16x16xf32> -> vector<16x16xf32>
    %c0_270 = arith.constant 0 : index
    %c4_271 = arith.constant 4 : index
    %c0_272 = arith.constant 0 : index
    %451 = vector.load %arg12[%c0_270, %c4_271, %c0_272] : memref<2x6x16xf32, #tpu.memory_space<vmem>>, vector<1x1x16xf32>
    %452 = vector.shape_cast %451 : vector<1x1x16xf32> to vector<16xf32>
    %453 = vector.shape_cast %452 : vector<16xf32> to vector<1x16xf32>
    %454 = vector.broadcast %453 : vector<1x16xf32> to vector<16x16xf32>
    %455 = arith.addf %450, %454 : vector<16x16xf32>
    %456 = vector.shape_cast %439 : vector<16x16xf32> to vector<2x8x16xf32>
    %457 = arith.truncf %456 : vector<2x8x16xf32> to vector<2x8x16xbf16>
    %458 = vector.shape_cast %447 : vector<16x16xf32> to vector<2x8x16xf32>
    %459 = arith.truncf %458 : vector<2x8x16xf32> to vector<2x8x16xbf16>
    %460 = vector.shape_cast %455 : vector<16x16xf32> to vector<2x8x16xf32>
    %461 = arith.truncf %460 : vector<2x8x16xf32> to vector<2x8x16xbf16>
    "tpu.trace_start"() <{level = 10 : i32, message = "bqd,bkd->bqk"}> : () -> ()
    %cst_273 = arith.constant dense<0.000000e+00> : vector<2x8x8xf32>
    %462 = tpu.matmul %457, %459, %cst_273 {dimension_numbers = #tpu.dot_dimension_numbers<[2], [2], [1], [1], [0, 0, 0, 1, 1, 1], [0], [0]>} : vector<2x8x16xbf16>, vector<2x8x16xbf16>, vector<2x8x8xf32> -> vector<2x8x8xf32>
    "tpu.trace_stop"() : () -> ()
    %cst_274 = arith.constant 2.500000e-01 : f32
    %463 = vector.broadcast %cst_274 : f32 to vector<2x8x8xf32>
    %464 = arith.mulf %462, %463 : vector<2x8x8xf32>
    %cst_275 = arith.constant dense<0xFF800000> : vector<2x8xf32>
    %465 = vector.multi_reduction <maximumf>, %464, %cst_275 [2] : vector<2x8x8xf32> to vector<2x8xf32>
    %466 = vector.shape_cast %465 : vector<2x8xf32> to vector<2x8x1xf32>
    %467 = vector.broadcast %466 : vector<2x8x1xf32> to vector<2x8x8xf32>
    %468 = arith.subf %464, %467 : vector<2x8x8xf32>
    %469 = math.exp %468 : vector<2x8x8xf32>
    %cst_276 = arith.constant dense<0.000000e+00> : vector<2x8xf32>
    %470 = vector.multi_reduction <add>, %469, %cst_276 [2] : vector<2x8x8xf32> to vector<2x8xf32>
    %471 = vector.shape_cast %470 : vector<2x8xf32> to vector<2x8x1xf32>
    %472 = tpu.reciprocal %471 {approx = true} : vector<2x8x1xf32> -> vector<2x8x1xf32>
    %473 = vector.broadcast %472 : vector<2x8x1xf32> to vector<2x8x8xf32>
    %474 = arith.mulf %469, %473 : vector<2x8x8xf32>
    %475 = arith.truncf %474 : vector<2x8x8xf32> to vector<2x8x8xbf16>
    "tpu.trace_start"() <{level = 10 : i32, message = "bqk,bkd->bqd"}> : () -> ()
    %cst_277 = arith.constant dense<0.000000e+00> : vector<2x8x16xf32>
    %476 = tpu.matmul %475, %461, %cst_277 {dimension_numbers = #tpu.dot_dimension_numbers<[2], [1], [1], [2], [0, 0, 0, 1, 1, 2], [0], [0]>} : vector<2x8x8xbf16>, vector<2x8x16xbf16>, vector<2x8x16xf32> -> vector<2x8x16xf32>
    "tpu.trace_stop"() : () -> ()
    %477 = vector.shape_cast %476 : vector<2x8x16xf32> to vector<16x16xf32>
    %478 = arith.truncf %477 : vector<16x16xf32> to vector<16x16xbf16>
    %c0_278 = arith.constant 0 : index
    %c0_279 = arith.constant 0 : index
    %c0_280 = arith.constant 0 : index
    %c0_281 = arith.constant 0 : index
    %479 = vector.load %arg13[%c0_278, %c0_279, %c0_280, %c0_281] : memref<2x2x16x32xbf16, #tpu.memory_space<vmem>>, vector<1x1x16x32xbf16>
    %480 = vector.shape_cast %479 : vector<1x1x16x32xbf16> to vector<16x32xbf16>
    %cst_282 = arith.constant dense<0.000000e+00> : vector<16x32xf32>
    %481 = tpu.matmul %478, %480, %cst_282 {dimension_numbers = #tpu.dot_dimension_numbers<[1], [0], [0], [1], [0, 0, 1, 1], [], []>} : vector<16x16xbf16>, vector<16x32xbf16>, vector<16x32xf32> -> vector<16x32xf32>
    %c0_283 = arith.constant 0 : index
    %c0_284 = arith.constant 0 : index
    %c1_285 = arith.constant 1 : index
    %c0_286 = arith.constant 0 : index
    %c0_287 = arith.constant 0 : index
    %482 = vector.load %arg11[%c0_283, %c0_284, %c1_285, %c0_286, %c0_287] : memref<2x3x2x32x16xbf16, #tpu.memory_space<vmem>>, vector<1x1x1x32x16xbf16>
    %483 = vector.shape_cast %482 : vector<1x1x1x32x16xbf16> to vector<32x16xbf16>
    %cst_288 = arith.constant dense<0.000000e+00> : vector<16x16xf32>
    %484 = tpu.matmul %431, %483, %cst_288 {dimension_numbers = #tpu.dot_dimension_numbers<[1], [0], [0], [1], [0, 0, 1, 1], [], []>} : vector<16x32xbf16>, vector<32x16xbf16>, vector<16x16xf32> -> vector<16x16xf32>
    %c0_289 = arith.constant 0 : index
    %c1_290 = arith.constant 1 : index
    %c0_291 = arith.constant 0 : index
    %485 = vector.load %arg12[%c0_289, %c1_290, %c0_291] : memref<2x6x16xf32, #tpu.memory_space<vmem>>, vector<1x1x16xf32>
    %486 = vector.shape_cast %485 : vector<1x1x16xf32> to vector<16xf32>
    %487 = vector.shape_cast %486 : vector<16xf32> to vector<1x16xf32>
    %488 = vector.broadcast %487 : vector<1x16xf32> to vector<16x16xf32>
    %489 = arith.addf %484, %488 : vector<16x16xf32>
    %c0_292 = arith.constant 0 : index
    %c1_293 = arith.constant 1 : index
    %c1_294 = arith.constant 1 : index
    %c0_295 = arith.constant 0 : index
    %c0_296 = arith.constant 0 : index
    %490 = vector.load %arg11[%c0_292, %c1_293, %c1_294, %c0_295, %c0_296] : memref<2x3x2x32x16xbf16, #tpu.memory_space<vmem>>, vector<1x1x1x32x16xbf16>
    %491 = vector.shape_cast %490 : vector<1x1x1x32x16xbf16> to vector<32x16xbf16>
    %cst_297 = arith.constant dense<0.000000e+00> : vector<16x16xf32>
    %492 = tpu.matmul %431, %491, %cst_297 {dimension_numbers = #tpu.dot_dimension_numbers<[1], [0], [0], [1], [0, 0, 1, 1], [], []>} : vector<16x32xbf16>, vector<32x16xbf16>, vector<16x16xf32> -> vector<16x16xf32>
    %c0_298 = arith.constant 0 : index
    %c3_299 = arith.constant 3 : index
    %c0_300 = arith.constant 0 : index
    %493 = vector.load %arg12[%c0_298, %c3_299, %c0_300] : memref<2x6x16xf32, #tpu.memory_space<vmem>>, vector<1x1x16xf32>
    %494 = vector.shape_cast %493 : vector<1x1x16xf32> to vector<16xf32>
    %495 = vector.shape_cast %494 : vector<16xf32> to vector<1x16xf32>
    %496 = vector.broadcast %495 : vector<1x16xf32> to vector<16x16xf32>
    %497 = arith.addf %492, %496 : vector<16x16xf32>
    %c0_301 = arith.constant 0 : index
    %c2_302 = arith.constant 2 : index
    %c1_303 = arith.constant 1 : index
    %c0_304 = arith.constant 0 : index
    %c0_305 = arith.constant 0 : index
    %498 = vector.load %arg11[%c0_301, %c2_302, %c1_303, %c0_304, %c0_305] : memref<2x3x2x32x16xbf16, #tpu.memory_space<vmem>>, vector<1x1x1x32x16xbf16>
    %499 = vector.shape_cast %498 : vector<1x1x1x32x16xbf16> to vector<32x16xbf16>
    %cst_306 = arith.constant dense<0.000000e+00> : vector<16x16xf32>
    %500 = tpu.matmul %431, %499, %cst_306 {dimension_numbers = #tpu.dot_dimension_numbers<[1], [0], [0], [1], [0, 0, 1, 1], [], []>} : vector<16x32xbf16>, vector<32x16xbf16>, vector<16x16xf32> -> vector<16x16xf32>
    %c0_307 = arith.constant 0 : index
    %c5_308 = arith.constant 5 : index
    %c0_309 = arith.constant 0 : index
    %501 = vector.load %arg12[%c0_307, %c5_308, %c0_309] : memref<2x6x16xf32, #tpu.memory_space<vmem>>, vector<1x1x16xf32>
    %502 = vector.shape_cast %501 : vector<1x1x16xf32> to vector<16xf32>
    %503 = vector.shape_cast %502 : vector<16xf32> to vector<1x16xf32>
    %504 = vector.broadcast %503 : vector<1x16xf32> to vector<16x16xf32>
    %505 = arith.addf %500, %504 : vector<16x16xf32>
    %506 = vector.shape_cast %489 : vector<16x16xf32> to vector<2x8x16xf32>
    %507 = arith.truncf %506 : vector<2x8x16xf32> to vector<2x8x16xbf16>
    %508 = vector.shape_cast %497 : vector<16x16xf32> to vector<2x8x16xf32>
    %509 = arith.truncf %508 : vector<2x8x16xf32> to vector<2x8x16xbf16>
    %510 = vector.shape_cast %505 : vector<16x16xf32> to vector<2x8x16xf32>
    %511 = arith.truncf %510 : vector<2x8x16xf32> to vector<2x8x16xbf16>
    "tpu.trace_start"() <{level = 10 : i32, message = "bqd,bkd->bqk"}> : () -> ()
    %cst_310 = arith.constant dense<0.000000e+00> : vector<2x8x8xf32>
    %512 = tpu.matmul %507, %509, %cst_310 {dimension_numbers = #tpu.dot_dimension_numbers<[2], [2], [1], [1], [0, 0, 0, 1, 1, 1], [0], [0]>} : vector<2x8x16xbf16>, vector<2x8x16xbf16>, vector<2x8x8xf32> -> vector<2x8x8xf32>
    "tpu.trace_stop"() : () -> ()
    %cst_311 = arith.constant 2.500000e-01 : f32
    %513 = vector.broadcast %cst_311 : f32 to vector<2x8x8xf32>
    %514 = arith.mulf %512, %513 : vector<2x8x8xf32>
    %cst_312 = arith.constant dense<0xFF800000> : vector<2x8xf32>
    %515 = vector.multi_reduction <maximumf>, %514, %cst_312 [2] : vector<2x8x8xf32> to vector<2x8xf32>
    %516 = vector.shape_cast %515 : vector<2x8xf32> to vector<2x8x1xf32>
    %517 = vector.broadcast %516 : vector<2x8x1xf32> to vector<2x8x8xf32>
    %518 = arith.subf %514, %517 : vector<2x8x8xf32>
    %519 = math.exp %518 : vector<2x8x8xf32>
    %cst_313 = arith.constant dense<0.000000e+00> : vector<2x8xf32>
    %520 = vector.multi_reduction <add>, %519, %cst_313 [2] : vector<2x8x8xf32> to vector<2x8xf32>
    %521 = vector.shape_cast %520 : vector<2x8xf32> to vector<2x8x1xf32>
    %522 = tpu.reciprocal %521 {approx = true} : vector<2x8x1xf32> -> vector<2x8x1xf32>
    %523 = vector.broadcast %522 : vector<2x8x1xf32> to vector<2x8x8xf32>
    %524 = arith.mulf %519, %523 : vector<2x8x8xf32>
    %525 = arith.truncf %524 : vector<2x8x8xf32> to vector<2x8x8xbf16>
    "tpu.trace_start"() <{level = 10 : i32, message = "bqk,bkd->bqd"}> : () -> ()
    %cst_314 = arith.constant dense<0.000000e+00> : vector<2x8x16xf32>
    %526 = tpu.matmul %525, %511, %cst_314 {dimension_numbers = #tpu.dot_dimension_numbers<[2], [1], [1], [2], [0, 0, 0, 1, 1, 2], [0], [0]>} : vector<2x8x8xbf16>, vector<2x8x16xbf16>, vector<2x8x16xf32> -> vector<2x8x16xf32>
    "tpu.trace_stop"() : () -> ()
    %527 = vector.shape_cast %526 : vector<2x8x16xf32> to vector<16x16xf32>
    %528 = arith.truncf %527 : vector<16x16xf32> to vector<16x16xbf16>
    %c0_315 = arith.constant 0 : index
    %c1_316 = arith.constant 1 : index
    %c0_317 = arith.constant 0 : index
    %c0_318 = arith.constant 0 : index
    %529 = vector.load %arg13[%c0_315, %c1_316, %c0_317, %c0_318] : memref<2x2x16x32xbf16, #tpu.memory_space<vmem>>, vector<1x1x16x32xbf16>
    %530 = vector.shape_cast %529 : vector<1x1x16x32xbf16> to vector<16x32xbf16>
    %cst_319 = arith.constant dense<0.000000e+00> : vector<16x32xf32>
    %531 = tpu.matmul %528, %530, %cst_319 {dimension_numbers = #tpu.dot_dimension_numbers<[1], [0], [0], [1], [0, 0, 1, 1], [], []>} : vector<16x16xbf16>, vector<16x32xbf16>, vector<16x32xf32> -> vector<16x32xf32>
    %532 = arith.addf %481, %531 : vector<16x32xf32>
    %c0_320 = arith.constant 0 : index
    %c0_321 = arith.constant 0 : index
    %c0_322 = arith.constant 0 : index
    %533 = vector.load %arg14[%c0_320, %c0_321, %c0_322] : memref<2x6x32xf32, #tpu.memory_space<vmem>>, vector<1x1x32xf32>
    %534 = vector.shape_cast %533 : vector<1x1x32xf32> to vector<32xf32>
    %535 = vector.shape_cast %534 : vector<32xf32> to vector<1x32xf32>
    %c0_323 = arith.constant 0 : index
    %c1_324 = arith.constant 1 : index
    %c0_325 = arith.constant 0 : index
    %536 = vector.load %arg14[%c0_323, %c1_324, %c0_325] : memref<2x6x32xf32, #tpu.memory_space<vmem>>, vector<1x1x32xf32>
    %537 = vector.shape_cast %536 : vector<1x1x32xf32> to vector<32xf32>
    %538 = vector.shape_cast %537 : vector<32xf32> to vector<1x32xf32>
    %c0_326 = arith.constant 0 : index
    %c2_327 = arith.constant 2 : index
    %c0_328 = arith.constant 0 : index
    %539 = vector.load %arg14[%c0_326, %c2_327, %c0_328] : memref<2x6x32xf32, #tpu.memory_space<vmem>>, vector<1x1x32xf32>
    %540 = vector.shape_cast %539 : vector<1x1x32xf32> to vector<32xf32>
    %541 = vector.shape_cast %540 : vector<32xf32> to vector<1x32xf32>
    %c0_329 = arith.constant 0 : index
    %c3_330 = arith.constant 3 : index
    %c0_331 = arith.constant 0 : index
    %542 = vector.load %arg14[%c0_329, %c3_330, %c0_331] : memref<2x6x32xf32, #tpu.memory_space<vmem>>, vector<1x1x32xf32>
    %543 = vector.shape_cast %542 : vector<1x1x32xf32> to vector<32xf32>
    %544 = vector.shape_cast %543 : vector<32xf32> to vector<1x32xf32>
    %c0_332 = arith.constant 0 : index
    %c4_333 = arith.constant 4 : index
    %c0_334 = arith.constant 0 : index
    %545 = vector.load %arg14[%c0_332, %c4_333, %c0_334] : memref<2x6x32xf32, #tpu.memory_space<vmem>>, vector<1x1x32xf32>
    %546 = vector.shape_cast %545 : vector<1x1x32xf32> to vector<32xf32>
    %547 = vector.shape_cast %546 : vector<32xf32> to vector<1x32xf32>
    %c0_335 = arith.constant 0 : index
    %c5_336 = arith.constant 5 : index
    %c0_337 = arith.constant 0 : index
    %548 = vector.load %arg14[%c0_335, %c5_336, %c0_337] : memref<2x6x32xf32, #tpu.memory_space<vmem>>, vector<1x1x32xf32>
    %549 = vector.shape_cast %548 : vector<1x1x32xf32> to vector<32xf32>
    %550 = vector.shape_cast %549 : vector<32xf32> to vector<1x32xf32>
    %551 = arith.addf %430, %532 : vector<16x32xf32>
    %552 = vector.broadcast %535 : vector<1x32xf32> to vector<16x32xf32>
    %553 = arith.addf %551, %552 : vector<16x32xf32>
    %cst_338 = arith.constant dense<0.000000e+00> : vector<16xf32>
    %554 = vector.multi_reduction <add>, %553, %cst_338 [1] : vector<16x32xf32> to vector<16xf32>
    %555 = vector.shape_cast %554 : vector<16xf32> to vector<16x1xf32>
    %cst_339 = arith.constant 3.200000e+01 : f32
    %556 = vector.broadcast %cst_339 : f32 to vector<16x1xf32>
    %557 = arith.divf %555, %556 : vector<16x1xf32>
    %558 = vector.broadcast %557 : vector<16x1xf32> to vector<16x32xf32>
    %559 = arith.subf %553, %558 : vector<16x32xf32>
    %560 = arith.mulf %559, %559 : vector<16x32xf32>
    %cst_340 = arith.constant dense<0.000000e+00> : vector<16xf32>
    %561 = vector.multi_reduction <add>, %560, %cst_340 [1] : vector<16x32xf32> to vector<16xf32>
    %562 = vector.shape_cast %561 : vector<16xf32> to vector<16x1xf32>
    %cst_341 = arith.constant 3.200000e+01 : f32
    %563 = vector.broadcast %cst_341 : f32 to vector<16x1xf32>
    %564 = arith.divf %562, %563 : vector<16x1xf32>
    %cst_342 = arith.constant 9.99999974E-6 : f32
    %565 = vector.broadcast %cst_342 : f32 to vector<16x1xf32>
    %566 = arith.addf %564, %565 : vector<16x1xf32>
    %567 = math.rsqrt %566 : vector<16x1xf32>
    %568 = vector.broadcast %567 : vector<16x1xf32> to vector<16x32xf32>
    %569 = arith.mulf %559, %568 : vector<16x32xf32>
    %570 = vector.broadcast %538 : vector<1x32xf32> to vector<16x32xf32>
    %571 = arith.mulf %569, %570 : vector<16x32xf32>
    %572 = vector.broadcast %541 : vector<1x32xf32> to vector<16x32xf32>
    %573 = arith.addf %571, %572 : vector<16x32xf32>
    %574 = arith.truncf %573 : vector<16x32xf32> to vector<16x32xbf16>
    %cst_343 = arith.constant 0.000000e+00 : f32
    %575 = vector.broadcast %cst_343 : f32 to vector<16x32xf32>
    %c0_344 = arith.constant 0 : index
    %c0_345 = arith.constant 0 : index
    %c0_346 = arith.constant 0 : index
    %576 = vector.load %arg25[%c0_344, %c0_345, %c0_346] : memref<2x32x2048xi8, #tpu.memory_space<vmem>>, vector<1x32x512xi8>
    %577 = vector.shape_cast %576 : vector<1x32x512xi8> to vector<32x512xi8>
    %578 = arith.sitofp %577 : vector<32x512xi8> to vector<32x512xf32>
    %579 = arith.truncf %578 : vector<32x512xf32> to vector<32x512xbf16>
    %cst_347 = arith.constant dense<0.000000e+00> : vector<16x512xf32>
    %580 = tpu.matmul %574, %579, %cst_347 {dimension_numbers = #tpu.dot_dimension_numbers<[1], [0], [0], [1], [0, 0, 1, 1], [], []>} : vector<16x32xbf16>, vector<32x512xbf16>, vector<16x512xf32> -> vector<16x512xf32>
    %c0_348 = arith.constant 0 : index
    %c0_349 = arith.constant 0 : index
    %581 = vector.load %arg16[%c0_348, %c0_349] : memref<2x2048xf32, #tpu.memory_space<vmem>>, vector<1x512xf32>
    %582 = vector.shape_cast %581 : vector<1x512xf32> to vector<512xf32>
    %583 = vector.shape_cast %582 : vector<512xf32> to vector<1x512xf32>
    %584 = vector.broadcast %583 : vector<1x512xf32> to vector<16x512xf32>
    %585 = arith.mulf %580, %584 : vector<16x512xf32>
    %c0_350 = arith.constant 0 : index
    %c0_351 = arith.constant 0 : index
    %586 = vector.load %arg15[%c0_350, %c0_351] : memref<2x2048xf32, #tpu.memory_space<vmem>>, vector<1x512xf32>
    %587 = vector.shape_cast %586 : vector<1x512xf32> to vector<512xf32>
    %588 = vector.shape_cast %587 : vector<512xf32> to vector<1x512xf32>
    %589 = vector.broadcast %588 : vector<1x512xf32> to vector<16x512xf32>
    %590 = arith.addf %585, %589 : vector<16x512xf32>
    %cst_352 = arith.constant 0.000000e+00 : f32
    %591 = vector.broadcast %cst_352 : f32 to vector<16x512xf32>
    %592 = arith.maximumf %590, %591 : vector<16x512xf32>
    %c0_353 = arith.constant 0 : index
    %c0_354 = arith.constant 0 : index
    %c0_355 = arith.constant 0 : index
    %593 = vector.load %arg26[%c0_353, %c0_354, %c0_355] : memref<2x2048x32xi8, #tpu.memory_space<vmem>>, vector<1x512x32xi8>
    %594 = vector.shape_cast %593 : vector<1x512x32xi8> to vector<512x32xi8>
    %595 = arith.sitofp %594 : vector<512x32xi8> to vector<512x32xf32>
    %596 = arith.truncf %595 : vector<512x32xf32> to vector<512x32xbf16>
    %597 = arith.truncf %592 : vector<16x512xf32> to vector<16x512xbf16>
    %cst_356 = arith.constant dense<0.000000e+00> : vector<16x32xf32>
    %598 = tpu.matmul %597, %596, %cst_356 {dimension_numbers = #tpu.dot_dimension_numbers<[1], [0], [0], [1], [0, 0, 1, 1], [], []>} : vector<16x512xbf16>, vector<512x32xbf16>, vector<16x32xf32> -> vector<16x32xf32>
    %599 = arith.addf %575, %598 : vector<16x32xf32>
    %c0_357 = arith.constant 0 : index
    %c0_358 = arith.constant 0 : index
    %c512 = arith.constant 512 : index
    %600 = vector.load %arg25[%c0_357, %c0_358, %c512] : memref<2x32x2048xi8, #tpu.memory_space<vmem>>, vector<1x32x512xi8>
    %601 = vector.shape_cast %600 : vector<1x32x512xi8> to vector<32x512xi8>
    %602 = arith.sitofp %601 : vector<32x512xi8> to vector<32x512xf32>
    %603 = arith.truncf %602 : vector<32x512xf32> to vector<32x512xbf16>
    %cst_359 = arith.constant dense<0.000000e+00> : vector<16x512xf32>
    %604 = tpu.matmul %574, %603, %cst_359 {dimension_numbers = #tpu.dot_dimension_numbers<[1], [0], [0], [1], [0, 0, 1, 1], [], []>} : vector<16x32xbf16>, vector<32x512xbf16>, vector<16x512xf32> -> vector<16x512xf32>
    %c0_360 = arith.constant 0 : index
    %c512_361 = arith.constant 512 : index
    %605 = vector.load %arg16[%c0_360, %c512_361] : memref<2x2048xf32, #tpu.memory_space<vmem>>, vector<1x512xf32>
    %606 = vector.shape_cast %605 : vector<1x512xf32> to vector<512xf32>
    %607 = vector.shape_cast %606 : vector<512xf32> to vector<1x512xf32>
    %608 = vector.broadcast %607 : vector<1x512xf32> to vector<16x512xf32>
    %609 = arith.mulf %604, %608 : vector<16x512xf32>
    %c0_362 = arith.constant 0 : index
    %c512_363 = arith.constant 512 : index
    %610 = vector.load %arg15[%c0_362, %c512_363] : memref<2x2048xf32, #tpu.memory_space<vmem>>, vector<1x512xf32>
    %611 = vector.shape_cast %610 : vector<1x512xf32> to vector<512xf32>
    %612 = vector.shape_cast %611 : vector<512xf32> to vector<1x512xf32>
    %613 = vector.broadcast %612 : vector<1x512xf32> to vector<16x512xf32>
    %614 = arith.addf %609, %613 : vector<16x512xf32>
    %cst_364 = arith.constant 0.000000e+00 : f32
    %615 = vector.broadcast %cst_364 : f32 to vector<16x512xf32>
    %616 = arith.maximumf %614, %615 : vector<16x512xf32>
    %c0_365 = arith.constant 0 : index
    %c512_366 = arith.constant 512 : index
    %c0_367 = arith.constant 0 : index
    %617 = vector.load %arg26[%c0_365, %c512_366, %c0_367] : memref<2x2048x32xi8, #tpu.memory_space<vmem>>, vector<1x512x32xi8>
    %618 = vector.shape_cast %617 : vector<1x512x32xi8> to vector<512x32xi8>
    %619 = arith.sitofp %618 : vector<512x32xi8> to vector<512x32xf32>
    %620 = arith.truncf %619 : vector<512x32xf32> to vector<512x32xbf16>
    %621 = arith.truncf %616 : vector<16x512xf32> to vector<16x512xbf16>
    %cst_368 = arith.constant dense<0.000000e+00> : vector<16x32xf32>
    %622 = tpu.matmul %621, %620, %cst_368 {dimension_numbers = #tpu.dot_dimension_numbers<[1], [0], [0], [1], [0, 0, 1, 1], [], []>} : vector<16x512xbf16>, vector<512x32xbf16>, vector<16x32xf32> -> vector<16x32xf32>
    %623 = arith.addf %599, %622 : vector<16x32xf32>
    %c0_369 = arith.constant 0 : index
    %c0_370 = arith.constant 0 : index
    %c1024 = arith.constant 1024 : index
    %624 = vector.load %arg25[%c0_369, %c0_370, %c1024] : memref<2x32x2048xi8, #tpu.memory_space<vmem>>, vector<1x32x512xi8>
    %625 = vector.shape_cast %624 : vector<1x32x512xi8> to vector<32x512xi8>
    %626 = arith.sitofp %625 : vector<32x512xi8> to vector<32x512xf32>
    %627 = arith.truncf %626 : vector<32x512xf32> to vector<32x512xbf16>
    %cst_371 = arith.constant dense<0.000000e+00> : vector<16x512xf32>
    %628 = tpu.matmul %574, %627, %cst_371 {dimension_numbers = #tpu.dot_dimension_numbers<[1], [0], [0], [1], [0, 0, 1, 1], [], []>} : vector<16x32xbf16>, vector<32x512xbf16>, vector<16x512xf32> -> vector<16x512xf32>
    %c0_372 = arith.constant 0 : index
    %c1024_373 = arith.constant 1024 : index
    %629 = vector.load %arg16[%c0_372, %c1024_373] : memref<2x2048xf32, #tpu.memory_space<vmem>>, vector<1x512xf32>
    %630 = vector.shape_cast %629 : vector<1x512xf32> to vector<512xf32>
    %631 = vector.shape_cast %630 : vector<512xf32> to vector<1x512xf32>
    %632 = vector.broadcast %631 : vector<1x512xf32> to vector<16x512xf32>
    %633 = arith.mulf %628, %632 : vector<16x512xf32>
    %c0_374 = arith.constant 0 : index
    %c1024_375 = arith.constant 1024 : index
    %634 = vector.load %arg15[%c0_374, %c1024_375] : memref<2x2048xf32, #tpu.memory_space<vmem>>, vector<1x512xf32>
    %635 = vector.shape_cast %634 : vector<1x512xf32> to vector<512xf32>
    %636 = vector.shape_cast %635 : vector<512xf32> to vector<1x512xf32>
    %637 = vector.broadcast %636 : vector<1x512xf32> to vector<16x512xf32>
    %638 = arith.addf %633, %637 : vector<16x512xf32>
    %cst_376 = arith.constant 0.000000e+00 : f32
    %639 = vector.broadcast %cst_376 : f32 to vector<16x512xf32>
    %640 = arith.maximumf %638, %639 : vector<16x512xf32>
    %c0_377 = arith.constant 0 : index
    %c1024_378 = arith.constant 1024 : index
    %c0_379 = arith.constant 0 : index
    %641 = vector.load %arg26[%c0_377, %c1024_378, %c0_379] : memref<2x2048x32xi8, #tpu.memory_space<vmem>>, vector<1x512x32xi8>
    %642 = vector.shape_cast %641 : vector<1x512x32xi8> to vector<512x32xi8>
    %643 = arith.sitofp %642 : vector<512x32xi8> to vector<512x32xf32>
    %644 = arith.truncf %643 : vector<512x32xf32> to vector<512x32xbf16>
    %645 = arith.truncf %640 : vector<16x512xf32> to vector<16x512xbf16>
    %cst_380 = arith.constant dense<0.000000e+00> : vector<16x32xf32>
    %646 = tpu.matmul %645, %644, %cst_380 {dimension_numbers = #tpu.dot_dimension_numbers<[1], [0], [0], [1], [0, 0, 1, 1], [], []>} : vector<16x512xbf16>, vector<512x32xbf16>, vector<16x32xf32> -> vector<16x32xf32>
    %647 = arith.addf %623, %646 : vector<16x32xf32>
    %c0_381 = arith.constant 0 : index
    %c0_382 = arith.constant 0 : index
    %c1536 = arith.constant 1536 : index
    %648 = vector.load %arg25[%c0_381, %c0_382, %c1536] : memref<2x32x2048xi8, #tpu.memory_space<vmem>>, vector<1x32x512xi8>
    %649 = vector.shape_cast %648 : vector<1x32x512xi8> to vector<32x512xi8>
    %650 = arith.sitofp %649 : vector<32x512xi8> to vector<32x512xf32>
    %651 = arith.truncf %650 : vector<32x512xf32> to vector<32x512xbf16>
    %cst_383 = arith.constant dense<0.000000e+00> : vector<16x512xf32>
    %652 = tpu.matmul %574, %651, %cst_383 {dimension_numbers = #tpu.dot_dimension_numbers<[1], [0], [0], [1], [0, 0, 1, 1], [], []>} : vector<16x32xbf16>, vector<32x512xbf16>, vector<16x512xf32> -> vector<16x512xf32>
    %c0_384 = arith.constant 0 : index
    %c1536_385 = arith.constant 1536 : index
    %653 = vector.load %arg16[%c0_384, %c1536_385] : memref<2x2048xf32, #tpu.memory_space<vmem>>, vector<1x512xf32>
    %654 = vector.shape_cast %653 : vector<1x512xf32> to vector<512xf32>
    %655 = vector.shape_cast %654 : vector<512xf32> to vector<1x512xf32>
    %656 = vector.broadcast %655 : vector<1x512xf32> to vector<16x512xf32>
    %657 = arith.mulf %652, %656 : vector<16x512xf32>
    %c0_386 = arith.constant 0 : index
    %c1536_387 = arith.constant 1536 : index
    %658 = vector.load %arg15[%c0_386, %c1536_387] : memref<2x2048xf32, #tpu.memory_space<vmem>>, vector<1x512xf32>
    %659 = vector.shape_cast %658 : vector<1x512xf32> to vector<512xf32>
    %660 = vector.shape_cast %659 : vector<512xf32> to vector<1x512xf32>
    %661 = vector.broadcast %660 : vector<1x512xf32> to vector<16x512xf32>
    %662 = arith.addf %657, %661 : vector<16x512xf32>
    %cst_388 = arith.constant 0.000000e+00 : f32
    %663 = vector.broadcast %cst_388 : f32 to vector<16x512xf32>
    %664 = arith.maximumf %662, %663 : vector<16x512xf32>
    %c0_389 = arith.constant 0 : index
    %c1536_390 = arith.constant 1536 : index
    %c0_391 = arith.constant 0 : index
    %665 = vector.load %arg26[%c0_389, %c1536_390, %c0_391] : memref<2x2048x32xi8, #tpu.memory_space<vmem>>, vector<1x512x32xi8>
    %666 = vector.shape_cast %665 : vector<1x512x32xi8> to vector<512x32xi8>
    %667 = arith.sitofp %666 : vector<512x32xi8> to vector<512x32xf32>
    %668 = arith.truncf %667 : vector<512x32xf32> to vector<512x32xbf16>
    %669 = arith.truncf %664 : vector<16x512xf32> to vector<16x512xbf16>
    %cst_392 = arith.constant dense<0.000000e+00> : vector<16x32xf32>
    %670 = tpu.matmul %669, %668, %cst_392 {dimension_numbers = #tpu.dot_dimension_numbers<[1], [0], [0], [1], [0, 0, 1, 1], [], []>} : vector<16x512xbf16>, vector<512x32xbf16>, vector<16x32xf32> -> vector<16x32xf32>
    %671 = arith.addf %647, %670 : vector<16x32xf32>
    %c0_393 = arith.constant 0 : index
    %c0_394 = arith.constant 0 : index
    %672 = vector.load %arg17[%c0_393, %c0_394] : memref<2x32xf32, #tpu.memory_space<vmem>>, vector<1x32xf32>
    %673 = vector.shape_cast %672 : vector<1x32xf32> to vector<32xf32>
    %674 = vector.shape_cast %673 : vector<32xf32> to vector<1x32xf32>
    %675 = vector.broadcast %674 : vector<1x32xf32> to vector<16x32xf32>
    %676 = arith.mulf %671, %675 : vector<16x32xf32>
    %677 = vector.broadcast %544 : vector<1x32xf32> to vector<16x32xf32>
    %678 = arith.addf %676, %677 : vector<16x32xf32>
    %679 = arith.addf %573, %678 : vector<16x32xf32>
    %cst_395 = arith.constant dense<0.000000e+00> : vector<16xf32>
    %680 = vector.multi_reduction <add>, %679, %cst_395 [1] : vector<16x32xf32> to vector<16xf32>
    %681 = vector.shape_cast %680 : vector<16xf32> to vector<16x1xf32>
    %cst_396 = arith.constant 3.200000e+01 : f32
    %682 = vector.broadcast %cst_396 : f32 to vector<16x1xf32>
    %683 = arith.divf %681, %682 : vector<16x1xf32>
    %684 = vector.broadcast %683 : vector<16x1xf32> to vector<16x32xf32>
    %685 = arith.subf %679, %684 : vector<16x32xf32>
    %686 = arith.mulf %685, %685 : vector<16x32xf32>
    %cst_397 = arith.constant dense<0.000000e+00> : vector<16xf32>
    %687 = vector.multi_reduction <add>, %686, %cst_397 [1] : vector<16x32xf32> to vector<16xf32>
    %688 = vector.shape_cast %687 : vector<16xf32> to vector<16x1xf32>
    %cst_398 = arith.constant 3.200000e+01 : f32
    %689 = vector.broadcast %cst_398 : f32 to vector<16x1xf32>
    %690 = arith.divf %688, %689 : vector<16x1xf32>
    %cst_399 = arith.constant 9.99999974E-6 : f32
    %691 = vector.broadcast %cst_399 : f32 to vector<16x1xf32>
    %692 = arith.addf %690, %691 : vector<16x1xf32>
    %693 = math.rsqrt %692 : vector<16x1xf32>
    %694 = vector.broadcast %693 : vector<16x1xf32> to vector<16x32xf32>
    %695 = arith.mulf %685, %694 : vector<16x32xf32>
    %696 = vector.broadcast %547 : vector<1x32xf32> to vector<16x32xf32>
    %697 = arith.mulf %695, %696 : vector<16x32xf32>
    %698 = vector.broadcast %550 : vector<1x32xf32> to vector<16x32xf32>
    %699 = arith.addf %697, %698 : vector<16x32xf32>
    %700 = vector.shape_cast %699 : vector<16x32xf32> to vector<2x8x32xf32>
    %701 = vector.extract_strided_slice %700 {offsets = [0, 7, 0], sizes = [2, 1, 32], strides = [1, 1, 1]} : vector<2x8x32xf32> to vector<2x1x32xf32>
    %702 = vector.shape_cast %701 : vector<2x1x32xf32> to vector<2x32xf32>
    %c0_400 = arith.constant 0 : index
    %c0_401 = arith.constant 0 : index
    %c0_402 = arith.constant 0 : index
    %703 = vector.load %arg23[%c0_400, %c0_401, %c0_402] : memref<2x2x32xf32, #tpu.memory_space<vmem>>, vector<1x2x32xf32>
    %704 = vector.shape_cast %703 : vector<1x2x32xf32> to vector<2x32xf32>
    %705 = vector.shape_cast %702 : vector<2x32xf32> to vector<1x2x32xf32>
    tpu.vector_store %arg23[%c0_400, %c0_401, %c0_402], %705 {strides = array<i32>} : memref<2x2x32xf32, #tpu.memory_space<vmem>>, vector<1x2x32xf32>,
    %c1_403 = arith.constant 1 : index
    %c0_404 = arith.constant 0 : index
    %c0_405 = arith.constant 0 : index
    %706 = vector.load %arg10[%c1_403, %c0_404, %c0_405] : memref<2x16x32xf32, #tpu.memory_space<vmem>>, vector<1x16x32xf32>
    %707 = vector.shape_cast %706 : vector<1x16x32xf32> to vector<16x32xf32>
    %708 = arith.truncf %707 : vector<16x32xf32> to vector<16x32xbf16>
    %c1_406 = arith.constant 1 : index
    %c0_407 = arith.constant 0 : index
    %c0_408 = arith.constant 0 : index
    %c0_409 = arith.constant 0 : index
    %c0_410 = arith.constant 0 : index
    %709 = vector.load %arg11[%c1_406, %c0_407, %c0_408, %c0_409, %c0_410] : memref<2x3x2x32x16xbf16, #tpu.memory_space<vmem>>, vector<1x1x1x32x16xbf16>
    %710 = vector.shape_cast %709 : vector<1x1x1x32x16xbf16> to vector<32x16xbf16>
    %cst_411 = arith.constant dense<0.000000e+00> : vector<16x16xf32>
    %711 = tpu.matmul %708, %710, %cst_411 {dimension_numbers = #tpu.dot_dimension_numbers<[1], [0], [0], [1], [0, 0, 1, 1], [], []>} : vector<16x32xbf16>, vector<32x16xbf16>, vector<16x16xf32> -> vector<16x16xf32>
    %c1_412 = arith.constant 1 : index
    %c0_413 = arith.constant 0 : index
    %c0_414 = arith.constant 0 : index
    %712 = vector.load %arg12[%c1_412, %c0_413, %c0_414] : memref<2x6x16xf32, #tpu.memory_space<vmem>>, vector<1x1x16xf32>
    %713 = vector.shape_cast %712 : vector<1x1x16xf32> to vector<16xf32>
    %714 = vector.shape_cast %713 : vector<16xf32> to vector<1x16xf32>
    %715 = vector.broadcast %714 : vector<1x16xf32> to vector<16x16xf32>
    %716 = arith.addf %711, %715 : vector<16x16xf32>
    %c1_415 = arith.constant 1 : index
    %c1_416 = arith.constant 1 : index
    %c0_417 = arith.constant 0 : index
    %c0_418 = arith.constant 0 : index
    %c0_419 = arith.constant 0 : index
    %717 = vector.load %arg11[%c1_415, %c1_416, %c0_417, %c0_418, %c0_419] : memref<2x3x2x32x16xbf16, #tpu.memory_space<vmem>>, vector<1x1x1x32x16xbf16>
    %718 = vector.shape_cast %717 : vector<1x1x1x32x16xbf16> to vector<32x16xbf16>
    %cst_420 = arith.constant dense<0.000000e+00> : vector<16x16xf32>
    %719 = tpu.matmul %708, %718, %cst_420 {dimension_numbers = #tpu.dot_dimension_numbers<[1], [0], [0], [1], [0, 0, 1, 1], [], []>} : vector<16x32xbf16>, vector<32x16xbf16>, vector<16x16xf32> -> vector<16x16xf32>
    %c1_421 = arith.constant 1 : index
    %c2_422 = arith.constant 2 : index
    %c0_423 = arith.constant 0 : index
    %720 = vector.load %arg12[%c1_421, %c2_422, %c0_423] : memref<2x6x16xf32, #tpu.memory_space<vmem>>, vector<1x1x16xf32>
    %721 = vector.shape_cast %720 : vector<1x1x16xf32> to vector<16xf32>
    %722 = vector.shape_cast %721 : vector<16xf32> to vector<1x16xf32>
    %723 = vector.broadcast %722 : vector<1x16xf32> to vector<16x16xf32>
    %724 = arith.addf %719, %723 : vector<16x16xf32>
    %c1_424 = arith.constant 1 : index
    %c2_425 = arith.constant 2 : index
    %c0_426 = arith.constant 0 : index
    %c0_427 = arith.constant 0 : index
    %c0_428 = arith.constant 0 : index
    %725 = vector.load %arg11[%c1_424, %c2_425, %c0_426, %c0_427, %c0_428] : memref<2x3x2x32x16xbf16, #tpu.memory_space<vmem>>, vector<1x1x1x32x16xbf16>
    %726 = vector.shape_cast %725 : vector<1x1x1x32x16xbf16> to vector<32x16xbf16>
    %cst_429 = arith.constant dense<0.000000e+00> : vector<16x16xf32>
    %727 = tpu.matmul %708, %726, %cst_429 {dimension_numbers = #tpu.dot_dimension_numbers<[1], [0], [0], [1], [0, 0, 1, 1], [], []>} : vector<16x32xbf16>, vector<32x16xbf16>, vector<16x16xf32> -> vector<16x16xf32>
    %c1_430 = arith.constant 1 : index
    %c4_431 = arith.constant 4 : index
    %c0_432 = arith.constant 0 : index
    %728 = vector.load %arg12[%c1_430, %c4_431, %c0_432] : memref<2x6x16xf32, #tpu.memory_space<vmem>>, vector<1x1x16xf32>
    %729 = vector.shape_cast %728 : vector<1x1x16xf32> to vector<16xf32>
    %730 = vector.shape_cast %729 : vector<16xf32> to vector<1x16xf32>
    %731 = vector.broadcast %730 : vector<1x16xf32> to vector<16x16xf32>
    %732 = arith.addf %727, %731 : vector<16x16xf32>
    %733 = vector.shape_cast %716 : vector<16x16xf32> to vector<2x8x16xf32>
    %734 = arith.truncf %733 : vector<2x8x16xf32> to vector<2x8x16xbf16>
    %735 = vector.shape_cast %724 : vector<16x16xf32> to vector<2x8x16xf32>
    %736 = arith.truncf %735 : vector<2x8x16xf32> to vector<2x8x16xbf16>
    %737 = vector.shape_cast %732 : vector<16x16xf32> to vector<2x8x16xf32>
    %738 = arith.truncf %737 : vector<2x8x16xf32> to vector<2x8x16xbf16>
    "tpu.trace_start"() <{level = 10 : i32, message = "bqd,bkd->bqk"}> : () -> ()
    %cst_433 = arith.constant dense<0.000000e+00> : vector<2x8x8xf32>
    %739 = tpu.matmul %734, %736, %cst_433 {dimension_numbers = #tpu.dot_dimension_numbers<[2], [2], [1], [1], [0, 0, 0, 1, 1, 1], [0], [0]>} : vector<2x8x16xbf16>, vector<2x8x16xbf16>, vector<2x8x8xf32> -> vector<2x8x8xf32>
    "tpu.trace_stop"() : () -> ()
    %cst_434 = arith.constant 2.500000e-01 : f32
    %740 = vector.broadcast %cst_434 : f32 to vector<2x8x8xf32>
    %741 = arith.mulf %739, %740 : vector<2x8x8xf32>
    %cst_435 = arith.constant dense<0xFF800000> : vector<2x8xf32>
    %742 = vector.multi_reduction <maximumf>, %741, %cst_435 [2] : vector<2x8x8xf32> to vector<2x8xf32>
    %743 = vector.shape_cast %742 : vector<2x8xf32> to vector<2x8x1xf32>
    %744 = vector.broadcast %743 : vector<2x8x1xf32> to vector<2x8x8xf32>
    %745 = arith.subf %741, %744 : vector<2x8x8xf32>
    %746 = math.exp %745 : vector<2x8x8xf32>
    %cst_436 = arith.constant dense<0.000000e+00> : vector<2x8xf32>
    %747 = vector.multi_reduction <add>, %746, %cst_436 [2] : vector<2x8x8xf32> to vector<2x8xf32>
    %748 = vector.shape_cast %747 : vector<2x8xf32> to vector<2x8x1xf32>
    %749 = tpu.reciprocal %748 {approx = true} : vector<2x8x1xf32> -> vector<2x8x1xf32>
    %750 = vector.broadcast %749 : vector<2x8x1xf32> to vector<2x8x8xf32>
    %751 = arith.mulf %746, %750 : vector<2x8x8xf32>
    %752 = arith.truncf %751 : vector<2x8x8xf32> to vector<2x8x8xbf16>
    "tpu.trace_start"() <{level = 10 : i32, message = "bqk,bkd->bqd"}> : () -> ()
    %cst_437 = arith.constant dense<0.000000e+00> : vector<2x8x16xf32>
    %753 = tpu.matmul %752, %738, %cst_437 {dimension_numbers = #tpu.dot_dimension_numbers<[2], [1], [1], [2], [0, 0, 0, 1, 1, 2], [0], [0]>} : vector<2x8x8xbf16>, vector<2x8x16xbf16>, vector<2x8x16xf32> -> vector<2x8x16xf32>
    "tpu.trace_stop"() : () -> ()
    %754 = vector.shape_cast %753 : vector<2x8x16xf32> to vector<16x16xf32>
    %755 = arith.truncf %754 : vector<16x16xf32> to vector<16x16xbf16>
    %c1_438 = arith.constant 1 : index
    %c0_439 = arith.constant 0 : index
    %c0_440 = arith.constant 0 : index
    %c0_441 = arith.constant 0 : index
    %756 = vector.load %arg13[%c1_438, %c0_439, %c0_440, %c0_441] : memref<2x2x16x32xbf16, #tpu.memory_space<vmem>>, vector<1x1x16x32xbf16>
    %757 = vector.shape_cast %756 : vector<1x1x16x32xbf16> to vector<16x32xbf16>
    %cst_442 = arith.constant dense<0.000000e+00> : vector<16x32xf32>
    %758 = tpu.matmul %755, %757, %cst_442 {dimension_numbers = #tpu.dot_dimension_numbers<[1], [0], [0], [1], [0, 0, 1, 1], [], []>} : vector<16x16xbf16>, vector<16x32xbf16>, vector<16x32xf32> -> vector<16x32xf32>
    %c1_443 = arith.constant 1 : index
    %c0_444 = arith.constant 0 : index
    %c1_445 = arith.constant 1 : index
    %c0_446 = arith.constant 0 : index
    %c0_447 = arith.constant 0 : index
    %759 = vector.load %arg11[%c1_443, %c0_444, %c1_445, %c0_446, %c0_447] : memref<2x3x2x32x16xbf16, #tpu.memory_space<vmem>>, vector<1x1x1x32x16xbf16>
    %760 = vector.shape_cast %759 : vector<1x1x1x32x16xbf16> to vector<32x16xbf16>
    %cst_448 = arith.constant dense<0.000000e+00> : vector<16x16xf32>
    %761 = tpu.matmul %708, %760, %cst_448 {dimension_numbers = #tpu.dot_dimension_numbers<[1], [0], [0], [1], [0, 0, 1, 1], [], []>} : vector<16x32xbf16>, vector<32x16xbf16>, vector<16x16xf32> -> vector<16x16xf32>
    %c1_449 = arith.constant 1 : index
    %c1_450 = arith.constant 1 : index
    %c0_451 = arith.constant 0 : index
    %762 = vector.load %arg12[%c1_449, %c1_450, %c0_451] : memref<2x6x16xf32, #tpu.memory_space<vmem>>, vector<1x1x16xf32>
    %763 = vector.shape_cast %762 : vector<1x1x16xf32> to vector<16xf32>
    %764 = vector.shape_cast %763 : vector<16xf32> to vector<1x16xf32>
    %765 = vector.broadcast %764 : vector<1x16xf32> to vector<16x16xf32>
    %766 = arith.addf %761, %765 : vector<16x16xf32>
    %c1_452 = arith.constant 1 : index
    %c1_453 = arith.constant 1 : index
    %c1_454 = arith.constant 1 : index
    %c0_455 = arith.constant 0 : index
    %c0_456 = arith.constant 0 : index
    %767 = vector.load %arg11[%c1_452, %c1_453, %c1_454, %c0_455, %c0_456] : memref<2x3x2x32x16xbf16, #tpu.memory_space<vmem>>, vector<1x1x1x32x16xbf16>
    %768 = vector.shape_cast %767 : vector<1x1x1x32x16xbf16> to vector<32x16xbf16>
    %cst_457 = arith.constant dense<0.000000e+00> : vector<16x16xf32>
    %769 = tpu.matmul %708, %768, %cst_457 {dimension_numbers = #tpu.dot_dimension_numbers<[1], [0], [0], [1], [0, 0, 1, 1], [], []>} : vector<16x32xbf16>, vector<32x16xbf16>, vector<16x16xf32> -> vector<16x16xf32>
    %c1_458 = arith.constant 1 : index
    %c3_459 = arith.constant 3 : index
    %c0_460 = arith.constant 0 : index
    %770 = vector.load %arg12[%c1_458, %c3_459, %c0_460] : memref<2x6x16xf32, #tpu.memory_space<vmem>>, vector<1x1x16xf32>
    %771 = vector.shape_cast %770 : vector<1x1x16xf32> to vector<16xf32>
    %772 = vector.shape_cast %771 : vector<16xf32> to vector<1x16xf32>
    %773 = vector.broadcast %772 : vector<1x16xf32> to vector<16x16xf32>
    %774 = arith.addf %769, %773 : vector<16x16xf32>
    %c1_461 = arith.constant 1 : index
    %c2_462 = arith.constant 2 : index
    %c1_463 = arith.constant 1 : index
    %c0_464 = arith.constant 0 : index
    %c0_465 = arith.constant 0 : index
    %775 = vector.load %arg11[%c1_461, %c2_462, %c1_463, %c0_464, %c0_465] : memref<2x3x2x32x16xbf16, #tpu.memory_space<vmem>>, vector<1x1x1x32x16xbf16>
    %776 = vector.shape_cast %775 : vector<1x1x1x32x16xbf16> to vector<32x16xbf16>
    %cst_466 = arith.constant dense<0.000000e+00> : vector<16x16xf32>
    %777 = tpu.matmul %708, %776, %cst_466 {dimension_numbers = #tpu.dot_dimension_numbers<[1], [0], [0], [1], [0, 0, 1, 1], [], []>} : vector<16x32xbf16>, vector<32x16xbf16>, vector<16x16xf32> -> vector<16x16xf32>
    %c1_467 = arith.constant 1 : index
    %c5_468 = arith.constant 5 : index
    %c0_469 = arith.constant 0 : index
    %778 = vector.load %arg12[%c1_467, %c5_468, %c0_469] : memref<2x6x16xf32, #tpu.memory_space<vmem>>, vector<1x1x16xf32>
    %779 = vector.shape_cast %778 : vector<1x1x16xf32> to vector<16xf32>
    %780 = vector.shape_cast %779 : vector<16xf32> to vector<1x16xf32>
    %781 = vector.broadcast %780 : vector<1x16xf32> to vector<16x16xf32>
    %782 = arith.addf %777, %781 : vector<16x16xf32>
    %783 = vector.shape_cast %766 : vector<16x16xf32> to vector<2x8x16xf32>
    %784 = arith.truncf %783 : vector<2x8x16xf32> to vector<2x8x16xbf16>
    %785 = vector.shape_cast %774 : vector<16x16xf32> to vector<2x8x16xf32>
    %786 = arith.truncf %785 : vector<2x8x16xf32> to vector<2x8x16xbf16>
    %787 = vector.shape_cast %782 : vector<16x16xf32> to vector<2x8x16xf32>
    %788 = arith.truncf %787 : vector<2x8x16xf32> to vector<2x8x16xbf16>
    "tpu.trace_start"() <{level = 10 : i32, message = "bqd,bkd->bqk"}> : () -> ()
    %cst_470 = arith.constant dense<0.000000e+00> : vector<2x8x8xf32>
    %789 = tpu.matmul %784, %786, %cst_470 {dimension_numbers = #tpu.dot_dimension_numbers<[2], [2], [1], [1], [0, 0, 0, 1, 1, 1], [0], [0]>} : vector<2x8x16xbf16>, vector<2x8x16xbf16>, vector<2x8x8xf32> -> vector<2x8x8xf32>
    "tpu.trace_stop"() : () -> ()
    %cst_471 = arith.constant 2.500000e-01 : f32
    %790 = vector.broadcast %cst_471 : f32 to vector<2x8x8xf32>
    %791 = arith.mulf %789, %790 : vector<2x8x8xf32>
    %cst_472 = arith.constant dense<0xFF800000> : vector<2x8xf32>
    %792 = vector.multi_reduction <maximumf>, %791, %cst_472 [2] : vector<2x8x8xf32> to vector<2x8xf32>
    %793 = vector.shape_cast %792 : vector<2x8xf32> to vector<2x8x1xf32>
    %794 = vector.broadcast %793 : vector<2x8x1xf32> to vector<2x8x8xf32>
    %795 = arith.subf %791, %794 : vector<2x8x8xf32>
    %796 = math.exp %795 : vector<2x8x8xf32>
    %cst_473 = arith.constant dense<0.000000e+00> : vector<2x8xf32>
    %797 = vector.multi_reduction <add>, %796, %cst_473 [2] : vector<2x8x8xf32> to vector<2x8xf32>
    %798 = vector.shape_cast %797 : vector<2x8xf32> to vector<2x8x1xf32>
    %799 = tpu.reciprocal %798 {approx = true} : vector<2x8x1xf32> -> vector<2x8x1xf32>
    %800 = vector.broadcast %799 : vector<2x8x1xf32> to vector<2x8x8xf32>
    %801 = arith.mulf %796, %800 : vector<2x8x8xf32>
    %802 = arith.truncf %801 : vector<2x8x8xf32> to vector<2x8x8xbf16>
    "tpu.trace_start"() <{level = 10 : i32, message = "bqk,bkd->bqd"}> : () -> ()
    %cst_474 = arith.constant dense<0.000000e+00> : vector<2x8x16xf32>
    %803 = tpu.matmul %802, %788, %cst_474 {dimension_numbers = #tpu.dot_dimension_numbers<[2], [1], [1], [2], [0, 0, 0, 1, 1, 2], [0], [0]>} : vector<2x8x8xbf16>, vector<2x8x16xbf16>, vector<2x8x16xf32> -> vector<2x8x16xf32>
    "tpu.trace_stop"() : () -> ()
    %804 = vector.shape_cast %803 : vector<2x8x16xf32> to vector<16x16xf32>
    %805 = arith.truncf %804 : vector<16x16xf32> to vector<16x16xbf16>
    %c1_475 = arith.constant 1 : index
    %c1_476 = arith.constant 1 : index
    %c0_477 = arith.constant 0 : index
    %c0_478 = arith.constant 0 : index
    %806 = vector.load %arg13[%c1_475, %c1_476, %c0_477, %c0_478] : memref<2x2x16x32xbf16, #tpu.memory_space<vmem>>, vector<1x1x16x32xbf16>
    %807 = vector.shape_cast %806 : vector<1x1x16x32xbf16> to vector<16x32xbf16>
    %cst_479 = arith.constant dense<0.000000e+00> : vector<16x32xf32>
    %808 = tpu.matmul %805, %807, %cst_479 {dimension_numbers = #tpu.dot_dimension_numbers<[1], [0], [0], [1], [0, 0, 1, 1], [], []>} : vector<16x16xbf16>, vector<16x32xbf16>, vector<16x32xf32> -> vector<16x32xf32>
    %809 = arith.addf %758, %808 : vector<16x32xf32>
    %c1_480 = arith.constant 1 : index
    %c0_481 = arith.constant 0 : index
    %c0_482 = arith.constant 0 : index
    %810 = vector.load %arg14[%c1_480, %c0_481, %c0_482] : memref<2x6x32xf32, #tpu.memory_space<vmem>>, vector<1x1x32xf32>
    %811 = vector.shape_cast %810 : vector<1x1x32xf32> to vector<32xf32>
    %812 = vector.shape_cast %811 : vector<32xf32> to vector<1x32xf32>
    %c1_483 = arith.constant 1 : index
    %c1_484 = arith.constant 1 : index
    %c0_485 = arith.constant 0 : index
    %813 = vector.load %arg14[%c1_483, %c1_484, %c0_485] : memref<2x6x32xf32, #tpu.memory_space<vmem>>, vector<1x1x32xf32>
    %814 = vector.shape_cast %813 : vector<1x1x32xf32> to vector<32xf32>
    %815 = vector.shape_cast %814 : vector<32xf32> to vector<1x32xf32>
    %c1_486 = arith.constant 1 : index
    %c2_487 = arith.constant 2 : index
    %c0_488 = arith.constant 0 : index
    %816 = vector.load %arg14[%c1_486, %c2_487, %c0_488] : memref<2x6x32xf32, #tpu.memory_space<vmem>>, vector<1x1x32xf32>
    %817 = vector.shape_cast %816 : vector<1x1x32xf32> to vector<32xf32>
    %818 = vector.shape_cast %817 : vector<32xf32> to vector<1x32xf32>
    %c1_489 = arith.constant 1 : index
    %c3_490 = arith.constant 3 : index
    %c0_491 = arith.constant 0 : index
    %819 = vector.load %arg14[%c1_489, %c3_490, %c0_491] : memref<2x6x32xf32, #tpu.memory_space<vmem>>, vector<1x1x32xf32>
    %820 = vector.shape_cast %819 : vector<1x1x32xf32> to vector<32xf32>
    %821 = vector.shape_cast %820 : vector<32xf32> to vector<1x32xf32>
    %c1_492 = arith.constant 1 : index
    %c4_493 = arith.constant 4 : index
    %c0_494 = arith.constant 0 : index
    %822 = vector.load %arg14[%c1_492, %c4_493, %c0_494] : memref<2x6x32xf32, #tpu.memory_space<vmem>>, vector<1x1x32xf32>
    %823 = vector.shape_cast %822 : vector<1x1x32xf32> to vector<32xf32>
    %824 = vector.shape_cast %823 : vector<32xf32> to vector<1x32xf32>
    %c1_495 = arith.constant 1 : index
    %c5_496 = arith.constant 5 : index
    %c0_497 = arith.constant 0 : index
    %825 = vector.load %arg14[%c1_495, %c5_496, %c0_497] : memref<2x6x32xf32, #tpu.memory_space<vmem>>, vector<1x1x32xf32>
    %826 = vector.shape_cast %825 : vector<1x1x32xf32> to vector<32xf32>
    %827 = vector.shape_cast %826 : vector<32xf32> to vector<1x32xf32>
    %828 = arith.addf %707, %809 : vector<16x32xf32>
    %829 = vector.broadcast %812 : vector<1x32xf32> to vector<16x32xf32>
    %830 = arith.addf %828, %829 : vector<16x32xf32>
    %cst_498 = arith.constant dense<0.000000e+00> : vector<16xf32>
    %831 = vector.multi_reduction <add>, %830, %cst_498 [1] : vector<16x32xf32> to vector<16xf32>
    %832 = vector.shape_cast %831 : vector<16xf32> to vector<16x1xf32>
    %cst_499 = arith.constant 3.200000e+01 : f32
    %833 = vector.broadcast %cst_499 : f32 to vector<16x1xf32>
    %834 = arith.divf %832, %833 : vector<16x1xf32>
    %835 = vector.broadcast %834 : vector<16x1xf32> to vector<16x32xf32>
    %836 = arith.subf %830, %835 : vector<16x32xf32>
    %837 = arith.mulf %836, %836 : vector<16x32xf32>
    %cst_500 = arith.constant dense<0.000000e+00> : vector<16xf32>
    %838 = vector.multi_reduction <add>, %837, %cst_500 [1] : vector<16x32xf32> to vector<16xf32>
    %839 = vector.shape_cast %838 : vector<16xf32> to vector<16x1xf32>
    %cst_501 = arith.constant 3.200000e+01 : f32
    %840 = vector.broadcast %cst_501 : f32 to vector<16x1xf32>
    %841 = arith.divf %839, %840 : vector<16x1xf32>
    %cst_502 = arith.constant 9.99999974E-6 : f32
    %842 = vector.broadcast %cst_502 : f32 to vector<16x1xf32>
    %843 = arith.addf %841, %842 : vector<16x1xf32>
    %844 = math.rsqrt %843 : vector<16x1xf32>
    %845 = vector.broadcast %844 : vector<16x1xf32> to vector<16x32xf32>
    %846 = arith.mulf %836, %845 : vector<16x32xf32>
    %847 = vector.broadcast %815 : vector<1x32xf32> to vector<16x32xf32>
    %848 = arith.mulf %846, %847 : vector<16x32xf32>
    %849 = vector.broadcast %818 : vector<1x32xf32> to vector<16x32xf32>
    %850 = arith.addf %848, %849 : vector<16x32xf32>
    %851 = arith.truncf %850 : vector<16x32xf32> to vector<16x32xbf16>
    %cst_503 = arith.constant 0.000000e+00 : f32
    %852 = vector.broadcast %cst_503 : f32 to vector<16x32xf32>
    %c1_504 = arith.constant 1 : index
    %c0_505 = arith.constant 0 : index
    %c0_506 = arith.constant 0 : index
    %853 = vector.load %arg25[%c1_504, %c0_505, %c0_506] : memref<2x32x2048xi8, #tpu.memory_space<vmem>>, vector<1x32x512xi8>
    %854 = vector.shape_cast %853 : vector<1x32x512xi8> to vector<32x512xi8>
    %855 = arith.sitofp %854 : vector<32x512xi8> to vector<32x512xf32>
    %856 = arith.truncf %855 : vector<32x512xf32> to vector<32x512xbf16>
    %cst_507 = arith.constant dense<0.000000e+00> : vector<16x512xf32>
    %857 = tpu.matmul %851, %856, %cst_507 {dimension_numbers = #tpu.dot_dimension_numbers<[1], [0], [0], [1], [0, 0, 1, 1], [], []>} : vector<16x32xbf16>, vector<32x512xbf16>, vector<16x512xf32> -> vector<16x512xf32>
    %c1_508 = arith.constant 1 : index
    %c0_509 = arith.constant 0 : index
    %858 = vector.load %arg16[%c1_508, %c0_509] : memref<2x2048xf32, #tpu.memory_space<vmem>>, vector<1x512xf32>
    %859 = vector.shape_cast %858 : vector<1x512xf32> to vector<512xf32>
    %860 = vector.shape_cast %859 : vector<512xf32> to vector<1x512xf32>
    %861 = vector.broadcast %860 : vector<1x512xf32> to vector<16x512xf32>
    %862 = arith.mulf %857, %861 : vector<16x512xf32>
    %c1_510 = arith.constant 1 : index
    %c0_511 = arith.constant 0 : index
    %863 = vector.load %arg15[%c1_510, %c0_511] : memref<2x2048xf32, #tpu.memory_space<vmem>>, vector<1x512xf32>
    %864 = vector.shape_cast %863 : vector<1x512xf32> to vector<512xf32>
    %865 = vector.shape_cast %864 : vector<512xf32> to vector<1x512xf32>
    %866 = vector.broadcast %865 : vector<1x512xf32> to vector<16x512xf32>
    %867 = arith.addf %862, %866 : vector<16x512xf32>
    %cst_512 = arith.constant 0.000000e+00 : f32
    %868 = vector.broadcast %cst_512 : f32 to vector<16x512xf32>
    %869 = arith.maximumf %867, %868 : vector<16x512xf32>
    %c1_513 = arith.constant 1 : index
    %c0_514 = arith.constant 0 : index
    %c0_515 = arith.constant 0 : index
    %870 = vector.load %arg26[%c1_513, %c0_514, %c0_515] : memref<2x2048x32xi8, #tpu.memory_space<vmem>>, vector<1x512x32xi8>
    %871 = vector.shape_cast %870 : vector<1x512x32xi8> to vector<512x32xi8>
    %872 = arith.sitofp %871 : vector<512x32xi8> to vector<512x32xf32>
    %873 = arith.truncf %872 : vector<512x32xf32> to vector<512x32xbf16>
    %874 = arith.truncf %869 : vector<16x512xf32> to vector<16x512xbf16>
    %cst_516 = arith.constant dense<0.000000e+00> : vector<16x32xf32>
    %875 = tpu.matmul %874, %873, %cst_516 {dimension_numbers = #tpu.dot_dimension_numbers<[1], [0], [0], [1], [0, 0, 1, 1], [], []>} : vector<16x512xbf16>, vector<512x32xbf16>, vector<16x32xf32> -> vector<16x32xf32>
    %876 = arith.addf %852, %875 : vector<16x32xf32>
    %c1_517 = arith.constant 1 : index
    %c0_518 = arith.constant 0 : index
    %c512_519 = arith.constant 512 : index
    %877 = vector.load %arg25[%c1_517, %c0_518, %c512_519] : memref<2x32x2048xi8, #tpu.memory_space<vmem>>, vector<1x32x512xi8>
    %878 = vector.shape_cast %877 : vector<1x32x512xi8> to vector<32x512xi8>
    %879 = arith.sitofp %878 : vector<32x512xi8> to vector<32x512xf32>
    %880 = arith.truncf %879 : vector<32x512xf32> to vector<32x512xbf16>
    %cst_520 = arith.constant dense<0.000000e+00> : vector<16x512xf32>
    %881 = tpu.matmul %851, %880, %cst_520 {dimension_numbers = #tpu.dot_dimension_numbers<[1], [0], [0], [1], [0, 0, 1, 1], [], []>} : vector<16x32xbf16>, vector<32x512xbf16>, vector<16x512xf32> -> vector<16x512xf32>
    %c1_521 = arith.constant 1 : index
    %c512_522 = arith.constant 512 : index
    %882 = vector.load %arg16[%c1_521, %c512_522] : memref<2x2048xf32, #tpu.memory_space<vmem>>, vector<1x512xf32>
    %883 = vector.shape_cast %882 : vector<1x512xf32> to vector<512xf32>
    %884 = vector.shape_cast %883 : vector<512xf32> to vector<1x512xf32>
    %885 = vector.broadcast %884 : vector<1x512xf32> to vector<16x512xf32>
    %886 = arith.mulf %881, %885 : vector<16x512xf32>
    %c1_523 = arith.constant 1 : index
    %c512_524 = arith.constant 512 : index
    %887 = vector.load %arg15[%c1_523, %c512_524] : memref<2x2048xf32, #tpu.memory_space<vmem>>, vector<1x512xf32>
    %888 = vector.shape_cast %887 : vector<1x512xf32> to vector<512xf32>
    %889 = vector.shape_cast %888 : vector<512xf32> to vector<1x512xf32>
    %890 = vector.broadcast %889 : vector<1x512xf32> to vector<16x512xf32>
    %891 = arith.addf %886, %890 : vector<16x512xf32>
    %cst_525 = arith.constant 0.000000e+00 : f32
    %892 = vector.broadcast %cst_525 : f32 to vector<16x512xf32>
    %893 = arith.maximumf %891, %892 : vector<16x512xf32>
    %c1_526 = arith.constant 1 : index
    %c512_527 = arith.constant 512 : index
    %c0_528 = arith.constant 0 : index
    %894 = vector.load %arg26[%c1_526, %c512_527, %c0_528] : memref<2x2048x32xi8, #tpu.memory_space<vmem>>, vector<1x512x32xi8>
    %895 = vector.shape_cast %894 : vector<1x512x32xi8> to vector<512x32xi8>
    %896 = arith.sitofp %895 : vector<512x32xi8> to vector<512x32xf32>
    %897 = arith.truncf %896 : vector<512x32xf32> to vector<512x32xbf16>
    %898 = arith.truncf %893 : vector<16x512xf32> to vector<16x512xbf16>
    %cst_529 = arith.constant dense<0.000000e+00> : vector<16x32xf32>
    %899 = tpu.matmul %898, %897, %cst_529 {dimension_numbers = #tpu.dot_dimension_numbers<[1], [0], [0], [1], [0, 0, 1, 1], [], []>} : vector<16x512xbf16>, vector<512x32xbf16>, vector<16x32xf32> -> vector<16x32xf32>
    %900 = arith.addf %876, %899 : vector<16x32xf32>
    %c1_530 = arith.constant 1 : index
    %c0_531 = arith.constant 0 : index
    %c1024_532 = arith.constant 1024 : index
    %901 = vector.load %arg25[%c1_530, %c0_531, %c1024_532] : memref<2x32x2048xi8, #tpu.memory_space<vmem>>, vector<1x32x512xi8>
    %902 = vector.shape_cast %901 : vector<1x32x512xi8> to vector<32x512xi8>
    %903 = arith.sitofp %902 : vector<32x512xi8> to vector<32x512xf32>
    %904 = arith.truncf %903 : vector<32x512xf32> to vector<32x512xbf16>
    %cst_533 = arith.constant dense<0.000000e+00> : vector<16x512xf32>
    %905 = tpu.matmul %851, %904, %cst_533 {dimension_numbers = #tpu.dot_dimension_numbers<[1], [0], [0], [1], [0, 0, 1, 1], [], []>} : vector<16x32xbf16>, vector<32x512xbf16>, vector<16x512xf32> -> vector<16x512xf32>
    %c1_534 = arith.constant 1 : index
    %c1024_535 = arith.constant 1024 : index
    %906 = vector.load %arg16[%c1_534, %c1024_535] : memref<2x2048xf32, #tpu.memory_space<vmem>>, vector<1x512xf32>
    %907 = vector.shape_cast %906 : vector<1x512xf32> to vector<512xf32>
    %908 = vector.shape_cast %907 : vector<512xf32> to vector<1x512xf32>
    %909 = vector.broadcast %908 : vector<1x512xf32> to vector<16x512xf32>
    %910 = arith.mulf %905, %909 : vector<16x512xf32>
    %c1_536 = arith.constant 1 : index
    %c1024_537 = arith.constant 1024 : index
    %911 = vector.load %arg15[%c1_536, %c1024_537] : memref<2x2048xf32, #tpu.memory_space<vmem>>, vector<1x512xf32>
    %912 = vector.shape_cast %911 : vector<1x512xf32> to vector<512xf32>
    %913 = vector.shape_cast %912 : vector<512xf32> to vector<1x512xf32>
    %914 = vector.broadcast %913 : vector<1x512xf32> to vector<16x512xf32>
    %915 = arith.addf %910, %914 : vector<16x512xf32>
    %cst_538 = arith.constant 0.000000e+00 : f32
    %916 = vector.broadcast %cst_538 : f32 to vector<16x512xf32>
    %917 = arith.maximumf %915, %916 : vector<16x512xf32>
    %c1_539 = arith.constant 1 : index
    %c1024_540 = arith.constant 1024 : index
    %c0_541 = arith.constant 0 : index
    %918 = vector.load %arg26[%c1_539, %c1024_540, %c0_541] : memref<2x2048x32xi8, #tpu.memory_space<vmem>>, vector<1x512x32xi8>
    %919 = vector.shape_cast %918 : vector<1x512x32xi8> to vector<512x32xi8>
    %920 = arith.sitofp %919 : vector<512x32xi8> to vector<512x32xf32>
    %921 = arith.truncf %920 : vector<512x32xf32> to vector<512x32xbf16>
    %922 = arith.truncf %917 : vector<16x512xf32> to vector<16x512xbf16>
    %cst_542 = arith.constant dense<0.000000e+00> : vector<16x32xf32>
    %923 = tpu.matmul %922, %921, %cst_542 {dimension_numbers = #tpu.dot_dimension_numbers<[1], [0], [0], [1], [0, 0, 1, 1], [], []>} : vector<16x512xbf16>, vector<512x32xbf16>, vector<16x32xf32> -> vector<16x32xf32>
    %924 = arith.addf %900, %923 : vector<16x32xf32>
    %c1_543 = arith.constant 1 : index
    %c0_544 = arith.constant 0 : index
    %c1536_545 = arith.constant 1536 : index
    %925 = vector.load %arg25[%c1_543, %c0_544, %c1536_545] : memref<2x32x2048xi8, #tpu.memory_space<vmem>>, vector<1x32x512xi8>
    %926 = vector.shape_cast %925 : vector<1x32x512xi8> to vector<32x512xi8>
    %927 = arith.sitofp %926 : vector<32x512xi8> to vector<32x512xf32>
    %928 = arith.truncf %927 : vector<32x512xf32> to vector<32x512xbf16>
    %cst_546 = arith.constant dense<0.000000e+00> : vector<16x512xf32>
    %929 = tpu.matmul %851, %928, %cst_546 {dimension_numbers = #tpu.dot_dimension_numbers<[1], [0], [0], [1], [0, 0, 1, 1], [], []>} : vector<16x32xbf16>, vector<32x512xbf16>, vector<16x512xf32> -> vector<16x512xf32>
    %c1_547 = arith.constant 1 : index
    %c1536_548 = arith.constant 1536 : index
    %930 = vector.load %arg16[%c1_547, %c1536_548] : memref<2x2048xf32, #tpu.memory_space<vmem>>, vector<1x512xf32>
    %931 = vector.shape_cast %930 : vector<1x512xf32> to vector<512xf32>
    %932 = vector.shape_cast %931 : vector<512xf32> to vector<1x512xf32>
    %933 = vector.broadcast %932 : vector<1x512xf32> to vector<16x512xf32>
    %934 = arith.mulf %929, %933 : vector<16x512xf32>
    %c1_549 = arith.constant 1 : index
    %c1536_550 = arith.constant 1536 : index
    %935 = vector.load %arg15[%c1_549, %c1536_550] : memref<2x2048xf32, #tpu.memory_space<vmem>>, vector<1x512xf32>
    %936 = vector.shape_cast %935 : vector<1x512xf32> to vector<512xf32>
    %937 = vector.shape_cast %936 : vector<512xf32> to vector<1x512xf32>
    %938 = vector.broadcast %937 : vector<1x512xf32> to vector<16x512xf32>
    %939 = arith.addf %934, %938 : vector<16x512xf32>
    %cst_551 = arith.constant 0.000000e+00 : f32
    %940 = vector.broadcast %cst_551 : f32 to vector<16x512xf32>
    %941 = arith.maximumf %939, %940 : vector<16x512xf32>
    %c1_552 = arith.constant 1 : index
    %c1536_553 = arith.constant 1536 : index
    %c0_554 = arith.constant 0 : index
    %942 = vector.load %arg26[%c1_552, %c1536_553, %c0_554] : memref<2x2048x32xi8, #tpu.memory_space<vmem>>, vector<1x512x32xi8>
    %943 = vector.shape_cast %942 : vector<1x512x32xi8> to vector<512x32xi8>
    %944 = arith.sitofp %943 : vector<512x32xi8> to vector<512x32xf32>
    %945 = arith.truncf %944 : vector<512x32xf32> to vector<512x32xbf16>
    %946 = arith.truncf %941 : vector<16x512xf32> to vector<16x512xbf16>
    %cst_555 = arith.constant dense<0.000000e+00> : vector<16x32xf32>
    %947 = tpu.matmul %946, %945, %cst_555 {dimension_numbers = #tpu.dot_dimension_numbers<[1], [0], [0], [1], [0, 0, 1, 1], [], []>} : vector<16x512xbf16>, vector<512x32xbf16>, vector<16x32xf32> -> vector<16x32xf32>
    %948 = arith.addf %924, %947 : vector<16x32xf32>
    %c1_556 = arith.constant 1 : index
    %c0_557 = arith.constant 0 : index
    %949 = vector.load %arg17[%c1_556, %c0_557] : memref<2x32xf32, #tpu.memory_space<vmem>>, vector<1x32xf32>
    %950 = vector.shape_cast %949 : vector<1x32xf32> to vector<32xf32>
    %951 = vector.shape_cast %950 : vector<32xf32> to vector<1x32xf32>
    %952 = vector.broadcast %951 : vector<1x32xf32> to vector<16x32xf32>
    %953 = arith.mulf %948, %952 : vector<16x32xf32>
    %954 = vector.broadcast %821 : vector<1x32xf32> to vector<16x32xf32>
    %955 = arith.addf %953, %954 : vector<16x32xf32>
    %956 = arith.addf %850, %955 : vector<16x32xf32>
    %cst_558 = arith.constant dense<0.000000e+00> : vector<16xf32>
    %957 = vector.multi_reduction <add>, %956, %cst_558 [1] : vector<16x32xf32> to vector<16xf32>
    %958 = vector.shape_cast %957 : vector<16xf32> to vector<16x1xf32>
    %cst_559 = arith.constant 3.200000e+01 : f32
    %959 = vector.broadcast %cst_559 : f32 to vector<16x1xf32>
    %960 = arith.divf %958, %959 : vector<16x1xf32>
    %961 = vector.broadcast %960 : vector<16x1xf32> to vector<16x32xf32>
    %962 = arith.subf %956, %961 : vector<16x32xf32>
    %963 = arith.mulf %962, %962 : vector<16x32xf32>
    %cst_560 = arith.constant dense<0.000000e+00> : vector<16xf32>
    %964 = vector.multi_reduction <add>, %963, %cst_560 [1] : vector<16x32xf32> to vector<16xf32>
    %965 = vector.shape_cast %964 : vector<16xf32> to vector<16x1xf32>
    %cst_561 = arith.constant 3.200000e+01 : f32
    %966 = vector.broadcast %cst_561 : f32 to vector<16x1xf32>
    %967 = arith.divf %965, %966 : vector<16x1xf32>
    %cst_562 = arith.constant 9.99999974E-6 : f32
    %968 = vector.broadcast %cst_562 : f32 to vector<16x1xf32>
    %969 = arith.addf %967, %968 : vector<16x1xf32>
    %970 = math.rsqrt %969 : vector<16x1xf32>
    %971 = vector.broadcast %970 : vector<16x1xf32> to vector<16x32xf32>
    %972 = arith.mulf %962, %971 : vector<16x32xf32>
    %973 = vector.broadcast %824 : vector<1x32xf32> to vector<16x32xf32>
    %974 = arith.mulf %972, %973 : vector<16x32xf32>
    %975 = vector.broadcast %827 : vector<1x32xf32> to vector<16x32xf32>
    %976 = arith.addf %974, %975 : vector<16x32xf32>
    %977 = vector.shape_cast %976 : vector<16x32xf32> to vector<2x8x32xf32>
    %978 = vector.extract_strided_slice %977 {offsets = [0, 7, 0], sizes = [2, 1, 32], strides = [1, 1, 1]} : vector<2x8x32xf32> to vector<2x1x32xf32>
    %979 = vector.shape_cast %978 : vector<2x1x32xf32> to vector<2x32xf32>
    %c1_563 = arith.constant 1 : index
    %c0_564 = arith.constant 0 : index
    %c0_565 = arith.constant 0 : index
    %980 = vector.load %arg23[%c1_563, %c0_564, %c0_565] : memref<2x2x32xf32, #tpu.memory_space<vmem>>, vector<1x2x32xf32>
    %981 = vector.shape_cast %980 : vector<1x2x32xf32> to vector<2x32xf32>
    %982 = vector.shape_cast %979 : vector<2x32xf32> to vector<1x2x32xf32>
    tpu.vector_store %arg23[%c1_563, %c0_564, %c0_565], %982 {strides = array<i32>} : memref<2x2x32xf32, #tpu.memory_space<vmem>>, vector<1x2x32xf32>,
    %983 = arith.truncf %979 : vector<2x32xf32> to vector<2x32xbf16>
    %c0_566 = arith.constant 0 : index
    %c0_567 = arith.constant 0 : index
    %984 = vector.load %arg18[%c0_566, %c0_567] : memref<32x128xbf16, #tpu.memory_space<vmem>>, vector<32x128xbf16>
    %cst_568 = arith.constant dense<0.000000e+00> : vector<2x128xf32>
    %985 = tpu.matmul %983, %984, %cst_568 {dimension_numbers = #tpu.dot_dimension_numbers<[1], [0], [0], [1], [0, 0, 1, 1], [], []>} : vector<2x32xbf16>, vector<32x128xbf16>, vector<2x128xf32> -> vector<2x128xf32>
    %c0_569 = arith.constant 0 : index
    %c0_570 = arith.constant 0 : index
    %986 = vector.load %arg19[%c0_569, %c0_570] : memref<1x128xf32, #tpu.memory_space<vmem>>, vector<1x128xf32>
    %987 = vector.broadcast %986 : vector<1x128xf32> to vector<2x128xf32>
    %988 = arith.addf %985, %987 : vector<2x128xf32>
    %cst_571 = arith.constant 0.000000e+00 : f32
    %989 = vector.broadcast %cst_571 : f32 to vector<2x128xf32>
    %990 = arith.subf %989, %988 : vector<2x128xf32>
    %991 = math.exp %990 : vector<2x128xf32>
    %cst_572 = arith.constant 1.000000e+00 : f32
    %992 = vector.broadcast %cst_572 : f32 to vector<2x128xf32>
    %993 = arith.addf %992, %991 : vector<2x128xf32>
    %cst_573 = arith.constant 1.000000e+00 : f32
    %994 = vector.broadcast %cst_573 : f32 to vector<2x128xf32>
    %995 = arith.divf %994, %993 : vector<2x128xf32>
    %c0_574 = arith.constant 0 : index
    %c0_575 = arith.constant 0 : index
    %996 = vector.load %arg24[%c0_574, %c0_575] : memref<2x128xf32, #tpu.memory_space<vmem>>, vector<2x128xf32>
    tpu.vector_store %arg24[%c0_574, %c0_575], %995 {strides = array<i32>} : memref<2x128xf32, #tpu.memory_space<vmem>>, vector<2x128xf32>,
    return
  }
}

</mosaic_0001>

<llo_original>
// kernel: multi_source_encoder_forward.1
$region0: #{multi_source_encoder_forward.1}
  #allocation0 [shape = 'u32[]', space=smem, size = 0x4, offset = 0x4, fixed_abs, tag = 'smem constant byte address 0x4 - core index']
  #allocation1 [shape = 'u32[144,128]{1,0:T(1,128)}', space=vmem, size = 0x12000, scoped, tag = 'internal scratch']
  #allocation2 [shape = 's8[2,32,2048]{2,1,0:T(32,128)(4,1)}', space=vmem, size = 0x20000, scoped, tag = 'scratch operand']
  #allocation3 [shape = 's8[2,2048,32]{2,1,0:T(32,128)(4,1)}', space=vmem, size = 0x80000, scoped, tag = 'scratch operand']
  #allocation4 [shape = 's32[2]{0}', space=sflag, size = 0x8, scoped, tag = 'scratch operand']
  #allocation7 [shape = 's32[]', space=sflag, size = 0x4, offset = 0, fixed_abs, tag = 'sflag constant byte address 0x0 - dummy sync flag']
  #allocation8 [shape = 's32[]', space=sflag, size = 0x4, offset = 0, fixed_abs, tag = 'sflag constant byte address 0x0 - dummy sync flag']
  %s0 = inlined_call_operand.vmem [shape: f32[32,32], index: 0, kind: input, shape index: {}]
  %s1 = inlined_call_operand.vmem [shape: f32[2,1,16], index: 1, kind: input, shape index: {}]
  %s2 = inlined_call_operand.vmem [shape: f32[2,32], index: 2, kind: input, shape index: {}]
  %s3 = inlined_call_operand.vmem [shape: bf16[2,3,2,32,16], index: 3, kind: input, shape index: {}]
  %s4 = inlined_call_operand.vmem [shape: f32[2,6,16], index: 4, kind: input, shape index: {}]
  %s5 = inlined_call_operand.vmem [shape: bf16[2,2,16,32], index: 5, kind: input, shape index: {}]
  %s6 = inlined_call_operand.vmem [shape: f32[2,6,32], index: 6, kind: input, shape index: {}]
  %s7 = inlined_call_operand.vmem [shape: bf16[2,32,128], index: 7, kind: input, shape index: {}]
  %s8 = inlined_call_operand.vmem [shape: f32[2,128], index: 8, kind: input, shape index: {}]
  %s9 = inlined_call_operand.vmem [shape: bf16[2,128,32], index: 9, kind: input, shape index: {}]
  %s10 = inlined_call_operand.vmem [shape: f32[2,16,32], index: 10, kind: input, shape index: {}]
  %s11 = inlined_call_operand.vmem [shape: bf16[2,3,2,32,16], index: 11, kind: input, shape index: {}]
  %s12 = inlined_call_operand.vmem [shape: f32[2,6,16], index: 12, kind: input, shape index: {}]
  %s13 = inlined_call_operand.vmem [shape: bf16[2,2,16,32], index: 13, kind: input, shape index: {}]
  %s14 = inlined_call_operand.vmem [shape: f32[2,6,32], index: 14, kind: input, shape index: {}]
  %s15 = inlined_call_operand.vmem [shape: f32[2,2048], index: 15, kind: input, shape index: {}]
  %s16 = inlined_call_operand.vmem [shape: f32[2,2048], index: 16, kind: input, shape index: {}]
  %s17 = inlined_call_operand.vmem [shape: f32[2,32], index: 17, kind: input, shape index: {}]
  %s18 = inlined_call_operand.vmem [shape: bf16[32,128], index: 18, kind: input, shape index: {}]
  %s19 = inlined_call_operand.vmem [shape: f32[1,128], index: 19, kind: input, shape index: {}]
  %s20 = inlined_call_operand.vmem [shape: s8[2,32,2048], index: 20, kind: input, shape index: {}]
  %s21 = inlined_call_operand.vmem [shape: s8[2,2048,32], index: 21, kind: input, shape index: {}]
  %s22 = inlined_call_operand.hbm [shape: f32[32,32], index: 22, kind: output, shape index: {0}]
  %s23 = inlined_call_operand.vmem [shape: f32[2,2,32], index: 23, kind: output, shape index: {1}]
  %s24 = inlined_call_operand.vmem [shape: f32[2,128], index: 24, kind: output, shape index: {2}]
  %25 = xla_tuple %s22, %s23, %s24
  %s26 = sld [smem:[#allocation0]]
  $region174: #{multi_source_encoder_forward.1} parent=0
    _
  %s28 = ssub.s32 1, %s26
  %s29 = scalar_select 0, %s28, %s26
  $region1: #{multi_source_encoder_forward.1} parent=0
    #allocation5 [shape = 'u8[16384]{0}', space=vmem, size = 0x4000, scoped, tag = 'output window, operand 0, single buffered']
    #allocation6 [shape = 's32[1]{0}', space=sflag, size = 0x4, scoped, tag = 'scoped memory for multi_source_encoder_forward.1']
    %30 = vsyncpa [#allocation6], 0
    // Predicated region
    $region2: #{multi_source_encoder_forward.1} parent=1 // pred_check
      _
    $region3: #{multi_source_encoder_forward.1} parent=1 // pred_check_branch
      %32 = sbr.rel (0) target = $region5
    $region4: #{multi_source_encoder_forward.1} parent=1 // pred_region
      _
    $region5: #{multi_source_encoder_forward.1} parent=1 // pred_fallthru
      _
    // Predicated region
    $region6: #{multi_source_encoder_forward.1} parent=1 // pred_check
      _
    $region7: #{multi_source_encoder_forward.1} parent=1 // pred_check_branch
      %34 = sbr.rel (0) target = $region9
    $region8: #{multi_source_encoder_forward.1} parent=1 // pred_region
      _
    $region9: #{multi_source_encoder_forward.1} parent=1 // pred_fallthru
      _
    // Predicated region
    $region10: #{multi_source_encoder_forward.1} parent=1 // pred_check
      _
    $region11: #{multi_source_encoder_forward.1} parent=1 // pred_check_branch
      %36 = sbr.rel (0) target = $region13
    $region12: #{multi_source_encoder_forward.1} parent=1 // pred_region
      _
    $region13: #{multi_source_encoder_forward.1} parent=1 // pred_fallthru
      _
    // Predicated region
    $region14: #{multi_source_encoder_forward.1} parent=1 // pred_check
      _
    $region15: #{multi_source_encoder_forward.1} parent=1 // pred_check_branch
      %38 = sbr.rel (0) target = $region17
    $region16: #{multi_source_encoder_forward.1} parent=1 // pred_region
      _
    $region17: #{multi_source_encoder_forward.1} parent=1 // pred_fallthru
      _
    // Predicated region
    $region18: #{multi_source_encoder_forward.1} parent=1 // pred_check
      _
    $region19: #{multi_source_encoder_forward.1} parent=1 // pred_check_branch
      %40 = sbr.rel (0) target = $region21
    $region20: #{multi_source_encoder_forward.1} parent=1 // pred_region
      _
    $region21: #{multi_source_encoder_forward.1} parent=1 // pred_fallthru
      _
    // Predicated region
    $region22: #{multi_source_encoder_forward.1} parent=1 // pred_check
      _
    $region23: #{multi_source_encoder_forward.1} parent=1 // pred_check_branch
      %42 = sbr.rel (0) target = $region25
    $region24: #{multi_source_encoder_forward.1} parent=1 // pred_region
      _
    $region25: #{multi_source_encoder_forward.1} parent=1 // pred_fallthru
      _
    // Predicated region
    $region26: #{multi_source_encoder_forward.1} parent=1 // pred_check
      _
    $region27: #{multi_source_encoder_forward.1} parent=1 // pred_check_branch
      %44 = sbr.rel (0) target = $region29
    $region28: #{multi_source_encoder_forward.1} parent=1 // pred_region
      _
    $region29: #{multi_source_encoder_forward.1} parent=1 // pred_fallthru
      _
    // Predicated region
    $region30: #{multi_source_encoder_forward.1} parent=1 // pred_check
      _
    $region31: #{multi_source_encoder_forward.1} parent=1 // pred_check_branch
      %46 = sbr.rel (0) target = $region33
    $region32: #{multi_source_encoder_forward.1} parent=1 // pred_region
      _
    $region33: #{multi_source_encoder_forward.1} parent=1 // pred_fallthru
      _
    // Predicated region
    $region34: #{multi_source_encoder_forward.1} parent=1 // pred_check
      _
    $region35: #{multi_source_encoder_forward.1} parent=1 // pred_check_branch
      %48 = sbr.rel (0) target = $region37
    $region36: #{multi_source_encoder_forward.1} parent=1 // pred_region
      _
    $region37: #{multi_source_encoder_forward.1} parent=1 // pred_fallthru
      _
    // Predicated region
    $region38: #{multi_source_encoder_forward.1} parent=1 // pred_check
      _
    $region39: #{multi_source_encoder_forward.1} parent=1 // pred_check_branch
      %50 = sbr.rel (0) target = $region41
    $region40: #{multi_source_encoder_forward.1} parent=1 // pred_region
      _
    $region41: #{multi_source_encoder_forward.1} parent=1 // pred_fallthru
      _
    // Predicated region
    $region42: #{multi_source_encoder_forward.1} parent=1 // pred_check
      _
    $region43: #{multi_source_encoder_forward.1} parent=1 // pred_check_branch
      %52 = sbr.rel (0) target = $region45
    $region44: #{multi_source_encoder_forward.1} parent=1 // pred_region
      _
    $region45: #{multi_source_encoder_forward.1} parent=1 // pred_fallthru
      _
    // Predicated region
    $region46: #{multi_source_encoder_forward.1} parent=1 // pred_check
      _
    $region47: #{multi_source_encoder_forward.1} parent=1 // pred_check_branch
      %54 = sbr.rel (0) target = $region49
    $region48: #{multi_source_encoder_forward.1} parent=1 // pred_region
      _
    $region49: #{multi_source_encoder_forward.1} parent=1 // pred_fallthru
      _
    // Predicated region
    $region50: #{multi_source_encoder_forward.1} parent=1 // pred_check
      _
    $region51: #{multi_source_encoder_forward.1} parent=1 // pred_check_branch
      %56 = sbr.rel (0) target = $region53
    $region52: #{multi_source_encoder_forward.1} parent=1 // pred_region
      _
    $region53: #{multi_source_encoder_forward.1} parent=1 // pred_fallthru
      _
    // Predicated region
    $region54: #{multi_source_encoder_forward.1} parent=1 // pred_check
      _
    $region55: #{multi_source_encoder_forward.1} parent=1 // pred_check_branch
      %58 = sbr.rel (0) target = $region57
    $region56: #{multi_source_encoder_forward.1} parent=1 // pred_region
      _
    $region57: #{multi_source_encoder_forward.1} parent=1 // pred_fallthru
      _
    // Predicated region
    $region58: #{multi_source_encoder_forward.1} parent=1 // pred_check
      _
    $region59: #{multi_source_encoder_forward.1} parent=1 // pred_check_branch
      %60 = sbr.rel (0) target = $region61
    $region60: #{multi_source_encoder_forward.1} parent=1 // pred_region
      _
    $region61: #{multi_source_encoder_forward.1} parent=1 // pred_fallthru
      _
    // Predicated region
    $region62: #{multi_source_encoder_forward.1} parent=1 // pred_check
      _
    $region63: #{multi_source_encoder_forward.1} parent=1 // pred_check_branch
      %62 = sbr.rel (0) target = $region65
    $region64: #{multi_source_encoder_forward.1} parent=1 // pred_region
      _
    $region65: #{multi_source_encoder_forward.1} parent=1 // pred_fallthru
      _
    // Predicated region
    $region66: #{multi_source_encoder_forward.1} parent=1 // pred_check
      _
    $region67: #{multi_source_encoder_forward.1} parent=1 // pred_check_branch
      %64 = sbr.rel (0) target = $region69
    $region68: #{multi_source_encoder_forward.1} parent=1 // pred_region
      _
    $region69: #{multi_source_encoder_forward.1} parent=1 // pred_fallthru
      _
    // Predicated region
    $region70: #{multi_source_encoder_forward.1} parent=1 // pred_check
      _
    $region71: #{multi_source_encoder_forward.1} parent=1 // pred_check_branch
      %66 = sbr.rel (0) target = $region73
    $region72: #{multi_source_encoder_forward.1} parent=1 // pred_region
      _
    $region73: #{multi_source_encoder_forward.1} parent=1 // pred_fallthru
      _
    // Predicated region
    $region74: #{multi_source_encoder_forward.1} parent=1 // pred_check
      _
    $region75: #{multi_source_encoder_forward.1} parent=1 // pred_check_branch
      %68 = sbr.rel (0) target = $region77
    $region76: #{multi_source_encoder_forward.1} parent=1 // pred_region
      _
    $region77: #{multi_source_encoder_forward.1} parent=1 // pred_fallthru
      _
    // Predicated region
    $region78: #{multi_source_encoder_forward.1} parent=1 // pred_check
      _
    $region79: #{multi_source_encoder_forward.1} parent=1 // pred_check_branch
      %70 = sbr.rel (0) target = $region81
    $region80: #{multi_source_encoder_forward.1} parent=1 // pred_region
      _
    $region81: #{multi_source_encoder_forward.1} parent=1 // pred_fallthru
      _
    %p73 = scmp.lt.u32.totalorder 256, 8
    %p74 = pneg %p73
    // Predicated region
    $region82: #{multi_source_encoder_forward.1} parent=1 // pred_check
      _
    $region83: #{multi_source_encoder_forward.1} parent=1 // pred_check_branch
      %76 = sbr.rel (%p73) target = $region85
    $region84: #{multi_source_encoder_forward.1} parent=1 // pred_region
      %s91 = sand.u32 256, 7
      %p92 = scmp.eq.s32.totalorder %s91, 0
      // Predicated region
      $region97: #{multi_source_encoder_forward.1} parent=84 // pred_check
        %p93 = pneg %p92
      $region98: #{multi_source_encoder_forward.1} parent=84 // pred_check_branch
        %95 = sbr.rel (%p93) target = $region100
      $region99: #{multi_source_encoder_forward.1} parent=84 // pred_region
        loop: start=0, step=1, limit=1
        $region101: #{multi_source_encoder_forward.1} parent=99 // loop_pre_header
          _
        $region102: #{multi_source_encoder_forward.1} parent=99 // loop_header
          %s97 = sphi 0, %s101
          %p98 = scmp.ge.s32.totalorder %s97, 1
          %s102 = sphi %s20, %s20
          %s103 = sphi [#allocation2], [#allocation2]
        $region103: #{multi_source_encoder_forward.1} parent=99 // loop_header_branch
          %100 = sbr.rel (%p98) target = $region107
        $region104: #{multi_source_encoder_forward.1} parent=99 // loop_body
          %v104 = vld [vmem:[%s102] sm:$0xff]
          %105 = vst [vmem:[%s103] sm:$0xff] %v104
          %v106 = vld [vmem:[%s102 + $0x8] sm:$0xff]
          %107 = vst [vmem:[%s103 + $0x8] sm:$0xff] %v106
          %v108 = vld [vmem:[%s102 + $0x10] sm:$0xff]
          %109 = vst [vmem:[%s103 + $0x10] sm:$0xff] %v108
          %v110 = vld [vmem:[%s102 + $0x18] sm:$0xff]
          %111 = vst [vmem:[%s103 + $0x18] sm:$0xff] %v110
          %v112 = vld [vmem:[%s102 + $0x20] sm:$0xff]
          %113 = vst [vmem:[%s103 + $0x20] sm:$0xff] %v112
          %v114 = vld [vmem:[%s102 + $0x28] sm:$0xff]
          %115 = vst [vmem:[%s103 + $0x28] sm:$0xff] %v114
          %v116 = vld [vmem:[%s102 + $0x30] sm:$0xff]
          %117 = vst [vmem:[%s103 + $0x30] sm:$0xff] %v116
          %v118 = vld [vmem:[%s102 + $0x38] sm:$0xff]
          %119 = vst [vmem:[%s103 + $0x38] sm:$0xff] %v118
          %v120 = vld [vmem:[%s102 + $0x40] sm:$0xff]
          %121 = vst [vmem:[%s103 + $0x40] sm:$0xff] %v120
          %v122 = vld [vmem:[%s102 + $0x48] sm:$0xff]
          %123 = vst [vmem:[%s103 + $0x48] sm:$0xff] %v122
          %v124 = vld [vmem:[%s102 + $0x50] sm:$0xff]
          %125 = vst [vmem:[%s103 + $0x50] sm:$0xff] %v124
          %v126 = vld [vmem:[%s102 + $0x58] sm:$0xff]
          %127 = vst [vmem:[%s103 + $0x58] sm:$0xff] %v126
          %v128 = vld [vmem:[%s102 + $0x60] sm:$0xff]
          %129 = vst [vmem:[%s103 + $0x60] sm:$0xff] %v128
          %v130 = vld [vmem:[%s102 + $0x68] sm:$0xff]
          %131 = vst [vmem:[%s103 + $0x68] sm:$0xff] %v130
          %v132 = vld [vmem:[%s102 + $0x70] sm:$0xff]
          %133 = vst [vmem:[%s103 + $0x70] sm:$0xff] %v132
          %v134 = vld [vmem:[%s102 + $0x78] sm:$0xff]
          %135 = vst [vmem:[%s103 + $0x78] sm:$0xff] %v134
          %v136 = vld [vmem:[%s102 + $0x80] sm:$0xff]
          %137 = vst [vmem:[%s103 + $0x80] sm:$0xff] %v136
          %v138 = vld [vmem:[%s102 + $0x88] sm:$0xff]
          %139 = vst [vmem:[%s103 + $0x88] sm:$0xff] %v138
          %v140 = vld [vmem:[%s102 + $0x90] sm:$0xff]
          %141 = vst [vmem:[%s103 + $0x90] sm:$0xff] %v140
          %v142 = vld [vmem:[%s102 + $0x98] sm:$0xff]
          %143 = vst [vmem:[%s103 + $0x98] sm:$0xff] %v142
          %v144 = vld [vmem:[%s102 + $0xa0] sm:$0xff]
          %145 = vst [vmem:[%s103 + $0xa0] sm:$0xff] %v144
          %v146 = vld [vmem:[%s102 + $0xa8] sm:$0xff]
          %147 = vst [vmem:[%s103 + $0xa8] sm:$0xff] %v146
          %v148 = vld [vmem:[%s102 + $0xb0] sm:$0xff]
          %149 = vst [vmem:[%s103 + $0xb0] sm:$0xff] %v148
          %v150 = vld [vmem:[%s102 + $0xb8] sm:$0xff]
          %151 = vst [vmem:[%s103 + $0xb8] sm:$0xff] %v150
          %v152 = vld [vmem:[%s102 + $0xc0] sm:$0xff]
          %153 = vst [vmem:[%s103 + $0xc0] sm:$0xff] %v152
          %v154 = vld [vmem:[%s102 + $0xc8] sm:$0xff]
          %155 = vst [vmem:[%s103 + $0xc8] sm:$0xff] %v154
          %v156 = vld [vmem:[%s102 + $0xd0] sm:$0xff]
          %157 = vst [vmem:[%s103 + $0xd0] sm:$0xff] %v156
          %v158 = vld [vmem:[%s102 + $0xd8] sm:$0xff]
          %159 = vst [vmem:[%s103 + $0xd8] sm:$0xff] %v158
          %v160 = vld [vmem:[%s102 + $0xe0] sm:$0xff]
          %161 = vst [vmem:[%s103 + $0xe0] sm:$0xff] %v160
          %v162 = vld [vmem:[%s102 + $0xe8] sm:$0xff]
          %163 = vst [vmem:[%s103 + $0xe8] sm:$0xff] %v162
          %v164 = vld [vmem:[%s102 + $0xf0] sm:$0xff]
          %165 = vst [vmem:[%s103 + $0xf0] sm:$0xff] %v164
          %v166 = vld [vmem:[%s102 + $0xf8] sm:$0xff]
          %167 = vst [vmem:[%s103 + $0xf8] sm:$0xff] %v166
        $region105: #{multi_source_encoder_forward.1} parent=99 // loop_footer
          %s101 = sadd.s32 1, %s97
        $region106: #{multi_source_encoder_forward.1} parent=99 // loop_footer_branch
          %96 = sbr.rel target = $region102
        $region107: #{multi_source_encoder_forward.1} parent=99 // loop_exit
          _
      $region100: #{multi_source_encoder_forward.1} parent=84 // pred_fallthru
        _
      %p168 = pneg %p92
      // Predicated region
      $region108: #{multi_source_encoder_forward.1} parent=84 // pred_check
        _
      $region109: #{multi_source_encoder_forward.1} parent=84 // pred_check_branch
        %170 = sbr.rel (%p92) target = $region111
      $region110: #{multi_source_encoder_forward.1} parent=84 // pred_region
        %s171 = sand.u32 256, 7
      $region111: #{multi_source_encoder_forward.1} parent=84 // pred_fallthru
        _
    $region85: #{multi_source_encoder_forward.1} parent=1 // pred_fallthru
      _
    // Predicated region
    $region86: #{multi_source_encoder_forward.1} parent=1 // pred_check
      %p77 = pneg %p73
    $region87: #{multi_source_encoder_forward.1} parent=1 // pred_check_branch
      %79 = sbr.rel (%p77) target = $region89
    $region88: #{multi_source_encoder_forward.1} parent=1 // pred_region
      %s80 = sshllo.u32 0, 256
      loop: start=0, step=1, limit=1
      $region90: #{multi_source_encoder_forward.1} parent=88 // loop_pre_header
        _
      $region91: #{multi_source_encoder_forward.1} parent=88 // loop_header
        %s82 = sphi 0, %s86
        %p83 = scmp.ge.s32.totalorder %s82, 1
        %s87 = sphi %s20, %s20
        %s88 = sphi [#allocation2], [#allocation2]
      $region92: #{multi_source_encoder_forward.1} parent=88 // loop_header_branch
        %85 = sbr.rel (%p83) target = $region96
      $region93: #{multi_source_encoder_forward.1} parent=88 // loop_body
        %v89 = vld [vmem:[%s87] sm:%s80]
        %90 = vst [vmem:[%s88] sm:%s80] %v89
      $region94: #{multi_source_encoder_forward.1} parent=88 // loop_footer
        %s86 = sadd.s32 1, %s82
      $region95: #{multi_source_encoder_forward.1} parent=88 // loop_footer_branch
        %81 = sbr.rel target = $region91
      $region96: #{multi_source_encoder_forward.1} parent=88 // loop_exit
        _
    $region89: #{multi_source_encoder_forward.1} parent=1 // pred_fallthru
      _
    // Predicated region
    $region112: #{multi_source_encoder_forward.1} parent=1 // pred_check
      _
    $region113: #{multi_source_encoder_forward.1} parent=1 // pred_check_branch
      %174 = sbr.rel (0) target = $region115
    $region114: #{multi_source_encoder_forward.1} parent=1 // pred_region
      %175 = vsyncadd [#allocation4], 4096
    $region115: #{multi_source_encoder_forward.1} parent=1 // pred_fallthru
      _
    %s176 = scalar_lea.sflag [#allocation4], 1
    %p178 = scmp.lt.u32.totalorder 1024, 8
    %p179 = pneg %p178
    // Predicated region
    $region116: #{multi_source_encoder_forward.1} parent=1 // pred_check
      _
    $region117: #{multi_source_encoder_forward.1} parent=1 // pred_check_branch
      %181 = sbr.rel (%p178) target = $region119
    $region118: #{multi_source_encoder_forward.1} parent=1 // pred_region
      %s196 = sand.u32 1024, 7
      %p197 = scmp.eq.s32.totalorder %s196, 0
      // Predicated region
      $region131: #{multi_source_encoder_forward.1} parent=118 // pred_check
        %p198 = pneg %p197
      $region132: #{multi_source_encoder_forward.1} parent=118 // pred_check_branch
        %200 = sbr.rel (%p198) target = $region134
      $region133: #{multi_source_encoder_forward.1} parent=118 // pred_region
        loop: start=0, step=1, limit=1
        $region135: #{multi_source_encoder_forward.1} parent=133 // loop_pre_header
          _
        $region136: #{multi_source_encoder_forward.1} parent=133 // loop_header
          %s202 = sphi 0, %s206
          %p203 = scmp.ge.s32.totalorder %s202, 1
          %s207 = sphi %s21, %s21
          %s208 = sphi [#allocation3], [#allocation3]
        $region137: #{multi_source_encoder_forward.1} parent=133 // loop_header_branch
          %205 = sbr.rel (%p203) target = $region141
        $region138: #{multi_source_encoder_forward.1} parent=133 // loop_body
          %v209 = vld [vmem:[%s207] sm:$0xff]
          %210 = vst [vmem:[%s208] sm:$0xff] %v209
          %v211 = vld [vmem:[%s207 + $0x8] sm:$0xff]
          %212 = vst [vmem:[%s208 + $0x8] sm:$0xff] %v211
          %v213 = vld [vmem:[%s207 + $0x10] sm:$0xff]
          %214 = vst [vmem:[%s208 + $0x10] sm:$0xff] %v213
          %v215 = vld [vmem:[%s207 + $0x18] sm:$0xff]
          %216 = vst [vmem:[%s208 + $0x18] sm:$0xff] %v215
          %v217 = vld [vmem:[%s207 + $0x20] sm:$0xff]
          %218 = vst [vmem:[%s208 + $0x20] sm:$0xff] %v217
          %v219 = vld [vmem:[%s207 + $0x28] sm:$0xff]
          %220 = vst [vmem:[%s208 + $0x28] sm:$0xff] %v219
          %v221 = vld [vmem:[%s207 + $0x30] sm:$0xff]
          %222 = vst [vmem:[%s208 + $0x30] sm:$0xff] %v221
          %v223 = vld [vmem:[%s207 + $0x38] sm:$0xff]
          %224 = vst [vmem:[%s208 + $0x38] sm:$0xff] %v223
          %v225 = vld [vmem:[%s207 + $0x40] sm:$0xff]
          %226 = vst [vmem:[%s208 + $0x40] sm:$0xff] %v225
          %v227 = vld [vmem:[%s207 + $0x48] sm:$0xff]
          %228 = vst [vmem:[%s208 + $0x48] sm:$0xff] %v227
          %v229 = vld [vmem:[%s207 + $0x50] sm:$0xff]
          %230 = vst [vmem:[%s208 + $0x50] sm:$0xff] %v229
          %v231 = vld [vmem:[%s207 + $0x58] sm:$0xff]
          %232 = vst [vmem:[%s208 + $0x58] sm:$0xff] %v231
          %v233 = vld [vmem:[%s207 + $0x60] sm:$0xff]
          %234 = vst [vmem:[%s208 + $0x60] sm:$0xff] %v233
          %v235 = vld [vmem:[%s207 + $0x68] sm:$0xff]
          %236 = vst [vmem:[%s208 + $0x68] sm:$0xff] %v235
          %v237 = vld [vmem:[%s207 + $0x70] sm:$0xff]
          %238 = vst [vmem:[%s208 + $0x70] sm:$0xff] %v237
          %v239 = vld [vmem:[%s207 + $0x78] sm:$0xff]
          %240 = vst [vmem:[%s208 + $0x78] sm:$0xff] %v239
          %v241 = vld [vmem:[%s207 + $0x80] sm:$0xff]
          %242 = vst [vmem:[%s208 + $0x80] sm:$0xff] %v241
          %v243 = vld [vmem:[%s207 + $0x88] sm:$0xff]
          %244 = vst [vmem:[%s208 + $0x88] sm:$0xff] %v243
          %v245 = vld [vmem:[%s207 + $0x90] sm:$0xff]
          %246 = vst [vmem:[%s208 + $0x90] sm:$0xff] %v245
          %v247 = vld [vmem:[%s207 + $0x98] sm:$0xff]
          %248 = vst [vmem:[%s208 + $0x98] sm:$0xff] %v247
          %v249 = vld [vmem:[%s207 + $0xa0] sm:$0xff]
          %250 = vst [vmem:[%s208 + $0xa0] sm:$0xff] %v249
          %v251 = vld [vmem:[%s207 + $0xa8] sm:$0xff]
          %252 = vst [vmem:[%s208 + $0xa8] sm:$0xff] %v251
          %v253 = vld [vmem:[%s207 + $0xb0] sm:$0xff]
          %254 = vst [vmem:[%s208 + $0xb0] sm:$0xff] %v253
          %v255 = vld [vmem:[%s207 + $0xb8] sm:$0xff]
          %256 = vst [vmem:[%s208 + $0xb8] sm:$0xff] %v255
          %v257 = vld [vmem:[%s207 + $0xc0] sm:$0xff]
          %258 = vst [vmem:[%s208 + $0xc0] sm:$0xff] %v257
          %v259 = vld [vmem:[%s207 + $0xc8] sm:$0xff]
          %260 = vst [vmem:[%s208 + $0xc8] sm:$0xff] %v259
          %v261 = vld [vmem:[%s207 + $0xd0] sm:$0xff]
          %262 = vst [vmem:[%s208 + $0xd0] sm:$0xff] %v261
          %v263 = vld [vmem:[%s207 + $0xd8] sm:$0xff]
          %264 = vst [vmem:[%s208 + $0xd8] sm:$0xff] %v263
          %v265 = vld [vmem:[%s207 + $0xe0] sm:$0xff]
          %266 = vst [vmem:[%s208 + $0xe0] sm:$0xff] %v265
          %v267 = vld [vmem:[%s207 + $0xe8] sm:$0xff]
          %268 = vst [vmem:[%s208 + $0xe8] sm:$0xff] %v267
          %v269 = vld [vmem:[%s207 + $0xf0] sm:$0xff]
          %270 = vst [vmem:[%s208 + $0xf0] sm:$0xff] %v269
          %v271 = vld [vmem:[%s207 + $0xf8] sm:$0xff]
          %272 = vst [vmem:[%s208 + $0xf8] sm:$0xff] %v271
          %v273 = vld [vmem:[%s207 + $0x100] sm:$0xff]
          %274 = vst [vmem:[%s208 + $0x100] sm:$0xff] %v273
          %v275 = vld [vmem:[%s207 + $0x108] sm:$0xff]
          %276 = vst [vmem:[%s208 + $0x108] sm:$0xff] %v275
          %v277 = vld [vmem:[%s207 + $0x110] sm:$0xff]
          %278 = vst [vmem:[%s208 + $0x110] sm:$0xff] %v277
          %v279 = vld [vmem:[%s207 + $0x118] sm:$0xff]
          %280 = vst [vmem:[%s208 + $0x118] sm:$0xff] %v279
          %v281 = vld [vmem:[%s207 + $0x120] sm:$0xff]
          %282 = vst [vmem:[%s208 + $0x120] sm:$0xff] %v281
          %v283 = vld [vmem:[%s207 + $0x128] sm:$0xff]
          %284 = vst [vmem:[%s208 + $0x128] sm:$0xff] %v283
          %v285 = vld [vmem:[%s207 + $0x130] sm:$0xff]
          %286 = vst [vmem:[%s208 + $0x130] sm:$0xff] %v285
          %v287 = vld [vmem:[%s207 + $0x138] sm:$0xff]
          %288 = vst [vmem:[%s208 + $0x138] sm:$0xff] %v287
          %v289 = vld [vmem:[%s207 + $0x140] sm:$0xff]
          %290 = vst [vmem:[%s208 + $0x140] sm:$0xff] %v289
          %v291 = vld [vmem:[%s207 + $0x148] sm:$0xff]
          %292 = vst [vmem:[%s208 + $0x148] sm:$0xff] %v291
          %v293 = vld [vmem:[%s207 + $0x150] sm:$0xff]
          %294 = vst [vmem:[%s208 + $0x150] sm:$0xff] %v293
          %v295 = vld [vmem:[%s207 + $0x158] sm:$0xff]
          %296 = vst [vmem:[%s208 + $0x158] sm:$0xff] %v295
          %v297 = vld [vmem:[%s207 + $0x160] sm:$0xff]
          %298 = vst [vmem:[%s208 + $0x160] sm:$0xff] %v297
          %v299 = vld [vmem:[%s207 + $0x168] sm:$0xff]
          %300 = vst [vmem:[%s208 + $0x168] sm:$0xff] %v299
          %v301 = vld [vmem:[%s207 + $0x170] sm:$0xff]
          %302 = vst [vmem:[%s208 + $0x170] sm:$0xff] %v301
          %v303 = vld [vmem:[%s207 + $0x178] sm:$0xff]
          %304 = vst [vmem:[%s208 + $0x178] sm:$0xff] %v303
          %v305 = vld [vmem:[%s207 + $0x180] sm:$0xff]
          %306 = vst [vmem:[%s208 + $0x180] sm:$0xff] %v305
          %v307 = vld [vmem:[%s207 + $0x188] sm:$0xff]
          %308 = vst [vmem:[%s208 + $0x188] sm:$0xff] %v307
          %v309 = vld [vmem:[%s207 + $0x190] sm:$0xff]
          %310 = vst [vmem:[%s208 + $0x190] sm:$0xff] %v309
          %v311 = vld [vmem:[%s207 + $0x198] sm:$0xff]
          %312 = vst [vmem:[%s208 + $0x198] sm:$0xff] %v311
          %v313 = vld [vmem:[%s207 + $0x1a0] sm:$0xff]
          %314 = vst [vmem:[%s208 + $0x1a0] sm:$0xff] %v313
          %v315 = vld [vmem:[%s207 + $0x1a8] sm:$0xff]
          %316 = vst [vmem:[%s208 + $0x1a8] sm:$0xff] %v315
          %v317 = vld [vmem:[%s207 + $0x1b0] sm:$0xff]
          %318 = vst [vmem:[%s208 + $0x1b0] sm:$0xff] %v317
          %v319 = vld [vmem:[%s207 + $0x1b8] sm:$0xff]
          %320 = vst [vmem:[%s208 + $0x1b8] sm:$0xff] %v319
          %v321 = vld [vmem:[%s207 + $0x1c0] sm:$0xff]
          %322 = vst [vmem:[%s208 + $0x1c0] sm:$0xff] %v321
          %v323 = vld [vmem:[%s207 + $0x1c8] sm:$0xff]
          %324 = vst [vmem:[%s208 + $0x1c8] sm:$0xff] %v323
          %v325 = vld [vmem:[%s207 + $0x1d0] sm:$0xff]
          %326 = vst [vmem:[%s208 + $0x1d0] sm:$0xff] %v325
          %v327 = vld [vmem:[%s207 + $0x1d8] sm:$0xff]
          %328 = vst [vmem:[%s208 + $0x1d8] sm:$0xff] %v327
          %v329 = vld [vmem:[%s207 + $0x1e0] sm:$0xff]
          %330 = vst [vmem:[%s208 + $0x1e0] sm:$0xff] %v329
          %v331 = vld [vmem:[%s207 + $0x1e8] sm:$0xff]
          %332 = vst [vmem:[%s208 + $0x1e8] sm:$0xff] %v331
          %v333 = vld [vmem:[%s207 + $0x1f0] sm:$0xff]
          %334 = vst [vmem:[%s208 + $0x1f0] sm:$0xff] %v333
          %v335 = vld [vmem:[%s207 + $0x1f8] sm:$0xff]
          %336 = vst [vmem:[%s208 + $0x1f8] sm:$0xff] %v335
          %v337 = vld [vmem:[%s207 + $0x200] sm:$0xff]
          %338 = vst [vmem:[%s208 + $0x200] sm:$0xff] %v337
          %v339 = vld [vmem:[%s207 + $0x208] sm:$0xff]
          %340 = vst [vmem:[%s208 + $0x208] sm:$0xff] %v339
          %v341 = vld [vmem:[%s207 + $0x210] sm:$0xff]
          %342 = vst [vmem:[%s208 + $0x210] sm:$0xff] %v341
          %v343 = vld [vmem:[%s207 + $0x218] sm:$0xff]
          %344 = vst [vmem:[%s208 + $0x218] sm:$0xff] %v343
          %v345 = vld [vmem:[%s207 + $0x220] sm:$0xff]
          %346 = vst [vmem:[%s208 + $0x220] sm:$0xff] %v345
          %v347 = vld [vmem:[%s207 + $0x228] sm:$0xff]
          %348 = vst [vmem:[%s208 + $0x228] sm:$0xff] %v347
          %v349 = vld [vmem:[%s207 + $0x230] sm:$0xff]
          %350 = vst [vmem:[%s208 + $0x230] sm:$0xff] %v349
          %v351 = vld [vmem:[%s207 + $0x238] sm:$0xff]
          %352 = vst [vmem:[%s208 + $0x238] sm:$0xff] %v351
          %v353 = vld [vmem:[%s207 + $0x240] sm:$0xff]
          %354 = vst [vmem:[%s208 + $0x240] sm:$0xff] %v353
          %v355 = vld [vmem:[%s207 + $0x248] sm:$0xff]
          %356 = vst [vmem:[%s208 + $0x248] sm:$0xff] %v355
          %v357 = vld [vmem:[%s207 + $0x250] sm:$0xff]
          %358 = vst [vmem:[%s208 + $0x250] sm:$0xff] %v357
          %v359 = vld [vmem:[%s207 + $0x258] sm:$0xff]
          %360 = vst [vmem:[%s208 + $0x258] sm:$0xff] %v359
          %v361 = vld [vmem:[%s207 + $0x260] sm:$0xff]
          %362 = vst [vmem:[%s208 + $0x260] sm:$0xff] %v361
          %v363 = vld [vmem:[%s207 + $0x268] sm:$0xff]
          %364 = vst [vmem:[%s208 + $0x268] sm:$0xff] %v363
          %v365 = vld [vmem:[%s207 + $0x270] sm:$0xff]
          %366 = vst [vmem:[%s208 + $0x270] sm:$0xff] %v365
          %v367 = vld [vmem:[%s207 + $0x278] sm:$0xff]
          %368 = vst [vmem:[%s208 + $0x278] sm:$0xff] %v367
          %v369 = vld [vmem:[%s207 + $0x280] sm:$0xff]
          %370 = vst [vmem:[%s208 + $0x280] sm:$0xff] %v369
          %v371 = vld [vmem:[%s207 + $0x288] sm:$0xff]
          %372 = vst [vmem:[%s208 + $0x288] sm:$0xff] %v371
          %v373 = vld [vmem:[%s207 + $0x290] sm:$0xff]
          %374 = vst [vmem:[%s208 + $0x290] sm:$0xff] %v373
          %v375 = vld [vmem:[%s207 + $0x298] sm:$0xff]
          %376 = vst [vmem:[%s208 + $0x298] sm:$0xff] %v375
          %v377 = vld [vmem:[%s207 + $0x2a0] sm:$0xff]
          %378 = vst [vmem:[%s208 + $0x2a0] sm:$0xff] %v377
          %v379 = vld [vmem:[%s207 + $0x2a8] sm:$0xff]
          %380 = vst [vmem:[%s208 + $0x2a8] sm:$0xff] %v379
          %v381 = vld [vmem:[%s207 + $0x2b0] sm:$0xff]
          %382 = vst [vmem:[%s208 + $0x2b0] sm:$0xff] %v381
          %v383 = vld [vmem:[%s207 + $0x2b8] sm:$0xff]
          %384 = vst [vmem:[%s208 + $0x2b8] sm:$0xff] %v383
          %v385 = vld [vmem:[%s207 + $0x2c0] sm:$0xff]
          %386 = vst [vmem:[%s208 + $0x2c0] sm:$0xff] %v385
          %v387 = vld [vmem:[%s207 + $0x2c8] sm:$0xff]
          %388 = vst [vmem:[%s208 + $0x2c8] sm:$0xff] %v387
          %v389 = vld [vmem:[%s207 + $0x2d0] sm:$0xff]
          %390 = vst [vmem:[%s208 + $0x2d0] sm:$0xff] %v389
          %v391 = vld [vmem:[%s207 + $0x2d8] sm:$0xff]
          %392 = vst [vmem:[%s208 + $0x2d8] sm:$0xff] %v391
          %v393 = vld [vmem:[%s207 + $0x2e0] sm:$0xff]
          %394 = vst [vmem:[%s208 + $0x2e0] sm:$0xff] %v393
          %v395 = vld [vmem:[%s207 + $0x2e8] sm:$0xff]
          %396 = vst [vmem:[%s208 + $0x2e8] sm:$0xff] %v395
          %v397 = vld [vmem:[%s207 + $0x2f0] sm:$0xff]
          %398 = vst [vmem:[%s208 + $0x2f0] sm:$0xff] %v397
          %v399 = vld [vmem:[%s207 + $0x2f8] sm:$0xff]
          %400 = vst [vmem:[%s208 + $0x2f8] sm:$0xff] %v399
          %v401 = vld [vmem:[%s207 + $0x300] sm:$0xff]
          %402 = vst [vmem:[%s208 + $0x300] sm:$0xff] %v401
          %v403 = vld [vmem:[%s207 + $0x308] sm:$0xff]
          %404 = vst [vmem:[%s208 + $0x308] sm:$0xff] %v403
          %v405 = vld [vmem:[%s207 + $0x310] sm:$0xff]
          %406 = vst [vmem:[%s208 + $0x310] sm:$0xff] %v405
          %v407 = vld [vmem:[%s207 + $0x318] sm:$0xff]
          %408 = vst [vmem:[%s208 + $0x318] sm:$0xff] %v407
          %v409 = vld [vmem:[%s207 + $0x320] sm:$0xff]
          %410 = vst [vmem:[%s208 + $0x320] sm:$0xff] %v409
          %v411 = vld [vmem:[%s207 + $0x328] sm:$0xff]
          %412 = vst [vmem:[%s208 + $0x328] sm:$0xff] %v411
          %v413 = vld [vmem:[%s207 + $0x330] sm:$0xff]
          %414 = vst [vmem:[%s208 + $0x330] sm:$0xff] %v413
          %v415 = vld [vmem:[%s207 + $0x338] sm:$0xff]
          %416 = vst [vmem:[%s208 + $0x338] sm:$0xff] %v415
          %v417 = vld [vmem:[%s207 + $0x340] sm:$0xff]
          %418 = vst [vmem:[%s208 + $0x340] sm:$0xff] %v417
          %v419 = vld [vmem:[%s207 + $0x348] sm:$0xff]
          %420 = vst [vmem:[%s208 + $0x348] sm:$0xff] %v419
          %v421 = vld [vmem:[%s207 + $0x350] sm:$0xff]
          %422 = vst [vmem:[%s208 + $0x350] sm:$0xff] %v421
          %v423 = vld [vmem:[%s207 + $0x358] sm:$0xff]
          %424 = vst [vmem:[%s208 + $0x358] sm:$0xff] %v423
          %v425 = vld [vmem:[%s207 + $0x360] sm:$0xff]
          %426 = vst [vmem:[%s208 + $0x360] sm:$0xff] %v425
          %v427 = vld [vmem:[%s207 + $0x368] sm:$0xff]
          %428 = vst [vmem:[%s208 + $0x368] sm:$0xff] %v427
          %v429 = vld [vmem:[%s207 + $0x370] sm:$0xff]
          %430 = vst [vmem:[%s208 + $0x370] sm:$0xff] %v429
          %v431 = vld [vmem:[%s207 + $0x378] sm:$0xff]
          %432 = vst [vmem:[%s208 + $0x378] sm:$0xff] %v431
          %v433 = vld [vmem:[%s207 + $0x380] sm:$0xff]
          %434 = vst [vmem:[%s208 + $0x380] sm:$0xff] %v433
          %v435 = vld [vmem:[%s207 + $0x388] sm:$0xff]
          %436 = vst [vmem:[%s208 + $0x388] sm:$0xff] %v435
          %v437 = vld [vmem:[%s207 + $0x390] sm:$0xff]
          %438 = vst [vmem:[%s208 + $0x390] sm:$0xff] %v437
          %v439 = vld [vmem:[%s207 + $0x398] sm:$0xff]
          %440 = vst [vmem:[%s208 + $0x398] sm:$0xff] %v439
          %v441 = vld [vmem:[%s207 + $0x3a0] sm:$0xff]
          %442 = vst [vmem:[%s208 + $0x3a0] sm:$0xff] %v441
          %v443 = vld [vmem:[%s207 + $0x3a8] sm:$0xff]
          %444 = vst [vmem:[%s208 + $0x3a8] sm:$0xff] %v443
          %v445 = vld [vmem:[%s207 + $0x3b0] sm:$0xff]
          %446 = vst [vmem:[%s208 + $0x3b0] sm:$0xff] %v445
          %v447 = vld [vmem:[%s207 + $0x3b8] sm:$0xff]
          %448 = vst [vmem:[%s208 + $0x3b8] sm:$0xff] %v447
          %v449 = vld [vmem:[%s207 + $0x3c0] sm:$0xff]
          %450 = vst [vmem:[%s208 + $0x3c0] sm:$0xff] %v449
          %v451 = vld [vmem:[%s207 + $0x3c8] sm:$0xff]
          %452 = vst [vmem:[%s208 + $0x3c8] sm:$0xff] %v451
          %v453 = vld [vmem:[%s207 + $0x3d0] sm:$0xff]
          %454 = vst [vmem:[%s208 + $0x3d0] sm:$0xff] %v453
          %v455 = vld [vmem:[%s207 + $0x3d8] sm:$0xff]
          %456 = vst [vmem:[%s208 + $0x3d8] sm:$0xff] %v455
          %v457 = vld [vmem:[%s207 + $0x3e0] sm:$0xff]
          %458 = vst [vmem:[%s208 + $0x3e0] sm:$0xff] %v457
          %v459 = vld [vmem:[%s207 + $0x3e8] sm:$0xff]
          %460 = vst [vmem:[%s208 + $0x3e8] sm:$0xff] %v459
          %v461 = vld [vmem:[%s207 + $0x3f0] sm:$0xff]
          %462 = vst [vmem:[%s208 + $0x3f0] sm:$0xff] %v461
          %v463 = vld [vmem:[%s207 + $0x3f8] sm:$0xff]
          %464 = vst [vmem:[%s208 + $0x3f8] sm:$0xff] %v463
        $region139: #{multi_source_encoder_forward.1} parent=133 // loop_footer
          %s206 = sadd.s32 1, %s202
        $region140: #{multi_source_encoder_forward.1} parent=133 // loop_footer_branch
          %201 = sbr.rel target = $region136
        $region141: #{multi_source_encoder_forward.1} parent=133 // loop_exit
          _
      $region134: #{multi_source_encoder_forward.1} parent=118 // pred_fallthru
        _
      %p465 = pneg %p197
      // Predicated region
      $region142: #{multi_source_encoder_forward.1} parent=118 // pred_check
        _
      $region143: #{multi_source_encoder_forward.1} parent=118 // pred_check_branch
        %467 = sbr.rel (%p197) target = $region145
      $region144: #{multi_source_encoder_forward.1} parent=118 // pred_region
        %s468 = sand.u32 1024, 7
      $region145: #{multi_source_encoder_forward.1} parent=118 // pred_fallthru
        _
    $region119: #{multi_source_encoder_forward.1} parent=1 // pred_fallthru
      _
    // Predicated region
    $region120: #{multi_source_encoder_forward.1} parent=1 // pred_check
      %p182 = pneg %p178
    $region121: #{multi_source_encoder_forward.1} parent=1 // pred_check_branch
      %184 = sbr.rel (%p182) target = $region123
    $region122: #{multi_source_encoder_forward.1} parent=1 // pred_region
      %s185 = sshllo.u32 0, 1024
      loop: start=0, step=1, limit=1
      $region124: #{multi_source_encoder_forward.1} parent=122 // loop_pre_header
        _
      $region125: #{multi_source_encoder_forward.1} parent=122 // loop_header
        %s187 = sphi 0, %s191
        %p188 = scmp.ge.s32.totalorder %s187, 1
        %s192 = sphi %s21, %s21
        %s193 = sphi [#allocation3], [#allocation3]
      $region126: #{multi_source_encoder_forward.1} parent=122 // loop_header_branch
        %190 = sbr.rel (%p188) target = $region130
      $region127: #{multi_source_encoder_forward.1} parent=122 // loop_body
        %v194 = vld [vmem:[%s192] sm:%s185]
        %195 = vst [vmem:[%s193] sm:%s185] %v194
      $region128: #{multi_source_encoder_forward.1} parent=122 // loop_footer
        %s191 = sadd.s32 1, %s187
      $region129: #{multi_source_encoder_forward.1} parent=122 // loop_footer_branch
        %186 = sbr.rel target = $region125
      $region130: #{multi_source_encoder_forward.1} parent=122 // loop_exit
        _
    $region123: #{multi_source_encoder_forward.1} parent=1 // pred_fallthru
      _
    // Predicated region
    $region146: #{multi_source_encoder_forward.1} parent=1 // pred_check
      _
    $region147: #{multi_source_encoder_forward.1} parent=1 // pred_check_branch
      %471 = sbr.rel (0) target = $region149
    $region148: #{multi_source_encoder_forward.1} parent=1 // pred_region
      %472 = vsyncadd %s176, 16384
    $region149: #{multi_source_encoder_forward.1} parent=1 // pred_fallthru
      _
    %v473 = vld [vmem:[%s0] sm:$0xff]
    %v474 = vld [vmem:[%s0 + $0x8] sm:$0xff]
    %v475 = vld [vmem:[%s0 + $0x10] sm:$0xff]
    %v476 = vld [vmem:[%s0 + $0x18] sm:$0xff]
    %v477 = vld [vmem:[%s2] sm:$0x1]
    %v478 = vld [vmem:[%s2 + $0x1] sm:$0x1]
    %vm479 = vcmask 261120
    %v480 = vsel %vm479, %v473, 0.0
    %481 = vadd.xlane.f32.xlu0 %v480
    %v482 = vpop.xlane.xlu0 %481
    %v483 = vsel %vm479, %v474, 0.0
    %484 = vadd.xlane.f32.xlu0 %v483
    %v485 = vpop.xlane.xlu0 %484
    %v486 = vsel %vm479, %v475, 0.0
    %487 = vadd.xlane.f32.xlu0 %v486
    %v488 = vpop.xlane.xlu0 %487
    %v489 = vsel %vm479, %v476, 0.0
    %490 = vadd.xlane.f32.xlu0 %v489
    %v491 = vpop.xlane.xlu0 %490
    %v492 = vrcp.pop 32.0
    %v493 = vmul.f32 %v482, %v492
    %v494 = vmul.f32 %v485, %v492
    %v495 = vmul.f32 %v488, %v492
    %v496 = vmul.f32 %v491, %v492
    %v497 = vsub.f32 %v473, %v493
    %v498 = vsub.f32 %v474, %v494
    %v499 = vsub.f32 %v475, %v495
    %v500 = vsub.f32 %v476, %v496
    %v501 = vmul.f32 %v497, %v497
    %v502 = vmul.f32 %v498, %v498
    %v503 = vmul.f32 %v499, %v499
    %v504 = vmul.f32 %v500, %v500
    %v505 = vsel %vm479, %v501, 0.0
    %506 = vadd.xlane.f32.xlu0 %v505
    %v507 = vpop.xlane.xlu0 %506
    %v508 = vsel %vm479, %v502, 0.0
    %509 = vadd.xlane.f32.xlu0 %v508
    %v510 = vpop.xlane.xlu0 %509
    %v511 = vsel %vm479, %v503, 0.0
    %512 = vadd.xlane.f32.xlu0 %v511
    %v513 = vpop.xlane.xlu0 %512
    %v514 = vsel %vm479, %v504, 0.0
    %515 = vadd.xlane.f32.xlu0 %v514
    %v516 = vpop.xlane.xlu0 %515
    %v517 = vmul.f32 %v507, %v492
    %v518 = vmul.f32 %v510, %v492
    %v519 = vmul.f32 %v513, %v492
    %v520 = vmul.f32 %v516, %v492
    %v521 = vadd.f32 %v517, 1e-12
    %v522 = vadd.f32 %v518, 1e-12
    %v523 = vadd.f32 %v519, 1e-12
    %v524 = vadd.f32 %v520, 1e-12
    %v525 = vrsqrt.pop %v521
    %v526 = vrsqrt.pop %v522
    %v527 = vrsqrt.pop %v523
    %v528 = vrsqrt.pop %v524
    %v529 = vmul.f32 %v497, %v525
    %v530 = vmul.f32 %v498, %v526
    %v531 = vmul.f32 %v499, %v527
    %v532 = vmul.f32 %v500, %v528
    %v533 = vlaneseq
    %v534 = vshrl.u32 %v533, 7
    %v535 = vsub.s32 0, %v534
    %v536 = vrot.slane %v477, %v535
    %v537 = vmul.f32 %v529, %v536
    %v538 = vmul.f32 %v530, %v536
    %v539 = vmul.f32 %v531, %v536
    %v540 = vmul.f32 %v532, %v536
    %v541 = vlaneseq
    %v542 = vshrl.u32 %v541, 7
    %v543 = vsub.s32 0, %v542
    %v544 = vrot.slane %v478, %v543
    %v545 = vadd.f32 %v537, %v544
    %v546 = vadd.f32 %v538, %v544
    %v547 = vadd.f32 %v539, %v544
    %v548 = vadd.f32 %v540, %v544
    %v549 = vld [vmem:[%s1] sm:$0x1]
    %v550 = vld [vmem:[%s1 + $0x1] sm:$0x1]
    %v551 = vpack.c.bf16 %v546, %v545
    %v552 = vpack.c.bf16 %v548, %v547
    %v553 = vld [vmem:[%s3] sm:$0xf]
    %v554 = vld [vmem:[%s3 + $0x4] sm:$0xf]
    %v555 = vld [vmem:[%s3 + $0x8] sm:$0xf]
    %v556 = vld [vmem:[%s3 + $0xc] sm:$0xf]
    %v557 = vld [vmem:[%s4] sm:$0x1]
    %v558 = vlaneseq
    %v559 = vshrl.u32 %v558, 7
    %v560 = vsub.s32 0, %v559
    %v561 = vrot.slane %v557, %v560
    %v566 = vunpack.c.l.b16 %v553
    %v567 = vunpack.c.l.b16 %v554
    %v568 = vunpack.c.l.b16 %v555
    %v569 = vunpack.c.l.b16 %v556
    %v570 = vpack.c.b16 %v567, %v566
    %v571 = vpack.c.b16 %v569, %v568
    %v575 = vsel %vm479, %v551, 0
    %v578 = vsel %vm479, %v552, 0
    %580 = vmatprep.subr.bf16.mxu0 0
    %581 = vmatpush1.bf16.msra.mxu0 %v570
    %582 = vmatprep.subr.bf16.mxu0 0
    %583 = vmatpush1.bf16.msra.mxu0 %v571
    %584 = vmatprep.subr.bf16.mxu0 0
    %585 = vmatpush1.bf16.msra.mxu0 0
    %586 = vmatprep.subr.bf16.mxu0 0
    %587 = vmatpush1.bf16.msra.mxu0 0
    %588 = vmatprep.subr.bf16.mxu0 0
    %589 = vmatpush1.bf16.msra.mxu0 0
    %590 = vmatprep.subr.bf16.mxu0 0
    %591 = vmatpush1.bf16.msra.mxu0 0
    %592 = vmatprep.subr.bf16.mxu0 0
    %593 = vmatpush1.bf16.msra.mxu0 0
    %594 = vmatprep.subr.bf16.mxu0 0
    %595 = vmatpush1.bf16.msra.mxu0 0
    %596 = vmatprep.subr.bf16.mxu0 0
    %597 = vmatpush1.bf16.msra.mxu0 0
    %598 = vmatprep.subr.bf16.mxu0 0
    %599 = vmatpush1.bf16.msra.mxu0 0
    %600 = vmatprep.subr.bf16.mxu0 0
    %601 = vmatpush1.bf16.msra.mxu0 0
    %602 = vmatprep.subr.bf16.mxu0 0
    %603 = vmatpush1.bf16.msra.mxu0 0
    %604 = vmatprep.subr.bf16.mxu0 0
    %605 = vmatpush1.bf16.msra.mxu0 0
    %606 = vmatprep.subr.bf16.mxu0 0
    %607 = vmatpush1.bf16.msra.mxu0 0
    %608 = vmatprep.subr.bf16.mxu0 0
    %609 = vmatpush1.bf16.msra.mxu0 0
    %610 = vmatprep.subr.bf16.mxu0 0
    %611 = vmatpush1.bf16.msra.mxu0 0
    %612 = vmatprep.mubr.bf16.mxu0 0
    %613 = vmatmul.mubr.bf16.gmra.mrb[0].mxu0 %v575
    %v614 = vpop.f32.mrb[0].mxu0
    %v615 = vadd.f32 %v561, %v614
    %v616 = vpop.f32.mrb[0].mxu0
    %v617 = vpop.f32.mrb[0].mxu0
    %v618 = vadd.f32 %v561, %v617
    %v619 = vpop.f32.mrb[0].mxu0
    %620 = vmatprep.mubr.bf16.mxu0 0
    %621 = vmatmul.mubr.bf16.gmra.mrb[0].mxu0 %v578
    %v622 = vpop.f32.mrb[0].mxu0
    %v623 = vadd.f32 %v561, %v622
    %v624 = vpop.f32.mrb[0].mxu0
    %v625 = vpop.f32.mrb[0].mxu0
    %v626 = vadd.f32 %v561, %v625
    %v627 = vpop.f32.mrb[0].mxu0
    %628 = vdwg.mxu0
    %s629 = scalar_lea.vmem %s3, 32
    %v630 = vld [vmem:[%s629] sm:$0xf]
    %v631 = vld [vmem:[%s629 + $0x4] sm:$0xf]
    %v632 = vld [vmem:[%s629 + $0x8] sm:$0xf]
    %v633 = vld [vmem:[%s629 + $0xc] sm:$0xf]
    %v634 = vld [vmem:[%s4 + $0x2] sm:$0x1]
    %v635 = vlaneseq
    %v636 = vshrl.u32 %v635, 7
    %v637 = vsub.s32 0, %v636
    %v638 = vrot.slane %v634, %v637
    %v643 = vunpack.c.l.b16 %v630
    %v644 = vunpack.c.l.b16 %v631
    %v645 = vunpack.c.l.b16 %v632
    %v646 = vunpack.c.l.b16 %v633
    %v647 = vpack.c.b16 %v644, %v643
    %v648 = vpack.c.b16 %v646, %v645
    %651 = vmatprep.subr.bf16.mxu0 0
    %652 = vmatpush1.bf16.msra.mxu0 %v647
    %653 = vmatprep.subr.bf16.mxu0 0
    %654 = vmatpush1.bf16.msra.mxu0 %v648
    %655 = vmatprep.subr.bf16.mxu0 0
    %656 = vmatpush1.bf16.msra.mxu0 0
    %657 = vmatprep.subr.bf16.mxu0 0
    %658 = vmatpush1.bf16.msra.mxu0 0
    %659 = vmatprep.subr.bf16.mxu0 0
    %660 = vmatpush1.bf16.msra.mxu0 0
    %661 = vmatprep.subr.bf16.mxu0 0
    %662 = vmatpush1.bf16.msra.mxu0 0
    %663 = vmatprep.subr.bf16.mxu0 0
    %664 = vmatpush1.bf16.msra.mxu0 0
    %665 = vmatprep.subr.bf16.mxu0 0
    %666 = vmatpush1.bf16.msra.mxu0 0
    %667 = vmatprep.subr.bf16.mxu0 0
    %668 = vmatpush1.bf16.msra.mxu0 0
    %669 = vmatprep.subr.bf16.mxu0 0
    %670 = vmatpush1.bf16.msra.mxu0 0
    %671 = vmatprep.subr.bf16.mxu0 0
    %672 = vmatpush1.bf16.msra.mxu0 0
    %673 = vmatprep.subr.bf16.mxu0 0
    %674 = vmatpush1.bf16.msra.mxu0 0
    %675 = vmatprep.subr.bf16.mxu0 0
    %676 = vmatpush1.bf16.msra.mxu0 0
    %677 = vmatprep.subr.bf16.mxu0 0
    %678 = vmatpush1.bf16.msra.mxu0 0
    %679 = vmatprep.subr.bf16.mxu0 0
    %680 = vmatpush1.bf16.msra.mxu0 0
    %681 = vmatprep.subr.bf16.mxu0 0
    %682 = vmatpush1.bf16.msra.mxu0 0
    %683 = vmatprep.mubr.bf16.mxu0 0
    %684 = vmatmul.mubr.bf16.gmra.mrb[0].mxu0 %v575
    %v685 = vpop.f32.mrb[0].mxu0
    %v686 = vadd.f32 %v638, %v685
    %v687 = vpop.f32.mrb[0].mxu0
    %v688 = vpop.f32.mrb[0].mxu0
    %v689 = vadd.f32 %v638, %v688
    %v690 = vpop.f32.mrb[0].mxu0
    %691 = vmatprep.mubr.bf16.mxu0 0
    %692 = vmatmul.mubr.bf16.gmra.mrb[0].mxu0 %v578
    %v693 = vpop.f32.mrb[0].mxu0
    %v694 = vadd.f32 %v638, %v693
    %v695 = vpop.f32.mrb[0].mxu0
    %v696 = vpop.f32.mrb[0].mxu0
    %v697 = vadd.f32 %v638, %v696
    %v698 = vpop.f32.mrb[0].mxu0
    %699 = vdwg.mxu0
    %s700 = scalar_lea.vmem %s3, 64
    %v701 = vld [vmem:[%s700] sm:$0xf]
    %v702 = vld [vmem:[%s700 + $0x4] sm:$0xf]
    %v703 = vld [vmem:[%s700 + $0x8] sm:$0xf]
    %v704 = vld [vmem:[%s700 + $0xc] sm:$0xf]
    %v705 = vld [vmem:[%s4 + $0x4] sm:$0x1]
    %v706 = vlaneseq
    %v707 = vshrl.u32 %v706, 7
    %v708 = vsub.s32 0, %v707
    %v709 = vrot.slane %v705, %v708
    %v714 = vunpack.c.l.b16 %v701
    %v715 = vunpack.c.l.b16 %v702
    %v716 = vunpack.c.l.b16 %v703
    %v717 = vunpack.c.l.b16 %v704
    %v718 = vpack.c.b16 %v715, %v714
    %v719 = vpack.c.b16 %v717, %v716
    %722 = vmatprep.subr.bf16.mxu0 0
    %723 = vmatpush1.bf16.msra.mxu0 %v718
    %724 = vmatprep.subr.bf16.mxu0 0
    %725 = vmatpush1.bf16.msra.mxu0 %v719
    %726 = vmatprep.subr.bf16.mxu0 0
    %727 = vmatpush1.bf16.msra.mxu0 0
    %728 = vmatprep.subr.bf16.mxu0 0
    %729 = vmatpush1.bf16.msra.mxu0 0
    %730 = vmatprep.subr.bf16.mxu0 0
    %731 = vmatpush1.bf16.msra.mxu0 0
    %732 = vmatprep.subr.bf16.mxu0 0
    %733 = vmatpush1.bf16.msra.mxu0 0
    %734 = vmatprep.subr.bf16.mxu0 0
    %735 = vmatpush1.bf16.msra.mxu0 0
    %736 = vmatprep.subr.bf16.mxu0 0
    %737 = vmatpush1.bf16.msra.mxu0 0
    %738 = vmatprep.subr.bf16.mxu0 0
    %739 = vmatpush1.bf16.msra.mxu0 0
    %740 = vmatprep.subr.bf16.mxu0 0
    %741 = vmatpush1.bf16.msra.mxu0 0
    %742 = vmatprep.subr.bf16.mxu0 0
    %743 = vmatpush1.bf16.msra.mxu0 0
    %744 = vmatprep.subr.bf16.mxu0 0
    %745 = vmatpush1.bf16.msra.mxu0 0
    %746 = vmatprep.subr.bf16.mxu0 0
    %747 = vmatpush1.bf16.msra.mxu0 0
    %748 = vmatprep.subr.bf16.mxu0 0
    %749 = vmatpush1.bf16.msra.mxu0 0
    %750 = vmatprep.subr.bf16.mxu0 0
    %751 = vmatpush1.bf16.msra.mxu0 0
    %752 = vmatprep.subr.bf16.mxu0 0
    %753 = vmatpush1.bf16.msra.mxu0 0
    %754 = vmatprep.mubr.bf16.mxu0 0
    %755 = vmatmul.mubr.bf16.gmra.mrb[0].mxu0 %v575
    %v756 = vpop.f32.mrb[0].mxu0
    %v757 = vadd.f32 %v709, %v756
    %v758 = vpop.f32.mrb[0].mxu0
    %v759 = vpop.f32.mrb[0].mxu0
    %v760 = vadd.f32 %v709, %v759
    %v761 = vpop.f32.mrb[0].mxu0
    %762 = vmatprep.mubr.bf16.mxu0 0
    %763 = vmatmul.mubr.bf16.gmra.mrb[0].mxu0 %v578
    %v764 = vpop.f32.mrb[0].mxu0
    %v765 = vadd.f32 %v709, %v764
    %v766 = vpop.f32.mrb[0].mxu0
    %v767 = vpop.f32.mrb[0].mxu0
    %v768 = vadd.f32 %v709, %v767
    %v769 = vpop.f32.mrb[0].mxu0
    %770 = vdwg.mxu0
    %v771 = vpack.c.bf16 %v618, %v615
    %v772 = vpack.c.bf16 %v626, %v623
    %v773 = vpack.c.bf16 %v689, %v686
    %v774 = vpack.c.bf16 %v697, %v694
    %v775 = vpack.c.bf16 %v760, %v757
    %v776 = vpack.c.bf16 %v768, %v765
    %vm777 = vcmask 130048
    %v779 = vsel %vm777, %v771, 0
    %v782 = vsel %vm777, %v773, 0
    %784 = vmatprep.subr.bf16.mxu0 0
    %785 = vmatpush1.bf16.xpose.msra.mxu0 %v782
    %786 = vmatprep.subr.bf16.mxu0 0
    %787 = vmatpush1.bf16.xpose.msra.mxu0 0
    %788 = vmatprep.subr.bf16.mxu0 0
    %789 = vmatpush1.bf16.xpose.msra.mxu0 0
    %790 = vmatprep.subr.bf16.mxu0 0
    %791 = vmatpush1.bf16.xpose.msra.mxu0 0
    %792 = vmatprep.subr.bf16.mxu0 0
    %793 = vmatpush1.bf16.xpose.msra.mxu0 0
    %794 = vmatprep.subr.bf16.mxu0 0
    %795 = vmatpush1.bf16.xpose.msra.mxu0 0
    %796 = vmatprep.subr.bf16.mxu0 0
    %797 = vmatpush1.bf16.xpose.msra.mxu0 0
    %798 = vmatprep.subr.bf16.mxu0 0
    %799 = vmatpush1.bf16.xpose.msra.mxu0 0
    %800 = vmatprep.subr.bf16.mxu0 0
    %801 = vmatpush1.bf16.xpose.msra.mxu0 0
    %802 = vmatprep.subr.bf16.mxu0 0
    %803 = vmatpush1.bf16.xpose.msra.mxu0 0
    %804 = vmatprep.subr.bf16.mxu0 0
    %805 = vmatpush1.bf16.xpose.msra.mxu0 0
    %806 = vmatprep.subr.bf16.mxu0 0
    %807 = vmatpush1.bf16.xpose.msra.mxu0 0
    %808 = vmatprep.subr.bf16.mxu0 0
    %809 = vmatpush1.bf16.xpose.msra.mxu0 0
    %810 = vmatprep.subr.bf16.mxu0 0
    %811 = vmatpush1.bf16.xpose.msra.mxu0 0
    %812 = vmatprep.subr.bf16.mxu0 0
    %813 = vmatpush1.bf16.xpose.msra.mxu0 0
    %814 = vmatprep.subr.bf16.mxu0 0
    %815 = vmatpush1.bf16.xpose.msra.mxu0 0
    %816 = vmatprep.mubr.bf16.mxu0 0
    %817 = vmatmul.mubr.bf16.gmra.mrb[0].mxu0 %v779
    %v818 = vpop.f32.mrb[0].mxu0
    %v819 = vadd.f32 0.0, %v818
    %v820 = vpop.f32.mrb[0].mxu0
    %v821 = vpop.f32.mrb[0].mxu0
    %v822 = vadd.f32 0.0, %v821
    %v823 = vpop.f32.mrb[0].mxu0
    %824 = vdwg.mxu0
    %v826 = vsel %vm777, %v772, 0
    %v829 = vsel %vm777, %v774, 0
    %831 = vmatprep.subr.bf16.mxu0 0
    %832 = vmatpush1.bf16.xpose.msra.mxu0 %v829
    %833 = vmatprep.subr.bf16.mxu0 0
    %834 = vmatpush1.bf16.xpose.msra.mxu0 0
    %835 = vmatprep.subr.bf16.mxu0 0
    %836 = vmatpush1.bf16.xpose.msra.mxu0 0
    %837 = vmatprep.subr.bf16.mxu0 0
    %838 = vmatpush1.bf16.xpose.msra.mxu0 0
    %839 = vmatprep.subr.bf16.mxu0 0
    %840 = vmatpush1.bf16.xpose.msra.mxu0 0
    %841 = vmatprep.subr.bf16.mxu0 0
    %842 = vmatpush1.bf16.xpose.msra.mxu0 0
    %843 = vmatprep.subr.bf16.mxu0 0
    %844 = vmatpush1.bf16.xpose.msra.mxu0 0
    %845 = vmatprep.subr.bf16.mxu0 0
    %846 = vmatpush1.bf16.xpose.msra.mxu0 0
    %847 = vmatprep.subr.bf16.mxu0 0
    %848 = vmatpush1.bf16.xpose.msra.mxu0 0
    %849 = vmatprep.subr.bf16.mxu0 0
    %850 = vmatpush1.bf16.xpose.msra.mxu0 0
    %851 = vmatprep.subr.bf16.mxu0 0
    %852 = vmatpush1.bf16.xpose.msra.mxu0 0
    %853 = vmatprep.subr.bf16.mxu0 0
    %854 = vmatpush1.bf16.xpose.msra.mxu0 0
    %855 = vmatprep.subr.bf16.mxu0 0
    %856 = vmatpush1.bf16.xpose.msra.mxu0 0
    %857 = vmatprep.subr.bf16.mxu0 0
    %858 = vmatpush1.bf16.xpose.msra.mxu0 0
    %859 = vmatprep.subr.bf16.mxu0 0
    %860 = vmatpush1.bf16.xpose.msra.mxu0 0
    %861 = vmatprep.subr.bf16.mxu0 0
    %862 = vmatpush1.bf16.xpose.msra.mxu0 0
    %863 = vmatprep.mubr.bf16.mxu0 0
    %864 = vmatmul.mubr.bf16.gmra.mrb[0].mxu0 %v826
    %v865 = vpop.f32.mrb[0].mxu0
    %v866 = vadd.f32 0.0, %v865
    %v867 = vpop.f32.mrb[0].mxu0
    %v868 = vpop.f32.mrb[0].mxu0
    %v869 = vadd.f32 0.0, %v868
    %v870 = vpop.f32.mrb[0].mxu0
    %871 = vdwg.mxu0
    %v872 = vmul.f32 %v819, 0.25
    %v873 = vmul.f32 %v822, 0.25
    %v874 = vmul.f32 %v866, 0.25
    %v875 = vmul.f32 %v869, 0.25
    %v878 = vlaneseq
    %v879 = vshrl.u32 %v878, 7
    %v880 = vsub.s32 0, %v879
    %v881 = vrot.slane %v549, %v880
    %v882 = vlaneseq
    %v883 = vshrl.u32 %v882, 7
    %v884 = vsub.s32 0, %v883
    %v885 = vrot.slane %v550, %v884
    %v888 = vadd.f32 %v872, %v881
    %v889 = vadd.f32 %v873, %v881
    %v890 = vadd.f32 %v874, %v885
    %v891 = vadd.f32 %v875, %v885
    %v892 = vsel %vm777, %v888, -inf
    %893 = vmax.xlane.f32.xlu0 %v892
    %v894 = vpop.xlane.xlu0 %893
    %v895 = vsel %vm777, %v889, -inf
    %896 = vmax.xlane.f32.xlu0 %v895
    %v897 = vpop.xlane.xlu0 %896
    %v898 = vsel %vm777, %v890, -inf
    %899 = vmax.xlane.f32.xlu0 %v898
    %v900 = vpop.xlane.xlu0 %899
    %v901 = vsel %vm777, %v891, -inf
    %902 = vmax.xlane.f32.xlu0 %v901
    %v903 = vpop.xlane.xlu0 %902
    %v904 = vsub.f32 %v888, %v894
    %v905 = vsub.f32 %v889, %v897
    %v906 = vsub.f32 %v890, %v900
    %v907 = vsub.f32 %v891, %v903
    %v908 = vmul.f32 %v904, 1.442695
    %v909 = vpow.pop %v908
    %v910 = vmul.f32 %v905, 1.442695
    %v911 = vpow.pop %v910
    %v912 = vmul.f32 %v906, 1.442695
    %v913 = vpow.pop %v912
    %v914 = vmul.f32 %v907, 1.442695
    %v915 = vpow.pop %v914
    %v916 = vsel %vm777, %v909, 0.0
    %917 = vadd.xlane.f32.xlu0 %v916
    %v918 = vpop.xlane.xlu0 %917
    %v919 = vsel %vm777, %v911, 0.0
    %920 = vadd.xlane.f32.xlu0 %v919
    %v921 = vpop.xlane.xlu0 %920
    %v922 = vsel %vm777, %v913, 0.0
    %923 = vadd.xlane.f32.xlu0 %v922
    %v924 = vpop.xlane.xlu0 %923
    %v925 = vsel %vm777, %v915, 0.0
    %926 = vadd.xlane.f32.xlu0 %v925
    %v927 = vpop.xlane.xlu0 %926
    %v928 = vrcp.pop %v918
    %v929 = vrcp.pop %v921
    %v930 = vrcp.pop %v924
    %v931 = vrcp.pop %v927
    %v932 = vmul.f32 %v909, %v928
    %v933 = vmul.f32 %v911, %v929
    %v934 = vmul.f32 %v913, %v930
    %v935 = vmul.f32 %v915, %v931
    %v936 = vpack.c.bf16 %v933, %v932
    %v937 = vpack.c.bf16 %v935, %v934
    %v939 = vsel %vm777, %v936, 0
    %941 = vmatprep.subr.bf16.mxu0 0
    %942 = vmatpush1.bf16.msra.mxu0 %v775
    %943 = vmatprep.subr.bf16.mxu0 0
    %944 = vmatpush1.bf16.msra.mxu0 0
    %945 = vmatprep.subr.bf16.mxu0 0
    %946 = vmatpush1.bf16.msra.mxu0 0
    %947 = vmatprep.subr.bf16.mxu0 0
    %948 = vmatpush1.bf16.msra.mxu0 0
    %949 = vmatprep.subr.bf16.mxu0 0
    %950 = vmatpush1.bf16.msra.mxu0 0
    %951 = vmatprep.subr.bf16.mxu0 0
    %952 = vmatpush1.bf16.msra.mxu0 0
    %953 = vmatprep.subr.bf16.mxu0 0
    %954 = vmatpush1.bf16.msra.mxu0 0
    %955 = vmatprep.subr.bf16.mxu0 0
    %956 = vmatpush1.bf16.msra.mxu0 0
    %957 = vmatprep.subr.bf16.mxu0 0
    %958 = vmatpush1.bf16.msra.mxu0 0
    %959 = vmatprep.subr.bf16.mxu0 0
    %960 = vmatpush1.bf16.msra.mxu0 0
    %961 = vmatprep.subr.bf16.mxu0 0
    %962 = vmatpush1.bf16.msra.mxu0 0
    %963 = vmatprep.subr.bf16.mxu0 0
    %964 = vmatpush1.bf16.msra.mxu0 0
    %965 = vmatprep.subr.bf16.mxu0 0
    %966 = vmatpush1.bf16.msra.mxu0 0
    %967 = vmatprep.subr.bf16.mxu0 0
    %968 = vmatpush1.bf16.msra.mxu0 0
    %969 = vmatprep.subr.bf16.mxu0 0
    %970 = vmatpush1.bf16.msra.mxu0 0
    %971 = vmatprep.subr.bf16.mxu0 0
    %972 = vmatpush1.bf16.msra.mxu0 0
    %973 = vmatprep.mubr.bf16.mxu0 0
    %974 = vmatmul.mubr.bf16.gmra.mrb[0].mxu0 %v939
    %v975 = vpop.f32.mrb[0].mxu0
    %v976 = vadd.f32 0.0, %v975
    %v977 = vpop.f32.mrb[0].mxu0
    %v978 = vpop.f32.mrb[0].mxu0
    %v979 = vadd.f32 0.0, %v978
    %v980 = vpop.f32.mrb[0].mxu0
    %981 = vdwg.mxu0
    %v983 = vsel %vm777, %v937, 0
    %985 = vmatprep.subr.bf16.mxu0 0
    %986 = vmatpush1.bf16.msra.mxu0 %v776
    %987 = vmatprep.subr.bf16.mxu0 0
    %988 = vmatpush1.bf16.msra.mxu0 0
    %989 = vmatprep.subr.bf16.mxu0 0
    %990 = vmatpush1.bf16.msra.mxu0 0
    %991 = vmatprep.subr.bf16.mxu0 0
    %992 = vmatpush1.bf16.msra.mxu0 0
    %993 = vmatprep.subr.bf16.mxu0 0
    %994 = vmatpush1.bf16.msra.mxu0 0
    %995 = vmatprep.subr.bf16.mxu0 0
    %996 = vmatpush1.bf16.msra.mxu0 0
    %997 = vmatprep.subr.bf16.mxu0 0
    %998 = vmatpush1.bf16.msra.mxu0 0
    %999 = vmatprep.subr.bf16.mxu0 0
    %1000 = vmatpush1.bf16.msra.mxu0 0
    %1001 = vmatprep.subr.bf16.mxu0 0
    %1002 = vmatpush1.bf16.msra.mxu0 0
    %1003 = vmatprep.subr.bf16.mxu0 0
    %1004 = vmatpush1.bf16.msra.mxu0 0
    %1005 = vmatprep.subr.bf16.mxu0 0
    %1006 = vmatpush1.bf16.msra.mxu0 0
    %1007 = vmatprep.subr.bf16.mxu0 0
    %1008 = vmatpush1.bf16.msra.mxu0 0
    %1009 = vmatprep.subr.bf16.mxu0 0
    %1010 = vmatpush1.bf16.msra.mxu0 0
    %1011 = vmatprep.subr.bf16.mxu0 0
    %1012 = vmatpush1.bf16.msra.mxu0 0
    %1013 = vmatprep.subr.bf16.mxu0 0
    %1014 = vmatpush1.bf16.msra.mxu0 0
    %1015 = vmatprep.subr.bf16.mxu0 0
    %1016 = vmatpush1.bf16.msra.mxu0 0
    %1017 = vmatprep.mubr.bf16.mxu0 0
    %1018 = vmatmul.mubr.bf16.gmra.mrb[0].mxu0 %v983
    %v1019 = vpop.f32.mrb[0].mxu0
    %v1020 = vadd.f32 0.0, %v1019
    %v1021 = vpop.f32.mrb[0].mxu0
    %v1022 = vpop.f32.mrb[0].mxu0
    %v1023 = vadd.f32 0.0, %v1022
    %v1024 = vpop.f32.mrb[0].mxu0
    %1025 = vdwg.mxu0
    %v1026 = vpack.c.bf16 %v979, %v976
    %v1027 = vpack.c.bf16 %v1023, %v1020
    %v1028 = vld [vmem:[%s5] sm:$0xf]
    %v1029 = vld [vmem:[%s5 + $0x4] sm:$0xf]
    %s1030 = scalar_lea.vmem %s3, 16
    %v1031 = vld [vmem:[%s1030] sm:$0xf]
    %v1032 = vld [vmem:[%s1030 + $0x4] sm:$0xf]
    %v1033 = vld [vmem:[%s1030 + $0x8] sm:$0xf]
    %v1034 = vld [vmem:[%s1030 + $0xc] sm:$0xf]
    %v1035 = vld [vmem:[%s4 + $0x1] sm:$0x1]
    %v1036 = vlaneseq
    %v1037 = vshrl.u32 %v1036, 7
    %v1038 = vsub.s32 0, %v1037
    %v1039 = vrot.slane %v1035, %v1038
    %v1044 = vunpack.c.l.b16 %v1031
    %v1045 = vunpack.c.l.b16 %v1032
    %v1046 = vunpack.c.l.b16 %v1033
    %v1047 = vunpack.c.l.b16 %v1034
    %v1048 = vpack.c.b16 %v1045, %v1044
    %v1049 = vpack.c.b16 %v1047, %v1046
    %1052 = vmatprep.subr.bf16.mxu0 0
    %1053 = vmatpush1.bf16.msra.mxu0 %v1048
    %1054 = vmatprep.subr.bf16.mxu0 0
    %1055 = vmatpush1.bf16.msra.mxu0 %v1049
    %1056 = vmatprep.subr.bf16.mxu0 0
    %1057 = vmatpush1.bf16.msra.mxu0 0
    %1058 = vmatprep.subr.bf16.mxu0 0
    %1059 = vmatpush1.bf16.msra.mxu0 0
    %1060 = vmatprep.subr.bf16.mxu0 0
    %1061 = vmatpush1.bf16.msra.mxu0 0
    %1062 = vmatprep.subr.bf16.mxu0 0
    %1063 = vmatpush1.bf16.msra.mxu0 0
    %1064 = vmatprep.subr.bf16.mxu0 0
    %1065 = vmatpush1.bf16.msra.mxu0 0
    %1066 = vmatprep.subr.bf16.mxu0 0
    %1067 = vmatpush1.bf16.msra.mxu0 0
    %1068 = vmatprep.subr.bf16.mxu0 0
    %1069 = vmatpush1.bf16.msra.mxu0 0
    %1070 = vmatprep.subr.bf16.mxu0 0
    %1071 = vmatpush1.bf16.msra.mxu0 0
    %1072 = vmatprep.subr.bf16.mxu0 0
    %1073 = vmatpush1.bf16.msra.mxu0 0
    %1074 = vmatprep.subr.bf16.mxu0 0
    %1075 = vmatpush1.bf16.msra.mxu0 0
    %1076 = vmatprep.subr.bf16.mxu0 0
    %1077 = vmatpush1.bf16.msra.mxu0 0
    %1078 = vmatprep.subr.bf16.mxu0 0
    %1079 = vmatpush1.bf16.msra.mxu0 0
    %1080 = vmatprep.subr.bf16.mxu0 0
    %1081 = vmatpush1.bf16.msra.mxu0 0
    %1082 = vmatprep.subr.bf16.mxu0 0
    %1083 = vmatpush1.bf16.msra.mxu0 0
    %1084 = vmatprep.mubr.bf16.mxu0 0
    %1085 = vmatmul.mubr.bf16.gmra.mrb[0].mxu0 %v575
    %v1086 = vpop.f32.mrb[0].mxu0
    %v1087 = vadd.f32 %v1039, %v1086
    %v1088 = vpop.f32.mrb[0].mxu0
    %v1089 = vpop.f32.mrb[0].mxu0
    %v1090 = vadd.f32 %v1039, %v1089
    %v1091 = vpop.f32.mrb[0].mxu0
    %1092 = vmatprep.mubr.bf16.mxu0 0
    %1093 = vmatmul.mubr.bf16.gmra.mrb[0].mxu0 %v578
    %v1094 = vpop.f32.mrb[0].mxu0
    %v1095 = vadd.f32 %v1039, %v1094
    %v1096 = vpop.f32.mrb[0].mxu0
    %v1097 = vpop.f32.mrb[0].mxu0
    %v1098 = vadd.f32 %v1039, %v1097
    %v1099 = vpop.f32.mrb[0].mxu0
    %1100 = vdwg.mxu0
    %s1101 = scalar_lea.vmem %s3, 48
    %v1102 = vld [vmem:[%s1101] sm:$0xf]
    %v1103 = vld [vmem:[%s1101 + $0x4] sm:$0xf]
    %v1104 = vld [vmem:[%s1101 + $0x8] sm:$0xf]
    %v1105 = vld [vmem:[%s1101 + $0xc] sm:$0xf]
    %v1106 = vld [vmem:[%s4 + $0x3] sm:$0x1]
    %v1107 = vlaneseq
    %v1108 = vshrl.u32 %v1107, 7
    %v1109 = vsub.s32 0, %v1108
    %v1110 = vrot.slane %v1106, %v1109
    %v1115 = vunpack.c.l.b16 %v1102
    %v1116 = vunpack.c.l.b16 %v1103
    %v1117 = vunpack.c.l.b16 %v1104
    %v1118 = vunpack.c.l.b16 %v1105
    %v1119 = vpack.c.b16 %v1116, %v1115
    %v1120 = vpack.c.b16 %v1118, %v1117
    %1123 = vmatprep.subr.bf16.mxu0 0
    %1124 = vmatpush1.bf16.msra.mxu0 %v1119
    %1125 = vmatprep.subr.bf16.mxu0 0
    %1126 = vmatpush1.bf16.msra.mxu0 %v1120
    %1127 = vmatprep.subr.bf16.mxu0 0
    %1128 = vmatpush1.bf16.msra.mxu0 0
    %1129 = vmatprep.subr.bf16.mxu0 0
    %1130 = vmatpush1.bf16.msra.mxu0 0
    %1131 = vmatprep.subr.bf16.mxu0 0
    %1132 = vmatpush1.bf16.msra.mxu0 0
    %1133 = vmatprep.subr.bf16.mxu0 0
    %1134 = vmatpush1.bf16.msra.mxu0 0
    %1135 = vmatprep.subr.bf16.mxu0 0
    %1136 = vmatpush1.bf16.msra.mxu0 0
    %1137 = vmatprep.subr.bf16.mxu0 0
    %1138 = vmatpush1.bf16.msra.mxu0 0
    %1139 = vmatprep.subr.bf16.mxu0 0
    %1140 = vmatpush1.bf16.msra.mxu0 0
    %1141 = vmatprep.subr.bf16.mxu0 0
    %1142 = vmatpush1.bf16.msra.mxu0 0
    %1143 = vmatprep.subr.bf16.mxu0 0
    %1144 = vmatpush1.bf16.msra.mxu0 0
    %1145 = vmatprep.subr.bf16.mxu0 0
    %1146 = vmatpush1.bf16.msra.mxu0 0
    %1147 = vmatprep.subr.bf16.mxu0 0
    %1148 = vmatpush1.bf16.msra.mxu0 0
    %1149 = vmatprep.subr.bf16.mxu0 0
    %1150 = vmatpush1.bf16.msra.mxu0 0
    %1151 = vmatprep.subr.bf16.mxu0 0
    %1152 = vmatpush1.bf16.msra.mxu0 0
    %1153 = vmatprep.subr.bf16.mxu0 0
    %1154 = vmatpush1.bf16.msra.mxu0 0
    %1155 = vmatprep.mubr.bf16.mxu0 0
    %1156 = vmatmul.mubr.bf16.gmra.mrb[0].mxu0 %v575
    %v1157 = vpop.f32.mrb[0].mxu0
    %v1158 = vadd.f32 %v1110, %v1157
    %v1159 = vpop.f32.mrb[0].mxu0
    %v1160 = vpop.f32.mrb[0].mxu0
    %v1161 = vadd.f32 %v1110, %v1160
    %v1162 = vpop.f32.mrb[0].mxu0
    %1163 = vmatprep.mubr.bf16.mxu0 0
    %1164 = vmatmul.mubr.bf16.gmra.mrb[0].mxu0 %v578
    %v1165 = vpop.f32.mrb[0].mxu0
    %v1166 = vadd.f32 %v1110, %v1165
    %v1167 = vpop.f32.mrb[0].mxu0
    %v1168 = vpop.f32.mrb[0].mxu0
    %v1169 = vadd.f32 %v1110, %v1168
    %v1170 = vpop.f32.mrb[0].mxu0
    %1171 = vdwg.mxu0
    %s1172 = scalar_lea.vmem %s3, 80
    %v1173 = vld [vmem:[%s1172] sm:$0xf]
    %v1174 = vld [vmem:[%s1172 + $0x4] sm:$0xf]
    %v1175 = vld [vmem:[%s1172 + $0x8] sm:$0xf]
    %v1176 = vld [vmem:[%s1172 + $0xc] sm:$0xf]
    %v1177 = vld [vmem:[%s4 + $0x5] sm:$0x1]
    %v1178 = vlaneseq
    %v1179 = vshrl.u32 %v1178, 7
    %v1180 = vsub.s32 0, %v1179
    %v1181 = vrot.slane %v1177, %v1180
    %v1186 = vunpack.c.l.b16 %v1173
    %v1187 = vunpack.c.l.b16 %v1174
    %v1188 = vunpack.c.l.b16 %v1175
    %v1189 = vunpack.c.l.b16 %v1176
    %v1190 = vpack.c.b16 %v1187, %v1186
    %v1191 = vpack.c.b16 %v1189, %v1188
    %1194 = vmatprep.subr.bf16.mxu0 0
    %1195 = vmatpush1.bf16.msra.mxu0 %v1190
    %1196 = vmatprep.subr.bf16.mxu0 0
    %1197 = vmatpush1.bf16.msra.mxu0 %v1191
    %1198 = vmatprep.subr.bf16.mxu0 0
    %1199 = vmatpush1.bf16.msra.mxu0 0
    %1200 = vmatprep.subr.bf16.mxu0 0
    %1201 = vmatpush1.bf16.msra.mxu0 0
    %1202 = vmatprep.subr.bf16.mxu0 0
    %1203 = vmatpush1.bf16.msra.mxu0 0
    %1204 = vmatprep.subr.bf16.mxu0 0
    %1205 = vmatpush1.bf16.msra.mxu0 0
    %1206 = vmatprep.subr.bf16.mxu0 0
    %1207 = vmatpush1.bf16.msra.mxu0 0
    %1208 = vmatprep.subr.bf16.mxu0 0
    %1209 = vmatpush1.bf16.msra.mxu0 0
    %1210 = vmatprep.subr.bf16.mxu0 0
    %1211 = vmatpush1.bf16.msra.mxu0 0
    %1212 = vmatprep.subr.bf16.mxu0 0
    %1213 = vmatpush1.bf16.msra.mxu0 0
    %1214 = vmatprep.subr.bf16.mxu0 0
    %1215 = vmatpush1.bf16.msra.mxu0 0
    %1216 = vmatprep.subr.bf16.mxu0 0
    %1217 = vmatpush1.bf16.msra.mxu0 0
    %1218 = vmatprep.subr.bf16.mxu0 0
    %1219 = vmatpush1.bf16.msra.mxu0 0
    %1220 = vmatprep.subr.bf16.mxu0 0
    %1221 = vmatpush1.bf16.msra.mxu0 0
    %1222 = vmatprep.subr.bf16.mxu0 0
    %1223 = vmatpush1.bf16.msra.mxu0 0
    %1224 = vmatprep.subr.bf16.mxu0 0
    %1225 = vmatpush1.bf16.msra.mxu0 0
    %1226 = vmatprep.mubr.bf16.mxu0 0
    %1227 = vmatmul.mubr.bf16.gmra.mrb[0].mxu0 %v575
    %v1228 = vpop.f32.mrb[0].mxu0
    %v1229 = vadd.f32 %v1181, %v1228
    %v1230 = vpop.f32.mrb[0].mxu0
    %v1231 = vpop.f32.mrb[0].mxu0
    %v1232 = vadd.f32 %v1181, %v1231
    %v1233 = vpop.f32.mrb[0].mxu0
    %1234 = vmatprep.mubr.bf16.mxu0 0
    %1235 = vmatmul.mubr.bf16.gmra.mrb[0].mxu0 %v578
    %v1236 = vpop.f32.mrb[0].mxu0
    %v1237 = vadd.f32 %v1181, %v1236
    %v1238 = vpop.f32.mrb[0].mxu0
    %v1239 = vpop.f32.mrb[0].mxu0
    %v1240 = vadd.f32 %v1181, %v1239
    %v1241 = vpop.f32.mrb[0].mxu0
    %1242 = vdwg.mxu0
    %v1243 = vpack.c.bf16 %v1090, %v1087
    %v1244 = vpack.c.bf16 %v1098, %v1095
    %v1245 = vpack.c.bf16 %v1161, %v1158
    %v1246 = vpack.c.bf16 %v1169, %v1166
    %v1247 = vpack.c.bf16 %v1232, %v1229
    %v1248 = vpack.c.bf16 %v1240, %v1237
    %v1250 = vsel %vm777, %v1243, 0
    %v1253 = vsel %vm777, %v1245, 0
    %1255 = vmatprep.subr.bf16.mxu0 0
    %1256 = vmatpush1.bf16.xpose.msra.mxu0 %v1253
    %1257 = vmatprep.subr.bf16.mxu0 0
    %1258 = vmatpush1.bf16.xpose.msra.mxu0 0
    %1259 = vmatprep.subr.bf16.mxu0 0
    %1260 = vmatpush1.bf16.xpose.msra.mxu0 0
    %1261 = vmatprep.subr.bf16.mxu0 0
    %1262 = vmatpush1.bf16.xpose.msra.mxu0 0
    %1263 = vmatprep.subr.bf16.mxu0 0
    %1264 = vmatpush1.bf16.xpose.msra.mxu0 0
    %1265 = vmatprep.subr.bf16.mxu0 0
    %1266 = vmatpush1.bf16.xpose.msra.mxu0 0
    %1267 = vmatprep.subr.bf16.mxu0 0
    %1268 = vmatpush1.bf16.xpose.msra.mxu0 0
    %1269 = vmatprep.subr.bf16.mxu0 0
    %1270 = vmatpush1.bf16.xpose.msra.mxu0 0
    %1271 = vmatprep.subr.bf16.mxu0 0
    %1272 = vmatpush1.bf16.xpose.msra.mxu0 0
    %1273 = vmatprep.subr.bf16.mxu0 0
    %1274 = vmatpush1.bf16.xpose.msra.mxu0 0
    %1275 = vmatprep.subr.bf16.mxu0 0
    %1276 = vmatpush1.bf16.xpose.msra.mxu0 0
    %1277 = vmatprep.subr.bf16.mxu0 0
    %1278 = vmatpush1.bf16.xpose.msra.mxu0 0
    %1279 = vmatprep.subr.bf16.mxu0 0
    %1280 = vmatpush1.bf16.xpose.msra.mxu0 0
    %1281 = vmatprep.subr.bf16.mxu0 0
    %1282 = vmatpush1.bf16.xpose.msra.mxu0 0
    %1283 = vmatprep.subr.bf16.mxu0 0
    %1284 = vmatpush1.bf16.xpose.msra.mxu0 0
    %1285 = vmatprep.subr.bf16.mxu0 0
    %1286 = vmatpush1.bf16.xpose.msra.mxu0 0
    %1287 = vmatprep.mubr.bf16.mxu0 0
    %1288 = vmatmul.mubr.bf16.gmra.mrb[0].mxu0 %v1250
    %v1289 = vpop.f32.mrb[0].mxu0
    %v1290 = vadd.f32 0.0, %v1289
    %v1291 = vpop.f32.mrb[0].mxu0
    %v1292 = vpop.f32.mrb[0].mxu0
    %v1293 = vadd.f32 0.0, %v1292
    %v1294 = vpop.f32.mrb[0].mxu0
    %1295 = vdwg.mxu0
    %v1297 = vsel %vm777, %v1244, 0
    %v1300 = vsel %vm777, %v1246, 0
    %1302 = vmatprep.subr.bf16.mxu0 0
    %1303 = vmatpush1.bf16.xpose.msra.mxu0 %v1300
    %1304 = vmatprep.subr.bf16.mxu0 0
    %1305 = vmatpush1.bf16.xpose.msra.mxu0 0
    %1306 = vmatprep.subr.bf16.mxu0 0
    %1307 = vmatpush1.bf16.xpose.msra.mxu0 0
    %1308 = vmatprep.subr.bf16.mxu0 0
    %1309 = vmatpush1.bf16.xpose.msra.mxu0 0
    %1310 = vmatprep.subr.bf16.mxu0 0
    %1311 = vmatpush1.bf16.xpose.msra.mxu0 0
    %1312 = vmatprep.subr.bf16.mxu0 0
    %1313 = vmatpush1.bf16.xpose.msra.mxu0 0
    %1314 = vmatprep.subr.bf16.mxu0 0
    %1315 = vmatpush1.bf16.xpose.msra.mxu0 0
    %1316 = vmatprep.subr.bf16.mxu0 0
    %1317 = vmatpush1.bf16.xpose.msra.mxu0 0
    %1318 = vmatprep.subr.bf16.mxu0 0
    %1319 = vmatpush1.bf16.xpose.msra.mxu0 0
    %1320 = vmatprep.subr.bf16.mxu0 0
    %1321 = vmatpush1.bf16.xpose.msra.mxu0 0
    %1322 = vmatprep.subr.bf16.mxu0 0
    %1323 = vmatpush1.bf16.xpose.msra.mxu0 0
    %1324 = vmatprep.subr.bf16.mxu0 0
    %1325 = vmatpush1.bf16.xpose.msra.mxu0 0
    %1326 = vmatprep.subr.bf16.mxu0 0
    %1327 = vmatpush1.bf16.xpose.msra.mxu0 0
    %1328 = vmatprep.subr.bf16.mxu0 0
    %1329 = vmatpush1.bf16.xpose.msra.mxu0 0
    %1330 = vmatprep.subr.bf16.mxu0 0
    %1331 = vmatpush1.bf16.xpose.msra.mxu0 0
    %1332 = vmatprep.subr.bf16.mxu0 0
    %1333 = vmatpush1.bf16.xpose.msra.mxu0 0
    %1334 = vmatprep.mubr.bf16.mxu0 0
    %1335 = vmatmul.mubr.bf16.gmra.mrb[0].mxu0 %v1297
    %v1336 = vpop.f32.mrb[0].mxu0
    %v1337 = vadd.f32 0.0, %v1336
    %v1338 = vpop.f32.mrb[0].mxu0
    %v1339 = vpop.f32.mrb[0].mxu0
    %v1340 = vadd.f32 0.0, %v1339
    %v1341 = vpop.f32.mrb[0].mxu0
    %1342 = vdwg.mxu0
    %v1343 = vmul.f32 %v1290, 0.25
    %v1344 = vmul.f32 %v1293, 0.25
    %v1345 = vmul.f32 %v1337, 0.25
    %v1346 = vmul.f32 %v1340, 0.25
    %v1347 = vadd.f32 %v1343, %v881
    %v1348 = vadd.f32 %v1344, %v881
    %v1349 = vadd.f32 %v1345, %v885
    %v1350 = vadd.f32 %v1346, %v885
    %v1351 = vsel %vm777, %v1347, -inf
    %1352 = vmax.xlane.f32.xlu0 %v1351
    %v1353 = vpop.xlane.xlu0 %1352
    %v1354 = vsel %vm777, %v1348, -inf
    %1355 = vmax.xlane.f32.xlu0 %v1354
    %v1356 = vpop.xlane.xlu0 %1355
    %v1357 = vsel %vm777, %v1349, -inf
    %1358 = vmax.xlane.f32.xlu0 %v1357
    %v1359 = vpop.xlane.xlu0 %1358
    %v1360 = vsel %vm777, %v1350, -inf
    %1361 = vmax.xlane.f32.xlu0 %v1360
    %v1362 = vpop.xlane.xlu0 %1361
    %v1363 = vsub.f32 %v1347, %v1353
    %v1364 = vsub.f32 %v1348, %v1356
    %v1365 = vsub.f32 %v1349, %v1359
    %v1366 = vsub.f32 %v1350, %v1362
    %v1367 = vmul.f32 %v1363, 1.442695
    %v1368 = vpow.pop %v1367
    %v1369 = vmul.f32 %v1364, 1.442695
    %v1370 = vpow.pop %v1369
    %v1371 = vmul.f32 %v1365, 1.442695
    %v1372 = vpow.pop %v1371
    %v1373 = vmul.f32 %v1366, 1.442695
    %v1374 = vpow.pop %v1373
    %v1375 = vsel %vm777, %v1368, 0.0
    %1376 = vadd.xlane.f32.xlu0 %v1375
    %v1377 = vpop.xlane.xlu0 %1376
    %v1378 = vsel %vm777, %v1370, 0.0
    %1379 = vadd.xlane.f32.xlu0 %v1378
    %v1380 = vpop.xlane.xlu0 %1379
    %v1381 = vsel %vm777, %v1372, 0.0
    %1382 = vadd.xlane.f32.xlu0 %v1381
    %v1383 = vpop.xlane.xlu0 %1382
    %v1384 = vsel %vm777, %v1374, 0.0
    %1385 = vadd.xlane.f32.xlu0 %v1384
    %v1386 = vpop.xlane.xlu0 %1385
    %v1387 = vrcp.pop %v1377
    %v1388 = vrcp.pop %v1380
    %v1389 = vrcp.pop %v1383
    %v1390 = vrcp.pop %v1386
    %v1391 = vmul.f32 %v1368, %v1387
    %v1392 = vmul.f32 %v1370, %v1388
    %v1393 = vmul.f32 %v1372, %v1389
    %v1394 = vmul.f32 %v1374, %v1390
    %v1395 = vpack.c.bf16 %v1392, %v1391
    %v1396 = vpack.c.bf16 %v1394, %v1393
    %v1398 = vsel %vm777, %v1395, 0
    %1400 = vmatprep.subr.bf16.mxu0 0
    %1401 = vmatpush1.bf16.msra.mxu0 %v1247
    %1402 = vmatprep.subr.bf16.mxu0 0
    %1403 = vmatpush1.bf16.msra.mxu0 0
    %1404 = vmatprep.subr.bf16.mxu0 0
    %1405 = vmatpush1.bf16.msra.mxu0 0
    %1406 = vmatprep.subr.bf16.mxu0 0
    %1407 = vmatpush1.bf16.msra.mxu0 0
    %1408 = vmatprep.subr.bf16.mxu0 0
    %1409 = vmatpush1.bf16.msra.mxu0 0
    %1410 = vmatprep.subr.bf16.mxu0 0
    %1411 = vmatpush1.bf16.msra.mxu0 0
    %1412 = vmatprep.subr.bf16.mxu0 0
    %1413 = vmatpush1.bf16.msra.mxu0 0
    %1414 = vmatprep.subr.bf16.mxu0 0
    %1415 = vmatpush1.bf16.msra.mxu0 0
    %1416 = vmatprep.subr.bf16.mxu0 0
    %1417 = vmatpush1.bf16.msra.mxu0 0
    %1418 = vmatprep.subr.bf16.mxu0 0
    %1419 = vmatpush1.bf16.msra.mxu0 0
    %1420 = vmatprep.subr.bf16.mxu0 0
    %1421 = vmatpush1.bf16.msra.mxu0 0
    %1422 = vmatprep.subr.bf16.mxu0 0
    %1423 = vmatpush1.bf16.msra.mxu0 0
    %1424 = vmatprep.subr.bf16.mxu0 0
    %1425 = vmatpush1.bf16.msra.mxu0 0
    %1426 = vmatprep.subr.bf16.mxu0 0
    %1427 = vmatpush1.bf16.msra.mxu0 0
    %1428 = vmatprep.subr.bf16.mxu0 0
    %1429 = vmatpush1.bf16.msra.mxu0 0
    %1430 = vmatprep.subr.bf16.mxu0 0
    %1431 = vmatpush1.bf16.msra.mxu0 0
    %1432 = vmatprep.mubr.bf16.mxu0 0
    %1433 = vmatmul.mubr.bf16.gmra.mrb[0].mxu0 %v1398
    %v1434 = vpop.f32.mrb[0].mxu0
    %v1435 = vadd.f32 0.0, %v1434
    %v1436 = vpop.f32.mrb[0].mxu0
    %v1437 = vpop.f32.mrb[0].mxu0
    %v1438 = vadd.f32 0.0, %v1437
    %v1439 = vpop.f32.mrb[0].mxu0
    %1440 = vdwg.mxu0
    %v1442 = vsel %vm777, %v1396, 0
    %1444 = vmatprep.subr.bf16.mxu0 0
    %1445 = vmatpush1.bf16.msra.mxu0 %v1248
    %1446 = vmatprep.subr.bf16.mxu0 0
    %1447 = vmatpush1.bf16.msra.mxu0 0
    %1448 = vmatprep.subr.bf16.mxu0 0
    %1449 = vmatpush1.bf16.msra.mxu0 0
    %1450 = vmatprep.subr.bf16.mxu0 0
    %1451 = vmatpush1.bf16.msra.mxu0 0
    %1452 = vmatprep.subr.bf16.mxu0 0
    %1453 = vmatpush1.bf16.msra.mxu0 0
    %1454 = vmatprep.subr.bf16.mxu0 0
    %1455 = vmatpush1.bf16.msra.mxu0 0
    %1456 = vmatprep.subr.bf16.mxu0 0
    %1457 = vmatpush1.bf16.msra.mxu0 0
    %1458 = vmatprep.subr.bf16.mxu0 0
    %1459 = vmatpush1.bf16.msra.mxu0 0
    %1460 = vmatprep.subr.bf16.mxu0 0
    %1461 = vmatpush1.bf16.msra.mxu0 0
    %1462 = vmatprep.subr.bf16.mxu0 0
    %1463 = vmatpush1.bf16.msra.mxu0 0
    %1464 = vmatprep.subr.bf16.mxu0 0
    %1465 = vmatpush1.bf16.msra.mxu0 0
    %1466 = vmatprep.subr.bf16.mxu0 0
    %1467 = vmatpush1.bf16.msra.mxu0 0
    %1468 = vmatprep.subr.bf16.mxu0 0
    %1469 = vmatpush1.bf16.msra.mxu0 0
    %1470 = vmatprep.subr.bf16.mxu0 0
    %1471 = vmatpush1.bf16.msra.mxu0 0
    %1472 = vmatprep.subr.bf16.mxu0 0
    %1473 = vmatpush1.bf16.msra.mxu0 0
    %1474 = vmatprep.subr.bf16.mxu0 0
    %1475 = vmatpush1.bf16.msra.mxu0 0
    %1476 = vmatprep.mubr.bf16.mxu0 0
    %1477 = vmatmul.mubr.bf16.gmra.mrb[0].mxu0 %v1442
    %v1478 = vpop.f32.mrb[0].mxu0
    %v1479 = vadd.f32 0.0, %v1478
    %v1480 = vpop.f32.mrb[0].mxu0
    %v1481 = vpop.f32.mrb[0].mxu0
    %v1482 = vadd.f32 0.0, %v1481
    %v1483 = vpop.f32.mrb[0].mxu0
    %1484 = vdwg.mxu0
    %v1485 = vpack.c.bf16 %v1438, %v1435
    %v1486 = vpack.c.bf16 %v1482, %v1479
    %s1487 = scalar_lea.vmem %s5, 8
    %v1488 = vld [vmem:[%s1487] sm:$0xf]
    %v1489 = vld [vmem:[%s1487 + $0x4] sm:$0xf]
    %v1492 = vunpack.c.l.b16 %v1488
    %v1493 = vunpack.c.l.b16 %v1489
    %v1494 = vpack.c.b16 %v1493, %v1492
    %v1497 = vsel %vm777, %v1485, 0
    %v1500 = vsel %vm777, %v1486, 0
    %1502 = vmatprep.subr.bf16.mxu0 0
    %1503 = vmatpush1.bf16.msra.mxu0 %v1494
    %1504 = vmatprep.subr.bf16.mxu0 0
    %1505 = vmatpush1.bf16.msra.mxu0 0
    %1506 = vmatprep.subr.bf16.mxu0 0
    %1507 = vmatpush1.bf16.msra.mxu0 0
    %1508 = vmatprep.subr.bf16.mxu0 0
    %1509 = vmatpush1.bf16.msra.mxu0 0
    %1510 = vmatprep.subr.bf16.mxu0 0
    %1511 = vmatpush1.bf16.msra.mxu0 0
    %1512 = vmatprep.subr.bf16.mxu0 0
    %1513 = vmatpush1.bf16.msra.mxu0 0
    %1514 = vmatprep.subr.bf16.mxu0 0
    %1515 = vmatpush1.bf16.msra.mxu0 0
    %1516 = vmatprep.subr.bf16.mxu0 0
    %1517 = vmatpush1.bf16.msra.mxu0 0
    %1518 = vmatprep.subr.bf16.mxu0 0
    %1519 = vmatpush1.bf16.msra.mxu0 0
    %1520 = vmatprep.subr.bf16.mxu0 0
    %1521 = vmatpush1.bf16.msra.mxu0 0
    %1522 = vmatprep.subr.bf16.mxu0 0
    %1523 = vmatpush1.bf16.msra.mxu0 0
    %1524 = vmatprep.subr.bf16.mxu0 0
    %1525 = vmatpush1.bf16.msra.mxu0 0
    %1526 = vmatprep.subr.bf16.mxu0 0
    %1527 = vmatpush1.bf16.msra.mxu0 0
    %1528 = vmatprep.subr.bf16.mxu0 0
    %1529 = vmatpush1.bf16.msra.mxu0 0
    %1530 = vmatprep.subr.bf16.mxu0 0
    %1531 = vmatpush1.bf16.msra.mxu0 0
    %1532 = vmatprep.subr.bf16.mxu0 0
    %1533 = vmatpush1.bf16.msra.mxu0 0
    %1534 = vmatprep.mubr.bf16.mxu0 0
    %1535 = vmatmul.mubr.bf16.gmra.mrb[0].mxu0 %v1497
    %v1536 = vpop.f32.mrb[0].mxu0
    %v1537 = vadd.f32 0.0, %v1536
    %v1538 = vpop.f32.mrb[0].mxu0
    %v1539 = vpop.f32.mrb[0].mxu0
    %v1540 = vadd.f32 0.0, %v1539
    %v1541 = vpop.f32.mrb[0].mxu0
    %1542 = vmatprep.mubr.bf16.mxu0 0
    %1543 = vmatmul.mubr.bf16.gmra.mrb[0].mxu0 %v1500
    %v1544 = vpop.f32.mrb[0].mxu0
    %v1545 = vadd.f32 0.0, %v1544
    %v1546 = vpop.f32.mrb[0].mxu0
    %v1547 = vpop.f32.mrb[0].mxu0
    %v1548 = vadd.f32 0.0, %v1547
    %v1549 = vpop.f32.mrb[0].mxu0
    %1550 = vdwg.mxu0
    %v1553 = vunpack.c.l.b16 %v1028
    %v1554 = vunpack.c.l.b16 %v1029
    %v1555 = vpack.c.b16 %v1554, %v1553
    %v1558 = vsel %vm777, %v1026, 0
    %v1561 = vsel %vm777, %v1027, 0
    %1563 = vmatprep.subr.bf16.mxu0 0
    %1564 = vmatpush1.bf16.msra.mxu0 %v1555
    %1565 = vmatprep.subr.bf16.mxu0 0
    %1566 = vmatpush1.bf16.msra.mxu0 0
    %1567 = vmatprep.subr.bf16.mxu0 0
    %1568 = vmatpush1.bf16.msra.mxu0 0
    %1569 = vmatprep.subr.bf16.mxu0 0
    %1570 = vmatpush1.bf16.msra.mxu0 0
    %1571 = vmatprep.subr.bf16.mxu0 0
    %1572 = vmatpush1.bf16.msra.mxu0 0
    %1573 = vmatprep.subr.bf16.mxu0 0
    %1574 = vmatpush1.bf16.msra.mxu0 0
    %1575 = vmatprep.subr.bf16.mxu0 0
    %1576 = vmatpush1.bf16.msra.mxu0 0
    %1577 = vmatprep.subr.bf16.mxu0 0
    %1578 = vmatpush1.bf16.msra.mxu0 0
    %1579 = vmatprep.subr.bf16.mxu0 0
    %1580 = vmatpush1.bf16.msra.mxu0 0
    %1581 = vmatprep.subr.bf16.mxu0 0
    %1582 = vmatpush1.bf16.msra.mxu0 0
    %1583 = vmatprep.subr.bf16.mxu0 0
    %1584 = vmatpush1.bf16.msra.mxu0 0
    %1585 = vmatprep.subr.bf16.mxu0 0
    %1586 = vmatpush1.bf16.msra.mxu0 0
    %1587 = vmatprep.subr.bf16.mxu0 0
    %1588 = vmatpush1.bf16.msra.mxu0 0
    %1589 = vmatprep.subr.bf16.mxu0 0
    %1590 = vmatpush1.bf16.msra.mxu0 0
    %1591 = vmatprep.subr.bf16.mxu0 0
    %1592 = vmatpush1.bf16.msra.mxu0 0
    %1593 = vmatprep.subr.bf16.mxu0 0
    %1594 = vmatpush1.bf16.msra.mxu0 0
    %1595 = vmatprep.mubr.bf16.mxu0 0
    %1596 = vmatmul.mubr.bf16.gmra.mrb[0].mxu0 %v1558
    %v1597 = vpop.f32.mrb[0].mxu0
    %v1598 = vadd.f32 %v1537, %v1597
    %v1599 = vpop.f32.mrb[0].mxu0
    %v1600 = vpop.f32.mrb[0].mxu0
    %v1601 = vadd.f32 %v1540, %v1600
    %v1602 = vpop.f32.mrb[0].mxu0
    %1603 = vmatprep.mubr.bf16.mxu0 0
    %1604 = vmatmul.mubr.bf16.gmra.mrb[0].mxu0 %v1561
    %v1605 = vpop.f32.mrb[0].mxu0
    %v1606 = vadd.f32 %v1545, %v1605
    %v1607 = vpop.f32.mrb[0].mxu0
    %v1608 = vpop.f32.mrb[0].mxu0
    %v1609 = vadd.f32 %v1548, %v1608
    %v1610 = vpop.f32.mrb[0].mxu0
    %1611 = vdwg.mxu0
    %v1612 = vld [vmem:[%s6] sm:$0x1]
    %v1613 = vld [vmem:[%s6 + $0x1] sm:$0x1]
    %v1614 = vld [vmem:[%s6 + $0x2] sm:$0x1]
    %v1615 = vld [vmem:[%s6 + $0x3] sm:$0x1]
    %v1616 = vld [vmem:[%s6 + $0x4] sm:$0x1]
    %v1617 = vld [vmem:[%s6 + $0x5] sm:$0x1]
    %v1618 = vadd.f32 %v545, %v1598
    %v1619 = vadd.f32 %v546, %v1601
    %v1620 = vadd.f32 %v547, %v1606
    %v1621 = vadd.f32 %v548, %v1609
    %v1622 = vlaneseq
    %v1623 = vshrl.u32 %v1622, 7
    %v1624 = vsub.s32 0, %v1623
    %v1625 = vrot.slane %v1612, %v1624
    %v1626 = vadd.f32 %v1618, %v1625
    %v1627 = vadd.f32 %v1619, %v1625
    %v1628 = vadd.f32 %v1620, %v1625
    %v1629 = vadd.f32 %v1621, %v1625
    %v1630 = vsel %vm479, %v1626, 0.0
    %1631 = vadd.xlane.f32.xlu0 %v1630
    %v1632 = vpop.xlane.xlu0 %1631
    %v1633 = vsel %vm479, %v1627, 0.0
    %1634 = vadd.xlane.f32.xlu0 %v1633
    %v1635 = vpop.xlane.xlu0 %1634
    %v1636 = vsel %vm479, %v1628, 0.0
    %1637 = vadd.xlane.f32.xlu0 %v1636
    %v1638 = vpop.xlane.xlu0 %1637
    %v1639 = vsel %vm479, %v1629, 0.0
    %1640 = vadd.xlane.f32.xlu0 %v1639
    %v1641 = vpop.xlane.xlu0 %1640
    %v1642 = vmul.f32 %v1632, %v492
    %v1643 = vmul.f32 %v1635, %v492
    %v1644 = vmul.f32 %v1638, %v492
    %v1645 = vmul.f32 %v1641, %v492
    %v1646 = vsub.f32 %v1626, %v1642
    %v1647 = vsub.f32 %v1627, %v1643
    %v1648 = vsub.f32 %v1628, %v1644
    %v1649 = vsub.f32 %v1629, %v1645
    %v1650 = vmul.f32 %v1646, %v1646
    %v1651 = vmul.f32 %v1647, %v1647
    %v1652 = vmul.f32 %v1648, %v1648
    %v1653 = vmul.f32 %v1649, %v1649
    %v1654 = vsel %vm479, %v1650, 0.0
    %1655 = vadd.xlane.f32.xlu0 %v1654
    %v1656 = vpop.xlane.xlu0 %1655
    %v1657 = vsel %vm479, %v1651, 0.0
    %1658 = vadd.xlane.f32.xlu0 %v1657
    %v1659 = vpop.xlane.xlu0 %1658
    %v1660 = vsel %vm479, %v1652, 0.0
    %1661 = vadd.xlane.f32.xlu0 %v1660
    %v1662 = vpop.xlane.xlu0 %1661
    %v1663 = vsel %vm479, %v1653, 0.0
    %1664 = vadd.xlane.f32.xlu0 %v1663
    %v1665 = vpop.xlane.xlu0 %1664
    %v1666 = vmul.f32 %v1656, %v492
    %v1667 = vmul.f32 %v1659, %v492
    %v1668 = vmul.f32 %v1662, %v492
    %v1669 = vmul.f32 %v1665, %v492
    %v1670 = vadd.f32 %v1666, 1e-12
    %v1671 = vadd.f32 %v1667, 1e-12
    %v1672 = vadd.f32 %v1668, 1e-12
    %v1673 = vadd.f32 %v1669, 1e-12
    %v1674 = vrsqrt.pop %v1670
    %v1675 = vrsqrt.pop %v1671
    %v1676 = vrsqrt.pop %v1672
    %v1677 = vrsqrt.pop %v1673
    %v1678 = vmul.f32 %v1646, %v1674
    %v1679 = vmul.f32 %v1647, %v1675
    %v1680 = vmul.f32 %v1648, %v1676
    %v1681 = vmul.f32 %v1649, %v1677
    %v1682 = vlaneseq
    %v1683 = vshrl.u32 %v1682, 7
    %v1684 = vsub.s32 0, %v1683
    %v1685 = vrot.slane %v1613, %v1684
    %v1686 = vmul.f32 %v1678, %v1685
    %v1687 = vmul.f32 %v1679, %v1685
    %v1688 = vmul.f32 %v1680, %v1685
    %v1689 = vmul.f32 %v1681, %v1685
    %v1690 = vlaneseq
    %v1691 = vshrl.u32 %v1690, 7
    %v1692 = vsub.s32 0, %v1691
    %v1693 = vrot.slane %v1614, %v1692
    %v1694 = vadd.f32 %v1686, %v1693
    %v1695 = vadd.f32 %v1687, %v1693
    %v1696 = vadd.f32 %v1688, %v1693
    %v1697 = vadd.f32 %v1689, %v1693
    %v1698 = vpack.c.bf16 %v1695, %v1694
    %v1699 = vpack.c.bf16 %v1697, %v1696
    %v1700 = vld [vmem:[%s7] sm:$0xf]
    %v1701 = vld [vmem:[%s7 + $0x4] sm:$0xf]
    %v1702 = vld [vmem:[%s7 + $0x8] sm:$0xf]
    %v1703 = vld [vmem:[%s7 + $0xc] sm:$0xf]
    %v1704 = vld [vmem:[%s8] sm:$0x1]
    %v1705 = vlaneseq
    %v1706 = vshrl.u32 %v1705, 7
    %v1707 = vsub.s32 0, %v1706
    %v1708 = vrot.slane %v1704, %v1707
    %v1713 = vunpack.c.l.b16 %v1700
    %v1714 = vunpack.c.l.b16 %v1701
    %v1715 = vunpack.c.l.b16 %v1702
    %v1716 = vunpack.c.l.b16 %v1703
    %v1717 = vpack.c.b16 %v1714, %v1713
    %v1718 = vpack.c.b16 %v1716, %v1715
    %v1722 = vsel %vm479, %v1698, 0
    %v1725 = vsel %vm479, %v1699, 0
    %1727 = vmatprep.subr.bf16.mxu0 0
    %1728 = vmatpush1.bf16.msra.mxu0 %v1717
    %1729 = vmatprep.subr.bf16.mxu0 0
    %1730 = vmatpush1.bf16.msra.mxu0 %v1718
    %1731 = vmatprep.subr.bf16.mxu0 0
    %1732 = vmatpush1.bf16.msra.mxu0 0
    %1733 = vmatprep.subr.bf16.mxu0 0
    %1734 = vmatpush1.bf16.msra.mxu0 0
    %1735 = vmatprep.subr.bf16.mxu0 0
    %1736 = vmatpush1.bf16.msra.mxu0 0
    %1737 = vmatprep.subr.bf16.mxu0 0
    %1738 = vmatpush1.bf16.msra.mxu0 0
    %1739 = vmatprep.subr.bf16.mxu0 0
    %1740 = vmatpush1.bf16.msra.mxu0 0
    %1741 = vmatprep.subr.bf16.mxu0 0
    %1742 = vmatpush1.bf16.msra.mxu0 0
    %1743 = vmatprep.subr.bf16.mxu0 0
    %1744 = vmatpush1.bf16.msra.mxu0 0
    %1745 = vmatprep.subr.bf16.mxu0 0
    %1746 = vmatpush1.bf16.msra.mxu0 0
    %1747 = vmatprep.subr.bf16.mxu0 0
    %1748 = vmatpush1.bf16.msra.mxu0 0
    %1749 = vmatprep.subr.bf16.mxu0 0
    %1750 = vmatpush1.bf16.msra.mxu0 0
    %1751 = vmatprep.subr.bf16.mxu0 0
    %1752 = vmatpush1.bf16.msra.mxu0 0
    %1753 = vmatprep.subr.bf16.mxu0 0
    %1754 = vmatpush1.bf16.msra.mxu0 0
    %1755 = vmatprep.subr.bf16.mxu0 0
    %1756 = vmatpush1.bf16.msra.mxu0 0
    %1757 = vmatprep.subr.bf16.mxu0 0
    %1758 = vmatpush1.bf16.msra.mxu0 0
    %1759 = vmatprep.mubr.bf16.mxu0 0
    %1760 = vmatmul.mubr.bf16.gmra.mrb[0].mxu0 %v1722
    %v1761 = vpop.f32.mrb[0].mxu0
    %v1762 = vadd.f32 %v1708, %v1761
    %v1763 = vpop.f32.mrb[0].mxu0
    %v1764 = vpop.f32.mrb[0].mxu0
    %v1765 = vadd.f32 %v1708, %v1764
    %v1766 = vpop.f32.mrb[0].mxu0
    %1767 = vmatprep.mubr.bf16.mxu0 0
    %1768 = vmatmul.mubr.bf16.gmra.mrb[0].mxu0 %v1725
    %v1769 = vpop.f32.mrb[0].mxu0
    %v1770 = vadd.f32 %v1708, %v1769
    %v1771 = vpop.f32.mrb[0].mxu0
    %v1772 = vpop.f32.mrb[0].mxu0
    %v1773 = vadd.f32 %v1708, %v1772
    %v1774 = vpop.f32.mrb[0].mxu0
    %1775 = vdwg.mxu0
    %v1776 = vmul.f32 %v1762, 0.5
    %v1777 = vmul.f32 %v1765, 0.5
    %v1778 = vmul.f32 %v1770, 0.5
    %v1779 = vmul.f32 %v1773, 0.5
    %v1780 = vmul.f32 %v1762, 0.044715
    %v1781 = vmul.f32 %v1765, 0.044715
    %v1782 = vmul.f32 %v1770, 0.044715
    %v1783 = vmul.f32 %v1773, 0.044715
    %v1784 = vmul.f32 %v1780, %v1762
    %v1785 = vmul.f32 %v1781, %v1765
    %v1786 = vmul.f32 %v1782, %v1770
    %v1787 = vmul.f32 %v1783, %v1773
    %v1788 = vmul.f32 %v1784, %v1762
    %v1789 = vmul.f32 %v1785, %v1765
    %v1790 = vmul.f32 %v1786, %v1770
    %v1791 = vmul.f32 %v1787, %v1773
    %v1792 = vadd.f32 %v1762, %v1788
    %v1793 = vadd.f32 %v1765, %v1789
    %v1794 = vadd.f32 %v1770, %v1790
    %v1795 = vadd.f32 %v1773, %v1791
    %v1796 = vmul.f32 %v1792, 0.7978846
    %v1797 = vmul.f32 %v1793, 0.7978846
    %v1798 = vmul.f32 %v1794, 0.7978846
    %v1799 = vmul.f32 %v1795, 0.7978846
    %v1800 = vtanh.pop %v1796
    %v1801 = vtanh.pop %v1797
    %v1802 = vtanh.pop %v1798
    %v1803 = vtanh.pop %v1799
    %v1804 = vadd.f32 %v1800, 1.0
    %v1805 = vadd.f32 %v1801, 1.0
    %v1806 = vadd.f32 %v1802, 1.0
    %v1807 = vadd.f32 %v1803, 1.0
    %v1808 = vmul.f32 %v1776, %v1804
    %v1809 = vmul.f32 %v1777, %v1805
    %v1810 = vmul.f32 %v1778, %v1806
    %v1811 = vmul.f32 %v1779, %v1807
    %v1812 = vpack.c.bf16 %v1809, %v1808
    %v1813 = vpack.c.bf16 %v1811, %v1810
    %v1814 = vld [vmem:[%s9] sm:$0xf]
    %v1815 = vld [vmem:[%s9 + $0x4] sm:$0xf]
    %v1816 = vld [vmem:[%s9 + $0x8] sm:$0xf]
    %v1817 = vld [vmem:[%s9 + $0xc] sm:$0xf]
    %v1818 = vld [vmem:[%s9 + $0x10] sm:$0xf]
    %v1819 = vld [vmem:[%s9 + $0x14] sm:$0xf]
    %v1820 = vld [vmem:[%s9 + $0x18] sm:$0xf]
    %v1821 = vld [vmem:[%s9 + $0x1c] sm:$0xf]
    %v1822 = vld [vmem:[%s9 + $0x20] sm:$0xf]
    %v1823 = vld [vmem:[%s9 + $0x24] sm:$0xf]
    %v1824 = vld [vmem:[%s9 + $0x28] sm:$0xf]
    %v1825 = vld [vmem:[%s9 + $0x2c] sm:$0xf]
    %v1826 = vld [vmem:[%s9 + $0x30] sm:$0xf]
    %v1827 = vld [vmem:[%s9 + $0x34] sm:$0xf]
    %v1828 = vld [vmem:[%s9 + $0x38] sm:$0xf]
    %v1829 = vld [vmem:[%s9 + $0x3c] sm:$0xf]
    %v1830 = vlaneseq
    %v1831 = vshrl.u32 %v1830, 7
    %v1832 = vsub.s32 0, %v1831
    %v1833 = vrot.slane %v1615, %v1832
    %v1850 = vunpack.c.l.b16 %v1814
    %v1851 = vunpack.c.l.b16 %v1815
    %v1852 = vunpack.c.l.b16 %v1816
    %v1853 = vunpack.c.l.b16 %v1817
    %v1854 = vunpack.c.l.b16 %v1818
    %v1855 = vunpack.c.l.b16 %v1819
    %v1856 = vunpack.c.l.b16 %v1820
    %v1857 = vunpack.c.l.b16 %v1821
    %v1858 = vunpack.c.l.b16 %v1822
    %v1859 = vunpack.c.l.b16 %v1823
    %v1860 = vunpack.c.l.b16 %v1824
    %v1861 = vunpack.c.l.b16 %v1825
    %v1862 = vunpack.c.l.b16 %v1826
    %v1863 = vunpack.c.l.b16 %v1827
    %v1864 = vunpack.c.l.b16 %v1828
    %v1865 = vunpack.c.l.b16 %v1829
    %v1866 = vpack.c.b16 %v1851, %v1850
    %v1867 = vpack.c.b16 %v1853, %v1852
    %v1868 = vpack.c.b16 %v1855, %v1854
    %v1869 = vpack.c.b16 %v1857, %v1856
    %v1870 = vpack.c.b16 %v1859, %v1858
    %v1871 = vpack.c.b16 %v1861, %v1860
    %v1872 = vpack.c.b16 %v1863, %v1862
    %v1873 = vpack.c.b16 %v1865, %v1864
    %1882 = vmatprep.subr.bf16.mxu0 0
    %1883 = vmatpush1.bf16.msra.mxu0 %v1866
    %1884 = vmatprep.subr.bf16.mxu0 0
    %1885 = vmatpush1.bf16.msra.mxu0 %v1867
    %1886 = vmatprep.subr.bf16.mxu0 0
    %1887 = vmatpush1.bf16.msra.mxu0 %v1868
    %1888 = vmatprep.subr.bf16.mxu0 0
    %1889 = vmatpush1.bf16.msra.mxu0 %v1869
    %1890 = vmatprep.subr.bf16.mxu0 0
    %1891 = vmatpush1.bf16.msra.mxu0 %v1870
    %1892 = vmatprep.subr.bf16.mxu0 0
    %1893 = vmatpush1.bf16.msra.mxu0 %v1871
    %1894 = vmatprep.subr.bf16.mxu0 0
    %1895 = vmatpush1.bf16.msra.mxu0 %v1872
    %1896 = vmatprep.subr.bf16.mxu0 0
    %1897 = vmatpush1.bf16.msra.mxu0 %v1873
    %1898 = vmatprep.subr.bf16.mxu0 0
    %1899 = vmatpush1.bf16.msra.mxu0 0
    %1900 = vmatprep.subr.bf16.mxu0 0
    %1901 = vmatpush1.bf16.msra.mxu0 0
    %1902 = vmatprep.subr.bf16.mxu0 0
    %1903 = vmatpush1.bf16.msra.mxu0 0
    %1904 = vmatprep.subr.bf16.mxu0 0
    %1905 = vmatpush1.bf16.msra.mxu0 0
    %1906 = vmatprep.subr.bf16.mxu0 0
    %1907 = vmatpush1.bf16.msra.mxu0 0
    %1908 = vmatprep.subr.bf16.mxu0 0
    %1909 = vmatpush1.bf16.msra.mxu0 0
    %1910 = vmatprep.subr.bf16.mxu0 0
    %1911 = vmatpush1.bf16.msra.mxu0 0
    %1912 = vmatprep.subr.bf16.mxu0 0
    %1913 = vmatpush1.bf16.msra.mxu0 0
    %1914 = vmatprep.mubr.bf16.mxu0 0
    %1915 = vmatmul.mubr.bf16.gmra.mrb[0].mxu0 %v1812
    %v1916 = vpop.f32.mrb[0].mxu0
    %v1917 = vadd.f32 %v1833, %v1916
    %v1918 = vpop.f32.mrb[0].mxu0
    %v1919 = vpop.f32.mrb[0].mxu0
    %v1920 = vadd.f32 %v1833, %v1919
    %v1921 = vpop.f32.mrb[0].mxu0
    %1922 = vmatprep.mubr.bf16.mxu0 0
    %1923 = vmatmul.mubr.bf16.gmra.mrb[0].mxu0 %v1813
    %v1924 = vpop.f32.mrb[0].mxu0
    %v1925 = vadd.f32 %v1833, %v1924
    %v1926 = vpop.f32.mrb[0].mxu0
    %v1927 = vpop.f32.mrb[0].mxu0
    %v1928 = vadd.f32 %v1833, %v1927
    %v1929 = vpop.f32.mrb[0].mxu0
    %1930 = vdwg.mxu0
    %v1931 = vadd.f32 %v1694, %v1917
    %v1932 = vadd.f32 %v1695, %v1920
    %v1933 = vadd.f32 %v1696, %v1925
    %v1934 = vadd.f32 %v1697, %v1928
    %v1935 = vsel %vm479, %v1931, 0.0
    %1936 = vadd.xlane.f32.xlu0 %v1935
    %v1937 = vpop.xlane.xlu0 %1936
    %v1938 = vsel %vm479, %v1932, 0.0
    %1939 = vadd.xlane.f32.xlu0 %v1938
    %v1940 = vpop.xlane.xlu0 %1939
    %v1941 = vsel %vm479, %v1933, 0.0
    %1942 = vadd.xlane.f32.xlu0 %v1941
    %v1943 = vpop.xlane.xlu0 %1942
    %v1944 = vsel %vm479, %v1934, 0.0
    %1945 = vadd.xlane.f32.xlu0 %v1944
    %v1946 = vpop.xlane.xlu0 %1945
    %v1947 = vmul.f32 %v1937, %v492
    %v1948 = vmul.f32 %v1940, %v492
    %v1949 = vmul.f32 %v1943, %v492
    %v1950 = vmul.f32 %v1946, %v492
    %v1951 = vsub.f32 %v1931, %v1947
    %v1952 = vsub.f32 %v1932, %v1948
    %v1953 = vsub.f32 %v1933, %v1949
    %v1954 = vsub.f32 %v1934, %v1950
    %v1955 = vmul.f32 %v1951, %v1951
    %v1956 = vmul.f32 %v1952, %v1952
    %v1957 = vmul.f32 %v1953, %v1953
    %v1958 = vmul.f32 %v1954, %v1954
    %v1959 = vsel %vm479, %v1955, 0.0
    %1960 = vadd.xlane.f32.xlu0 %v1959
    %v1961 = vpop.xlane.xlu0 %1960
    %v1962 = vsel %vm479, %v1956, 0.0
    %1963 = vadd.xlane.f32.xlu0 %v1962
    %v1964 = vpop.xlane.xlu0 %1963
    %v1965 = vsel %vm479, %v1957, 0.0
    %1966 = vadd.xlane.f32.xlu0 %v1965
    %v1967 = vpop.xlane.xlu0 %1966
    %v1968 = vsel %vm479, %v1958, 0.0
    %1969 = vadd.xlane.f32.xlu0 %v1968
    %v1970 = vpop.xlane.xlu0 %1969
    %v1971 = vmul.f32 %v1961, %v492
    %v1972 = vmul.f32 %v1964, %v492
    %v1973 = vmul.f32 %v1967, %v492
    %v1974 = vmul.f32 %v1970, %v492
    %v1975 = vadd.f32 %v1971, 1e-12
    %v1976 = vadd.f32 %v1972, 1e-12
    %v1977 = vadd.f32 %v1973, 1e-12
    %v1978 = vadd.f32 %v1974, 1e-12
    %v1979 = vrsqrt.pop %v1975
    %v1980 = vrsqrt.pop %v1976
    %v1981 = vrsqrt.pop %v1977
    %v1982 = vrsqrt.pop %v1978
    %v1983 = vmul.f32 %v1951, %v1979
    %v1984 = vmul.f32 %v1952, %v1980
    %v1985 = vmul.f32 %v1953, %v1981
    %v1986 = vmul.f32 %v1954, %v1982
    %v1987 = vlaneseq
    %v1988 = vshrl.u32 %v1987, 7
    %v1989 = vsub.s32 0, %v1988
    %v1990 = vrot.slane %v1616, %v1989
    %v1991 = vmul.f32 %v1983, %v1990
    %v1992 = vmul.f32 %v1984, %v1990
    %v1993 = vmul.f32 %v1985, %v1990
    %v1994 = vmul.f32 %v1986, %v1990
    %v1995 = vlaneseq
    %v1996 = vshrl.u32 %v1995, 7
    %v1997 = vsub.s32 0, %v1996
    %v1998 = vrot.slane %v1617, %v1997
    %v1999 = vadd.f32 %v1991, %v1998
    %v2000 = vadd.f32 %v1992, %v1998
    %v2001 = vadd.f32 %v1993, %v1998
    %v2002 = vadd.f32 %v1994, %v1998
    %v2003 = vpack.c.bf16 %v2000, %v1999
    %v2004 = vpack.c.bf16 %v2002, %v2001
    %s2005 = scalar_lea.vmem %s3, 96
    %v2006 = vld [vmem:[%s2005] sm:$0xf]
    %v2007 = vld [vmem:[%s2005 + $0x4] sm:$0xf]
    %v2008 = vld [vmem:[%s2005 + $0x8] sm:$0xf]
    %v2009 = vld [vmem:[%s2005 + $0xc] sm:$0xf]
    %s2010 = scalar_lea.vmem %s4, 8
    %v2011 = vld [vmem:[%s2010] sm:$0x1]
    %v2012 = vlaneseq
    %v2013 = vshrl.u32 %v2012, 7
    %v2014 = vsub.s32 0, %v2013
    %v2015 = vrot.slane %v2011, %v2014
    %v2020 = vunpack.c.l.b16 %v2006
    %v2021 = vunpack.c.l.b16 %v2007
    %v2022 = vunpack.c.l.b16 %v2008
    %v2023 = vunpack.c.l.b16 %v2009
    %v2024 = vpack.c.b16 %v2021, %v2020
    %v2025 = vpack.c.b16 %v2023, %v2022
    %v2029 = vsel %vm479, %v2003, 0
    %v2032 = vsel %vm479, %v2004, 0
    %2034 = vmatprep.subr.bf16.mxu0 0
    %2035 = vmatpush1.bf16.msra.mxu0 %v2024
    %2036 = vmatprep.subr.bf16.mxu0 0
    %2037 = vmatpush1.bf16.msra.mxu0 %v2025
    %2038 = vmatprep.subr.bf16.mxu0 0
    %2039 = vmatpush1.bf16.msra.mxu0 0
    %2040 = vmatprep.subr.bf16.mxu0 0
    %2041 = vmatpush1.bf16.msra.mxu0 0
    %2042 = vmatprep.subr.bf16.mxu0 0
    %2043 = vmatpush1.bf16.msra.mxu0 0
    %2044 = vmatprep.subr.bf16.mxu0 0
    %2045 = vmatpush1.bf16.msra.mxu0 0
    %2046 = vmatprep.subr.bf16.mxu0 0
    %2047 = vmatpush1.bf16.msra.mxu0 0
    %2048 = vmatprep.subr.bf16.mxu0 0
    %2049 = vmatpush1.bf16.msra.mxu0 0
    %2050 = vmatprep.subr.bf16.mxu0 0
    %2051 = vmatpush1.bf16.msra.mxu0 0
    %2052 = vmatprep.subr.bf16.mxu0 0
    %2053 = vmatpush1.bf16.msra.mxu0 0
    %2054 = vmatprep.subr.bf16.mxu0 0
    %2055 = vmatpush1.bf16.msra.mxu0 0
    %2056 = vmatprep.subr.bf16.mxu0 0
    %2057 = vmatpush1.bf16.msra.mxu0 0
    %2058 = vmatprep.subr.bf16.mxu0 0
    %2059 = vmatpush1.bf16.msra.mxu0 0
    %2060 = vmatprep.subr.bf16.mxu0 0
    %2061 = vmatpush1.bf16.msra.mxu0 0
    %2062 = vmatprep.subr.bf16.mxu0 0
    %2063 = vmatpush1.bf16.msra.mxu0 0
    %2064 = vmatprep.subr.bf16.mxu0 0
    %2065 = vmatpush1.bf16.msra.mxu0 0
    %2066 = vmatprep.mubr.bf16.mxu0 0
    %2067 = vmatmul.mubr.bf16.gmra.mrb[0].mxu0 %v2029
    %v2068 = vpop.f32.mrb[0].mxu0
    %v2069 = vadd.f32 %v2015, %v2068
    %v2070 = vpop.f32.mrb[0].mxu0
    %v2071 = vpop.f32.mrb[0].mxu0
    %v2072 = vadd.f32 %v2015, %v2071
    %v2073 = vpop.f32.mrb[0].mxu0
    %2074 = vmatprep.mubr.bf16.mxu0 0
    %2075 = vmatmul.mubr.bf16.gmra.mrb[0].mxu0 %v2032
    %v2076 = vpop.f32.mrb[0].mxu0
    %v2077 = vadd.f32 %v2015, %v2076
    %v2078 = vpop.f32.mrb[0].mxu0
    %v2079 = vpop.f32.mrb[0].mxu0
    %v2080 = vadd.f32 %v2015, %v2079
    %v2081 = vpop.f32.mrb[0].mxu0
    %2082 = vdwg.mxu0
    %s2083 = scalar_lea.vmem %s3, 128
    %v2084 = vld [vmem:[%s2083] sm:$0xf]
    %v2085 = vld [vmem:[%s2083 + $0x4] sm:$0xf]
    %v2086 = vld [vmem:[%s2083 + $0x8] sm:$0xf]
    %v2087 = vld [vmem:[%s2083 + $0xc] sm:$0xf]
    %v2088 = vld [vmem:[%s2010 + $0x2] sm:$0x1]
    %v2089 = vlaneseq
    %v2090 = vshrl.u32 %v2089, 7
    %v2091 = vsub.s32 0, %v2090
    %v2092 = vrot.slane %v2088, %v2091
    %v2097 = vunpack.c.l.b16 %v2084
    %v2098 = vunpack.c.l.b16 %v2085
    %v2099 = vunpack.c.l.b16 %v2086
    %v2100 = vunpack.c.l.b16 %v2087
    %v2101 = vpack.c.b16 %v2098, %v2097
    %v2102 = vpack.c.b16 %v2100, %v2099
    %2105 = vmatprep.subr.bf16.mxu0 0
    %2106 = vmatpush1.bf16.msra.mxu0 %v2101
    %2107 = vmatprep.subr.bf16.mxu0 0
    %2108 = vmatpush1.bf16.msra.mxu0 %v2102
    %2109 = vmatprep.subr.bf16.mxu0 0
    %2110 = vmatpush1.bf16.msra.mxu0 0
    %2111 = vmatprep.subr.bf16.mxu0 0
    %2112 = vmatpush1.bf16.msra.mxu0 0
    %2113 = vmatprep.subr.bf16.mxu0 0
    %2114 = vmatpush1.bf16.msra.mxu0 0
    %2115 = vmatprep.subr.bf16.mxu0 0
    %2116 = vmatpush1.bf16.msra.mxu0 0
    %2117 = vmatprep.subr.bf16.mxu0 0
    %2118 = vmatpush1.bf16.msra.mxu0 0
    %2119 = vmatprep.subr.bf16.mxu0 0
    %2120 = vmatpush1.bf16.msra.mxu0 0
    %2121 = vmatprep.subr.bf16.mxu0 0
    %2122 = vmatpush1.bf16.msra.mxu0 0
    %2123 = vmatprep.subr.bf16.mxu0 0
    %2124 = vmatpush1.bf16.msra.mxu0 0
    %2125 = vmatprep.subr.bf16.mxu0 0
    %2126 = vmatpush1.bf16.msra.mxu0 0
    %2127 = vmatprep.subr.bf16.mxu0 0
    %2128 = vmatpush1.bf16.msra.mxu0 0
    %2129 = vmatprep.subr.bf16.mxu0 0
    %2130 = vmatpush1.bf16.msra.mxu0 0
    %2131 = vmatprep.subr.bf16.mxu0 0
    %2132 = vmatpush1.bf16.msra.mxu0 0
    %2133 = vmatprep.subr.bf16.mxu0 0
    %2134 = vmatpush1.bf16.msra.mxu0 0
    %2135 = vmatprep.subr.bf16.mxu0 0
    %2136 = vmatpush1.bf16.msra.mxu0 0
    %2137 = vmatprep.mubr.bf16.mxu0 0
    %2138 = vmatmul.mubr.bf16.gmra.mrb[0].mxu0 %v2029
    %v2139 = vpop.f32.mrb[0].mxu0
    %v2140 = vadd.f32 %v2092, %v2139
    %v2141 = vpop.f32.mrb[0].mxu0
    %v2142 = vpop.f32.mrb[0].mxu0
    %v2143 = vadd.f32 %v2092, %v2142
    %v2144 = vpop.f32.mrb[0].mxu0
    %2145 = vmatprep.mubr.bf16.mxu0 0
    %2146 = vmatmul.mubr.bf16.gmra.mrb[0].mxu0 %v2032
    %v2147 = vpop.f32.mrb[0].mxu0
    %v2148 = vadd.f32 %v2092, %v2147
    %v2149 = vpop.f32.mrb[0].mxu0
    %v2150 = vpop.f32.mrb[0].mxu0
    %v2151 = vadd.f32 %v2092, %v2150
    %v2152 = vpop.f32.mrb[0].mxu0
    %2153 = vdwg.mxu0
    %s2154 = scalar_lea.vmem %s3, 160
    %v2155 = vld [vmem:[%s2154] sm:$0xf]
    %v2156 = vld [vmem:[%s2154 + $0x4] sm:$0xf]
    %v2157 = vld [vmem:[%s2154 + $0x8] sm:$0xf]
    %v2158 = vld [vmem:[%s2154 + $0xc] sm:$0xf]
    %v2159 = vld [vmem:[%s2010 + $0x4] sm:$0x1]
    %v2160 = vlaneseq
    %v2161 = vshrl.u32 %v2160, 7
    %v2162 = vsub.s32 0, %v2161
    %v2163 = vrot.slane %v2159, %v2162
    %v2168 = vunpack.c.l.b16 %v2155
    %v2169 = vunpack.c.l.b16 %v2156
    %v2170 = vunpack.c.l.b16 %v2157
    %v2171 = vunpack.c.l.b16 %v2158
    %v2172 = vpack.c.b16 %v2169, %v2168
    %v2173 = vpack.c.b16 %v2171, %v2170
    %2176 = vmatprep.subr.bf16.mxu0 0
    %2177 = vmatpush1.bf16.msra.mxu0 %v2172
    %2178 = vmatprep.subr.bf16.mxu0 0
    %2179 = vmatpush1.bf16.msra.mxu0 %v2173
    %2180 = vmatprep.subr.bf16.mxu0 0
    %2181 = vmatpush1.bf16.msra.mxu0 0
    %2182 = vmatprep.subr.bf16.mxu0 0
    %2183 = vmatpush1.bf16.msra.mxu0 0
    %2184 = vmatprep.subr.bf16.mxu0 0
    %2185 = vmatpush1.bf16.msra.mxu0 0
    %2186 = vmatprep.subr.bf16.mxu0 0
    %2187 = vmatpush1.bf16.msra.mxu0 0
    %2188 = vmatprep.subr.bf16.mxu0 0
    %2189 = vmatpush1.bf16.msra.mxu0 0
    %2190 = vmatprep.subr.bf16.mxu0 0
    %2191 = vmatpush1.bf16.msra.mxu0 0
    %2192 = vmatprep.subr.bf16.mxu0 0
    %2193 = vmatpush1.bf16.msra.mxu0 0
    %2194 = vmatprep.subr.bf16.mxu0 0
    %2195 = vmatpush1.bf16.msra.mxu0 0
    %2196 = vmatprep.subr.bf16.mxu0 0
    %2197 = vmatpush1.bf16.msra.mxu0 0
    %2198 = vmatprep.subr.bf16.mxu0 0
    %2199 = vmatpush1.bf16.msra.mxu0 0
    %2200 = vmatprep.subr.bf16.mxu0 0
    %2201 = vmatpush1.bf16.msra.mxu0 0
    %2202 = vmatprep.subr.bf16.mxu0 0
    %2203 = vmatpush1.bf16.msra.mxu0 0
    %2204 = vmatprep.subr.bf16.mxu0 0
    %2205 = vmatpush1.bf16.msra.mxu0 0
    %2206 = vmatprep.subr.bf16.mxu0 0
    %2207 = vmatpush1.bf16.msra.mxu0 0
    %2208 = vmatprep.mubr.bf16.mxu0 0
    %2209 = vmatmul.mubr.bf16.gmra.mrb[0].mxu0 %v2029
    %v2210 = vpop.f32.mrb[0].mxu0
    %v2211 = vadd.f32 %v2163, %v2210
    %v2212 = vpop.f32.mrb[0].mxu0
    %v2213 = vpop.f32.mrb[0].mxu0
    %v2214 = vadd.f32 %v2163, %v2213
    %v2215 = vpop.f32.mrb[0].mxu0
    %2216 = vmatprep.mubr.bf16.mxu0 0
    %2217 = vmatmul.mubr.bf16.gmra.mrb[0].mxu0 %v2032
    %v2218 = vpop.f32.mrb[0].mxu0
    %v2219 = vadd.f32 %v2163, %v2218
    %v2220 = vpop.f32.mrb[0].mxu0
    %v2221 = vpop.f32.mrb[0].mxu0
    %v2222 = vadd.f32 %v2163, %v2221
    %v2223 = vpop.f32.mrb[0].mxu0
    %2224 = vdwg.mxu0
    %v2225 = vpack.c.bf16 %v2072, %v2069
    %v2226 = vpack.c.bf16 %v2080, %v2077
    %v2227 = vpack.c.bf16 %v2143, %v2140
    %v2228 = vpack.c.bf16 %v2151, %v2148
    %v2229 = vpack.c.bf16 %v2214, %v2211
    %v2230 = vpack.c.bf16 %v2222, %v2219
    %v2232 = vsel %vm777, %v2225, 0
    %v2235 = vsel %vm777, %v2227, 0
    %2237 = vmatprep.subr.bf16.mxu0 0
    %2238 = vmatpush1.bf16.xpose.msra.mxu0 %v2235
    %2239 = vmatprep.subr.bf16.mxu0 0
    %2240 = vmatpush1.bf16.xpose.msra.mxu0 0
    %2241 = vmatprep.subr.bf16.mxu0 0
    %2242 = vmatpush1.bf16.xpose.msra.mxu0 0
    %2243 = vmatprep.subr.bf16.mxu0 0
    %2244 = vmatpush1.bf16.xpose.msra.mxu0 0
    %2245 = vmatprep.subr.bf16.mxu0 0
    %2246 = vmatpush1.bf16.xpose.msra.mxu0 0
    %2247 = vmatprep.subr.bf16.mxu0 0
    %2248 = vmatpush1.bf16.xpose.msra.mxu0 0
    %2249 = vmatprep.subr.bf16.mxu0 0
    %2250 = vmatpush1.bf16.xpose.msra.mxu0 0
    %2251 = vmatprep.subr.bf16.mxu0 0
    %2252 = vmatpush1.bf16.xpose.msra.mxu0 0
    %2253 = vmatprep.subr.bf16.mxu0 0
    %2254 = vmatpush1.bf16.xpose.msra.mxu0 0
    %2255 = vmatprep.subr.bf16.mxu0 0
    %2256 = vmatpush1.bf16.xpose.msra.mxu0 0
    %2257 = vmatprep.subr.bf16.mxu0 0
    %2258 = vmatpush1.bf16.xpose.msra.mxu0 0
    %2259 = vmatprep.subr.bf16.mxu0 0
    %2260 = vmatpush1.bf16.xpose.msra.mxu0 0
    %2261 = vmatprep.subr.bf16.mxu0 0
    %2262 = vmatpush1.bf16.xpose.msra.mxu0 0
    %2263 = vmatprep.subr.bf16.mxu0 0
    %2264 = vmatpush1.bf16.xpose.msra.mxu0 0
    %2265 = vmatprep.subr.bf16.mxu0 0
    %2266 = vmatpush1.bf16.xpose.msra.mxu0 0
    %2267 = vmatprep.subr.bf16.mxu0 0
    %2268 = vmatpush1.bf16.xpose.msra.mxu0 0
    %2269 = vmatprep.mubr.bf16.mxu0 0
    %2270 = vmatmul.mubr.bf16.gmra.mrb[0].mxu0 %v2232
    %v2271 = vpop.f32.mrb[0].mxu0
    %v2272 = vadd.f32 0.0, %v2271
    %v2273 = vpop.f32.mrb[0].mxu0
    %v2274 = vpop.f32.mrb[0].mxu0
    %v2275 = vadd.f32 0.0, %v2274
    %v2276 = vpop.f32.mrb[0].mxu0
    %2277 = vdwg.mxu0
    %v2279 = vsel %vm777, %v2226, 0
    %v2282 = vsel %vm777, %v2228, 0
    %2284 = vmatprep.subr.bf16.mxu0 0
    %2285 = vmatpush1.bf16.xpose.msra.mxu0 %v2282
    %2286 = vmatprep.subr.bf16.mxu0 0
    %2287 = vmatpush1.bf16.xpose.msra.mxu0 0
    %2288 = vmatprep.subr.bf16.mxu0 0
    %2289 = vmatpush1.bf16.xpose.msra.mxu0 0
    %2290 = vmatprep.subr.bf16.mxu0 0
    %2291 = vmatpush1.bf16.xpose.msra.mxu0 0
    %2292 = vmatprep.subr.bf16.mxu0 0
    %2293 = vmatpush1.bf16.xpose.msra.mxu0 0
    %2294 = vmatprep.subr.bf16.mxu0 0
    %2295 = vmatpush1.bf16.xpose.msra.mxu0 0
    %2296 = vmatprep.subr.bf16.mxu0 0
    %2297 = vmatpush1.bf16.xpose.msra.mxu0 0
    %2298 = vmatprep.subr.bf16.mxu0 0
    %2299 = vmatpush1.bf16.xpose.msra.mxu0 0
    %2300 = vmatprep.subr.bf16.mxu0 0
    %2301 = vmatpush1.bf16.xpose.msra.mxu0 0
    %2302 = vmatprep.subr.bf16.mxu0 0
    %2303 = vmatpush1.bf16.xpose.msra.mxu0 0
    %2304 = vmatprep.subr.bf16.mxu0 0
    %2305 = vmatpush1.bf16.xpose.msra.mxu0 0
    %2306 = vmatprep.subr.bf16.mxu0 0
    %2307 = vmatpush1.bf16.xpose.msra.mxu0 0
    %2308 = vmatprep.subr.bf16.mxu0 0
    %2309 = vmatpush1.bf16.xpose.msra.mxu0 0
    %2310 = vmatprep.subr.bf16.mxu0 0
    %2311 = vmatpush1.bf16.xpose.msra.mxu0 0
    %2312 = vmatprep.subr.bf16.mxu0 0
    %2313 = vmatpush1.bf16.xpose.msra.mxu0 0
    %2314 = vmatprep.subr.bf16.mxu0 0
    %2315 = vmatpush1.bf16.xpose.msra.mxu0 0
    %2316 = vmatprep.mubr.bf16.mxu0 0
    %2317 = vmatmul.mubr.bf16.gmra.mrb[0].mxu0 %v2279
    %v2318 = vpop.f32.mrb[0].mxu0
    %v2319 = vadd.f32 0.0, %v2318
    %v2320 = vpop.f32.mrb[0].mxu0
    %v2321 = vpop.f32.mrb[0].mxu0
    %v2322 = vadd.f32 0.0, %v2321
    %v2323 = vpop.f32.mrb[0].mxu0
    %2324 = vdwg.mxu0
    %v2325 = vmul.f32 %v2272, 0.25
    %v2326 = vmul.f32 %v2275, 0.25
    %v2327 = vmul.f32 %v2319, 0.25
    %v2328 = vmul.f32 %v2322, 0.25
    %v2329 = vadd.f32 %v2325, %v881
    %v2330 = vadd.f32 %v2326, %v881
    %v2331 = vadd.f32 %v2327, %v885
    %v2332 = vadd.f32 %v2328, %v885
    %v2333 = vsel %vm777, %v2329, -inf
    %2334 = vmax.xlane.f32.xlu0 %v2333
    %v2335 = vpop.xlane.xlu0 %2334
    %v2336 = vsel %vm777, %v2330, -inf
    %2337 = vmax.xlane.f32.xlu0 %v2336
    %v2338 = vpop.xlane.xlu0 %2337
    %v2339 = vsel %vm777, %v2331, -inf
    %2340 = vmax.xlane.f32.xlu0 %v2339
    %v2341 = vpop.xlane.xlu0 %2340
    %v2342 = vsel %vm777, %v2332, -inf
    %2343 = vmax.xlane.f32.xlu0 %v2342
    %v2344 = vpop.xlane.xlu0 %2343
    %v2345 = vsub.f32 %v2329, %v2335
    %v2346 = vsub.f32 %v2330, %v2338
    %v2347 = vsub.f32 %v2331, %v2341
    %v2348 = vsub.f32 %v2332, %v2344
    %v2349 = vmul.f32 %v2345, 1.442695
    %v2350 = vpow.pop %v2349
    %v2351 = vmul.f32 %v2346, 1.442695
    %v2352 = vpow.pop %v2351
    %v2353 = vmul.f32 %v2347, 1.442695
    %v2354 = vpow.pop %v2353
    %v2355 = vmul.f32 %v2348, 1.442695
    %v2356 = vpow.pop %v2355
    %v2357 = vsel %vm777, %v2350, 0.0
    %2358 = vadd.xlane.f32.xlu0 %v2357
    %v2359 = vpop.xlane.xlu0 %2358
    %v2360 = vsel %vm777, %v2352, 0.0
    %2361 = vadd.xlane.f32.xlu0 %v2360
    %v2362 = vpop.xlane.xlu0 %2361
    %v2363 = vsel %vm777, %v2354, 0.0
    %2364 = vadd.xlane.f32.xlu0 %v2363
    %v2365 = vpop.xlane.xlu0 %2364
    %v2366 = vsel %vm777, %v2356, 0.0
    %2367 = vadd.xlane.f32.xlu0 %v2366
    %v2368 = vpop.xlane.xlu0 %2367
    %v2369 = vrcp.pop %v2359
    %v2370 = vrcp.pop %v2362
    %v2371 = vrcp.pop %v2365
    %v2372 = vrcp.pop %v2368
    %v2373 = vmul.f32 %v2350, %v2369
    %v2374 = vmul.f32 %v2352, %v2370
    %v2375 = vmul.f32 %v2354, %v2371
    %v2376 = vmul.f32 %v2356, %v2372
    %v2377 = vpack.c.bf16 %v2374, %v2373
    %v2378 = vpack.c.bf16 %v2376, %v2375
    %v2380 = vsel %vm777, %v2377, 0
    %2382 = vmatprep.subr.bf16.mxu0 0
    %2383 = vmatpush1.bf16.msra.mxu0 %v2229
    %2384 = vmatprep.subr.bf16.mxu0 0
    %2385 = vmatpush1.bf16.msra.mxu0 0
    %2386 = vmatprep.subr.bf16.mxu0 0
    %2387 = vmatpush1.bf16.msra.mxu0 0
    %2388 = vmatprep.subr.bf16.mxu0 0
    %2389 = vmatpush1.bf16.msra.mxu0 0
    %2390 = vmatprep.subr.bf16.mxu0 0
    %2391 = vmatpush1.bf16.msra.mxu0 0
    %2392 = vmatprep.subr.bf16.mxu0 0
    %2393 = vmatpush1.bf16.msra.mxu0 0
    %2394 = vmatprep.subr.bf16.mxu0 0
    %2395 = vmatpush1.bf16.msra.mxu0 0
    %2396 = vmatprep.subr.bf16.mxu0 0
    %2397 = vmatpush1.bf16.msra.mxu0 0
    %2398 = vmatprep.subr.bf16.mxu0 0
    %2399 = vmatpush1.bf16.msra.mxu0 0
    %2400 = vmatprep.subr.bf16.mxu0 0
    %2401 = vmatpush1.bf16.msra.mxu0 0
    %2402 = vmatprep.subr.bf16.mxu0 0
    %2403 = vmatpush1.bf16.msra.mxu0 0
    %2404 = vmatprep.subr.bf16.mxu0 0
    %2405 = vmatpush1.bf16.msra.mxu0 0
    %2406 = vmatprep.subr.bf16.mxu0 0
    %2407 = vmatpush1.bf16.msra.mxu0 0
    %2408 = vmatprep.subr.bf16.mxu0 0
    %2409 = vmatpush1.bf16.msra.mxu0 0
    %2410 = vmatprep.subr.bf16.mxu0 0
    %2411 = vmatpush1.bf16.msra.mxu0 0
    %2412 = vmatprep.subr.bf16.mxu0 0
    %2413 = vmatpush1.bf16.msra.mxu0 0
    %2414 = vmatprep.mubr.bf16.mxu0 0
    %2415 = vmatmul.mubr.bf16.gmra.mrb[0].mxu0 %v2380
    %v2416 = vpop.f32.mrb[0].mxu0
    %v2417 = vadd.f32 0.0, %v2416
    %v2418 = vpop.f32.mrb[0].mxu0
    %v2419 = vpop.f32.mrb[0].mxu0
    %v2420 = vadd.f32 0.0, %v2419
    %v2421 = vpop.f32.mrb[0].mxu0
    %2422 = vdwg.mxu0
    %v2424 = vsel %vm777, %v2378, 0
    %2426 = vmatprep.subr.bf16.mxu0 0
    %2427 = vmatpush1.bf16.msra.mxu0 %v2230
    %2428 = vmatprep.subr.bf16.mxu0 0
    %2429 = vmatpush1.bf16.msra.mxu0 0
    %2430 = vmatprep.subr.bf16.mxu0 0
    %2431 = vmatpush1.bf16.msra.mxu0 0
    %2432 = vmatprep.subr.bf16.mxu0 0
    %2433 = vmatpush1.bf16.msra.mxu0 0
    %2434 = vmatprep.subr.bf16.mxu0 0
    %2435 = vmatpush1.bf16.msra.mxu0 0
    %2436 = vmatprep.subr.bf16.mxu0 0
    %2437 = vmatpush1.bf16.msra.mxu0 0
    %2438 = vmatprep.subr.bf16.mxu0 0
    %2439 = vmatpush1.bf16.msra.mxu0 0
    %2440 = vmatprep.subr.bf16.mxu0 0
    %2441 = vmatpush1.bf16.msra.mxu0 0
    %2442 = vmatprep.subr.bf16.mxu0 0
    %2443 = vmatpush1.bf16.msra.mxu0 0
    %2444 = vmatprep.subr.bf16.mxu0 0
    %2445 = vmatpush1.bf16.msra.mxu0 0
    %2446 = vmatprep.subr.bf16.mxu0 0
    %2447 = vmatpush1.bf16.msra.mxu0 0
    %2448 = vmatprep.subr.bf16.mxu0 0
    %2449 = vmatpush1.bf16.msra.mxu0 0
    %2450 = vmatprep.subr.bf16.mxu0 0
    %2451 = vmatpush1.bf16.msra.mxu0 0
    %2452 = vmatprep.subr.bf16.mxu0 0
    %2453 = vmatpush1.bf16.msra.mxu0 0
    %2454 = vmatprep.subr.bf16.mxu0 0
    %2455 = vmatpush1.bf16.msra.mxu0 0
    %2456 = vmatprep.subr.bf16.mxu0 0
    %2457 = vmatpush1.bf16.msra.mxu0 0
    %2458 = vmatprep.mubr.bf16.mxu0 0
    %2459 = vmatmul.mubr.bf16.gmra.mrb[0].mxu0 %v2424
    %v2460 = vpop.f32.mrb[0].mxu0
    %v2461 = vadd.f32 0.0, %v2460
    %v2462 = vpop.f32.mrb[0].mxu0
    %v2463 = vpop.f32.mrb[0].mxu0
    %v2464 = vadd.f32 0.0, %v2463
    %v2465 = vpop.f32.mrb[0].mxu0
    %2466 = vdwg.mxu0
    %v2467 = vpack.c.bf16 %v2420, %v2417
    %v2468 = vpack.c.bf16 %v2464, %v2461
    %s2469 = scalar_lea.vmem %s5, 16
    %v2470 = vld [vmem:[%s2469] sm:$0xf]
    %v2471 = vld [vmem:[%s2469 + $0x4] sm:$0xf]
    %s2472 = scalar_lea.vmem %s3, 112
    %v2473 = vld [vmem:[%s2472] sm:$0xf]
    %v2474 = vld [vmem:[%s2472 + $0x4] sm:$0xf]
    %v2475 = vld [vmem:[%s2472 + $0x8] sm:$0xf]
    %v2476 = vld [vmem:[%s2472 + $0xc] sm:$0xf]
    %v2477 = vld [vmem:[%s2010 + $0x1] sm:$0x1]
    %v2478 = vlaneseq
    %v2479 = vshrl.u32 %v2478, 7
    %v2480 = vsub.s32 0, %v2479
    %v2481 = vrot.slane %v2477, %v2480
    %v2486 = vunpack.c.l.b16 %v2473
    %v2487 = vunpack.c.l.b16 %v2474
    %v2488 = vunpack.c.l.b16 %v2475
    %v2489 = vunpack.c.l.b16 %v2476
    %v2490 = vpack.c.b16 %v2487, %v2486
    %v2491 = vpack.c.b16 %v2489, %v2488
    %2494 = vmatprep.subr.bf16.mxu0 0
    %2495 = vmatpush1.bf16.msra.mxu0 %v2490
    %2496 = vmatprep.subr.bf16.mxu0 0
    %2497 = vmatpush1.bf16.msra.mxu0 %v2491
    %2498 = vmatprep.subr.bf16.mxu0 0
    %2499 = vmatpush1.bf16.msra.mxu0 0
    %2500 = vmatprep.subr.bf16.mxu0 0
    %2501 = vmatpush1.bf16.msra.mxu0 0
    %2502 = vmatprep.subr.bf16.mxu0 0
    %2503 = vmatpush1.bf16.msra.mxu0 0
    %2504 = vmatprep.subr.bf16.mxu0 0
    %2505 = vmatpush1.bf16.msra.mxu0 0
    %2506 = vmatprep.subr.bf16.mxu0 0
    %2507 = vmatpush1.bf16.msra.mxu0 0
    %2508 = vmatprep.subr.bf16.mxu0 0
    %2509 = vmatpush1.bf16.msra.mxu0 0
    %2510 = vmatprep.subr.bf16.mxu0 0
    %2511 = vmatpush1.bf16.msra.mxu0 0
    %2512 = vmatprep.subr.bf16.mxu0 0
    %2513 = vmatpush1.bf16.msra.mxu0 0
    %2514 = vmatprep.subr.bf16.mxu0 0
    %2515 = vmatpush1.bf16.msra.mxu0 0
    %2516 = vmatprep.subr.bf16.mxu0 0
    %2517 = vmatpush1.bf16.msra.mxu0 0
    %2518 = vmatprep.subr.bf16.mxu0 0
    %2519 = vmatpush1.bf16.msra.mxu0 0
    %2520 = vmatprep.subr.bf16.mxu0 0
    %2521 = vmatpush1.bf16.msra.mxu0 0
    %2522 = vmatprep.subr.bf16.mxu0 0
    %2523 = vmatpush1.bf16.msra.mxu0 0
    %2524 = vmatprep.subr.bf16.mxu0 0
    %2525 = vmatpush1.bf16.msra.mxu0 0
    %2526 = vmatprep.mubr.bf16.mxu0 0
    %2527 = vmatmul.mubr.bf16.gmra.mrb[0].mxu0 %v2029
    %v2528 = vpop.f32.mrb[0].mxu0
    %v2529 = vadd.f32 %v2481, %v2528
    %v2530 = vpop.f32.mrb[0].mxu0
    %v2531 = vpop.f32.mrb[0].mxu0
    %v2532 = vadd.f32 %v2481, %v2531
    %v2533 = vpop.f32.mrb[0].mxu0
    %2534 = vmatprep.mubr.bf16.mxu0 0
    %2535 = vmatmul.mubr.bf16.gmra.mrb[0].mxu0 %v2032
    %v2536 = vpop.f32.mrb[0].mxu0
    %v2537 = vadd.f32 %v2481, %v2536
    %v2538 = vpop.f32.mrb[0].mxu0
    %v2539 = vpop.f32.mrb[0].mxu0
    %v2540 = vadd.f32 %v2481, %v2539
    %v2541 = vpop.f32.mrb[0].mxu0
    %2542 = vdwg.mxu0
    %s2543 = scalar_lea.vmem %s3, 144
    %v2544 = vld [vmem:[%s2543] sm:$0xf]
    %v2545 = vld [vmem:[%s2543 + $0x4] sm:$0xf]
    %v2546 = vld [vmem:[%s2543 + $0x8] sm:$0xf]
    %v2547 = vld [vmem:[%s2543 + $0xc] sm:$0xf]
    %v2548 = vld [vmem:[%s2010 + $0x3] sm:$0x1]
    %v2549 = vlaneseq
    %v2550 = vshrl.u32 %v2549, 7
    %v2551 = vsub.s32 0, %v2550
    %v2552 = vrot.slane %v2548, %v2551
    %v2557 = vunpack.c.l.b16 %v2544
    %v2558 = vunpack.c.l.b16 %v2545
    %v2559 = vunpack.c.l.b16 %v2546
    %v2560 = vunpack.c.l.b16 %v2547
    %v2561 = vpack.c.b16 %v2558, %v2557
    %v2562 = vpack.c.b16 %v2560, %v2559
    %2565 = vmatprep.subr.bf16.mxu0 0
    %2566 = vmatpush1.bf16.msra.mxu0 %v2561
    %2567 = vmatprep.subr.bf16.mxu0 0
    %2568 = vmatpush1.bf16.msra.mxu0 %v2562
    %2569 = vmatprep.subr.bf16.mxu0 0
    %2570 = vmatpush1.bf16.msra.mxu0 0
    %2571 = vmatprep.subr.bf16.mxu0 0
    %2572 = vmatpush1.bf16.msra.mxu0 0
    %2573 = vmatprep.subr.bf16.mxu0 0
    %2574 = vmatpush1.bf16.msra.mxu0 0
    %2575 = vmatprep.subr.bf16.mxu0 0
    %2576 = vmatpush1.bf16.msra.mxu0 0
    %2577 = vmatprep.subr.bf16.mxu0 0
    %2578 = vmatpush1.bf16.msra.mxu0 0
    %2579 = vmatprep.subr.bf16.mxu0 0
    %2580 = vmatpush1.bf16.msra.mxu0 0
    %2581 = vmatprep.subr.bf16.mxu0 0
    %2582 = vmatpush1.bf16.msra.mxu0 0
    %2583 = vmatprep.subr.bf16.mxu0 0
    %2584 = vmatpush1.bf16.msra.mxu0 0
    %2585 = vmatprep.subr.bf16.mxu0 0
    %2586 = vmatpush1.bf16.msra.mxu0 0
    %2587 = vmatprep.subr.bf16.mxu0 0
    %2588 = vmatpush1.bf16.msra.mxu0 0
    %2589 = vmatprep.subr.bf16.mxu0 0
    %2590 = vmatpush1.bf16.msra.mxu0 0
    %2591 = vmatprep.subr.bf16.mxu0 0
    %2592 = vmatpush1.bf16.msra.mxu0 0
    %2593 = vmatprep.subr.bf16.mxu0 0
    %2594 = vmatpush1.bf16.msra.mxu0 0
    %2595 = vmatprep.subr.bf16.mxu0 0
    %2596 = vmatpush1.bf16.msra.mxu0 0
    %2597 = vmatprep.mubr.bf16.mxu0 0
    %2598 = vmatmul.mubr.bf16.gmra.mrb[0].mxu0 %v2029
    %v2599 = vpop.f32.mrb[0].mxu0
    %v2600 = vadd.f32 %v2552, %v2599
    %v2601 = vpop.f32.mrb[0].mxu0
    %v2602 = vpop.f32.mrb[0].mxu0
    %v2603 = vadd.f32 %v2552, %v2602
    %v2604 = vpop.f32.mrb[0].mxu0
    %2605 = vmatprep.mubr.bf16.mxu0 0
    %2606 = vmatmul.mubr.bf16.gmra.mrb[0].mxu0 %v2032
    %v2607 = vpop.f32.mrb[0].mxu0
    %v2608 = vadd.f32 %v2552, %v2607
    %v2609 = vpop.f32.mrb[0].mxu0
    %v2610 = vpop.f32.mrb[0].mxu0
    %v2611 = vadd.f32 %v2552, %v2610
    %v2612 = vpop.f32.mrb[0].mxu0
    %2613 = vdwg.mxu0
    %s2614 = scalar_lea.vmem %s3, 176
    %v2615 = vld [vmem:[%s2614] sm:$0xf]
    %v2616 = vld [vmem:[%s2614 + $0x4] sm:$0xf]
    %v2617 = vld [vmem:[%s2614 + $0x8] sm:$0xf]
    %v2618 = vld [vmem:[%s2614 + $0xc] sm:$0xf]
    %v2619 = vld [vmem:[%s2010 + $0x5] sm:$0x1]
    %v2620 = vlaneseq
    %v2621 = vshrl.u32 %v2620, 7
    %v2622 = vsub.s32 0, %v2621
    %v2623 = vrot.slane %v2619, %v2622
    %v2628 = vunpack.c.l.b16 %v2615
    %v2629 = vunpack.c.l.b16 %v2616
    %v2630 = vunpack.c.l.b16 %v2617
    %v2631 = vunpack.c.l.b16 %v2618
    %v2632 = vpack.c.b16 %v2629, %v2628
    %v2633 = vpack.c.b16 %v2631, %v2630
    %2636 = vmatprep.subr.bf16.mxu0 0
    %2637 = vmatpush1.bf16.msra.mxu0 %v2632
    %2638 = vmatprep.subr.bf16.mxu0 0
    %2639 = vmatpush1.bf16.msra.mxu0 %v2633
    %2640 = vmatprep.subr.bf16.mxu0 0
    %2641 = vmatpush1.bf16.msra.mxu0 0
    %2642 = vmatprep.subr.bf16.mxu0 0
    %2643 = vmatpush1.bf16.msra.mxu0 0
    %2644 = vmatprep.subr.bf16.mxu0 0
    %2645 = vmatpush1.bf16.msra.mxu0 0
    %2646 = vmatprep.subr.bf16.mxu0 0
    %2647 = vmatpush1.bf16.msra.mxu0 0
    %2648 = vmatprep.subr.bf16.mxu0 0
    %2649 = vmatpush1.bf16.msra.mxu0 0
    %2650 = vmatprep.subr.bf16.mxu0 0
    %2651 = vmatpush1.bf16.msra.mxu0 0
    %2652 = vmatprep.subr.bf16.mxu0 0
    %2653 = vmatpush1.bf16.msra.mxu0 0
    %2654 = vmatprep.subr.bf16.mxu0 0
    %2655 = vmatpush1.bf16.msra.mxu0 0
    %2656 = vmatprep.subr.bf16.mxu0 0
    %2657 = vmatpush1.bf16.msra.mxu0 0
    %2658 = vmatprep.subr.bf16.mxu0 0
    %2659 = vmatpush1.bf16.msra.mxu0 0
    %2660 = vmatprep.subr.bf16.mxu0 0
    %2661 = vmatpush1.bf16.msra.mxu0 0
    %2662 = vmatprep.subr.bf16.mxu0 0
    %2663 = vmatpush1.bf16.msra.mxu0 0
    %2664 = vmatprep.subr.bf16.mxu0 0
    %2665 = vmatpush1.bf16.msra.mxu0 0
    %2666 = vmatprep.subr.bf16.mxu0 0
    %2667 = vmatpush1.bf16.msra.mxu0 0
    %2668 = vmatprep.mubr.bf16.mxu0 0
    %2669 = vmatmul.mubr.bf16.gmra.mrb[0].mxu0 %v2029
    %v2670 = vpop.f32.mrb[0].mxu0
    %v2671 = vadd.f32 %v2623, %v2670
    %v2672 = vpop.f32.mrb[0].mxu0
    %v2673 = vpop.f32.mrb[0].mxu0
    %v2674 = vadd.f32 %v2623, %v2673
    %v2675 = vpop.f32.mrb[0].mxu0
    %2676 = vmatprep.mubr.bf16.mxu0 0
    %2677 = vmatmul.mubr.bf16.gmra.mrb[0].mxu0 %v2032
    %v2678 = vpop.f32.mrb[0].mxu0
    %v2679 = vadd.f32 %v2623, %v2678
    %v2680 = vpop.f32.mrb[0].mxu0
    %v2681 = vpop.f32.mrb[0].mxu0
    %v2682 = vadd.f32 %v2623, %v2681
    %v2683 = vpop.f32.mrb[0].mxu0
    %2684 = vdwg.mxu0
    %v2685 = vpack.c.bf16 %v2532, %v2529
    %v2686 = vpack.c.bf16 %v2540, %v2537
    %v2687 = vpack.c.bf16 %v2603, %v2600
    %v2688 = vpack.c.bf16 %v2611, %v2608
    %v2689 = vpack.c.bf16 %v2674, %v2671
    %v2690 = vpack.c.bf16 %v2682, %v2679
    %v2692 = vsel %vm777, %v2685, 0
    %v2695 = vsel %vm777, %v2687, 0
    %2697 = vmatprep.subr.bf16.mxu0 0
    %2698 = vmatpush1.bf16.xpose.msra.mxu0 %v2695
    %2699 = vmatprep.subr.bf16.mxu0 0
    %2700 = vmatpush1.bf16.xpose.msra.mxu0 0
    %2701 = vmatprep.subr.bf16.mxu0 0
    %2702 = vmatpush1.bf16.xpose.msra.mxu0 0
    %2703 = vmatprep.subr.bf16.mxu0 0
    %2704 = vmatpush1.bf16.xpose.msra.mxu0 0
    %2705 = vmatprep.subr.bf16.mxu0 0
    %2706 = vmatpush1.bf16.xpose.msra.mxu0 0
    %2707 = vmatprep.subr.bf16.mxu0 0
    %2708 = vmatpush1.bf16.xpose.msra.mxu0 0
    %2709 = vmatprep.subr.bf16.mxu0 0
    %2710 = vmatpush1.bf16.xpose.msra.mxu0 0
    %2711 = vmatprep.subr.bf16.mxu0 0
    %2712 = vmatpush1.bf16.xpose.msra.mxu0 0
    %2713 = vmatprep.subr.bf16.mxu0 0
    %2714 = vmatpush1.bf16.xpose.msra.mxu0 0
    %2715 = vmatprep.subr.bf16.mxu0 0
    %2716 = vmatpush1.bf16.xpose.msra.mxu0 0
    %2717 = vmatprep.subr.bf16.mxu0 0
    %2718 = vmatpush1.bf16.xpose.msra.mxu0 0
    %2719 = vmatprep.subr.bf16.mxu0 0
    %2720 = vmatpush1.bf16.xpose.msra.mxu0 0
    %2721 = vmatprep.subr.bf16.mxu0 0
    %2722 = vmatpush1.bf16.xpose.msra.mxu0 0
    %2723 = vmatprep.subr.bf16.mxu0 0
    %2724 = vmatpush1.bf16.xpose.msra.mxu0 0
    %2725 = vmatprep.subr.bf16.mxu0 0
    %2726 = vmatpush1.bf16.xpose.msra.mxu0 0
    %2727 = vmatprep.subr.bf16.mxu0 0
    %2728 = vmatpush1.bf16.xpose.msra.mxu0 0
    %2729 = vmatprep.mubr.bf16.mxu0 0
    %2730 = vmatmul.mubr.bf16.gmra.mrb[0].mxu0 %v2692
    %v2731 = vpop.f32.mrb[0].mxu0
    %v2732 = vadd.f32 0.0, %v2731
    %v2733 = vpop.f32.mrb[0].mxu0
    %v2734 = vpop.f32.mrb[0].mxu0
    %v2735 = vadd.f32 0.0, %v2734
    %v2736 = vpop.f32.mrb[0].mxu0
    %2737 = vdwg.mxu0
    %v2739 = vsel %vm777, %v2686, 0
    %v2742 = vsel %vm777, %v2688, 0
    %2744 = vmatprep.subr.bf16.mxu0 0
    %2745 = vmatpush1.bf16.xpose.msra.mxu0 %v2742
    %2746 = vmatprep.subr.bf16.mxu0 0
    %2747 = vmatpush1.bf16.xpose.msra.mxu0 0
    %2748 = vmatprep.subr.bf16.mxu0 0
    %2749 = vmatpush1.bf16.xpose.msra.mxu0 0
    %2750 = vmatprep.subr.bf16.mxu0 0
    %2751 = vmatpush1.bf16.xpose.msra.mxu0 0
    %2752 = vmatprep.subr.bf16.mxu0 0
    %2753 = vmatpush1.bf16.xpose.msra.mxu0 0
    %2754 = vmatprep.subr.bf16.mxu0 0
    %2755 = vmatpush1.bf16.xpose.msra.mxu0 0
    %2756 = vmatprep.subr.bf16.mxu0 0
    %2757 = vmatpush1.bf16.xpose.msra.mxu0 0
    %2758 = vmatprep.subr.bf16.mxu0 0
    %2759 = vmatpush1.bf16.xpose.msra.mxu0 0
    %2760 = vmatprep.subr.bf16.mxu0 0
    %2761 = vmatpush1.bf16.xpose.msra.mxu0 0
    %2762 = vmatprep.subr.bf16.mxu0 0
    %2763 = vmatpush1.bf16.xpose.msra.mxu0 0
    %2764 = vmatprep.subr.bf16.mxu0 0
    %2765 = vmatpush1.bf16.xpose.msra.mxu0 0
    %2766 = vmatprep.subr.bf16.mxu0 0
    %2767 = vmatpush1.bf16.xpose.msra.mxu0 0
    %2768 = vmatprep.subr.bf16.mxu0 0
    %2769 = vmatpush1.bf16.xpose.msra.mxu0 0
    %2770 = vmatprep.subr.bf16.mxu0 0
    %2771 = vmatpush1.bf16.xpose.msra.mxu0 0
    %2772 = vmatprep.subr.bf16.mxu0 0
    %2773 = vmatpush1.bf16.xpose.msra.mxu0 0
    %2774 = vmatprep.subr.bf16.mxu0 0
    %2775 = vmatpush1.bf16.xpose.msra.mxu0 0
    %2776 = vmatprep.mubr.bf16.mxu0 0
    %2777 = vmatmul.mubr.bf16.gmra.mrb[0].mxu0 %v2739
    %v2778 = vpop.f32.mrb[0].mxu0
    %v2779 = vadd.f32 0.0, %v2778
    %v2780 = vpop.f32.mrb[0].mxu0
    %v2781 = vpop.f32.mrb[0].mxu0
    %v2782 = vadd.f32 0.0, %v2781
    %v2783 = vpop.f32.mrb[0].mxu0
    %2784 = vdwg.mxu0
    %v2785 = vmul.f32 %v2732, 0.25
    %v2786 = vmul.f32 %v2735, 0.25
    %v2787 = vmul.f32 %v2779, 0.25
    %v2788 = vmul.f32 %v2782, 0.25
    %v2789 = vadd.f32 %v2785, %v881
    %v2790 = vadd.f32 %v2786, %v881
    %v2791 = vadd.f32 %v2787, %v885
    %v2792 = vadd.f32 %v2788, %v885
    %v2793 = vsel %vm777, %v2789, -inf
    %2794 = vmax.xlane.f32.xlu0 %v2793
    %v2795 = vpop.xlane.xlu0 %2794
    %v2796 = vsel %vm777, %v2790, -inf
    %2797 = vmax.xlane.f32.xlu0 %v2796
    %v2798 = vpop.xlane.xlu0 %2797
    %v2799 = vsel %vm777, %v2791, -inf
    %2800 = vmax.xlane.f32.xlu0 %v2799
    %v2801 = vpop.xlane.xlu0 %2800
    %v2802 = vsel %vm777, %v2792, -inf
    %2803 = vmax.xlane.f32.xlu0 %v2802
    %v2804 = vpop.xlane.xlu0 %2803
    %v2805 = vsub.f32 %v2789, %v2795
    %v2806 = vsub.f32 %v2790, %v2798
    %v2807 = vsub.f32 %v2791, %v2801
    %v2808 = vsub.f32 %v2792, %v2804
    %v2809 = vmul.f32 %v2805, 1.442695
    %v2810 = vpow.pop %v2809
    %v2811 = vmul.f32 %v2806, 1.442695
    %v2812 = vpow.pop %v2811
    %v2813 = vmul.f32 %v2807, 1.442695
    %v2814 = vpow.pop %v2813
    %v2815 = vmul.f32 %v2808, 1.442695
    %v2816 = vpow.pop %v2815
    %v2817 = vsel %vm777, %v2810, 0.0
    %2818 = vadd.xlane.f32.xlu0 %v2817
    %v2819 = vpop.xlane.xlu0 %2818
    %v2820 = vsel %vm777, %v2812, 0.0
    %2821 = vadd.xlane.f32.xlu0 %v2820
    %v2822 = vpop.xlane.xlu0 %2821
    %v2823 = vsel %vm777, %v2814, 0.0
    %2824 = vadd.xlane.f32.xlu0 %v2823
    %v2825 = vpop.xlane.xlu0 %2824
    %v2826 = vsel %vm777, %v2816, 0.0
    %2827 = vadd.xlane.f32.xlu0 %v2826
    %v2828 = vpop.xlane.xlu0 %2827
    %v2829 = vrcp.pop %v2819
    %v2830 = vrcp.pop %v2822
    %v2831 = vrcp.pop %v2825
    %v2832 = vrcp.pop %v2828
    %v2833 = vmul.f32 %v2810, %v2829
    %v2834 = vmul.f32 %v2812, %v2830
    %v2835 = vmul.f32 %v2814, %v2831
    %v2836 = vmul.f32 %v2816, %v2832
    %v2837 = vpack.c.bf16 %v2834, %v2833
    %v2838 = vpack.c.bf16 %v2836, %v2835
    %v2840 = vsel %vm777, %v2837, 0
    %2842 = vmatprep.subr.bf16.mxu0 0
    %2843 = vmatpush1.bf16.msra.mxu0 %v2689
    %2844 = vmatprep.subr.bf16.mxu0 0
    %2845 = vmatpush1.bf16.msra.mxu0 0
    %2846 = vmatprep.subr.bf16.mxu0 0
    %2847 = vmatpush1.bf16.msra.mxu0 0
    %2848 = vmatprep.subr.bf16.mxu0 0
    %2849 = vmatpush1.bf16.msra.mxu0 0
    %2850 = vmatprep.subr.bf16.mxu0 0
    %2851 = vmatpush1.bf16.msra.mxu0 0
    %2852 = vmatprep.subr.bf16.mxu0 0
    %2853 = vmatpush1.bf16.msra.mxu0 0
    %2854 = vmatprep.subr.bf16.mxu0 0
    %2855 = vmatpush1.bf16.msra.mxu0 0
    %2856 = vmatprep.subr.bf16.mxu0 0
    %2857 = vmatpush1.bf16.msra.mxu0 0
    %2858 = vmatprep.subr.bf16.mxu0 0
    %2859 = vmatpush1.bf16.msra.mxu0 0
    %2860 = vmatprep.subr.bf16.mxu0 0
    %2861 = vmatpush1.bf16.msra.mxu0 0
    %2862 = vmatprep.subr.bf16.mxu0 0
    %2863 = vmatpush1.bf16.msra.mxu0 0
    %2864 = vmatprep.subr.bf16.mxu0 0
    %2865 = vmatpush1.bf16.msra.mxu0 0
    %2866 = vmatprep.subr.bf16.mxu0 0
    %2867 = vmatpush1.bf16.msra.mxu0 0
    %2868 = vmatprep.subr.bf16.mxu0 0
    %2869 = vmatpush1.bf16.msra.mxu0 0
    %2870 = vmatprep.subr.bf16.mxu0 0
    %2871 = vmatpush1.bf16.msra.mxu0 0
    %2872 = vmatprep.subr.bf16.mxu0 0
    %2873 = vmatpush1.bf16.msra.mxu0 0
    %2874 = vmatprep.mubr.bf16.mxu0 0
    %2875 = vmatmul.mubr.bf16.gmra.mrb[0].mxu0 %v2840
    %v2876 = vpop.f32.mrb[0].mxu0
    %v2877 = vadd.f32 0.0, %v2876
    %v2878 = vpop.f32.mrb[0].mxu0
    %v2879 = vpop.f32.mrb[0].mxu0
    %v2880 = vadd.f32 0.0, %v2879
    %v2881 = vpop.f32.mrb[0].mxu0
    %2882 = vdwg.mxu0
    %v2884 = vsel %vm777, %v2838, 0
    %2886 = vmatprep.subr.bf16.mxu0 0
    %2887 = vmatpush1.bf16.msra.mxu0 %v2690
    %2888 = vmatprep.subr.bf16.mxu0 0
    %2889 = vmatpush1.bf16.msra.mxu0 0
    %2890 = vmatprep.subr.bf16.mxu0 0
    %2891 = vmatpush1.bf16.msra.mxu0 0
    %2892 = vmatprep.subr.bf16.mxu0 0
    %2893 = vmatpush1.bf16.msra.mxu0 0
    %2894 = vmatprep.subr.bf16.mxu0 0
    %2895 = vmatpush1.bf16.msra.mxu0 0
    %2896 = vmatprep.subr.bf16.mxu0 0
    %2897 = vmatpush1.bf16.msra.mxu0 0
    %2898 = vmatprep.subr.bf16.mxu0 0
    %2899 = vmatpush1.bf16.msra.mxu0 0
    %2900 = vmatprep.subr.bf16.mxu0 0
    %2901 = vmatpush1.bf16.msra.mxu0 0
    %2902 = vmatprep.subr.bf16.mxu0 0
    %2903 = vmatpush1.bf16.msra.mxu0 0
    %2904 = vmatprep.subr.bf16.mxu0 0
    %2905 = vmatpush1.bf16.msra.mxu0 0
    %2906 = vmatprep.subr.bf16.mxu0 0
    %2907 = vmatpush1.bf16.msra.mxu0 0
    %2908 = vmatprep.subr.bf16.mxu0 0
    %2909 = vmatpush1.bf16.msra.mxu0 0
    %2910 = vmatprep.subr.bf16.mxu0 0
    %2911 = vmatpush1.bf16.msra.mxu0 0
    %2912 = vmatprep.subr.bf16.mxu0 0
    %2913 = vmatpush1.bf16.msra.mxu0 0
    %2914 = vmatprep.subr.bf16.mxu0 0
    %2915 = vmatpush1.bf16.msra.mxu0 0
    %2916 = vmatprep.subr.bf16.mxu0 0
    %2917 = vmatpush1.bf16.msra.mxu0 0
    %2918 = vmatprep.mubr.bf16.mxu0 0
    %2919 = vmatmul.mubr.bf16.gmra.mrb[0].mxu0 %v2884
    %v2920 = vpop.f32.mrb[0].mxu0
    %v2921 = vadd.f32 0.0, %v2920
    %v2922 = vpop.f32.mrb[0].mxu0
    %v2923 = vpop.f32.mrb[0].mxu0
    %v2924 = vadd.f32 0.0, %v2923
    %v2925 = vpop.f32.mrb[0].mxu0
    %2926 = vdwg.mxu0
    %v2927 = vpack.c.bf16 %v2880, %v2877
    %v2928 = vpack.c.bf16 %v2924, %v2921
    %s2929 = scalar_lea.vmem %s5, 24
    %v2930 = vld [vmem:[%s2929] sm:$0xf]
    %v2931 = vld [vmem:[%s2929 + $0x4] sm:$0xf]
    %v2934 = vunpack.c.l.b16 %v2930
    %v2935 = vunpack.c.l.b16 %v2931
    %v2936 = vpack.c.b16 %v2935, %v2934
    %v2939 = vsel %vm777, %v2927, 0
    %v2942 = vsel %vm777, %v2928, 0
    %2944 = vmatprep.subr.bf16.mxu0 0
    %2945 = vmatpush1.bf16.msra.mxu0 %v2936
    %2946 = vmatprep.subr.bf16.mxu0 0
    %2947 = vmatpush1.bf16.msra.mxu0 0
    %2948 = vmatprep.subr.bf16.mxu0 0
    %2949 = vmatpush1.bf16.msra.mxu0 0
    %2950 = vmatprep.subr.bf16.mxu0 0
    %2951 = vmatpush1.bf16.msra.mxu0 0
    %2952 = vmatprep.subr.bf16.mxu0 0
    %2953 = vmatpush1.bf16.msra.mxu0 0
    %2954 = vmatprep.subr.bf16.mxu0 0
    %2955 = vmatpush1.bf16.msra.mxu0 0
    %2956 = vmatprep.subr.bf16.mxu0 0
    %2957 = vmatpush1.bf16.msra.mxu0 0
    %2958 = vmatprep.subr.bf16.mxu0 0
    %2959 = vmatpush1.bf16.msra.mxu0 0
    %2960 = vmatprep.subr.bf16.mxu0 0
    %2961 = vmatpush1.bf16.msra.mxu0 0
    %2962 = vmatprep.subr.bf16.mxu0 0
    %2963 = vmatpush1.bf16.msra.mxu0 0
    %2964 = vmatprep.subr.bf16.mxu0 0
    %2965 = vmatpush1.bf16.msra.mxu0 0
    %2966 = vmatprep.subr.bf16.mxu0 0
    %2967 = vmatpush1.bf16.msra.mxu0 0
    %2968 = vmatprep.subr.bf16.mxu0 0
    %2969 = vmatpush1.bf16.msra.mxu0 0
    %2970 = vmatprep.subr.bf16.mxu0 0
    %2971 = vmatpush1.bf16.msra.mxu0 0
    %2972 = vmatprep.subr.bf16.mxu0 0
    %2973 = vmatpush1.bf16.msra.mxu0 0
    %2974 = vmatprep.subr.bf16.mxu0 0
    %2975 = vmatpush1.bf16.msra.mxu0 0
    %2976 = vmatprep.mubr.bf16.mxu0 0
    %2977 = vmatmul.mubr.bf16.gmra.mrb[0].mxu0 %v2939
    %v2978 = vpop.f32.mrb[0].mxu0
    %v2979 = vadd.f32 0.0, %v2978
    %v2980 = vpop.f32.mrb[0].mxu0
    %v2981 = vpop.f32.mrb[0].mxu0
    %v2982 = vadd.f32 0.0, %v2981
    %v2983 = vpop.f32.mrb[0].mxu0
    %2984 = vmatprep.mubr.bf16.mxu0 0
    %2985 = vmatmul.mubr.bf16.gmra.mrb[0].mxu0 %v2942
    %v2986 = vpop.f32.mrb[0].mxu0
    %v2987 = vadd.f32 0.0, %v2986
    %v2988 = vpop.f32.mrb[0].mxu0
    %v2989 = vpop.f32.mrb[0].mxu0
    %v2990 = vadd.f32 0.0, %v2989
    %v2991 = vpop.f32.mrb[0].mxu0
    %2992 = vdwg.mxu0
    %v2995 = vunpack.c.l.b16 %v2470
    %v2996 = vunpack.c.l.b16 %v2471
    %v2997 = vpack.c.b16 %v2996, %v2995
    %v3000 = vsel %vm777, %v2467, 0
    %v3003 = vsel %vm777, %v2468, 0
    %3005 = vmatprep.subr.bf16.mxu0 0
    %3006 = vmatpush1.bf16.msra.mxu0 %v2997
    %3007 = vmatprep.subr.bf16.mxu0 0
    %3008 = vmatpush1.bf16.msra.mxu0 0
    %3009 = vmatprep.subr.bf16.mxu0 0
    %3010 = vmatpush1.bf16.msra.mxu0 0
    %3011 = vmatprep.subr.bf16.mxu0 0
    %3012 = vmatpush1.bf16.msra.mxu0 0
    %3013 = vmatprep.subr.bf16.mxu0 0
    %3014 = vmatpush1.bf16.msra.mxu0 0
    %3015 = vmatprep.subr.bf16.mxu0 0
    %3016 = vmatpush1.bf16.msra.mxu0 0
    %3017 = vmatprep.subr.bf16.mxu0 0
    %3018 = vmatpush1.bf16.msra.mxu0 0
    %3019 = vmatprep.subr.bf16.mxu0 0
    %3020 = vmatpush1.bf16.msra.mxu0 0
    %3021 = vmatprep.subr.bf16.mxu0 0
    %3022 = vmatpush1.bf16.msra.mxu0 0
    %3023 = vmatprep.subr.bf16.mxu0 0
    %3024 = vmatpush1.bf16.msra.mxu0 0
    %3025 = vmatprep.subr.bf16.mxu0 0
    %3026 = vmatpush1.bf16.msra.mxu0 0
    %3027 = vmatprep.subr.bf16.mxu0 0
    %3028 = vmatpush1.bf16.msra.mxu0 0
    %3029 = vmatprep.subr.bf16.mxu0 0
    %3030 = vmatpush1.bf16.msra.mxu0 0
    %3031 = vmatprep.subr.bf16.mxu0 0
    %3032 = vmatpush1.bf16.msra.mxu0 0
    %3033 = vmatprep.subr.bf16.mxu0 0
    %3034 = vmatpush1.bf16.msra.mxu0 0
    %3035 = vmatprep.subr.bf16.mxu0 0
    %3036 = vmatpush1.bf16.msra.mxu0 0
    %3037 = vmatprep.mubr.bf16.mxu0 0
    %3038 = vmatmul.mubr.bf16.gmra.mrb[0].mxu0 %v3000
    %v3039 = vpop.f32.mrb[0].mxu0
    %v3040 = vadd.f32 %v2979, %v3039
    %v3041 = vpop.f32.mrb[0].mxu0
    %v3042 = vpop.f32.mrb[0].mxu0
    %v3043 = vadd.f32 %v2982, %v3042
    %v3044 = vpop.f32.mrb[0].mxu0
    %3045 = vmatprep.mubr.bf16.mxu0 0
    %3046 = vmatmul.mubr.bf16.gmra.mrb[0].mxu0 %v3003
    %v3047 = vpop.f32.mrb[0].mxu0
    %v3048 = vadd.f32 %v2987, %v3047
    %v3049 = vpop.f32.mrb[0].mxu0
    %v3050 = vpop.f32.mrb[0].mxu0
    %v3051 = vadd.f32 %v2990, %v3050
    %v3052 = vpop.f32.mrb[0].mxu0
    %3053 = vdwg.mxu0
    %s3054 = scalar_lea.vmem %s6, 8
    %v3055 = vld [vmem:[%s3054] sm:$0x1]
    %v3056 = vld [vmem:[%s3054 + $0x1] sm:$0x1]
    %v3057 = vld [vmem:[%s3054 + $0x2] sm:$0x1]
    %v3058 = vld [vmem:[%s3054 + $0x3] sm:$0x1]
    %v3059 = vld [vmem:[%s3054 + $0x4] sm:$0x1]
    %v3060 = vld [vmem:[%s3054 + $0x5] sm:$0x1]
    %v3061 = vadd.f32 %v1999, %v3040
    %v3062 = vadd.f32 %v2000, %v3043
    %v3063 = vadd.f32 %v2001, %v3048
    %v3064 = vadd.f32 %v2002, %v3051
    %v3065 = vlaneseq
    %v3066 = vshrl.u32 %v3065, 7
    %v3067 = vsub.s32 0, %v3066
    %v3068 = vrot.slane %v3055, %v3067
    %v3069 = vadd.f32 %v3061, %v3068
    %v3070 = vadd.f32 %v3062, %v3068
    %v3071 = vadd.f32 %v3063, %v3068
    %v3072 = vadd.f32 %v3064, %v3068
    %v3073 = vsel %vm479, %v3069, 0.0
    %3074 = vadd.xlane.f32.xlu0 %v3073
    %v3075 = vpop.xlane.xlu0 %3074
    %v3076 = vsel %vm479, %v3070, 0.0
    %3077 = vadd.xlane.f32.xlu0 %v3076
    %v3078 = vpop.xlane.xlu0 %3077
    %v3079 = vsel %vm479, %v3071, 0.0
    %3080 = vadd.xlane.f32.xlu0 %v3079
    %v3081 = vpop.xlane.xlu0 %3080
    %v3082 = vsel %vm479, %v3072, 0.0
    %3083 = vadd.xlane.f32.xlu0 %v3082
    %v3084 = vpop.xlane.xlu0 %3083
    %v3085 = vmul.f32 %v3075, %v492
    %v3086 = vmul.f32 %v3078, %v492
    %v3087 = vmul.f32 %v3081, %v492
    %v3088 = vmul.f32 %v3084, %v492
    %v3089 = vsub.f32 %v3069, %v3085
    %v3090 = vsub.f32 %v3070, %v3086
    %v3091 = vsub.f32 %v3071, %v3087
    %v3092 = vsub.f32 %v3072, %v3088
    %v3093 = vmul.f32 %v3089, %v3089
    %v3094 = vmul.f32 %v3090, %v3090
    %v3095 = vmul.f32 %v3091, %v3091
    %v3096 = vmul.f32 %v3092, %v3092
    %v3097 = vsel %vm479, %v3093, 0.0
    %3098 = vadd.xlane.f32.xlu0 %v3097
    %v3099 = vpop.xlane.xlu0 %3098
    %v3100 = vsel %vm479, %v3094, 0.0
    %3101 = vadd.xlane.f32.xlu0 %v3100
    %v3102 = vpop.xlane.xlu0 %3101
    %v3103 = vsel %vm479, %v3095, 0.0
    %3104 = vadd.xlane.f32.xlu0 %v3103
    %v3105 = vpop.xlane.xlu0 %3104
    %v3106 = vsel %vm479, %v3096, 0.0
    %3107 = vadd.xlane.f32.xlu0 %v3106
    %v3108 = vpop.xlane.xlu0 %3107
    %v3109 = vmul.f32 %v3099, %v492
    %v3110 = vmul.f32 %v3102, %v492
    %v3111 = vmul.f32 %v3105, %v492
    %v3112 = vmul.f32 %v3108, %v492
    %v3113 = vadd.f32 %v3109, 1e-12
    %v3114 = vadd.f32 %v3110, 1e-12
    %v3115 = vadd.f32 %v3111, 1e-12
    %v3116 = vadd.f32 %v3112, 1e-12
    %v3117 = vrsqrt.pop %v3113
    %v3118 = vrsqrt.pop %v3114
    %v3119 = vrsqrt.pop %v3115
    %v3120 = vrsqrt.pop %v3116
    %v3121 = vmul.f32 %v3089, %v3117
    %v3122 = vmul.f32 %v3090, %v3118
    %v3123 = vmul.f32 %v3091, %v3119
    %v3124 = vmul.f32 %v3092, %v3120
    %v3125 = vlaneseq
    %v3126 = vshrl.u32 %v3125, 7
    %v3127 = vsub.s32 0, %v3126
    %v3128 = vrot.slane %v3056, %v3127
    %v3129 = vmul.f32 %v3121, %v3128
    %v3130 = vmul.f32 %v3122, %v3128
    %v3131 = vmul.f32 %v3123, %v3128
    %v3132 = vmul.f32 %v3124, %v3128
    %v3133 = vlaneseq
    %v3134 = vshrl.u32 %v3133, 7
    %v3135 = vsub.s32 0, %v3134
    %v3136 = vrot.slane %v3057, %v3135
    %v3137 = vadd.f32 %v3129, %v3136
    %v3138 = vadd.f32 %v3130, %v3136
    %v3139 = vadd.f32 %v3131, %v3136
    %v3140 = vadd.f32 %v3132, %v3136
    %v3141 = vpack.c.bf16 %v3138, %v3137
    %v3142 = vpack.c.bf16 %v3140, %v3139
    %s3143 = scalar_lea.vmem %s7, 16
    %v3144 = vld [vmem:[%s3143] sm:$0xf]
    %v3145 = vld [vmem:[%s3143 + $0x4] sm:$0xf]
    %v3146 = vld [vmem:[%s3143 + $0x8] sm:$0xf]
    %v3147 = vld [vmem:[%s3143 + $0xc] sm:$0xf]
    %v3148 = vld [vmem:[%s8 + $0x1] sm:$0x1]
    %v3149 = vlaneseq
    %v3150 = vshrl.u32 %v3149, 7
    %v3151 = vsub.s32 0, %v3150
    %v3152 = vrot.slane %v3148, %v3151
    %v3157 = vunpack.c.l.b16 %v3144
    %v3158 = vunpack.c.l.b16 %v3145
    %v3159 = vunpack.c.l.b16 %v3146
    %v3160 = vunpack.c.l.b16 %v3147
    %v3161 = vpack.c.b16 %v3158, %v3157
    %v3162 = vpack.c.b16 %v3160, %v3159
    %v3166 = vsel %vm479, %v3141, 0
    %v3169 = vsel %vm479, %v3142, 0
    %3171 = vmatprep.subr.bf16.mxu0 0
    %3172 = vmatpush1.bf16.msra.mxu0 %v3161
    %3173 = vmatprep.subr.bf16.mxu0 0
    %3174 = vmatpush1.bf16.msra.mxu0 %v3162
    %3175 = vmatprep.subr.bf16.mxu0 0
    %3176 = vmatpush1.bf16.msra.mxu0 0
    %3177 = vmatprep.subr.bf16.mxu0 0
    %3178 = vmatpush1.bf16.msra.mxu0 0
    %3179 = vmatprep.subr.bf16.mxu0 0
    %3180 = vmatpush1.bf16.msra.mxu0 0
    %3181 = vmatprep.subr.bf16.mxu0 0
    %3182 = vmatpush1.bf16.msra.mxu0 0
    %3183 = vmatprep.subr.bf16.mxu0 0
    %3184 = vmatpush1.bf16.msra.mxu0 0
    %3185 = vmatprep.subr.bf16.mxu0 0
    %3186 = vmatpush1.bf16.msra.mxu0 0
    %3187 = vmatprep.subr.bf16.mxu0 0
    %3188 = vmatpush1.bf16.msra.mxu0 0
    %3189 = vmatprep.subr.bf16.mxu0 0
    %3190 = vmatpush1.bf16.msra.mxu0 0
    %3191 = vmatprep.subr.bf16.mxu0 0
    %3192 = vmatpush1.bf16.msra.mxu0 0
    %3193 = vmatprep.subr.bf16.mxu0 0
    %3194 = vmatpush1.bf16.msra.mxu0 0
    %3195 = vmatprep.subr.bf16.mxu0 0
    %3196 = vmatpush1.bf16.msra.mxu0 0
    %3197 = vmatprep.subr.bf16.mxu0 0
    %3198 = vmatpush1.bf16.msra.mxu0 0
    %3199 = vmatprep.subr.bf16.mxu0 0
    %3200 = vmatpush1.bf16.msra.mxu0 0
    %3201 = vmatprep.subr.bf16.mxu0 0
    %3202 = vmatpush1.bf16.msra.mxu0 0
    %3203 = vmatprep.mubr.bf16.mxu0 0
    %3204 = vmatmul.mubr.bf16.gmra.mrb[0].mxu0 %v3166
    %v3205 = vpop.f32.mrb[0].mxu0
    %v3206 = vadd.f32 %v3152, %v3205
    %v3207 = vpop.f32.mrb[0].mxu0
    %v3208 = vpop.f32.mrb[0].mxu0
    %v3209 = vadd.f32 %v3152, %v3208
    %v3210 = vpop.f32.mrb[0].mxu0
    %3211 = vmatprep.mubr.bf16.mxu0 0
    %3212 = vmatmul.mubr.bf16.gmra.mrb[0].mxu0 %v3169
    %v3213 = vpop.f32.mrb[0].mxu0
    %v3214 = vadd.f32 %v3152, %v3213
    %v3215 = vpop.f32.mrb[0].mxu0
    %v3216 = vpop.f32.mrb[0].mxu0
    %v3217 = vadd.f32 %v3152, %v3216
    %v3218 = vpop.f32.mrb[0].mxu0
    %3219 = vdwg.mxu0
    %v3220 = vmul.f32 %v3206, 0.5
    %v3221 = vmul.f32 %v3209, 0.5
    %v3222 = vmul.f32 %v3214, 0.5
    %v3223 = vmul.f32 %v3217, 0.5
    %v3224 = vmul.f32 %v3206, 0.044715
    %v3225 = vmul.f32 %v3209, 0.044715
    %v3226 = vmul.f32 %v3214, 0.044715
    %v3227 = vmul.f32 %v3217, 0.044715
    %v3228 = vmul.f32 %v3224, %v3206
    %v3229 = vmul.f32 %v3225, %v3209
    %v3230 = vmul.f32 %v3226, %v3214
    %v3231 = vmul.f32 %v3227, %v3217
    %v3232 = vmul.f32 %v3228, %v3206
    %v3233 = vmul.f32 %v3229, %v3209
    %v3234 = vmul.f32 %v3230, %v3214
    %v3235 = vmul.f32 %v3231, %v3217
    %v3236 = vadd.f32 %v3206, %v3232
    %v3237 = vadd.f32 %v3209, %v3233
    %v3238 = vadd.f32 %v3214, %v3234
    %v3239 = vadd.f32 %v3217, %v3235
    %v3240 = vmul.f32 %v3236, 0.7978846
    %v3241 = vmul.f32 %v3237, 0.7978846
    %v3242 = vmul.f32 %v3238, 0.7978846
    %v3243 = vmul.f32 %v3239, 0.7978846
    %v3244 = vtanh.pop %v3240
    %v3245 = vtanh.pop %v3241
    %v3246 = vtanh.pop %v3242
    %v3247 = vtanh.pop %v3243
    %v3248 = vadd.f32 %v3244, 1.0
    %v3249 = vadd.f32 %v3245, 1.0
    %v3250 = vadd.f32 %v3246, 1.0
    %v3251 = vadd.f32 %v3247, 1.0
    %v3252 = vmul.f32 %v3220, %v3248
    %v3253 = vmul.f32 %v3221, %v3249
    %v3254 = vmul.f32 %v3222, %v3250
    %v3255 = vmul.f32 %v3223, %v3251
    %v3256 = vpack.c.bf16 %v3253, %v3252
    %v3257 = vpack.c.bf16 %v3255, %v3254
    %s3258 = scalar_lea.vmem %s9, 64
    %v3259 = vld [vmem:[%s3258] sm:$0xf]
    %v3260 = vld [vmem:[%s3258 + $0x4] sm:$0xf]
    %v3261 = vld [vmem:[%s3258 + $0x8] sm:$0xf]
    %v3262 = vld [vmem:[%s3258 + $0xc] sm:$0xf]
    %v3263 = vld [vmem:[%s3258 + $0x10] sm:$0xf]
    %v3264 = vld [vmem:[%s3258 + $0x14] sm:$0xf]
    %v3265 = vld [vmem:[%s3258 + $0x18] sm:$0xf]
    %v3266 = vld [vmem:[%s3258 + $0x1c] sm:$0xf]
    %v3267 = vld [vmem:[%s3258 + $0x20] sm:$0xf]
    %v3268 = vld [vmem:[%s3258 + $0x24] sm:$0xf]
    %v3269 = vld [vmem:[%s3258 + $0x28] sm:$0xf]
    %v3270 = vld [vmem:[%s3258 + $0x2c] sm:$0xf]
    %v3271 = vld [vmem:[%s3258 + $0x30] sm:$0xf]
    %v3272 = vld [vmem:[%s3258 + $0x34] sm:$0xf]
    %v3273 = vld [vmem:[%s3258 + $0x38] sm:$0xf]
    %v3274 = vld [vmem:[%s3258 + $0x3c] sm:$0xf]
    %v3275 = vlaneseq
    %v3276 = vshrl.u32 %v3275, 7
    %v3277 = vsub.s32 0, %v3276
    %v3278 = vrot.slane %v3058, %v3277
    %v3295 = vunpack.c.l.b16 %v3259
    %v3296 = vunpack.c.l.b16 %v3260
    %v3297 = vunpack.c.l.b16 %v3261
    %v3298 = vunpack.c.l.b16 %v3262
    %v3299 = vunpack.c.l.b16 %v3263
    %v3300 = vunpack.c.l.b16 %v3264
    %v3301 = vunpack.c.l.b16 %v3265
    %v3302 = vunpack.c.l.b16 %v3266
    %v3303 = vunpack.c.l.b16 %v3267
    %v3304 = vunpack.c.l.b16 %v3268
    %v3305 = vunpack.c.l.b16 %v3269
    %v3306 = vunpack.c.l.b16 %v3270
    %v3307 = vunpack.c.l.b16 %v3271
    %v3308 = vunpack.c.l.b16 %v3272
    %v3309 = vunpack.c.l.b16 %v3273
    %v3310 = vunpack.c.l.b16 %v3274
    %v3311 = vpack.c.b16 %v3296, %v3295
    %v3312 = vpack.c.b16 %v3298, %v3297
    %v3313 = vpack.c.b16 %v3300, %v3299
    %v3314 = vpack.c.b16 %v3302, %v3301
    %v3315 = vpack.c.b16 %v3304, %v3303
    %v3316 = vpack.c.b16 %v3306, %v3305
    %v3317 = vpack.c.b16 %v3308, %v3307
    %v3318 = vpack.c.b16 %v3310, %v3309
    %3327 = vmatprep.subr.bf16.mxu0 0
    %3328 = vmatpush1.bf16.msra.mxu0 %v3311
    %3329 = vmatprep.subr.bf16.mxu0 0
    %3330 = vmatpush1.bf16.msra.mxu0 %v3312
    %3331 = vmatprep.subr.bf16.mxu0 0
    %3332 = vmatpush1.bf16.msra.mxu0 %v3313
    %3333 = vmatprep.subr.bf16.mxu0 0
    %3334 = vmatpush1.bf16.msra.mxu0 %v3314
    %3335 = vmatprep.subr.bf16.mxu0 0
    %3336 = vmatpush1.bf16.msra.mxu0 %v3315
    %3337 = vmatprep.subr.bf16.mxu0 0
    %3338 = vmatpush1.bf16.msra.mxu0 %v3316
    %3339 = vmatprep.subr.bf16.mxu0 0
    %3340 = vmatpush1.bf16.msra.mxu0 %v3317
    %3341 = vmatprep.subr.bf16.mxu0 0
    %3342 = vmatpush1.bf16.msra.mxu0 %v3318
    %3343 = vmatprep.subr.bf16.mxu0 0
    %3344 = vmatpush1.bf16.msra.mxu0 0
    %3345 = vmatprep.subr.bf16.mxu0 0
    %3346 = vmatpush1.bf16.msra.mxu0 0
    %3347 = vmatprep.subr.bf16.mxu0 0
    %3348 = vmatpush1.bf16.msra.mxu0 0
    %3349 = vmatprep.subr.bf16.mxu0 0
    %3350 = vmatpush1.bf16.msra.mxu0 0
    %3351 = vmatprep.subr.bf16.mxu0 0
    %3352 = vmatpush1.bf16.msra.mxu0 0
    %3353 = vmatprep.subr.bf16.mxu0 0
    %3354 = vmatpush1.bf16.msra.mxu0 0
    %3355 = vmatprep.subr.bf16.mxu0 0
    %3356 = vmatpush1.bf16.msra.mxu0 0
    %3357 = vmatprep.subr.bf16.mxu0 0
    %3358 = vmatpush1.bf16.msra.mxu0 0
    %3359 = vmatprep.mubr.bf16.mxu0 0
    %3360 = vmatmul.mubr.bf16.gmra.mrb[0].mxu0 %v3256
    %v3361 = vpop.f32.mrb[0].mxu0
    %v3362 = vadd.f32 %v3278, %v3361
    %v3363 = vpop.f32.mrb[0].mxu0
    %v3364 = vpop.f32.mrb[0].mxu0
    %v3365 = vadd.f32 %v3278, %v3364
    %v3366 = vpop.f32.mrb[0].mxu0
    %3367 = vmatprep.mubr.bf16.mxu0 0
    %3368 = vmatmul.mubr.bf16.gmra.mrb[0].mxu0 %v3257
    %v3369 = vpop.f32.mrb[0].mxu0
    %v3370 = vadd.f32 %v3278, %v3369
    %v3371 = vpop.f32.mrb[0].mxu0
    %v3372 = vpop.f32.mrb[0].mxu0
    %v3373 = vadd.f32 %v3278, %v3372
    %v3374 = vpop.f32.mrb[0].mxu0
    %3375 = vdwg.mxu0
    %v3376 = vadd.f32 %v3137, %v3362
    %v3377 = vadd.f32 %v3138, %v3365
    %v3378 = vadd.f32 %v3139, %v3370
    %v3379 = vadd.f32 %v3140, %v3373
    %v3380 = vsel %vm479, %v3376, 0.0
    %3381 = vadd.xlane.f32.xlu0 %v3380
    %v3382 = vpop.xlane.xlu0 %3381
    %v3383 = vsel %vm479, %v3377, 0.0
    %3384 = vadd.xlane.f32.xlu0 %v3383
    %v3385 = vpop.xlane.xlu0 %3384
    %v3386 = vsel %vm479, %v3378, 0.0
    %3387 = vadd.xlane.f32.xlu0 %v3386
    %v3388 = vpop.xlane.xlu0 %3387
    %v3389 = vsel %vm479, %v3379, 0.0
    %3390 = vadd.xlane.f32.xlu0 %v3389
    %v3391 = vpop.xlane.xlu0 %3390
    %v3392 = vmul.f32 %v3382, %v492
    %v3393 = vmul.f32 %v3385, %v492
    %v3394 = vmul.f32 %v3388, %v492
    %v3395 = vmul.f32 %v3391, %v492
    %v3396 = vsub.f32 %v3376, %v3392
    %v3397 = vsub.f32 %v3377, %v3393
    %v3398 = vsub.f32 %v3378, %v3394
    %v3399 = vsub.f32 %v3379, %v3395
    %v3400 = vmul.f32 %v3396, %v3396
    %v3401 = vmul.f32 %v3397, %v3397
    %v3402 = vmul.f32 %v3398, %v3398
    %v3403 = vmul.f32 %v3399, %v3399
    %v3404 = vsel %vm479, %v3400, 0.0
    %3405 = vadd.xlane.f32.xlu0 %v3404
    %v3406 = vpop.xlane.xlu0 %3405
    %v3407 = vsel %vm479, %v3401, 0.0
    %3408 = vadd.xlane.f32.xlu0 %v3407
    %v3409 = vpop.xlane.xlu0 %3408
    %v3410 = vsel %vm479, %v3402, 0.0
    %3411 = vadd.xlane.f32.xlu0 %v3410
    %v3412 = vpop.xlane.xlu0 %3411
    %v3413 = vsel %vm479, %v3403, 0.0
    %3414 = vadd.xlane.f32.xlu0 %v3413
    %v3415 = vpop.xlane.xlu0 %3414
    %v3416 = vmul.f32 %v3406, %v492
    %v3417 = vmul.f32 %v3409, %v492
    %v3418 = vmul.f32 %v3412, %v492
    %v3419 = vmul.f32 %v3415, %v492
    %v3420 = vadd.f32 %v3416, 1e-12
    %v3421 = vadd.f32 %v3417, 1e-12
    %v3422 = vadd.f32 %v3418, 1e-12
    %v3423 = vadd.f32 %v3419, 1e-12
    %v3424 = vrsqrt.pop %v3420
    %v3425 = vrsqrt.pop %v3421
    %v3426 = vrsqrt.pop %v3422
    %v3427 = vrsqrt.pop %v3423
    %v3428 = vmul.f32 %v3396, %v3424
    %v3429 = vmul.f32 %v3397, %v3425
    %v3430 = vmul.f32 %v3398, %v3426
    %v3431 = vmul.f32 %v3399, %v3427
    %v3432 = vlaneseq
    %v3433 = vshrl.u32 %v3432, 7
    %v3434 = vsub.s32 0, %v3433
    %v3435 = vrot.slane %v3059, %v3434
    %v3436 = vmul.f32 %v3428, %v3435
    %v3437 = vmul.f32 %v3429, %v3435
    %v3438 = vmul.f32 %v3430, %v3435
    %v3439 = vmul.f32 %v3431, %v3435
    %v3440 = vlaneseq
    %v3441 = vshrl.u32 %v3440, 7
    %v3442 = vsub.s32 0, %v3441
    %v3443 = vrot.slane %v3060, %v3442
    %v3444 = vadd.f32 %v3436, %v3443
    %v3445 = vadd.f32 %v3437, %v3443
    %v3446 = vadd.f32 %v3438, %v3443
    %v3447 = vadd.f32 %v3439, %v3443
    %3448 = vst.msk [vmem:[#allocation5] sm:$0xff] %vm479, %v3444
    %3449 = vst.msk [vmem:[#allocation5 + $0x8] sm:$0xff] %vm479, %v3445
    %3450 = vst.msk [vmem:[#allocation5 + $0x10] sm:$0xff] %vm479, %v3446
    %3451 = vst.msk [vmem:[#allocation5 + $0x18] sm:$0xff] %vm479, %v3447
    %s3452 = smul.u32 2, 2
    %s3453 = smul.u32 %s3452, 4
    %s3454 = smul.u32 %s3453, 16
    %s3455 = sshll.u32 %s3454, 4
    %3456 = dma.done [#allocation4], %s3455
    %s3457 = smul.u32 %s3452, 256
    %s3458 = smul.u32 %s3457, 1
    %s3459 = sshll.u32 %s3458, 4
    %3460 = dma.done %s176, %s3459
    %v3461 = vld [vmem:[%s10] sm:$0xff]
    %v3462 = vld [vmem:[%s10 + $0x8] sm:$0xff]
    %v3463 = vpack.c.bf16 %v3462, %v3461
    %v3464 = vld [vmem:[%s11] sm:$0xf]
    %v3465 = vld [vmem:[%s11 + $0x4] sm:$0xf]
    %v3466 = vld [vmem:[%s11 + $0x8] sm:$0xf]
    %v3467 = vld [vmem:[%s11 + $0xc] sm:$0xf]
    %v3468 = vld [vmem:[%s12] sm:$0x1]
    %v3469 = vlaneseq
    %v3470 = vshrl.u32 %v3469, 7
    %v3471 = vsub.s32 0, %v3470
    %v3472 = vrot.slane %v3468, %v3471
    %v3477 = vunpack.c.l.b16 %v3464
    %v3478 = vunpack.c.l.b16 %v3465
    %v3479 = vunpack.c.l.b16 %v3466
    %v3480 = vunpack.c.l.b16 %v3467
    %v3481 = vpack.c.b16 %v3478, %v3477
    %v3482 = vpack.c.b16 %v3480, %v3479
    %v3486 = vsel %vm479, %v3463, 0
    %3488 = vmatprep.subr.bf16.mxu0 0
    %3489 = vmatpush1.bf16.msra.mxu0 %v3481
    %3490 = vmatprep.subr.bf16.mxu0 0
    %3491 = vmatpush1.bf16.msra.mxu0 %v3482
    %3492 = vmatprep.subr.bf16.mxu0 0
    %3493 = vmatpush1.bf16.msra.mxu0 0
    %3494 = vmatprep.subr.bf16.mxu0 0
    %3495 = vmatpush1.bf16.msra.mxu0 0
    %3496 = vmatprep.subr.bf16.mxu0 0
    %3497 = vmatpush1.bf16.msra.mxu0 0
    %3498 = vmatprep.subr.bf16.mxu0 0
    %3499 = vmatpush1.bf16.msra.mxu0 0
    %3500 = vmatprep.subr.bf16.mxu0 0
    %3501 = vmatpush1.bf16.msra.mxu0 0
    %3502 = vmatprep.subr.bf16.mxu0 0
    %3503 = vmatpush1.bf16.msra.mxu0 0
    %3504 = vmatprep.subr.bf16.mxu0 0
    %3505 = vmatpush1.bf16.msra.mxu0 0
    %3506 = vmatprep.subr.bf16.mxu0 0
    %3507 = vmatpush1.bf16.msra.mxu0 0
    %3508 = vmatprep.subr.bf16.mxu0 0
    %3509 = vmatpush1.bf16.msra.mxu0 0
    %3510 = vmatprep.subr.bf16.mxu0 0
    %3511 = vmatpush1.bf16.msra.mxu0 0
    %3512 = vmatprep.subr.bf16.mxu0 0
    %3513 = vmatpush1.bf16.msra.mxu0 0
    %3514 = vmatprep.subr.bf16.mxu0 0
    %3515 = vmatpush1.bf16.msra.mxu0 0
    %3516 = vmatprep.subr.bf16.mxu0 0
    %3517 = vmatpush1.bf16.msra.mxu0 0
    %3518 = vmatprep.subr.bf16.mxu0 0
    %3519 = vmatpush1.bf16.msra.mxu0 0
    %3520 = vmatprep.mubr.bf16.mxu0 0
    %3521 = vmatmul.mubr.bf16.gmra.mrb[0].mxu0 %v3486
    %v3522 = vpop.f32.mrb[0].mxu0
    %v3523 = vadd.f32 %v3472, %v3522
    %v3524 = vpop.f32.mrb[0].mxu0
    %v3525 = vpop.f32.mrb[0].mxu0
    %v3526 = vadd.f32 %v3472, %v3525
    %v3527 = vpop.f32.mrb[0].mxu0
    %3528 = vdwg.mxu0
    %s3529 = scalar_lea.vmem %s11, 32
    %v3530 = vld [vmem:[%s3529] sm:$0xf]
    %v3531 = vld [vmem:[%s3529 + $0x4] sm:$0xf]
    %v3532 = vld [vmem:[%s3529 + $0x8] sm:$0xf]
    %v3533 = vld [vmem:[%s3529 + $0xc] sm:$0xf]
    %v3534 = vld [vmem:[%s12 + $0x2] sm:$0x1]
    %v3535 = vlaneseq
    %v3536 = vshrl.u32 %v3535, 7
    %v3537 = vsub.s32 0, %v3536
    %v3538 = vrot.slane %v3534, %v3537
    %v3543 = vunpack.c.l.b16 %v3530
    %v3544 = vunpack.c.l.b16 %v3531
    %v3545 = vunpack.c.l.b16 %v3532
    %v3546 = vunpack.c.l.b16 %v3533
    %v3547 = vpack.c.b16 %v3544, %v3543
    %v3548 = vpack.c.b16 %v3546, %v3545
    %3551 = vmatprep.subr.bf16.mxu0 0
    %3552 = vmatpush1.bf16.msra.mxu0 %v3547
    %3553 = vmatprep.subr.bf16.mxu0 0
    %3554 = vmatpush1.bf16.msra.mxu0 %v3548
    %3555 = vmatprep.subr.bf16.mxu0 0
    %3556 = vmatpush1.bf16.msra.mxu0 0
    %3557 = vmatprep.subr.bf16.mxu0 0
    %3558 = vmatpush1.bf16.msra.mxu0 0
    %3559 = vmatprep.subr.bf16.mxu0 0
    %3560 = vmatpush1.bf16.msra.mxu0 0
    %3561 = vmatprep.subr.bf16.mxu0 0
    %3562 = vmatpush1.bf16.msra.mxu0 0
    %3563 = vmatprep.subr.bf16.mxu0 0
    %3564 = vmatpush1.bf16.msra.mxu0 0
    %3565 = vmatprep.subr.bf16.mxu0 0
    %3566 = vmatpush1.bf16.msra.mxu0 0
    %3567 = vmatprep.subr.bf16.mxu0 0
    %3568 = vmatpush1.bf16.msra.mxu0 0
    %3569 = vmatprep.subr.bf16.mxu0 0
    %3570 = vmatpush1.bf16.msra.mxu0 0
    %3571 = vmatprep.subr.bf16.mxu0 0
    %3572 = vmatpush1.bf16.msra.mxu0 0
    %3573 = vmatprep.subr.bf16.mxu0 0
    %3574 = vmatpush1.bf16.msra.mxu0 0
    %3575 = vmatprep.subr.bf16.mxu0 0
    %3576 = vmatpush1.bf16.msra.mxu0 0
    %3577 = vmatprep.subr.bf16.mxu0 0
    %3578 = vmatpush1.bf16.msra.mxu0 0
    %3579 = vmatprep.subr.bf16.mxu0 0
    %3580 = vmatpush1.bf16.msra.mxu0 0
    %3581 = vmatprep.subr.bf16.mxu0 0
    %3582 = vmatpush1.bf16.msra.mxu0 0
    %3583 = vmatprep.mubr.bf16.mxu0 0
    %3584 = vmatmul.mubr.bf16.gmra.mrb[0].mxu0 %v3486
    %v3585 = vpop.f32.mrb[0].mxu0
    %v3586 = vadd.f32 %v3538, %v3585
    %v3587 = vpop.f32.mrb[0].mxu0
    %v3588 = vpop.f32.mrb[0].mxu0
    %v3589 = vadd.f32 %v3538, %v3588
    %v3590 = vpop.f32.mrb[0].mxu0
    %3591 = vdwg.mxu0
    %s3592 = scalar_lea.vmem %s11, 64
    %v3593 = vld [vmem:[%s3592] sm:$0xf]
    %v3594 = vld [vmem:[%s3592 + $0x4] sm:$0xf]
    %v3595 = vld [vmem:[%s3592 + $0x8] sm:$0xf]
    %v3596 = vld [vmem:[%s3592 + $0xc] sm:$0xf]
    %v3597 = vld [vmem:[%s12 + $0x4] sm:$0x1]
    %v3598 = vlaneseq
    %v3599 = vshrl.u32 %v3598, 7
    %v3600 = vsub.s32 0, %v3599
    %v3601 = vrot.slane %v3597, %v3600
    %v3606 = vunpack.c.l.b16 %v3593
    %v3607 = vunpack.c.l.b16 %v3594
    %v3608 = vunpack.c.l.b16 %v3595
    %v3609 = vunpack.c.l.b16 %v3596
    %v3610 = vpack.c.b16 %v3607, %v3606
    %v3611 = vpack.c.b16 %v3609, %v3608
    %3614 = vmatprep.subr.bf16.mxu0 0
    %3615 = vmatpush1.bf16.msra.mxu0 %v3610
    %3616 = vmatprep.subr.bf16.mxu0 0
    %3617 = vmatpush1.bf16.msra.mxu0 %v3611
    %3618 = vmatprep.subr.bf16.mxu0 0
    %3619 = vmatpush1.bf16.msra.mxu0 0
    %3620 = vmatprep.subr.bf16.mxu0 0
    %3621 = vmatpush1.bf16.msra.mxu0 0
    %3622 = vmatprep.subr.bf16.mxu0 0
    %3623 = vmatpush1.bf16.msra.mxu0 0
    %3624 = vmatprep.subr.bf16.mxu0 0
    %3625 = vmatpush1.bf16.msra.mxu0 0
    %3626 = vmatprep.subr.bf16.mxu0 0
    %3627 = vmatpush1.bf16.msra.mxu0 0
    %3628 = vmatprep.subr.bf16.mxu0 0
    %3629 = vmatpush1.bf16.msra.mxu0 0
    %3630 = vmatprep.subr.bf16.mxu0 0
    %3631 = vmatpush1.bf16.msra.mxu0 0
    %3632 = vmatprep.subr.bf16.mxu0 0
    %3633 = vmatpush1.bf16.msra.mxu0 0
    %3634 = vmatprep.subr.bf16.mxu0 0
    %3635 = vmatpush1.bf16.msra.mxu0 0
    %3636 = vmatprep.subr.bf16.mxu0 0
    %3637 = vmatpush1.bf16.msra.mxu0 0
    %3638 = vmatprep.subr.bf16.mxu0 0
    %3639 = vmatpush1.bf16.msra.mxu0 0
    %3640 = vmatprep.subr.bf16.mxu0 0
    %3641 = vmatpush1.bf16.msra.mxu0 0
    %3642 = vmatprep.subr.bf16.mxu0 0
    %3643 = vmatpush1.bf16.msra.mxu0 0
    %3644 = vmatprep.subr.bf16.mxu0 0
    %3645 = vmatpush1.bf16.msra.mxu0 0
    %3646 = vmatprep.mubr.bf16.mxu0 0
    %3647 = vmatmul.mubr.bf16.gmra.mrb[0].mxu0 %v3486
    %v3648 = vpop.f32.mrb[0].mxu0
    %v3649 = vadd.f32 %v3601, %v3648
    %v3650 = vpop.f32.mrb[0].mxu0
    %v3651 = vpop.f32.mrb[0].mxu0
    %v3652 = vadd.f32 %v3601, %v3651
    %v3653 = vpop.f32.mrb[0].mxu0
    %3654 = vdwg.mxu0
    %v3655 = vpack.c.bf16 %v3523, %v3523
    %v3656 = vpack.c.bf16 %v3526, %v3526
    %v3657 = vpack.c.bf16 %v3586, %v3586
    %v3658 = vpack.c.bf16 %v3589, %v3589
    %v3659 = vpack.c.bf16 %v3649, %v3649
    %v3660 = vpack.c.bf16 %v3652, %v3652
    %v3662 = vsel %vm777, %v3655, 0
    %v3665 = vsel %vm777, %v3657, 0
    %3667 = vmatprep.subr.bf16.mxu0 0
    %3668 = vmatpush1.bf16.xpose.msra.mxu0 %v3665
    %3669 = vmatprep.subr.bf16.mxu0 0
    %3670 = vmatpush1.bf16.xpose.msra.mxu0 0
    %3671 = vmatprep.subr.bf16.mxu0 0
    %3672 = vmatpush1.bf16.xpose.msra.mxu0 0
    %3673 = vmatprep.subr.bf16.mxu0 0
    %3674 = vmatpush1.bf16.xpose.msra.mxu0 0
    %3675 = vmatprep.subr.bf16.mxu0 0
    %3676 = vmatpush1.bf16.xpose.msra.mxu0 0
    %3677 = vmatprep.subr.bf16.mxu0 0
    %3678 = vmatpush1.bf16.xpose.msra.mxu0 0
    %3679 = vmatprep.subr.bf16.mxu0 0
    %3680 = vmatpush1.bf16.xpose.msra.mxu0 0
    %3681 = vmatprep.subr.bf16.mxu0 0
    %3682 = vmatpush1.bf16.xpose.msra.mxu0 0
    %3683 = vmatprep.subr.bf16.mxu0 0
    %3684 = vmatpush1.bf16.xpose.msra.mxu0 0
    %3685 = vmatprep.subr.bf16.mxu0 0
    %3686 = vmatpush1.bf16.xpose.msra.mxu0 0
    %3687 = vmatprep.subr.bf16.mxu0 0
    %3688 = vmatpush1.bf16.xpose.msra.mxu0 0
    %3689 = vmatprep.subr.bf16.mxu0 0
    %3690 = vmatpush1.bf16.xpose.msra.mxu0 0
    %3691 = vmatprep.subr.bf16.mxu0 0
    %3692 = vmatpush1.bf16.xpose.msra.mxu0 0
    %3693 = vmatprep.subr.bf16.mxu0 0
    %3694 = vmatpush1.bf16.xpose.msra.mxu0 0
    %3695 = vmatprep.subr.bf16.mxu0 0
    %3696 = vmatpush1.bf16.xpose.msra.mxu0 0
    %3697 = vmatprep.subr.bf16.mxu0 0
    %3698 = vmatpush1.bf16.xpose.msra.mxu0 0
    %3699 = vmatprep.mubr.bf16.mxu0 0
    %3700 = vmatmul.mubr.bf16.gmra.mrb[0].mxu0 %v3662
    %v3701 = vpop.f32.mrb[0].mxu0
    %v3702 = vadd.f32 0.0, %v3701
    %v3703 = vpop.f32.mrb[0].mxu0
    %v3704 = vpop.f32.mrb[0].mxu0
    %v3705 = vpop.f32.mrb[0].mxu0
    %3706 = vdwg.mxu0
    %v3708 = vsel %vm777, %v3656, 0
    %v3711 = vsel %vm777, %v3658, 0
    %3713 = vmatprep.subr.bf16.mxu0 0
    %3714 = vmatpush1.bf16.xpose.msra.mxu0 %v3711
    %3715 = vmatprep.subr.bf16.mxu0 0
    %3716 = vmatpush1.bf16.xpose.msra.mxu0 0
    %3717 = vmatprep.subr.bf16.mxu0 0
    %3718 = vmatpush1.bf16.xpose.msra.mxu0 0
    %3719 = vmatprep.subr.bf16.mxu0 0
    %3720 = vmatpush1.bf16.xpose.msra.mxu0 0
    %3721 = vmatprep.subr.bf16.mxu0 0
    %3722 = vmatpush1.bf16.xpose.msra.mxu0 0
    %3723 = vmatprep.subr.bf16.mxu0 0
    %3724 = vmatpush1.bf16.xpose.msra.mxu0 0
    %3725 = vmatprep.subr.bf16.mxu0 0
    %3726 = vmatpush1.bf16.xpose.msra.mxu0 0
    %3727 = vmatprep.subr.bf16.mxu0 0
    %3728 = vmatpush1.bf16.xpose.msra.mxu0 0
    %3729 = vmatprep.subr.bf16.mxu0 0
    %3730 = vmatpush1.bf16.xpose.msra.mxu0 0
    %3731 = vmatprep.subr.bf16.mxu0 0
    %3732 = vmatpush1.bf16.xpose.msra.mxu0 0
    %3733 = vmatprep.subr.bf16.mxu0 0
    %3734 = vmatpush1.bf16.xpose.msra.mxu0 0
    %3735 = vmatprep.subr.bf16.mxu0 0
    %3736 = vmatpush1.bf16.xpose.msra.mxu0 0
    %3737 = vmatprep.subr.bf16.mxu0 0
    %3738 = vmatpush1.bf16.xpose.msra.mxu0 0
    %3739 = vmatprep.subr.bf16.mxu0 0
    %3740 = vmatpush1.bf16.xpose.msra.mxu0 0
    %3741 = vmatprep.subr.bf16.mxu0 0
    %3742 = vmatpush1.bf16.xpose.msra.mxu0 0
    %3743 = vmatprep.subr.bf16.mxu0 0
    %3744 = vmatpush1.bf16.xpose.msra.mxu0 0
    %3745 = vmatprep.mubr.bf16.mxu0 0
    %3746 = vmatmul.mubr.bf16.gmra.mrb[0].mxu0 %v3708
    %v3747 = vpop.f32.mrb[0].mxu0
    %v3748 = vadd.f32 0.0, %v3747
    %v3749 = vpop.f32.mrb[0].mxu0
    %v3750 = vpop.f32.mrb[0].mxu0
    %v3751 = vpop.f32.mrb[0].mxu0
    %3752 = vdwg.mxu0
    %v3753 = vmul.f32 %v3702, 0.25
    %v3754 = vmul.f32 %v3748, 0.25
    %vm3755 = vcmask 64512
    %v3756 = vsel %vm3755, %v3753, -inf
    %3757 = vmax.xlane.f32.xlu0 %v3756
    %v3758 = vpop.xlane.xlu0 %3757
    %v3759 = vsel %vm3755, %v3754, -inf
    %3760 = vmax.xlane.f32.xlu0 %v3759
    %v3761 = vpop.xlane.xlu0 %3760
    %v3762 = vsub.f32 %v3753, %v3758
    %v3763 = vsub.f32 %v3754, %v3761
    %v3764 = vmul.f32 %v3762, 1.442695
    %v3765 = vpow.pop %v3764
    %v3766 = vmul.f32 %v3763, 1.442695
    %v3767 = vpow.pop %v3766
    %v3768 = vsel %vm3755, %v3765, 0.0
    %3769 = vadd.xlane.f32.xlu0 %v3768
    %v3770 = vpop.xlane.xlu0 %3769
    %v3771 = vsel %vm3755, %v3767, 0.0
    %3772 = vadd.xlane.f32.xlu0 %v3771
    %v3773 = vpop.xlane.xlu0 %3772
    %v3774 = vrcp.pop %v3770
    %v3775 = vrcp.pop %v3773
    %v3776 = vmul.f32 %v3765, %v3774
    %v3777 = vmul.f32 %v3767, %v3775
    %v3778 = vpack.c.bf16 %v3776, %v3776
    %v3779 = vpack.c.bf16 %v3777, %v3777
    %v3781 = vsel %vm3755, %v3778, 0
    %vm3783 = vcmask 1043456
    %v3785 = vsel %vm3783, %v3659, 0
    %3787 = vmatprep.subr.bf16.mxu0 0
    %3788 = vmatpush1.bf16.msra.mxu0 %v3785
    %3789 = vmatprep.subr.bf16.mxu0 0
    %3790 = vmatpush1.bf16.msra.mxu0 0
    %3791 = vmatprep.subr.bf16.mxu0 0
    %3792 = vmatpush1.bf16.msra.mxu0 0
    %3793 = vmatprep.subr.bf16.mxu0 0
    %3794 = vmatpush1.bf16.msra.mxu0 0
    %3795 = vmatprep.subr.bf16.mxu0 0
    %3796 = vmatpush1.bf16.msra.mxu0 0
    %3797 = vmatprep.subr.bf16.mxu0 0
    %3798 = vmatpush1.bf16.msra.mxu0 0
    %3799 = vmatprep.subr.bf16.mxu0 0
    %3800 = vmatpush1.bf16.msra.mxu0 0
    %3801 = vmatprep.subr.bf16.mxu0 0
    %3802 = vmatpush1.bf16.msra.mxu0 0
    %3803 = vmatprep.subr.bf16.mxu0 0
    %3804 = vmatpush1.bf16.msra.mxu0 0
    %3805 = vmatprep.subr.bf16.mxu0 0
    %3806 = vmatpush1.bf16.msra.mxu0 0
    %3807 = vmatprep.subr.bf16.mxu0 0
    %3808 = vmatpush1.bf16.msra.mxu0 0
    %3809 = vmatprep.subr.bf16.mxu0 0
    %3810 = vmatpush1.bf16.msra.mxu0 0
    %3811 = vmatprep.subr.bf16.mxu0 0
    %3812 = vmatpush1.bf16.msra.mxu0 0
    %3813 = vmatprep.subr.bf16.mxu0 0
    %3814 = vmatpush1.bf16.msra.mxu0 0
    %3815 = vmatprep.subr.bf16.mxu0 0
    %3816 = vmatpush1.bf16.msra.mxu0 0
    %3817 = vmatprep.subr.bf16.mxu0 0
    %3818 = vmatpush1.bf16.msra.mxu0 0
    %3819 = vmatprep.mubr.bf16.mxu0 0
    %3820 = vmatmul.mubr.bf16.gmra.mrb[0].mxu0 %v3781
    %v3821 = vpop.f32.mrb[0].mxu0
    %v3822 = vadd.f32 0.0, %v3821
    %v3823 = vpop.f32.mrb[0].mxu0
    %v3824 = vpop.f32.mrb[0].mxu0
    %v3825 = vpop.f32.mrb[0].mxu0
    %3826 = vdwg.mxu0
    %v3828 = vsel %vm3755, %v3779, 0
    %v3831 = vsel %vm3783, %v3660, 0
    %3833 = vmatprep.subr.bf16.mxu0 0
    %3834 = vmatpush1.bf16.msra.mxu0 %v3831
    %3835 = vmatprep.subr.bf16.mxu0 0
    %3836 = vmatpush1.bf16.msra.mxu0 0
    %3837 = vmatprep.subr.bf16.mxu0 0
    %3838 = vmatpush1.bf16.msra.mxu0 0
    %3839 = vmatprep.subr.bf16.mxu0 0
    %3840 = vmatpush1.bf16.msra.mxu0 0
    %3841 = vmatprep.subr.bf16.mxu0 0
    %3842 = vmatpush1.bf16.msra.mxu0 0
    %3843 = vmatprep.subr.bf16.mxu0 0
    %3844 = vmatpush1.bf16.msra.mxu0 0
    %3845 = vmatprep.subr.bf16.mxu0 0
    %3846 = vmatpush1.bf16.msra.mxu0 0
    %3847 = vmatprep.subr.bf16.mxu0 0
    %3848 = vmatpush1.bf16.msra.mxu0 0
    %3849 = vmatprep.subr.bf16.mxu0 0
    %3850 = vmatpush1.bf16.msra.mxu0 0
    %3851 = vmatprep.subr.bf16.mxu0 0
    %3852 = vmatpush1.bf16.msra.mxu0 0
    %3853 = vmatprep.subr.bf16.mxu0 0
    %3854 = vmatpush1.bf16.msra.mxu0 0
    %3855 = vmatprep.subr.bf16.mxu0 0
    %3856 = vmatpush1.bf16.msra.mxu0 0
    %3857 = vmatprep.subr.bf16.mxu0 0
    %3858 = vmatpush1.bf16.msra.mxu0 0
    %3859 = vmatprep.subr.bf16.mxu0 0
    %3860 = vmatpush1.bf16.msra.mxu0 0
    %3861 = vmatprep.subr.bf16.mxu0 0
    %3862 = vmatpush1.bf16.msra.mxu0 0
    %3863 = vmatprep.subr.bf16.mxu0 0
    %3864 = vmatpush1.bf16.msra.mxu0 0
    %3865 = vmatprep.mubr.bf16.mxu0 0
    %3866 = vmatmul.mubr.bf16.gmra.mrb[0].mxu0 %v3828
    %v3867 = vpop.f32.mrb[0].mxu0
    %v3868 = vadd.f32 0.0, %v3867
    %v3869 = vpop.f32.mrb[0].mxu0
    %v3870 = vpop.f32.mrb[0].mxu0
    %v3871 = vpop.f32.mrb[0].mxu0
    %3872 = vdwg.mxu0
    %v3873 = vpack.c.bf16 %v3868, %v3822
    %v3874 = vld [vmem:[%s13] sm:$0xf]
    %v3875 = vld [vmem:[%s13 + $0x4] sm:$0xf]
    %s3876 = scalar_lea.vmem %s11, 16
    %v3877 = vld [vmem:[%s3876] sm:$0xf]
    %v3878 = vld [vmem:[%s3876 + $0x4] sm:$0xf]
    %v3879 = vld [vmem:[%s3876 + $0x8] sm:$0xf]
    %v3880 = vld [vmem:[%s3876 + $0xc] sm:$0xf]
    %v3881 = vld [vmem:[%s12 + $0x1] sm:$0x1]
    %v3882 = vlaneseq
    %v3883 = vshrl.u32 %v3882, 7
    %v3884 = vsub.s32 0, %v3883
    %v3885 = vrot.slane %v3881, %v3884
    %v3890 = vunpack.c.l.b16 %v3877
    %v3891 = vunpack.c.l.b16 %v3878
    %v3892 = vunpack.c.l.b16 %v3879
    %v3893 = vunpack.c.l.b16 %v3880
    %v3894 = vpack.c.b16 %v3891, %v3890
    %v3895 = vpack.c.b16 %v3893, %v3892
    %3898 = vmatprep.subr.bf16.mxu0 0
    %3899 = vmatpush1.bf16.msra.mxu0 %v3894
    %3900 = vmatprep.subr.bf16.mxu0 0
    %3901 = vmatpush1.bf16.msra.mxu0 %v3895
    %3902 = vmatprep.subr.bf16.mxu0 0
    %3903 = vmatpush1.bf16.msra.mxu0 0
    %3904 = vmatprep.subr.bf16.mxu0 0
    %3905 = vmatpush1.bf16.msra.mxu0 0
    %3906 = vmatprep.subr.bf16.mxu0 0
    %3907 = vmatpush1.bf16.msra.mxu0 0
    %3908 = vmatprep.subr.bf16.mxu0 0
    %3909 = vmatpush1.bf16.msra.mxu0 0
    %3910 = vmatprep.subr.bf16.mxu0 0
    %3911 = vmatpush1.bf16.msra.mxu0 0
    %3912 = vmatprep.subr.bf16.mxu0 0
    %3913 = vmatpush1.bf16.msra.mxu0 0
    %3914 = vmatprep.subr.bf16.mxu0 0
    %3915 = vmatpush1.bf16.msra.mxu0 0
    %3916 = vmatprep.subr.bf16.mxu0 0
    %3917 = vmatpush1.bf16.msra.mxu0 0
    %3918 = vmatprep.subr.bf16.mxu0 0
    %3919 = vmatpush1.bf16.msra.mxu0 0
    %3920 = vmatprep.subr.bf16.mxu0 0
    %3921 = vmatpush1.bf16.msra.mxu0 0
    %3922 = vmatprep.subr.bf16.mxu0 0
    %3923 = vmatpush1.bf16.msra.mxu0 0
    %3924 = vmatprep.subr.bf16.mxu0 0
    %3925 = vmatpush1.bf16.msra.mxu0 0
    %3926 = vmatprep.subr.bf16.mxu0 0
    %3927 = vmatpush1.bf16.msra.mxu0 0
    %3928 = vmatprep.subr.bf16.mxu0 0
    %3929 = vmatpush1.bf16.msra.mxu0 0
    %3930 = vmatprep.mubr.bf16.mxu0 0
    %3931 = vmatmul.mubr.bf16.gmra.mrb[0].mxu0 %v3486
    %v3932 = vpop.f32.mrb[0].mxu0
    %v3933 = vadd.f32 %v3885, %v3932
    %v3934 = vpop.f32.mrb[0].mxu0
    %v3935 = vpop.f32.mrb[0].mxu0
    %v3936 = vadd.f32 %v3885, %v3935
    %v3937 = vpop.f32.mrb[0].mxu0
    %3938 = vdwg.mxu0
    %s3939 = scalar_lea.vmem %s11, 48
    %v3940 = vld [vmem:[%s3939] sm:$0xf]
    %v3941 = vld [vmem:[%s3939 + $0x4] sm:$0xf]
    %v3942 = vld [vmem:[%s3939 + $0x8] sm:$0xf]
    %v3943 = vld [vmem:[%s3939 + $0xc] sm:$0xf]
    %v3944 = vld [vmem:[%s12 + $0x3] sm:$0x1]
    %v3945 = vlaneseq
    %v3946 = vshrl.u32 %v3945, 7
    %v3947 = vsub.s32 0, %v3946
    %v3948 = vrot.slane %v3944, %v3947
    %v3953 = vunpack.c.l.b16 %v3940
    %v3954 = vunpack.c.l.b16 %v3941
    %v3955 = vunpack.c.l.b16 %v3942
    %v3956 = vunpack.c.l.b16 %v3943
    %v3957 = vpack.c.b16 %v3954, %v3953
    %v3958 = vpack.c.b16 %v3956, %v3955
    %3961 = vmatprep.subr.bf16.mxu0 0
    %3962 = vmatpush1.bf16.msra.mxu0 %v3957
    %3963 = vmatprep.subr.bf16.mxu0 0
    %3964 = vmatpush1.bf16.msra.mxu0 %v3958
    %3965 = vmatprep.subr.bf16.mxu0 0
    %3966 = vmatpush1.bf16.msra.mxu0 0
    %3967 = vmatprep.subr.bf16.mxu0 0
    %3968 = vmatpush1.bf16.msra.mxu0 0
    %3969 = vmatprep.subr.bf16.mxu0 0
    %3970 = vmatpush1.bf16.msra.mxu0 0
    %3971 = vmatprep.subr.bf16.mxu0 0
    %3972 = vmatpush1.bf16.msra.mxu0 0
    %3973 = vmatprep.subr.bf16.mxu0 0
    %3974 = vmatpush1.bf16.msra.mxu0 0
    %3975 = vmatprep.subr.bf16.mxu0 0
    %3976 = vmatpush1.bf16.msra.mxu0 0
    %3977 = vmatprep.subr.bf16.mxu0 0
    %3978 = vmatpush1.bf16.msra.mxu0 0
    %3979 = vmatprep.subr.bf16.mxu0 0
    %3980 = vmatpush1.bf16.msra.mxu0 0
    %3981 = vmatprep.subr.bf16.mxu0 0
    %3982 = vmatpush1.bf16.msra.mxu0 0
    %3983 = vmatprep.subr.bf16.mxu0 0
    %3984 = vmatpush1.bf16.msra.mxu0 0
    %3985 = vmatprep.subr.bf16.mxu0 0
    %3986 = vmatpush1.bf16.msra.mxu0 0
    %3987 = vmatprep.subr.bf16.mxu0 0
    %3988 = vmatpush1.bf16.msra.mxu0 0
    %3989 = vmatprep.subr.bf16.mxu0 0
    %3990 = vmatpush1.bf16.msra.mxu0 0
    %3991 = vmatprep.subr.bf16.mxu0 0
    %3992 = vmatpush1.bf16.msra.mxu0 0
    %3993 = vmatprep.mubr.bf16.mxu0 0
    %3994 = vmatmul.mubr.bf16.gmra.mrb[0].mxu0 %v3486
    %v3995 = vpop.f32.mrb[0].mxu0
    %v3996 = vadd.f32 %v3948, %v3995
    %v3997 = vpop.f32.mrb[0].mxu0
    %v3998 = vpop.f32.mrb[0].mxu0
    %v3999 = vadd.f32 %v3948, %v3998
    %v4000 = vpop.f32.mrb[0].mxu0
    %4001 = vdwg.mxu0
    %s4002 = scalar_lea.vmem %s11, 80
    %v4003 = vld [vmem:[%s4002] sm:$0xf]
    %v4004 = vld [vmem:[%s4002 + $0x4] sm:$0xf]
    %v4005 = vld [vmem:[%s4002 + $0x8] sm:$0xf]
    %v4006 = vld [vmem:[%s4002 + $0xc] sm:$0xf]
    %v4007 = vld [vmem:[%s12 + $0x5] sm:$0x1]
    %v4008 = vlaneseq
    %v4009 = vshrl.u32 %v4008, 7
    %v4010 = vsub.s32 0, %v4009
    %v4011 = vrot.slane %v4007, %v4010
    %v4016 = vunpack.c.l.b16 %v4003
    %v4017 = vunpack.c.l.b16 %v4004
    %v4018 = vunpack.c.l.b16 %v4005
    %v4019 = vunpack.c.l.b16 %v4006
    %v4020 = vpack.c.b16 %v4017, %v4016
    %v4021 = vpack.c.b16 %v4019, %v4018
    %4024 = vmatprep.subr.bf16.mxu0 0
    %4025 = vmatpush1.bf16.msra.mxu0 %v4020
    %4026 = vmatprep.subr.bf16.mxu0 0
    %4027 = vmatpush1.bf16.msra.mxu0 %v4021
    %4028 = vmatprep.subr.bf16.mxu0 0
    %4029 = vmatpush1.bf16.msra.mxu0 0
    %4030 = vmatprep.subr.bf16.mxu0 0
    %4031 = vmatpush1.bf16.msra.mxu0 0
    %4032 = vmatprep.subr.bf16.mxu0 0
    %4033 = vmatpush1.bf16.msra.mxu0 0
    %4034 = vmatprep.subr.bf16.mxu0 0
    %4035 = vmatpush1.bf16.msra.mxu0 0
    %4036 = vmatprep.subr.bf16.mxu0 0
    %4037 = vmatpush1.bf16.msra.mxu0 0
    %4038 = vmatprep.subr.bf16.mxu0 0
    %4039 = vmatpush1.bf16.msra.mxu0 0
    %4040 = vmatprep.subr.bf16.mxu0 0
    %4041 = vmatpush1.bf16.msra.mxu0 0
    %4042 = vmatprep.subr.bf16.mxu0 0
    %4043 = vmatpush1.bf16.msra.mxu0 0
    %4044 = vmatprep.subr.bf16.mxu0 0
    %4045 = vmatpush1.bf16.msra.mxu0 0
    %4046 = vmatprep.subr.bf16.mxu0 0
    %4047 = vmatpush1.bf16.msra.mxu0 0
    %4048 = vmatprep.subr.bf16.mxu0 0
    %4049 = vmatpush1.bf16.msra.mxu0 0
    %4050 = vmatprep.subr.bf16.mxu0 0
    %4051 = vmatpush1.bf16.msra.mxu0 0
    %4052 = vmatprep.subr.bf16.mxu0 0
    %4053 = vmatpush1.bf16.msra.mxu0 0
    %4054 = vmatprep.subr.bf16.mxu0 0
    %4055 = vmatpush1.bf16.msra.mxu0 0
    %4056 = vmatprep.mubr.bf16.mxu0 0
    %4057 = vmatmul.mubr.bf16.gmra.mrb[0].mxu0 %v3486
    %v4058 = vpop.f32.mrb[0].mxu0
    %v4059 = vadd.f32 %v4011, %v4058
    %v4060 = vpop.f32.mrb[0].mxu0
    %v4061 = vpop.f32.mrb[0].mxu0
    %v4062 = vadd.f32 %v4011, %v4061
    %v4063 = vpop.f32.mrb[0].mxu0
    %4064 = vdwg.mxu0
    %v4065 = vpack.c.bf16 %v3933, %v3933
    %v4066 = vpack.c.bf16 %v3936, %v3936
    %v4067 = vpack.c.bf16 %v3996, %v3996
    %v4068 = vpack.c.bf16 %v3999, %v3999
    %v4069 = vpack.c.bf16 %v4059, %v4059
    %v4070 = vpack.c.bf16 %v4062, %v4062
    %v4072 = vsel %vm777, %v4065, 0
    %v4075 = vsel %vm777, %v4067, 0
    %4077 = vmatprep.subr.bf16.mxu0 0
    %4078 = vmatpush1.bf16.xpose.msra.mxu0 %v4075
    %4079 = vmatprep.subr.bf16.mxu0 0
    %4080 = vmatpush1.bf16.xpose.msra.mxu0 0
    %4081 = vmatprep.subr.bf16.mxu0 0
    %4082 = vmatpush1.bf16.xpose.msra.mxu0 0
    %4083 = vmatprep.subr.bf16.mxu0 0
    %4084 = vmatpush1.bf16.xpose.msra.mxu0 0
    %4085 = vmatprep.subr.bf16.mxu0 0
    %4086 = vmatpush1.bf16.xpose.msra.mxu0 0
    %4087 = vmatprep.subr.bf16.mxu0 0
    %4088 = vmatpush1.bf16.xpose.msra.mxu0 0
    %4089 = vmatprep.subr.bf16.mxu0 0
    %4090 = vmatpush1.bf16.xpose.msra.mxu0 0
    %4091 = vmatprep.subr.bf16.mxu0 0
    %4092 = vmatpush1.bf16.xpose.msra.mxu0 0
    %4093 = vmatprep.subr.bf16.mxu0 0
    %4094 = vmatpush1.bf16.xpose.msra.mxu0 0
    %4095 = vmatprep.subr.bf16.mxu0 0
    %4096 = vmatpush1.bf16.xpose.msra.mxu0 0
    %4097 = vmatprep.subr.bf16.mxu0 0
    %4098 = vmatpush1.bf16.xpose.msra.mxu0 0
    %4099 = vmatprep.subr.bf16.mxu0 0
    %4100 = vmatpush1.bf16.xpose.msra.mxu0 0
    %4101 = vmatprep.subr.bf16.mxu0 0
    %4102 = vmatpush1.bf16.xpose.msra.mxu0 0
    %4103 = vmatprep.subr.bf16.mxu0 0
    %4104 = vmatpush1.bf16.xpose.msra.mxu0 0
    %4105 = vmatprep.subr.bf16.mxu0 0
    %4106 = vmatpush1.bf16.xpose.msra.mxu0 0
    %4107 = vmatprep.subr.bf16.mxu0 0
    %4108 = vmatpush1.bf16.xpose.msra.mxu0 0
    %4109 = vmatprep.mubr.bf16.mxu0 0
    %4110 = vmatmul.mubr.bf16.gmra.mrb[0].mxu0 %v4072
    %v4111 = vpop.f32.mrb[0].mxu0
    %v4112 = vadd.f32 0.0, %v4111
    %v4113 = vpop.f32.mrb[0].mxu0
    %v4114 = vpop.f32.mrb[0].mxu0
    %v4115 = vpop.f32.mrb[0].mxu0
    %4116 = vdwg.mxu0
    %v4118 = vsel %vm777, %v4066, 0
    %v4121 = vsel %vm777, %v4068, 0
    %4123 = vmatprep.subr.bf16.mxu0 0
    %4124 = vmatpush1.bf16.xpose.msra.mxu0 %v4121
    %4125 = vmatprep.subr.bf16.mxu0 0
    %4126 = vmatpush1.bf16.xpose.msra.mxu0 0
    %4127 = vmatprep.subr.bf16.mxu0 0
    %4128 = vmatpush1.bf16.xpose.msra.mxu0 0
    %4129 = vmatprep.subr.bf16.mxu0 0
    %4130 = vmatpush1.bf16.xpose.msra.mxu0 0
    %4131 = vmatprep.subr.bf16.mxu0 0
    %4132 = vmatpush1.bf16.xpose.msra.mxu0 0
    %4133 = vmatprep.subr.bf16.mxu0 0
    %4134 = vmatpush1.bf16.xpose.msra.mxu0 0
    %4135 = vmatprep.subr.bf16.mxu0 0
    %4136 = vmatpush1.bf16.xpose.msra.mxu0 0
    %4137 = vmatprep.subr.bf16.mxu0 0
    %4138 = vmatpush1.bf16.xpose.msra.mxu0 0
    %4139 = vmatprep.subr.bf16.mxu0 0
    %4140 = vmatpush1.bf16.xpose.msra.mxu0 0
    %4141 = vmatprep.subr.bf16.mxu0 0
    %4142 = vmatpush1.bf16.xpose.msra.mxu0 0
    %4143 = vmatprep.subr.bf16.mxu0 0
    %4144 = vmatpush1.bf16.xpose.msra.mxu0 0
    %4145 = vmatprep.subr.bf16.mxu0 0
    %4146 = vmatpush1.bf16.xpose.msra.mxu0 0
    %4147 = vmatprep.subr.bf16.mxu0 0
    %4148 = vmatpush1.bf16.xpose.msra.mxu0 0
    %4149 = vmatprep.subr.bf16.mxu0 0
    %4150 = vmatpush1.bf16.xpose.msra.mxu0 0
    %4151 = vmatprep.subr.bf16.mxu0 0
    %4152 = vmatpush1.bf16.xpose.msra.mxu0 0
    %4153 = vmatprep.subr.bf16.mxu0 0
    %4154 = vmatpush1.bf16.xpose.msra.mxu0 0
    %4155 = vmatprep.mubr.bf16.mxu0 0
    %4156 = vmatmul.mubr.bf16.gmra.mrb[0].mxu0 %v4118
    %v4157 = vpop.f32.mrb[0].mxu0
    %v4158 = vadd.f32 0.0, %v4157
    %v4159 = vpop.f32.mrb[0].mxu0
    %v4160 = vpop.f32.mrb[0].mxu0
    %v4161 = vpop.f32.mrb[0].mxu0
    %4162 = vdwg.mxu0
    %v4163 = vmul.f32 %v4112, 0.25
    %v4164 = vmul.f32 %v4158, 0.25
    %v4165 = vsel %vm3755, %v4163, -inf
    %4166 = vmax.xlane.f32.xlu0 %v4165
    %v4167 = vpop.xlane.xlu0 %4166
    %v4168 = vsel %vm3755, %v4164, -inf
    %4169 = vmax.xlane.f32.xlu0 %v4168
    %v4170 = vpop.xlane.xlu0 %4169
    %v4171 = vsub.f32 %v4163, %v4167
    %v4172 = vsub.f32 %v4164, %v4170
    %v4173 = vmul.f32 %v4171, 1.442695
    %v4174 = vpow.pop %v4173
    %v4175 = vmul.f32 %v4172, 1.442695
    %v4176 = vpow.pop %v4175
    %v4177 = vsel %vm3755, %v4174, 0.0
    %4178 = vadd.xlane.f32.xlu0 %v4177
    %v4179 = vpop.xlane.xlu0 %4178
    %v4180 = vsel %vm3755, %v4176, 0.0
    %4181 = vadd.xlane.f32.xlu0 %v4180
    %v4182 = vpop.xlane.xlu0 %4181
    %v4183 = vrcp.pop %v4179
    %v4184 = vrcp.pop %v4182
    %v4185 = vmul.f32 %v4174, %v4183
    %v4186 = vmul.f32 %v4176, %v4184
    %v4187 = vpack.c.bf16 %v4185, %v4185
    %v4188 = vpack.c.bf16 %v4186, %v4186
    %v4190 = vsel %vm3755, %v4187, 0
    %v4193 = vsel %vm3783, %v4069, 0
    %4195 = vmatprep.subr.bf16.mxu0 0
    %4196 = vmatpush1.bf16.msra.mxu0 %v4193
    %4197 = vmatprep.subr.bf16.mxu0 0
    %4198 = vmatpush1.bf16.msra.mxu0 0
    %4199 = vmatprep.subr.bf16.mxu0 0
    %4200 = vmatpush1.bf16.msra.mxu0 0
    %4201 = vmatprep.subr.bf16.mxu0 0
    %4202 = vmatpush1.bf16.msra.mxu0 0
    %4203 = vmatprep.subr.bf16.mxu0 0
    %4204 = vmatpush1.bf16.msra.mxu0 0
    %4205 = vmatprep.subr.bf16.mxu0 0
    %4206 = vmatpush1.bf16.msra.mxu0 0
    %4207 = vmatprep.subr.bf16.mxu0 0
    %4208 = vmatpush1.bf16.msra.mxu0 0
    %4209 = vmatprep.subr.bf16.mxu0 0
    %4210 = vmatpush1.bf16.msra.mxu0 0
    %4211 = vmatprep.subr.bf16.mxu0 0
    %4212 = vmatpush1.bf16.msra.mxu0 0
    %4213 = vmatprep.subr.bf16.mxu0 0
    %4214 = vmatpush1.bf16.msra.mxu0 0
    %4215 = vmatprep.subr.bf16.mxu0 0
    %4216 = vmatpush1.bf16.msra.mxu0 0
    %4217 = vmatprep.subr.bf16.mxu0 0
    %4218 = vmatpush1.bf16.msra.mxu0 0
    %4219 = vmatprep.subr.bf16.mxu0 0
    %4220 = vmatpush1.bf16.msra.mxu0 0
    %4221 = vmatprep.subr.bf16.mxu0 0
    %4222 = vmatpush1.bf16.msra.mxu0 0
    %4223 = vmatprep.subr.bf16.mxu0 0
    %4224 = vmatpush1.bf16.msra.mxu0 0
    %4225 = vmatprep.subr.bf16.mxu0 0
    %4226 = vmatpush1.bf16.msra.mxu0 0
    %4227 = vmatprep.mubr.bf16.mxu0 0
    %4228 = vmatmul.mubr.bf16.gmra.mrb[0].mxu0 %v4190
    %v4229 = vpop.f32.mrb[0].mxu0
    %v4230 = vadd.f32 0.0, %v4229
    %v4231 = vpop.f32.mrb[0].mxu0
    %v4232 = vpop.f32.mrb[0].mxu0
    %v4233 = vpop.f32.mrb[0].mxu0
    %4234 = vdwg.mxu0
    %v4236 = vsel %vm3755, %v4188, 0
    %v4239 = vsel %vm3783, %v4070, 0
    %4241 = vmatprep.subr.bf16.mxu0 0
    %4242 = vmatpush1.bf16.msra.mxu0 %v4239
    %4243 = vmatprep.subr.bf16.mxu0 0
    %4244 = vmatpush1.bf16.msra.mxu0 0
    %4245 = vmatprep.subr.bf16.mxu0 0
    %4246 = vmatpush1.bf16.msra.mxu0 0
    %4247 = vmatprep.subr.bf16.mxu0 0
    %4248 = vmatpush1.bf16.msra.mxu0 0
    %4249 = vmatprep.subr.bf16.mxu0 0
    %4250 = vmatpush1.bf16.msra.mxu0 0
    %4251 = vmatprep.subr.bf16.mxu0 0
    %4252 = vmatpush1.bf16.msra.mxu0 0
    %4253 = vmatprep.subr.bf16.mxu0 0
    %4254 = vmatpush1.bf16.msra.mxu0 0
    %4255 = vmatprep.subr.bf16.mxu0 0
    %4256 = vmatpush1.bf16.msra.mxu0 0
    %4257 = vmatprep.subr.bf16.mxu0 0
    %4258 = vmatpush1.bf16.msra.mxu0 0
    %4259 = vmatprep.subr.bf16.mxu0 0
    %4260 = vmatpush1.bf16.msra.mxu0 0
    %4261 = vmatprep.subr.bf16.mxu0 0
    %4262 = vmatpush1.bf16.msra.mxu0 0
    %4263 = vmatprep.subr.bf16.mxu0 0
    %4264 = vmatpush1.bf16.msra.mxu0 0
    %4265 = vmatprep.subr.bf16.mxu0 0
    %4266 = vmatpush1.bf16.msra.mxu0 0
    %4267 = vmatprep.subr.bf16.mxu0 0
    %4268 = vmatpush1.bf16.msra.mxu0 0
    %4269 = vmatprep.subr.bf16.mxu0 0
    %4270 = vmatpush1.bf16.msra.mxu0 0
    %4271 = vmatprep.subr.bf16.mxu0 0
    %4272 = vmatpush1.bf16.msra.mxu0 0
    %4273 = vmatprep.mubr.bf16.mxu0 0
    %4274 = vmatmul.mubr.bf16.gmra.mrb[0].mxu0 %v4236
    %v4275 = vpop.f32.mrb[0].mxu0
    %v4276 = vadd.f32 0.0, %v4275
    %v4277 = vpop.f32.mrb[0].mxu0
    %v4278 = vpop.f32.mrb[0].mxu0
    %v4279 = vpop.f32.mrb[0].mxu0
    %4280 = vdwg.mxu0
    %v4281 = vpack.c.bf16 %v4276, %v4230
    %s4282 = scalar_lea.vmem %s13, 8
    %v4283 = vld [vmem:[%s4282] sm:$0xf]
    %v4284 = vld [vmem:[%s4282 + $0x4] sm:$0xf]
    %v4287 = vunpack.c.l.b16 %v4283
    %v4288 = vunpack.c.l.b16 %v4284
    %v4289 = vpack.c.b16 %v4288, %v4287
    %v4292 = vsel %vm777, %v4281, 0
    %4294 = vmatprep.subr.bf16.mxu0 0
    %4295 = vmatpush1.bf16.msra.mxu0 %v4289
    %4296 = vmatprep.subr.bf16.mxu0 0
    %4297 = vmatpush1.bf16.msra.mxu0 0
    %4298 = vmatprep.subr.bf16.mxu0 0
    %4299 = vmatpush1.bf16.msra.mxu0 0
    %4300 = vmatprep.subr.bf16.mxu0 0
    %4301 = vmatpush1.bf16.msra.mxu0 0
    %4302 = vmatprep.subr.bf16.mxu0 0
    %4303 = vmatpush1.bf16.msra.mxu0 0
    %4304 = vmatprep.subr.bf16.mxu0 0
    %4305 = vmatpush1.bf16.msra.mxu0 0
    %4306 = vmatprep.subr.bf16.mxu0 0
    %4307 = vmatpush1.bf16.msra.mxu0 0
    %4308 = vmatprep.subr.bf16.mxu0 0
    %4309 = vmatpush1.bf16.msra.mxu0 0
    %4310 = vmatprep.subr.bf16.mxu0 0
    %4311 = vmatpush1.bf16.msra.mxu0 0
    %4312 = vmatprep.subr.bf16.mxu0 0
    %4313 = vmatpush1.bf16.msra.mxu0 0
    %4314 = vmatprep.subr.bf16.mxu0 0
    %4315 = vmatpush1.bf16.msra.mxu0 0
    %4316 = vmatprep.subr.bf16.mxu0 0
    %4317 = vmatpush1.bf16.msra.mxu0 0
    %4318 = vmatprep.subr.bf16.mxu0 0
    %4319 = vmatpush1.bf16.msra.mxu0 0
    %4320 = vmatprep.subr.bf16.mxu0 0
    %4321 = vmatpush1.bf16.msra.mxu0 0
    %4322 = vmatprep.subr.bf16.mxu0 0
    %4323 = vmatpush1.bf16.msra.mxu0 0
    %4324 = vmatprep.subr.bf16.mxu0 0
    %4325 = vmatpush1.bf16.msra.mxu0 0
    %4326 = vmatprep.mubr.bf16.mxu0 0
    %4327 = vmatmul.mubr.bf16.gmra.mrb[0].mxu0 %v4292
    %v4328 = vpop.f32.mrb[0].mxu0
    %v4329 = vadd.f32 0.0, %v4328
    %v4330 = vpop.f32.mrb[0].mxu0
    %v4331 = vpop.f32.mrb[0].mxu0
    %v4332 = vadd.f32 0.0, %v4331
    %v4333 = vpop.f32.mrb[0].mxu0
    %4334 = vdwg.mxu0
    %v4337 = vunpack.c.l.b16 %v3874
    %v4338 = vunpack.c.l.b16 %v3875
    %v4339 = vpack.c.b16 %v4338, %v4337
    %v4342 = vsel %vm777, %v3873, 0
    %4344 = vmatprep.subr.bf16.mxu0 0
    %4345 = vmatpush1.bf16.msra.mxu0 %v4339
    %4346 = vmatprep.subr.bf16.mxu0 0
    %4347 = vmatpush1.bf16.msra.mxu0 0
    %4348 = vmatprep.subr.bf16.mxu0 0
    %4349 = vmatpush1.bf16.msra.mxu0 0
    %4350 = vmatprep.subr.bf16.mxu0 0
    %4351 = vmatpush1.bf16.msra.mxu0 0
    %4352 = vmatprep.subr.bf16.mxu0 0
    %4353 = vmatpush1.bf16.msra.mxu0 0
    %4354 = vmatprep.subr.bf16.mxu0 0
    %4355 = vmatpush1.bf16.msra.mxu0 0
    %4356 = vmatprep.subr.bf16.mxu0 0
    %4357 = vmatpush1.bf16.msra.mxu0 0
    %4358 = vmatprep.subr.bf16.mxu0 0
    %4359 = vmatpush1.bf16.msra.mxu0 0
    %4360 = vmatprep.subr.bf16.mxu0 0
    %4361 = vmatpush1.bf16.msra.mxu0 0
    %4362 = vmatprep.subr.bf16.mxu0 0
    %4363 = vmatpush1.bf16.msra.mxu0 0
    %4364 = vmatprep.subr.bf16.mxu0 0
    %4365 = vmatpush1.bf16.msra.mxu0 0
    %4366 = vmatprep.subr.bf16.mxu0 0
    %4367 = vmatpush1.bf16.msra.mxu0 0
    %4368 = vmatprep.subr.bf16.mxu0 0
    %4369 = vmatpush1.bf16.msra.mxu0 0
    %4370 = vmatprep.subr.bf16.mxu0 0
    %4371 = vmatpush1.bf16.msra.mxu0 0
    %4372 = vmatprep.subr.bf16.mxu0 0
    %4373 = vmatpush1.bf16.msra.mxu0 0
    %4374 = vmatprep.subr.bf16.mxu0 0
    %4375 = vmatpush1.bf16.msra.mxu0 0
    %4376 = vmatprep.mubr.bf16.mxu0 0
    %4377 = vmatmul.mubr.bf16.gmra.mrb[0].mxu0 %v4342
    %v4378 = vpop.f32.mrb[0].mxu0
    %v4379 = vadd.f32 %v4329, %v4378
    %v4380 = vpop.f32.mrb[0].mxu0
    %v4381 = vpop.f32.mrb[0].mxu0
    %v4382 = vadd.f32 %v4332, %v4381
    %v4383 = vpop.f32.mrb[0].mxu0
    %4384 = vdwg.mxu0
    %v4385 = vld [vmem:[%s14] sm:$0x1]
    %v4386 = vld [vmem:[%s14 + $0x1] sm:$0x1]
    %v4387 = vld [vmem:[%s14 + $0x2] sm:$0x1]
    %v4388 = vld [vmem:[%s14 + $0x3] sm:$0x1]
    %v4389 = vld [vmem:[%s14 + $0x4] sm:$0x1]
    %v4390 = vld [vmem:[%s14 + $0x5] sm:$0x1]
    %v4391 = vadd.f32 %v3461, %v4379
    %v4392 = vadd.f32 %v3462, %v4382
    %v4393 = vlaneseq
    %v4394 = vshrl.u32 %v4393, 7
    %v4395 = vsub.s32 0, %v4394
    %v4396 = vrot.slane %v4385, %v4395
    %v4397 = vadd.f32 %v4391, %v4396
    %v4398 = vadd.f32 %v4392, %v4396
    %v4399 = vsel %vm479, %v4397, 0.0
    %4400 = vadd.xlane.f32.xlu0 %v4399
    %v4401 = vpop.xlane.xlu0 %4400
    %v4402 = vsel %vm479, %v4398, 0.0
    %4403 = vadd.xlane.f32.xlu0 %v4402
    %v4404 = vpop.xlane.xlu0 %4403
    %v4405 = vmul.f32 %v4401, %v492
    %v4406 = vmul.f32 %v4404, %v492
    %v4407 = vsub.f32 %v4397, %v4405
    %v4408 = vsub.f32 %v4398, %v4406
    %v4409 = vmul.f32 %v4407, %v4407
    %v4410 = vmul.f32 %v4408, %v4408
    %v4411 = vsel %vm479, %v4409, 0.0
    %4412 = vadd.xlane.f32.xlu0 %v4411
    %v4413 = vpop.xlane.xlu0 %4412
    %v4414 = vsel %vm479, %v4410, 0.0
    %4415 = vadd.xlane.f32.xlu0 %v4414
    %v4416 = vpop.xlane.xlu0 %4415
    %v4417 = vmul.f32 %v4413, %v492
    %v4418 = vmul.f32 %v4416, %v492
    %v4419 = vadd.f32 %v4417, 1e-05
    %v4420 = vadd.f32 %v4418, 1e-05
    %v4421 = vrsqrt.pop %v4419
    %v4422 = vrsqrt.pop %v4420
    %v4423 = vmul.f32 %v4407, %v4421
    %v4424 = vmul.f32 %v4408, %v4422
    %v4425 = vlaneseq
    %v4426 = vshrl.u32 %v4425, 7
    %v4427 = vsub.s32 0, %v4426
    %v4428 = vrot.slane %v4386, %v4427
    %v4429 = vmul.f32 %v4423, %v4428
    %v4430 = vmul.f32 %v4424, %v4428
    %v4431 = vlaneseq
    %v4432 = vshrl.u32 %v4431, 7
    %v4433 = vsub.s32 0, %v4432
    %v4434 = vrot.slane %v4387, %v4433
    %v4435 = vadd.f32 %v4429, %v4434
    %v4436 = vadd.f32 %v4430, %v4434
    %v4437 = vpack.c.bf16 %v4436, %v4435
    %v4438 = vld [vmem:[#allocation2] sm:$0xff]
    %v4439 = vld [vmem:[#allocation2 + $0x8] sm:$0xff]
    %v4440 = vld [vmem:[#allocation2 + $0x10] sm:$0xff]
    %v4441 = vld [vmem:[#allocation2 + $0x18] sm:$0xff]
    %v4442 = vunpack.c.l.s8.bf16 %v4438
    %v4443 = vunpack.c.l.s8.bf16 %v4439
    %v4444 = vunpack.c.l.s8.bf16 %v4440
    %v4445 = vunpack.c.l.s8.bf16 %v4441
    %v4446 = vunpack.c.h.s8.bf16 %v4438
    %v4447 = vunpack.c.h.s8.bf16 %v4439
    %v4448 = vunpack.c.h.s8.bf16 %v4440
    %v4449 = vunpack.c.h.s8.bf16 %v4441
    %v4451 = vsel %vm479, %v4437, 0
    %4453 = vmatprep.subr.bf16.mxu0 %v4443
    %4454 = vmatpush1.bf16.msra.mxu0 %v4442
    %4455 = vmatprep.subr.bf16.mxu0 %v4447
    %4456 = vmatpush1.bf16.msra.mxu0 %v4446
    %4457 = vmatprep.subr.bf16.mxu0 0
    %4458 = vmatpush1.bf16.msra.mxu0 0
    %4459 = vmatprep.subr.bf16.mxu0 0
    %4460 = vmatpush1.bf16.msra.mxu0 0
    %4461 = vmatprep.subr.bf16.mxu0 0
    %4462 = vmatpush1.bf16.msra.mxu0 0
    %4463 = vmatprep.subr.bf16.mxu0 0
    %4464 = vmatpush1.bf16.msra.mxu0 0
    %4465 = vmatprep.subr.bf16.mxu0 0
    %4466 = vmatpush1.bf16.msra.mxu0 0
    %4467 = vmatprep.subr.bf16.mxu0 0
    %4468 = vmatpush1.bf16.msra.mxu0 0
    %4469 = vmatprep.subr.bf16.mxu0 0
    %4470 = vmatpush1.bf16.msra.mxu0 0
    %4471 = vmatprep.subr.bf16.mxu0 0
    %4472 = vmatpush1.bf16.msra.mxu0 0
    %4473 = vmatprep.subr.bf16.mxu0 0
    %4474 = vmatpush1.bf16.msra.mxu0 0
    %4475 = vmatprep.subr.bf16.mxu0 0
    %4476 = vmatpush1.bf16.msra.mxu0 0
    %4477 = vmatprep.subr.bf16.mxu0 0
    %4478 = vmatpush1.bf16.msra.mxu0 0
    %4479 = vmatprep.subr.bf16.mxu0 0
    %4480 = vmatpush1.bf16.msra.mxu0 0
    %4481 = vmatprep.subr.bf16.mxu0 0
    %4482 = vmatpush1.bf16.msra.mxu0 0
    %4483 = vmatprep.subr.bf16.mxu0 0
    %4484 = vmatpush1.bf16.msra.mxu0 0
    %4485 = vmatprep.mubr.bf16.mxu0 0
    %4486 = vmatmul.mubr.bf16.gmra.mrb[0].mxu0 %v4451
    %v4487 = vpop.f32.mrb[0].mxu0
    %v4488 = vadd.f32 0.0, %v4487
    %v4489 = vpop.f32.mrb[0].mxu0
    %v4490 = vadd.f32 0.0, %v4489
    %v4491 = vpop.f32.mrb[0].mxu0
    %v4492 = vadd.f32 0.0, %v4491
    %v4493 = vpop.f32.mrb[0].mxu0
    %v4494 = vadd.f32 0.0, %v4493
    %4495 = vdwg.mxu0
    %4496 = vmatprep.subr.bf16.mxu0 %v4445
    %4497 = vmatpush1.bf16.msra.mxu0 %v4444
    %4498 = vmatprep.subr.bf16.mxu0 %v4449
    %4499 = vmatpush1.bf16.msra.mxu0 %v4448
    %4500 = vmatprep.subr.bf16.mxu0 0
    %4501 = vmatpush1.bf16.msra.mxu0 0
    %4502 = vmatprep.subr.bf16.mxu0 0
    %4503 = vmatpush1.bf16.msra.mxu0 0
    %4504 = vmatprep.subr.bf16.mxu0 0
    %4505 = vmatpush1.bf16.msra.mxu0 0
    %4506 = vmatprep.subr.bf16.mxu0 0
    %4507 = vmatpush1.bf16.msra.mxu0 0
    %4508 = vmatprep.subr.bf16.mxu0 0
    %4509 = vmatpush1.bf16.msra.mxu0 0
    %4510 = vmatprep.subr.bf16.mxu0 0
    %4511 = vmatpush1.bf16.msra.mxu0 0
    %4512 = vmatprep.subr.bf16.mxu0 0
    %4513 = vmatpush1.bf16.msra.mxu0 0
    %4514 = vmatprep.subr.bf16.mxu0 0
    %4515 = vmatpush1.bf16.msra.mxu0 0
    %4516 = vmatprep.subr.bf16.mxu0 0
    %4517 = vmatpush1.bf16.msra.mxu0 0
    %4518 = vmatprep.subr.bf16.mxu0 0
    %4519 = vmatpush1.bf16.msra.mxu0 0
    %4520 = vmatprep.subr.bf16.mxu0 0
    %4521 = vmatpush1.bf16.msra.mxu0 0
    %4522 = vmatprep.subr.bf16.mxu0 0
    %4523 = vmatpush1.bf16.msra.mxu0 0
    %4524 = vmatprep.subr.bf16.mxu0 0
    %4525 = vmatpush1.bf16.msra.mxu0 0
    %4526 = vmatprep.subr.bf16.mxu0 0
    %4527 = vmatpush1.bf16.msra.mxu0 0
    %4528 = vmatprep.mubr.bf16.mxu0 0
    %4529 = vmatmul.mubr.bf16.gmra.mrb[0].mxu0 %v4451
    %v4530 = vpop.f32.mrb[0].mxu0
    %v4531 = vadd.f32 0.0, %v4530
    %v4532 = vpop.f32.mrb[0].mxu0
    %v4533 = vadd.f32 0.0, %v4532
    %v4534 = vpop.f32.mrb[0].mxu0
    %v4535 = vadd.f32 0.0, %v4534
    %v4536 = vpop.f32.mrb[0].mxu0
    %v4537 = vadd.f32 0.0, %v4536
    %4538 = vdwg.mxu0
    %v4539 = vld [vmem:[%s16] ss:$2 sm:$0xf]
    %v4541 = vlaneseq
    %v4542 = vshrl.u32 %v4541, 7
    %v4543 = vsub.s32 0, %v4542
    %v4544 = vrot.slane %v4539, %v4543
    %v4545 = vlaneseq
    %v4546 = vshrl.u32 %v4545, 7
    %v4547 = vsub.s32 1, %v4546
    %v4548 = vrot.slane %v4539, %v4547
    %v4549 = vlaneseq
    %v4550 = vshrl.u32 %v4549, 7
    %v4551 = vsub.s32 2, %v4550
    %v4552 = vrot.slane %v4539, %v4551
    %v4553 = vlaneseq
    %v4554 = vshrl.u32 %v4553, 7
    %v4555 = vsub.s32 3, %v4554
    %v4556 = vrot.slane %v4539, %v4555
    %v4561 = vmul.f32 %v4488, %v4544
    %v4562 = vmul.f32 %v4490, %v4548
    %v4563 = vmul.f32 %v4531, %v4552
    %v4564 = vmul.f32 %v4533, %v4556
    %v4565 = vmul.f32 %v4492, %v4544
    %v4566 = vmul.f32 %v4494, %v4548
    %v4567 = vmul.f32 %v4535, %v4552
    %v4568 = vmul.f32 %v4537, %v4556
    %v4569 = vld [vmem:[%s15] ss:$2 sm:$0xf]
    %v4571 = vlaneseq
    %v4572 = vshrl.u32 %v4571, 7
    %v4573 = vsub.s32 0, %v4572
    %v4574 = vrot.slane %v4569, %v4573
    %v4575 = vlaneseq
    %v4576 = vshrl.u32 %v4575, 7
    %v4577 = vsub.s32 1, %v4576
    %v4578 = vrot.slane %v4569, %v4577
    %v4579 = vlaneseq
    %v4580 = vshrl.u32 %v4579, 7
    %v4581 = vsub.s32 2, %v4580
    %v4582 = vrot.slane %v4569, %v4581
    %v4583 = vlaneseq
    %v4584 = vshrl.u32 %v4583, 7
    %v4585 = vsub.s32 3, %v4584
    %v4586 = vrot.slane %v4569, %v4585
    %v4591 = vadd.f32 %v4561, %v4574
    %v4592 = vadd.f32 %v4562, %v4578
    %v4593 = vadd.f32 %v4563, %v4582
    %v4594 = vadd.f32 %v4564, %v4586
    %v4595 = vadd.f32 %v4565, %v4574
    %v4596 = vadd.f32 %v4566, %v4578
    %v4597 = vadd.f32 %v4567, %v4582
    %v4598 = vadd.f32 %v4568, %v4586
    %v4599 = vmax.f32 %v4591, 0.0
    %v4600 = vmax.f32 %v4592, 0.0
    %v4601 = vmax.f32 %v4593, 0.0
    %v4602 = vmax.f32 %v4594, 0.0
    %v4603 = vmax.f32 %v4595, 0.0
    %v4604 = vmax.f32 %v4596, 0.0
    %v4605 = vmax.f32 %v4597, 0.0
    %v4606 = vmax.f32 %v4598, 0.0
    %v4607 = vld [vmem:[#allocation3] sm:$0xff]
    %v4608 = vld [vmem:[#allocation3 + $0x8] sm:$0xff]
    %v4609 = vld [vmem:[#allocation3 + $0x10] sm:$0xff]
    %v4610 = vld [vmem:[#allocation3 + $0x18] sm:$0xff]
    %v4611 = vld [vmem:[#allocation3 + $0x20] sm:$0xff]
    %v4612 = vld [vmem:[#allocation3 + $0x28] sm:$0xff]
    %v4613 = vld [vmem:[#allocation3 + $0x30] sm:$0xff]
    %v4614 = vld [vmem:[#allocation3 + $0x38] sm:$0xff]
    %v4615 = vld [vmem:[#allocation3 + $0x40] sm:$0xff]
    %v4616 = vld [vmem:[#allocation3 + $0x48] sm:$0xff]
    %v4617 = vld [vmem:[#allocation3 + $0x50] sm:$0xff]
    %v4618 = vld [vmem:[#allocation3 + $0x58] sm:$0xff]
    %v4619 = vld [vmem:[#allocation3 + $0x60] sm:$0xff]
    %v4620 = vld [vmem:[#allocation3 + $0x68] sm:$0xff]
    %v4621 = vld [vmem:[#allocation3 + $0x70] sm:$0xff]
    %v4622 = vld [vmem:[#allocation3 + $0x78] sm:$0xff]
    %v4623 = vunpack.c.l.s8.bf16 %v4607
    %v4624 = vunpack.c.h.s8.bf16 %v4607
    %v4625 = vunpack.c.l.s8.bf16 %v4608
    %v4626 = vunpack.c.h.s8.bf16 %v4608
    %v4627 = vunpack.c.l.s8.bf16 %v4609
    %v4628 = vunpack.c.h.s8.bf16 %v4609
    %v4629 = vunpack.c.l.s8.bf16 %v4610
    %v4630 = vunpack.c.h.s8.bf16 %v4610
    %v4631 = vunpack.c.l.s8.bf16 %v4611
    %v4632 = vunpack.c.h.s8.bf16 %v4611
    %v4633 = vunpack.c.l.s8.bf16 %v4612
    %v4634 = vunpack.c.h.s8.bf16 %v4612
    %v4635 = vunpack.c.l.s8.bf16 %v4613
    %v4636 = vunpack.c.h.s8.bf16 %v4613
    %v4637 = vunpack.c.l.s8.bf16 %v4614
    %v4638 = vunpack.c.h.s8.bf16 %v4614
    %v4639 = vunpack.c.l.s8.bf16 %v4615
    %v4640 = vunpack.c.h.s8.bf16 %v4615
    %v4641 = vunpack.c.l.s8.bf16 %v4616
    %v4642 = vunpack.c.h.s8.bf16 %v4616
    %v4643 = vunpack.c.l.s8.bf16 %v4617
    %v4644 = vunpack.c.h.s8.bf16 %v4617
    %v4645 = vunpack.c.l.s8.bf16 %v4618
    %v4646 = vunpack.c.h.s8.bf16 %v4618
    %v4647 = vunpack.c.l.s8.bf16 %v4619
    %v4648 = vunpack.c.h.s8.bf16 %v4619
    %v4649 = vunpack.c.l.s8.bf16 %v4620
    %v4650 = vunpack.c.h.s8.bf16 %v4620
    %v4651 = vunpack.c.l.s8.bf16 %v4621
    %v4652 = vunpack.c.h.s8.bf16 %v4621
    %v4653 = vunpack.c.l.s8.bf16 %v4622
    %v4654 = vunpack.c.h.s8.bf16 %v4622
    %v4655 = vpack.c.bf16 %v4603, %v4599
    %v4656 = vpack.c.bf16 %v4604, %v4600
    %v4657 = vpack.c.bf16 %v4605, %v4601
    %v4658 = vpack.c.bf16 %v4606, %v4602
    %v4659 = vld [vmem:[#allocation2 + $0x20] sm:$0xff]
    %v4660 = vld [vmem:[#allocation2 + $0x28] sm:$0xff]
    %v4661 = vld [vmem:[#allocation2 + $0x30] sm:$0xff]
    %v4662 = vld [vmem:[#allocation2 + $0x38] sm:$0xff]
    %v4663 = vunpack.c.l.s8.bf16 %v4659
    %v4664 = vunpack.c.l.s8.bf16 %v4660
    %v4665 = vunpack.c.l.s8.bf16 %v4661
    %v4666 = vunpack.c.l.s8.bf16 %v4662
    %v4667 = vunpack.c.h.s8.bf16 %v4659
    %v4668 = vunpack.c.h.s8.bf16 %v4660
    %v4669 = vunpack.c.h.s8.bf16 %v4661
    %v4670 = vunpack.c.h.s8.bf16 %v4662
    %4671 = vmatprep.subr.bf16.mxu0 %v4664
    %4672 = vmatpush1.bf16.msra.mxu0 %v4663
    %4673 = vmatprep.subr.bf16.mxu0 %v4668
    %4674 = vmatpush1.bf16.msra.mxu0 %v4667
    %4675 = vmatprep.subr.bf16.mxu0 0
    %4676 = vmatpush1.bf16.msra.mxu0 0
    %4677 = vmatprep.subr.bf16.mxu0 0
    %4678 = vmatpush1.bf16.msra.mxu0 0
    %4679 = vmatprep.subr.bf16.mxu0 0
    %4680 = vmatpush1.bf16.msra.mxu0 0
    %4681 = vmatprep.subr.bf16.mxu0 0
    %4682 = vmatpush1.bf16.msra.mxu0 0
    %4683 = vmatprep.subr.bf16.mxu0 0
    %4684 = vmatpush1.bf16.msra.mxu0 0
    %4685 = vmatprep.subr.bf16.mxu0 0
    %4686 = vmatpush1.bf16.msra.mxu0 0
    %4687 = vmatprep.subr.bf16.mxu0 0
    %4688 = vmatpush1.bf16.msra.mxu0 0
    %4689 = vmatprep.subr.bf16.mxu0 0
    %4690 = vmatpush1.bf16.msra.mxu0 0
    %4691 = vmatprep.subr.bf16.mxu0 0
    %4692 = vmatpush1.bf16.msra.mxu0 0
    %4693 = vmatprep.subr.bf16.mxu0 0
    %4694 = vmatpush1.bf16.msra.mxu0 0
    %4695 = vmatprep.subr.bf16.mxu0 0
    %4696 = vmatpush1.bf16.msra.mxu0 0
    %4697 = vmatprep.subr.bf16.mxu0 0
    %4698 = vmatpush1.bf16.msra.mxu0 0
    %4699 = vmatprep.subr.bf16.mxu0 0
    %4700 = vmatpush1.bf16.msra.mxu0 0
    %4701 = vmatprep.subr.bf16.mxu0 0
    %4702 = vmatpush1.bf16.msra.mxu0 0
    %4703 = vmatprep.mubr.bf16.mxu0 0
    %4704 = vmatmul.mubr.bf16.gmra.mrb[0].mxu0 %v4451
    %v4705 = vpop.f32.mrb[0].mxu0
    %v4706 = vadd.f32 0.0, %v4705
    %v4707 = vpop.f32.mrb[0].mxu0
    %v4708 = vadd.f32 0.0, %v4707
    %v4709 = vpop.f32.mrb[0].mxu0
    %v4710 = vadd.f32 0.0, %v4709
    %v4711 = vpop.f32.mrb[0].mxu0
    %v4712 = vadd.f32 0.0, %v4711
    %4713 = vdwg.mxu0
    %4714 = vmatprep.subr.bf16.mxu0 %v4666
    %4715 = vmatpush1.bf16.msra.mxu0 %v4665
    %4716 = vmatprep.subr.bf16.mxu0 %v4670
    %4717 = vmatpush1.bf16.msra.mxu0 %v4669
    %4718 = vmatprep.subr.bf16.mxu0 0
    %4719 = vmatpush1.bf16.msra.mxu0 0
    %4720 = vmatprep.subr.bf16.mxu0 0
    %4721 = vmatpush1.bf16.msra.mxu0 0
    %4722 = vmatprep.subr.bf16.mxu0 0
    %4723 = vmatpush1.bf16.msra.mxu0 0
    %4724 = vmatprep.subr.bf16.mxu0 0
    %4725 = vmatpush1.bf16.msra.mxu0 0
    %4726 = vmatprep.subr.bf16.mxu0 0
    %4727 = vmatpush1.bf16.msra.mxu0 0
    %4728 = vmatprep.subr.bf16.mxu0 0
    %4729 = vmatpush1.bf16.msra.mxu0 0
    %4730 = vmatprep.subr.bf16.mxu0 0
    %4731 = vmatpush1.bf16.msra.mxu0 0
    %4732 = vmatprep.subr.bf16.mxu0 0
    %4733 = vmatpush1.bf16.msra.mxu0 0
    %4734 = vmatprep.subr.bf16.mxu0 0
    %4735 = vmatpush1.bf16.msra.mxu0 0
    %4736 = vmatprep.subr.bf16.mxu0 0
    %4737 = vmatpush1.bf16.msra.mxu0 0
    %4738 = vmatprep.subr.bf16.mxu0 0
    %4739 = vmatpush1.bf16.msra.mxu0 0
    %4740 = vmatprep.subr.bf16.mxu0 0
    %4741 = vmatpush1.bf16.msra.mxu0 0
    %4742 = vmatprep.subr.bf16.mxu0 0
    %4743 = vmatpush1.bf16.msra.mxu0 0
    %4744 = vmatprep.subr.bf16.mxu0 0
    %4745 = vmatpush1.bf16.msra.mxu0 0
    %4746 = vmatprep.mubr.bf16.mxu0 0
    %4747 = vmatmul.mubr.bf16.gmra.mrb[0].mxu0 %v4451
    %v4748 = vpop.f32.mrb[0].mxu0
    %v4749 = vadd.f32 0.0, %v4748
    %v4750 = vpop.f32.mrb[0].mxu0
    %v4751 = vadd.f32 0.0, %v4750
    %v4752 = vpop.f32.mrb[0].mxu0
    %v4753 = vadd.f32 0.0, %v4752
    %v4754 = vpop.f32.mrb[0].mxu0
    %v4755 = vadd.f32 0.0, %v4754
    %4756 = vdwg.mxu0
    %s4757 = scalar_lea.vmem %s16, 8
    %v4758 = vld [vmem:[%s4757] ss:$2 sm:$0xf]
    %v4760 = vlaneseq
    %v4761 = vshrl.u32 %v4760, 7
    %v4762 = vsub.s32 0, %v4761
    %v4763 = vrot.slane %v4758, %v4762
    %v4764 = vlaneseq
    %v4765 = vshrl.u32 %v4764, 7
    %v4766 = vsub.s32 1, %v4765
    %v4767 = vrot.slane %v4758, %v4766
    %v4768 = vlaneseq
    %v4769 = vshrl.u32 %v4768, 7
    %v4770 = vsub.s32 2, %v4769
    %v4771 = vrot.slane %v4758, %v4770
    %v4772 = vlaneseq
    %v4773 = vshrl.u32 %v4772, 7
    %v4774 = vsub.s32 3, %v4773
    %v4775 = vrot.slane %v4758, %v4774
    %v4780 = vmul.f32 %v4706, %v4763
    %v4781 = vmul.f32 %v4708, %v4767
    %v4782 = vmul.f32 %v4749, %v4771
    %v4783 = vmul.f32 %v4751, %v4775
    %v4784 = vmul.f32 %v4710, %v4763
    %v4785 = vmul.f32 %v4712, %v4767
    %v4786 = vmul.f32 %v4753, %v4771
    %v4787 = vmul.f32 %v4755, %v4775
    %s4788 = scalar_lea.vmem %s15, 8
    %v4789 = vld [vmem:[%s4788] ss:$2 sm:$0xf]
    %v4791 = vlaneseq
    %v4792 = vshrl.u32 %v4791, 7
    %v4793 = vsub.s32 0, %v4792
    %v4794 = vrot.slane %v4789, %v4793
    %v4795 = vlaneseq
    %v4796 = vshrl.u32 %v4795, 7
    %v4797 = vsub.s32 1, %v4796
    %v4798 = vrot.slane %v4789, %v4797
    %v4799 = vlaneseq
    %v4800 = vshrl.u32 %v4799, 7
    %v4801 = vsub.s32 2, %v4800
    %v4802 = vrot.slane %v4789, %v4801
    %v4803 = vlaneseq
    %v4804 = vshrl.u32 %v4803, 7
    %v4805 = vsub.s32 3, %v4804
    %v4806 = vrot.slane %v4789, %v4805
    %v4811 = vadd.f32 %v4780, %v4794
    %v4812 = vadd.f32 %v4781, %v4798
    %v4813 = vadd.f32 %v4782, %v4802
    %v4814 = vadd.f32 %v4783, %v4806
    %v4815 = vadd.f32 %v4784, %v4794
    %v4816 = vadd.f32 %v4785, %v4798
    %v4817 = vadd.f32 %v4786, %v4802
    %v4818 = vadd.f32 %v4787, %v4806
    %v4819 = vmax.f32 %v4811, 0.0
    %v4820 = vmax.f32 %v4812, 0.0
    %v4821 = vmax.f32 %v4813, 0.0
    %v4822 = vmax.f32 %v4814, 0.0
    %v4823 = vmax.f32 %v4815, 0.0
    %v4824 = vmax.f32 %v4816, 0.0
    %v4825 = vmax.f32 %v4817, 0.0
    %v4826 = vmax.f32 %v4818, 0.0
    %v4827 = vld [vmem:[#allocation3 + $0x80] sm:$0xff]
    %v4828 = vld [vmem:[#allocation3 + $0x88] sm:$0xff]
    %v4829 = vld [vmem:[#allocation3 + $0x90] sm:$0xff]
    %v4830 = vld [vmem:[#allocation3 + $0x98] sm:$0xff]
    %v4831 = vld [vmem:[#allocation3 + $0xa0] sm:$0xff]
    %v4832 = vld [vmem:[#allocation3 + $0xa8] sm:$0xff]
    %v4833 = vld [vmem:[#allocation3 + $0xb0] sm:$0xff]
    %v4834 = vld [vmem:[#allocation3 + $0xb8] sm:$0xff]
    %v4835 = vld [vmem:[#allocation3 + $0xc0] sm:$0xff]
    %v4836 = vld [vmem:[#allocation3 + $0xc8] sm:$0xff]
    %v4837 = vld [vmem:[#allocation3 + $0xd0] sm:$0xff]
    %v4838 = vld [vmem:[#allocation3 + $0xd8] sm:$0xff]
    %v4839 = vld [vmem:[#allocation3 + $0xe0] sm:$0xff]
    %v4840 = vld [vmem:[#allocation3 + $0xe8] sm:$0xff]
    %v4841 = vld [vmem:[#allocation3 + $0xf0] sm:$0xff]
    %v4842 = vld [vmem:[#allocation3 + $0xf8] sm:$0xff]
    %v4843 = vunpack.c.l.s8.bf16 %v4827
    %v4844 = vunpack.c.h.s8.bf16 %v4827
    %v4845 = vunpack.c.l.s8.bf16 %v4828
    %v4846 = vunpack.c.h.s8.bf16 %v4828
    %v4847 = vunpack.c.l.s8.bf16 %v4829
    %v4848 = vunpack.c.h.s8.bf16 %v4829
    %v4849 = vunpack.c.l.s8.bf16 %v4830
    %v4850 = vunpack.c.h.s8.bf16 %v4830
    %v4851 = vunpack.c.l.s8.bf16 %v4831
    %v4852 = vunpack.c.h.s8.bf16 %v4831
    %v4853 = vunpack.c.l.s8.bf16 %v4832
    %v4854 = vunpack.c.h.s8.bf16 %v4832
    %v4855 = vunpack.c.l.s8.bf16 %v4833
    %v4856 = vunpack.c.h.s8.bf16 %v4833
    %v4857 = vunpack.c.l.s8.bf16 %v4834
    %v4858 = vunpack.c.h.s8.bf16 %v4834
    %v4859 = vunpack.c.l.s8.bf16 %v4835
    %v4860 = vunpack.c.h.s8.bf16 %v4835
    %v4861 = vunpack.c.l.s8.bf16 %v4836
    %v4862 = vunpack.c.h.s8.bf16 %v4836
    %v4863 = vunpack.c.l.s8.bf16 %v4837
    %v4864 = vunpack.c.h.s8.bf16 %v4837
    %v4865 = vunpack.c.l.s8.bf16 %v4838
    %v4866 = vunpack.c.h.s8.bf16 %v4838
    %v4867 = vunpack.c.l.s8.bf16 %v4839
    %v4868 = vunpack.c.h.s8.bf16 %v4839
    %v4869 = vunpack.c.l.s8.bf16 %v4840
    %v4870 = vunpack.c.h.s8.bf16 %v4840
    %v4871 = vunpack.c.l.s8.bf16 %v4841
    %v4872 = vunpack.c.h.s8.bf16 %v4841
    %v4873 = vunpack.c.l.s8.bf16 %v4842
    %v4874 = vunpack.c.h.s8.bf16 %v4842
    %v4875 = vpack.c.bf16 %v4823, %v4819
    %v4876 = vpack.c.bf16 %v4824, %v4820
    %v4877 = vpack.c.bf16 %v4825, %v4821
    %v4878 = vpack.c.bf16 %v4826, %v4822
    %4879 = vmatprep.subr.bf16.mxu0 0
    %4880 = vmatpush1.bf16.msra.mxu0 %v4843
    %4881 = vmatprep.subr.bf16.mxu0 0
    %4882 = vmatpush1.bf16.msra.mxu0 %v4844
    %4883 = vmatprep.subr.bf16.mxu0 0
    %4884 = vmatpush1.bf16.msra.mxu0 %v4845
    %4885 = vmatprep.subr.bf16.mxu0 0
    %4886 = vmatpush1.bf16.msra.mxu0 %v4846
    %4887 = vmatprep.subr.bf16.mxu0 0
    %4888 = vmatpush1.bf16.msra.mxu0 %v4847
    %4889 = vmatprep.subr.bf16.mxu0 0
    %4890 = vmatpush1.bf16.msra.mxu0 %v4848
    %4891 = vmatprep.subr.bf16.mxu0 0
    %4892 = vmatpush1.bf16.msra.mxu0 %v4849
    %4893 = vmatprep.subr.bf16.mxu0 0
    %4894 = vmatpush1.bf16.msra.mxu0 %v4850
    %4895 = vmatprep.subr.bf16.mxu0 0
    %4896 = vmatpush1.bf16.msra.mxu0 %v4851
    %4897 = vmatprep.subr.bf16.mxu0 0
    %4898 = vmatpush1.bf16.msra.mxu0 %v4852
    %4899 = vmatprep.subr.bf16.mxu0 0
    %4900 = vmatpush1.bf16.msra.mxu0 %v4853
    %4901 = vmatprep.subr.bf16.mxu0 0
    %4902 = vmatpush1.bf16.msra.mxu0 %v4854
    %4903 = vmatprep.subr.bf16.mxu0 0
    %4904 = vmatpush1.bf16.msra.mxu0 %v4855
    %4905 = vmatprep.subr.bf16.mxu0 0
    %4906 = vmatpush1.bf16.msra.mxu0 %v4856
    %4907 = vmatprep.subr.bf16.mxu0 0
    %4908 = vmatpush1.bf16.msra.mxu0 %v4857
    %4909 = vmatprep.subr.bf16.mxu0 0
    %4910 = vmatpush1.bf16.msra.mxu0 %v4858
    %4911 = vmatprep.mubr.bf16.mxu0 %v4876
    %4912 = vmatmul.mubr.bf16.gmra.mrb[0].mxu0 %v4875
    %v4913 = vpop.f32.mrb[0].mxu0
    %v4914 = vadd.f32 0.0, %v4913
    %v4915 = vpop.f32.mrb[0].mxu0
    %v4916 = vpop.f32.mrb[0].mxu0
    %v4917 = vadd.f32 0.0, %v4916
    %v4918 = vpop.f32.mrb[0].mxu0
    %4919 = vdwg.mxu0
    %4920 = vmatprep.subr.bf16.mxu0 0
    %4921 = vmatpush1.bf16.msra.mxu0 %v4859
    %4922 = vmatprep.subr.bf16.mxu0 0
    %4923 = vmatpush1.bf16.msra.mxu0 %v4860
    %4924 = vmatprep.subr.bf16.mxu0 0
    %4925 = vmatpush1.bf16.msra.mxu0 %v4861
    %4926 = vmatprep.subr.bf16.mxu0 0
    %4927 = vmatpush1.bf16.msra.mxu0 %v4862
    %4928 = vmatprep.subr.bf16.mxu0 0
    %4929 = vmatpush1.bf16.msra.mxu0 %v4863
    %4930 = vmatprep.subr.bf16.mxu0 0
    %4931 = vmatpush1.bf16.msra.mxu0 %v4864
    %4932 = vmatprep.subr.bf16.mxu0 0
    %4933 = vmatpush1.bf16.msra.mxu0 %v4865
    %4934 = vmatprep.subr.bf16.mxu0 0
    %4935 = vmatpush1.bf16.msra.mxu0 %v4866
    %4936 = vmatprep.subr.bf16.mxu0 0
    %4937 = vmatpush1.bf16.msra.mxu0 %v4867
    %4938 = vmatprep.subr.bf16.mxu0 0
    %4939 = vmatpush1.bf16.msra.mxu0 %v4868
    %4940 = vmatprep.subr.bf16.mxu0 0
    %4941 = vmatpush1.bf16.msra.mxu0 %v4869
    %4942 = vmatprep.subr.bf16.mxu0 0
    %4943 = vmatpush1.bf16.msra.mxu0 %v4870
    %4944 = vmatprep.subr.bf16.mxu0 0
    %4945 = vmatpush1.bf16.msra.mxu0 %v4871
    %4946 = vmatprep.subr.bf16.mxu0 0
    %4947 = vmatpush1.bf16.msra.mxu0 %v4872
    %4948 = vmatprep.subr.bf16.mxu0 0
    %4949 = vmatpush1.bf16.msra.mxu0 %v4873
    %4950 = vmatprep.subr.bf16.mxu0 0
    %4951 = vmatpush1.bf16.msra.mxu0 %v4874
    %4952 = vmatprep.mubr.bf16.mxu0 %v4878
    %4953 = vmatmul.mubr.bf16.gmra.mrb[0].mxu0 %v4877
    %v4954 = vpop.f32.mrb[0].mxu0
    %v4955 = vadd.f32 %v4914, %v4954
    %v4956 = vpop.f32.mrb[0].mxu0
    %v4957 = vpop.f32.mrb[0].mxu0
    %v4958 = vadd.f32 %v4917, %v4957
    %v4959 = vpop.f32.mrb[0].mxu0
    %4960 = vdwg.mxu0
    %4961 = vmatprep.subr.bf16.mxu0 0
    %4962 = vmatpush1.bf16.msra.mxu0 %v4623
    %4963 = vmatprep.subr.bf16.mxu0 0
    %4964 = vmatpush1.bf16.msra.mxu0 %v4624
    %4965 = vmatprep.subr.bf16.mxu0 0
    %4966 = vmatpush1.bf16.msra.mxu0 %v4625
    %4967 = vmatprep.subr.bf16.mxu0 0
    %4968 = vmatpush1.bf16.msra.mxu0 %v4626
    %4969 = vmatprep.subr.bf16.mxu0 0
    %4970 = vmatpush1.bf16.msra.mxu0 %v4627
    %4971 = vmatprep.subr.bf16.mxu0 0
    %4972 = vmatpush1.bf16.msra.mxu0 %v4628
    %4973 = vmatprep.subr.bf16.mxu0 0
    %4974 = vmatpush1.bf16.msra.mxu0 %v4629
    %4975 = vmatprep.subr.bf16.mxu0 0
    %4976 = vmatpush1.bf16.msra.mxu0 %v4630
    %4977 = vmatprep.subr.bf16.mxu0 0
    %4978 = vmatpush1.bf16.msra.mxu0 %v4631
    %4979 = vmatprep.subr.bf16.mxu0 0
    %4980 = vmatpush1.bf16.msra.mxu0 %v4632
    %4981 = vmatprep.subr.bf16.mxu0 0
    %4982 = vmatpush1.bf16.msra.mxu0 %v4633
    %4983 = vmatprep.subr.bf16.mxu0 0
    %4984 = vmatpush1.bf16.msra.mxu0 %v4634
    %4985 = vmatprep.subr.bf16.mxu0 0
    %4986 = vmatpush1.bf16.msra.mxu0 %v4635
    %4987 = vmatprep.subr.bf16.mxu0 0
    %4988 = vmatpush1.bf16.msra.mxu0 %v4636
    %4989 = vmatprep.subr.bf16.mxu0 0
    %4990 = vmatpush1.bf16.msra.mxu0 %v4637
    %4991 = vmatprep.subr.bf16.mxu0 0
    %4992 = vmatpush1.bf16.msra.mxu0 %v4638
    %4993 = vmatprep.mubr.bf16.mxu0 %v4656
    %4994 = vmatmul.mubr.bf16.gmra.mrb[0].mxu0 %v4655
    %v4995 = vpop.f32.mrb[0].mxu0
    %v4996 = vadd.f32 %v4955, %v4995
    %v4997 = vpop.f32.mrb[0].mxu0
    %v4998 = vpop.f32.mrb[0].mxu0
    %v4999 = vadd.f32 %v4958, %v4998
    %v5000 = vpop.f32.mrb[0].mxu0
    %5001 = vdwg.mxu0
    %5002 = vmatprep.subr.bf16.mxu0 0
    %5003 = vmatpush1.bf16.msra.mxu0 %v4639
    %5004 = vmatprep.subr.bf16.mxu0 0
    %5005 = vmatpush1.bf16.msra.mxu0 %v4640
    %5006 = vmatprep.subr.bf16.mxu0 0
    %5007 = vmatpush1.bf16.msra.mxu0 %v4641
    %5008 = vmatprep.subr.bf16.mxu0 0
    %5009 = vmatpush1.bf16.msra.mxu0 %v4642
    %5010 = vmatprep.subr.bf16.mxu0 0
    %5011 = vmatpush1.bf16.msra.mxu0 %v4643
    %5012 = vmatprep.subr.bf16.mxu0 0
    %5013 = vmatpush1.bf16.msra.mxu0 %v4644
    %5014 = vmatprep.subr.bf16.mxu0 0
    %5015 = vmatpush1.bf16.msra.mxu0 %v4645
    %5016 = vmatprep.subr.bf16.mxu0 0
    %5017 = vmatpush1.bf16.msra.mxu0 %v4646
    %5018 = vmatprep.subr.bf16.mxu0 0
    %5019 = vmatpush1.bf16.msra.mxu0 %v4647
    %5020 = vmatprep.subr.bf16.mxu0 0
    %5021 = vmatpush1.bf16.msra.mxu0 %v4648
    %5022 = vmatprep.subr.bf16.mxu0 0
    %5023 = vmatpush1.bf16.msra.mxu0 %v4649
    %5024 = vmatprep.subr.bf16.mxu0 0
    %5025 = vmatpush1.bf16.msra.mxu0 %v4650
    %5026 = vmatprep.subr.bf16.mxu0 0
    %5027 = vmatpush1.bf16.msra.mxu0 %v4651
    %5028 = vmatprep.subr.bf16.mxu0 0
    %5029 = vmatpush1.bf16.msra.mxu0 %v4652
    %5030 = vmatprep.subr.bf16.mxu0 0
    %5031 = vmatpush1.bf16.msra.mxu0 %v4653
    %5032 = vmatprep.subr.bf16.mxu0 0
    %5033 = vmatpush1.bf16.msra.mxu0 %v4654
    %5034 = vmatprep.mubr.bf16.mxu0 %v4658
    %5035 = vmatmul.mubr.bf16.gmra.mrb[0].mxu0 %v4657
    %v5036 = vpop.f32.mrb[0].mxu0
    %v5037 = vadd.f32 %v4996, %v5036
    %v5038 = vpop.f32.mrb[0].mxu0
    %v5039 = vpop.f32.mrb[0].mxu0
    %v5040 = vadd.f32 %v4999, %v5039
    %v5041 = vpop.f32.mrb[0].mxu0
    %5042 = vdwg.mxu0
    %v5043 = vld [vmem:[#allocation2 + $0x40] sm:$0xff]
    %v5044 = vld [vmem:[#allocation2 + $0x48] sm:$0xff]
    %v5045 = vld [vmem:[#allocation2 + $0x50] sm:$0xff]
    %v5046 = vld [vmem:[#allocation2 + $0x58] sm:$0xff]
    %v5047 = vunpack.c.l.s8.bf16 %v5043
    %v5048 = vunpack.c.l.s8.bf16 %v5044
    %v5049 = vunpack.c.l.s8.bf16 %v5045
    %v5050 = vunpack.c.l.s8.bf16 %v5046
    %v5051 = vunpack.c.h.s8.bf16 %v5043
    %v5052 = vunpack.c.h.s8.bf16 %v5044
    %v5053 = vunpack.c.h.s8.bf16 %v5045
    %v5054 = vunpack.c.h.s8.bf16 %v5046
    %5055 = vmatprep.subr.bf16.mxu0 %v5048
    %5056 = vmatpush1.bf16.msra.mxu0 %v5047
    %5057 = vmatprep.subr.bf16.mxu0 %v5052
    %5058 = vmatpush1.bf16.msra.mxu0 %v5051
    %5059 = vmatprep.subr.bf16.mxu0 0
    %5060 = vmatpush1.bf16.msra.mxu0 0
    %5061 = vmatprep.subr.bf16.mxu0 0
    %5062 = vmatpush1.bf16.msra.mxu0 0
    %5063 = vmatprep.subr.bf16.mxu0 0
    %5064 = vmatpush1.bf16.msra.mxu0 0
    %5065 = vmatprep.subr.bf16.mxu0 0
    %5066 = vmatpush1.bf16.msra.mxu0 0
    %5067 = vmatprep.subr.bf16.mxu0 0
    %5068 = vmatpush1.bf16.msra.mxu0 0
    %5069 = vmatprep.subr.bf16.mxu0 0
    %5070 = vmatpush1.bf16.msra.mxu0 0
    %5071 = vmatprep.subr.bf16.mxu0 0
    %5072 = vmatpush1.bf16.msra.mxu0 0
    %5073 = vmatprep.subr.bf16.mxu0 0
    %5074 = vmatpush1.bf16.msra.mxu0 0
    %5075 = vmatprep.subr.bf16.mxu0 0
    %5076 = vmatpush1.bf16.msra.mxu0 0
    %5077 = vmatprep.subr.bf16.mxu0 0
    %5078 = vmatpush1.bf16.msra.mxu0 0
    %5079 = vmatprep.subr.bf16.mxu0 0
    %5080 = vmatpush1.bf16.msra.mxu0 0
    %5081 = vmatprep.subr.bf16.mxu0 0
    %5082 = vmatpush1.bf16.msra.mxu0 0
    %5083 = vmatprep.subr.bf16.mxu0 0
    %5084 = vmatpush1.bf16.msra.mxu0 0
    %5085 = vmatprep.subr.bf16.mxu0 0
    %5086 = vmatpush1.bf16.msra.mxu0 0
    %5087 = vmatprep.mubr.bf16.mxu0 0
    %5088 = vmatmul.mubr.bf16.gmra.mrb[0].mxu0 %v4451
    %v5089 = vpop.f32.mrb[0].mxu0
    %v5090 = vadd.f32 0.0, %v5089
    %v5091 = vpop.f32.mrb[0].mxu0
    %v5092 = vadd.f32 0.0, %v5091
    %v5093 = vpop.f32.mrb[0].mxu0
    %v5094 = vadd.f32 0.0, %v5093
    %v5095 = vpop.f32.mrb[0].mxu0
    %v5096 = vadd.f32 0.0, %v5095
    %5097 = vdwg.mxu0
    %5098 = vmatprep.subr.bf16.mxu0 %v5050
    %5099 = vmatpush1.bf16.msra.mxu0 %v5049
    %5100 = vmatprep.subr.bf16.mxu0 %v5054
    %5101 = vmatpush1.bf16.msra.mxu0 %v5053
    %5102 = vmatprep.subr.bf16.mxu0 0
    %5103 = vmatpush1.bf16.msra.mxu0 0
    %5104 = vmatprep.subr.bf16.mxu0 0
    %5105 = vmatpush1.bf16.msra.mxu0 0
    %5106 = vmatprep.subr.bf16.mxu0 0
    %5107 = vmatpush1.bf16.msra.mxu0 0
    %5108 = vmatprep.subr.bf16.mxu0 0
    %5109 = vmatpush1.bf16.msra.mxu0 0
    %5110 = vmatprep.subr.bf16.mxu0 0
    %5111 = vmatpush1.bf16.msra.mxu0 0
    %5112 = vmatprep.subr.bf16.mxu0 0
    %5113 = vmatpush1.bf16.msra.mxu0 0
    %5114 = vmatprep.subr.bf16.mxu0 0
    %5115 = vmatpush1.bf16.msra.mxu0 0
    %5116 = vmatprep.subr.bf16.mxu0 0
    %5117 = vmatpush1.bf16.msra.mxu0 0
    %5118 = vmatprep.subr.bf16.mxu0 0
    %5119 = vmatpush1.bf16.msra.mxu0 0
    %5120 = vmatprep.subr.bf16.mxu0 0
    %5121 = vmatpush1.bf16.msra.mxu0 0
    %5122 = vmatprep.subr.bf16.mxu0 0
    %5123 = vmatpush1.bf16.msra.mxu0 0
    %5124 = vmatprep.subr.bf16.mxu0 0
    %5125 = vmatpush1.bf16.msra.mxu0 0
    %5126 = vmatprep.subr.bf16.mxu0 0
    %5127 = vmatpush1.bf16.msra.mxu0 0
    %5128 = vmatprep.subr.bf16.mxu0 0
    %5129 = vmatpush1.bf16.msra.mxu0 0
    %5130 = vmatprep.mubr.bf16.mxu0 0
    %5131 = vmatmul.mubr.bf16.gmra.mrb[0].mxu0 %v4451
    %v5132 = vpop.f32.mrb[0].mxu0
    %v5133 = vadd.f32 0.0, %v5132
    %v5134 = vpop.f32.mrb[0].mxu0
    %v5135 = vadd.f32 0.0, %v5134
    %v5136 = vpop.f32.mrb[0].mxu0
    %v5137 = vadd.f32 0.0, %v5136
    %v5138 = vpop.f32.mrb[0].mxu0
    %v5139 = vadd.f32 0.0, %v5138
    %5140 = vdwg.mxu0
    %s5141 = scalar_lea.vmem %s16, 16
    %v5142 = vld [vmem:[%s5141] ss:$2 sm:$0xf]
    %v5144 = vlaneseq
    %v5145 = vshrl.u32 %v5144, 7
    %v5146 = vsub.s32 0, %v5145
    %v5147 = vrot.slane %v5142, %v5146
    %v5148 = vlaneseq
    %v5149 = vshrl.u32 %v5148, 7
    %v5150 = vsub.s32 1, %v5149
    %v5151 = vrot.slane %v5142, %v5150
    %v5152 = vlaneseq
    %v5153 = vshrl.u32 %v5152, 7
    %v5154 = vsub.s32 2, %v5153
    %v5155 = vrot.slane %v5142, %v5154
    %v5156 = vlaneseq
    %v5157 = vshrl.u32 %v5156, 7
    %v5158 = vsub.s32 3, %v5157
    %v5159 = vrot.slane %v5142, %v5158
    %v5164 = vmul.f32 %v5090, %v5147
    %v5165 = vmul.f32 %v5092, %v5151
    %v5166 = vmul.f32 %v5133, %v5155
    %v5167 = vmul.f32 %v5135, %v5159
    %v5168 = vmul.f32 %v5094, %v5147
    %v5169 = vmul.f32 %v5096, %v5151
    %v5170 = vmul.f32 %v5137, %v5155
    %v5171 = vmul.f32 %v5139, %v5159
    %s5172 = scalar_lea.vmem %s15, 16
    %v5173 = vld [vmem:[%s5172] ss:$2 sm:$0xf]
    %v5175 = vlaneseq
    %v5176 = vshrl.u32 %v5175, 7
    %v5177 = vsub.s32 0, %v5176
    %v5178 = vrot.slane %v5173, %v5177
    %v5179 = vlaneseq
    %v5180 = vshrl.u32 %v5179, 7
    %v5181 = vsub.s32 1, %v5180
    %v5182 = vrot.slane %v5173, %v5181
    %v5183 = vlaneseq
    %v5184 = vshrl.u32 %v5183, 7
    %v5185 = vsub.s32 2, %v5184
    %v5186 = vrot.slane %v5173, %v5185
    %v5187 = vlaneseq
    %v5188 = vshrl.u32 %v5187, 7
    %v5189 = vsub.s32 3, %v5188
    %v5190 = vrot.slane %v5173, %v5189
    %v5195 = vadd.f32 %v5164, %v5178
    %v5196 = vadd.f32 %v5165, %v5182
    %v5197 = vadd.f32 %v5166, %v5186
    %v5198 = vadd.f32 %v5167, %v5190
    %v5199 = vadd.f32 %v5168, %v5178
    %v5200 = vadd.f32 %v5169, %v5182
    %v5201 = vadd.f32 %v5170, %v5186
    %v5202 = vadd.f32 %v5171, %v5190
    %v5203 = vmax.f32 %v5195, 0.0
    %v5204 = vmax.f32 %v5196, 0.0
    %v5205 = vmax.f32 %v5197, 0.0
    %v5206 = vmax.f32 %v5198, 0.0
    %v5207 = vmax.f32 %v5199, 0.0
    %v5208 = vmax.f32 %v5200, 0.0
    %v5209 = vmax.f32 %v5201, 0.0
    %v5210 = vmax.f32 %v5202, 0.0
    %v5211 = vld [vmem:[#allocation3 + $0x100] sm:$0xff]
    %v5212 = vld [vmem:[#allocation3 + $0x108] sm:$0xff]
    %v5213 = vld [vmem:[#allocation3 + $0x110] sm:$0xff]
    %v5214 = vld [vmem:[#allocation3 + $0x118] sm:$0xff]
    %v5215 = vld [vmem:[#allocation3 + $0x120] sm:$0xff]
    %v5216 = vld [vmem:[#allocation3 + $0x128] sm:$0xff]
    %v5217 = vld [vmem:[#allocation3 + $0x130] sm:$0xff]
    %v5218 = vld [vmem:[#allocation3 + $0x138] sm:$0xff]
    %v5219 = vld [vmem:[#allocation3 + $0x140] sm:$0xff]
    %v5220 = vld [vmem:[#allocation3 + $0x148] sm:$0xff]
    %v5221 = vld [vmem:[#allocation3 + $0x150] sm:$0xff]
    %v5222 = vld [vmem:[#allocation3 + $0x158] sm:$0xff]
    %v5223 = vld [vmem:[#allocation3 + $0x160] sm:$0xff]
    %v5224 = vld [vmem:[#allocation3 + $0x168] sm:$0xff]
    %v5225 = vld [vmem:[#allocation3 + $0x170] sm:$0xff]
    %v5226 = vld [vmem:[#allocation3 + $0x178] sm:$0xff]
    %v5227 = vunpack.c.l.s8.bf16 %v5211
    %v5228 = vunpack.c.h.s8.bf16 %v5211
    %v5229 = vunpack.c.l.s8.bf16 %v5212
    %v5230 = vunpack.c.h.s8.bf16 %v5212
    %v5231 = vunpack.c.l.s8.bf16 %v5213
    %v5232 = vunpack.c.h.s8.bf16 %v5213
    %v5233 = vunpack.c.l.s8.bf16 %v5214
    %v5234 = vunpack.c.h.s8.bf16 %v5214
    %v5235 = vunpack.c.l.s8.bf16 %v5215
    %v5236 = vunpack.c.h.s8.bf16 %v5215
    %v5237 = vunpack.c.l.s8.bf16 %v5216
    %v5238 = vunpack.c.h.s8.bf16 %v5216
    %v5239 = vunpack.c.l.s8.bf16 %v5217
    %v5240 = vunpack.c.h.s8.bf16 %v5217
    %v5241 = vunpack.c.l.s8.bf16 %v5218
    %v5242 = vunpack.c.h.s8.bf16 %v5218
    %v5243 = vunpack.c.l.s8.bf16 %v5219
    %v5244 = vunpack.c.h.s8.bf16 %v5219
    %v5245 = vunpack.c.l.s8.bf16 %v5220
    %v5246 = vunpack.c.h.s8.bf16 %v5220
    %v5247 = vunpack.c.l.s8.bf16 %v5221
    %v5248 = vunpack.c.h.s8.bf16 %v5221
    %v5249 = vunpack.c.l.s8.bf16 %v5222
    %v5250 = vunpack.c.h.s8.bf16 %v5222
    %v5251 = vunpack.c.l.s8.bf16 %v5223
    %v5252 = vunpack.c.h.s8.bf16 %v5223
    %v5253 = vunpack.c.l.s8.bf16 %v5224
    %v5254 = vunpack.c.h.s8.bf16 %v5224
    %v5255 = vunpack.c.l.s8.bf16 %v5225
    %v5256 = vunpack.c.h.s8.bf16 %v5225
    %v5257 = vunpack.c.l.s8.bf16 %v5226
    %v5258 = vunpack.c.h.s8.bf16 %v5226
    %v5259 = vpack.c.bf16 %v5207, %v5203
    %v5260 = vpack.c.bf16 %v5208, %v5204
    %v5261 = vpack.c.bf16 %v5209, %v5205
    %v5262 = vpack.c.bf16 %v5210, %v5206
    %5263 = vmatprep.subr.bf16.mxu0 0
    %5264 = vmatpush1.bf16.msra.mxu0 %v5227
    %5265 = vmatprep.subr.bf16.mxu0 0
    %5266 = vmatpush1.bf16.msra.mxu0 %v5228
    %5267 = vmatprep.subr.bf16.mxu0 0
    %5268 = vmatpush1.bf16.msra.mxu0 %v5229
    %5269 = vmatprep.subr.bf16.mxu0 0
    %5270 = vmatpush1.bf16.msra.mxu0 %v5230
    %5271 = vmatprep.subr.bf16.mxu0 0
    %5272 = vmatpush1.bf16.msra.mxu0 %v5231
    %5273 = vmatprep.subr.bf16.mxu0 0
    %5274 = vmatpush1.bf16.msra.mxu0 %v5232
    %5275 = vmatprep.subr.bf16.mxu0 0
    %5276 = vmatpush1.bf16.msra.mxu0 %v5233
    %5277 = vmatprep.subr.bf16.mxu0 0
    %5278 = vmatpush1.bf16.msra.mxu0 %v5234
    %5279 = vmatprep.subr.bf16.mxu0 0
    %5280 = vmatpush1.bf16.msra.mxu0 %v5235
    %5281 = vmatprep.subr.bf16.mxu0 0
    %5282 = vmatpush1.bf16.msra.mxu0 %v5236
    %5283 = vmatprep.subr.bf16.mxu0 0
    %5284 = vmatpush1.bf16.msra.mxu0 %v5237
    %5285 = vmatprep.subr.bf16.mxu0 0
    %5286 = vmatpush1.bf16.msra.mxu0 %v5238
    %5287 = vmatprep.subr.bf16.mxu0 0
    %5288 = vmatpush1.bf16.msra.mxu0 %v5239
    %5289 = vmatprep.subr.bf16.mxu0 0
    %5290 = vmatpush1.bf16.msra.mxu0 %v5240
    %5291 = vmatprep.subr.bf16.mxu0 0
    %5292 = vmatpush1.bf16.msra.mxu0 %v5241
    %5293 = vmatprep.subr.bf16.mxu0 0
    %5294 = vmatpush1.bf16.msra.mxu0 %v5242
    %5295 = vmatprep.mubr.bf16.mxu0 %v5260
    %5296 = vmatmul.mubr.bf16.gmra.mrb[0].mxu0 %v5259
    %v5297 = vpop.f32.mrb[0].mxu0
    %v5298 = vadd.f32 0.0, %v5297
    %v5299 = vpop.f32.mrb[0].mxu0
    %v5300 = vpop.f32.mrb[0].mxu0
    %v5301 = vadd.f32 0.0, %v5300
    %v5302 = vpop.f32.mrb[0].mxu0
    %5303 = vdwg.mxu0
    %5304 = vmatprep.subr.bf16.mxu0 0
    %5305 = vmatpush1.bf16.msra.mxu0 %v5243
    %5306 = vmatprep.subr.bf16.mxu0 0
    %5307 = vmatpush1.bf16.msra.mxu0 %v5244
    %5308 = vmatprep.subr.bf16.mxu0 0
    %5309 = vmatpush1.bf16.msra.mxu0 %v5245
    %5310 = vmatprep.subr.bf16.mxu0 0
    %5311 = vmatpush1.bf16.msra.mxu0 %v5246
    %5312 = vmatprep.subr.bf16.mxu0 0
    %5313 = vmatpush1.bf16.msra.mxu0 %v5247
    %5314 = vmatprep.subr.bf16.mxu0 0
    %5315 = vmatpush1.bf16.msra.mxu0 %v5248
    %5316 = vmatprep.subr.bf16.mxu0 0
    %5317 = vmatpush1.bf16.msra.mxu0 %v5249
    %5318 = vmatprep.subr.bf16.mxu0 0
    %5319 = vmatpush1.bf16.msra.mxu0 %v5250
    %5320 = vmatprep.subr.bf16.mxu0 0
    %5321 = vmatpush1.bf16.msra.mxu0 %v5251
    %5322 = vmatprep.subr.bf16.mxu0 0
    %5323 = vmatpush1.bf16.msra.mxu0 %v5252
    %5324 = vmatprep.subr.bf16.mxu0 0
    %5325 = vmatpush1.bf16.msra.mxu0 %v5253
    %5326 = vmatprep.subr.bf16.mxu0 0
    %5327 = vmatpush1.bf16.msra.mxu0 %v5254
    %5328 = vmatprep.subr.bf16.mxu0 0
    %5329 = vmatpush1.bf16.msra.mxu0 %v5255
    %5330 = vmatprep.subr.bf16.mxu0 0
    %5331 = vmatpush1.bf16.msra.mxu0 %v5256
    %5332 = vmatprep.subr.bf16.mxu0 0
    %5333 = vmatpush1.bf16.msra.mxu0 %v5257
    %5334 = vmatprep.subr.bf16.mxu0 0
    %5335 = vmatpush1.bf16.msra.mxu0 %v5258
    %5336 = vmatprep.mubr.bf16.mxu0 %v5262
    %5337 = vmatmul.mubr.bf16.gmra.mrb[0].mxu0 %v5261
    %v5338 = vpop.f32.mrb[0].mxu0
    %v5339 = vadd.f32 %v5298, %v5338
    %v5340 = vpop.f32.mrb[0].mxu0
    %v5341 = vpop.f32.mrb[0].mxu0
    %v5342 = vadd.f32 %v5301, %v5341
    %v5343 = vpop.f32.mrb[0].mxu0
    %5344 = vdwg.mxu0
    %v5345 = vadd.f32 %v5037, %v5339
    %v5346 = vadd.f32 %v5040, %v5342
    %v5347 = vld [vmem:[#allocation2 + $0x60] sm:$0xff]
    %v5348 = vld [vmem:[#allocation2 + $0x68] sm:$0xff]
    %v5349 = vld [vmem:[#allocation2 + $0x70] sm:$0xff]
    %v5350 = vld [vmem:[#allocation2 + $0x78] sm:$0xff]
    %v5351 = vunpack.c.l.s8.bf16 %v5347
    %v5352 = vunpack.c.l.s8.bf16 %v5348
    %v5353 = vunpack.c.l.s8.bf16 %v5349
    %v5354 = vunpack.c.l.s8.bf16 %v5350
    %v5355 = vunpack.c.h.s8.bf16 %v5347
    %v5356 = vunpack.c.h.s8.bf16 %v5348
    %v5357 = vunpack.c.h.s8.bf16 %v5349
    %v5358 = vunpack.c.h.s8.bf16 %v5350
    %5359 = vmatprep.subr.bf16.mxu0 %v5352
    %5360 = vmatpush1.bf16.msra.mxu0 %v5351
    %5361 = vmatprep.subr.bf16.mxu0 %v5356
    %5362 = vmatpush1.bf16.msra.mxu0 %v5355
    %5363 = vmatprep.subr.bf16.mxu0 0
    %5364 = vmatpush1.bf16.msra.mxu0 0
    %5365 = vmatprep.subr.bf16.mxu0 0
    %5366 = vmatpush1.bf16.msra.mxu0 0
    %5367 = vmatprep.subr.bf16.mxu0 0
    %5368 = vmatpush1.bf16.msra.mxu0 0
    %5369 = vmatprep.subr.bf16.mxu0 0
    %5370 = vmatpush1.bf16.msra.mxu0 0
    %5371 = vmatprep.subr.bf16.mxu0 0
    %5372 = vmatpush1.bf16.msra.mxu0 0
    %5373 = vmatprep.subr.bf16.mxu0 0
    %5374 = vmatpush1.bf16.msra.mxu0 0
    %5375 = vmatprep.subr.bf16.mxu0 0
    %5376 = vmatpush1.bf16.msra.mxu0 0
    %5377 = vmatprep.subr.bf16.mxu0 0
    %5378 = vmatpush1.bf16.msra.mxu0 0
    %5379 = vmatprep.subr.bf16.mxu0 0
    %5380 = vmatpush1.bf16.msra.mxu0 0
    %5381 = vmatprep.subr.bf16.mxu0 0
    %5382 = vmatpush1.bf16.msra.mxu0 0
    %5383 = vmatprep.subr.bf16.mxu0 0
    %5384 = vmatpush1.bf16.msra.mxu0 0
    %5385 = vmatprep.subr.bf16.mxu0 0
    %5386 = vmatpush1.bf16.msra.mxu0 0
    %5387 = vmatprep.subr.bf16.mxu0 0
    %5388 = vmatpush1.bf16.msra.mxu0 0
    %5389 = vmatprep.subr.bf16.mxu0 0
    %5390 = vmatpush1.bf16.msra.mxu0 0
    %5391 = vmatprep.mubr.bf16.mxu0 0
    %5392 = vmatmul.mubr.bf16.gmra.mrb[0].mxu0 %v4451
    %v5393 = vpop.f32.mrb[0].mxu0
    %v5394 = vadd.f32 0.0, %v5393
    %v5395 = vpop.f32.mrb[0].mxu0
    %v5396 = vadd.f32 0.0, %v5395
    %v5397 = vpop.f32.mrb[0].mxu0
    %v5398 = vadd.f32 0.0, %v5397
    %v5399 = vpop.f32.mrb[0].mxu0
    %v5400 = vadd.f32 0.0, %v5399
    %5401 = vdwg.mxu0
    %5402 = vmatprep.subr.bf16.mxu0 %v5354
    %5403 = vmatpush1.bf16.msra.mxu0 %v5353
    %5404 = vmatprep.subr.bf16.mxu0 %v5358
    %5405 = vmatpush1.bf16.msra.mxu0 %v5357
    %5406 = vmatprep.subr.bf16.mxu0 0
    %5407 = vmatpush1.bf16.msra.mxu0 0
    %5408 = vmatprep.subr.bf16.mxu0 0
    %5409 = vmatpush1.bf16.msra.mxu0 0
    %5410 = vmatprep.subr.bf16.mxu0 0
    %5411 = vmatpush1.bf16.msra.mxu0 0
    %5412 = vmatprep.subr.bf16.mxu0 0
    %5413 = vmatpush1.bf16.msra.mxu0 0
    %5414 = vmatprep.subr.bf16.mxu0 0
    %5415 = vmatpush1.bf16.msra.mxu0 0
    %5416 = vmatprep.subr.bf16.mxu0 0
    %5417 = vmatpush1.bf16.msra.mxu0 0
    %5418 = vmatprep.subr.bf16.mxu0 0
    %5419 = vmatpush1.bf16.msra.mxu0 0
    %5420 = vmatprep.subr.bf16.mxu0 0
    %5421 = vmatpush1.bf16.msra.mxu0 0
    %5422 = vmatprep.subr.bf16.mxu0 0
    %5423 = vmatpush1.bf16.msra.mxu0 0
    %5424 = vmatprep.subr.bf16.mxu0 0
    %5425 = vmatpush1.bf16.msra.mxu0 0
    %5426 = vmatprep.subr.bf16.mxu0 0
    %5427 = vmatpush1.bf16.msra.mxu0 0
    %5428 = vmatprep.subr.bf16.mxu0 0
    %5429 = vmatpush1.bf16.msra.mxu0 0
    %5430 = vmatprep.subr.bf16.mxu0 0
    %5431 = vmatpush1.bf16.msra.mxu0 0
    %5432 = vmatprep.subr.bf16.mxu0 0
    %5433 = vmatpush1.bf16.msra.mxu0 0
    %5434 = vmatprep.mubr.bf16.mxu0 0
    %5435 = vmatmul.mubr.bf16.gmra.mrb[0].mxu0 %v4451
    %v5436 = vpop.f32.mrb[0].mxu0
    %v5437 = vadd.f32 0.0, %v5436
    %v5438 = vpop.f32.mrb[0].mxu0
    %v5439 = vadd.f32 0.0, %v5438
    %v5440 = vpop.f32.mrb[0].mxu0
    %v5441 = vadd.f32 0.0, %v5440
    %v5442 = vpop.f32.mrb[0].mxu0
    %v5443 = vadd.f32 0.0, %v5442
    %5444 = vdwg.mxu0
    %s5445 = scalar_lea.vmem %s16, 24
    %v5446 = vld [vmem:[%s5445] ss:$2 sm:$0xf]
    %v5448 = vlaneseq
    %v5449 = vshrl.u32 %v5448, 7
    %v5450 = vsub.s32 0, %v5449
    %v5451 = vrot.slane %v5446, %v5450
    %v5452 = vlaneseq
    %v5453 = vshrl.u32 %v5452, 7
    %v5454 = vsub.s32 1, %v5453
    %v5455 = vrot.slane %v5446, %v5454
    %v5456 = vlaneseq
    %v5457 = vshrl.u32 %v5456, 7
    %v5458 = vsub.s32 2, %v5457
    %v5459 = vrot.slane %v5446, %v5458
    %v5460 = vlaneseq
    %v5461 = vshrl.u32 %v5460, 7
    %v5462 = vsub.s32 3, %v5461
    %v5463 = vrot.slane %v5446, %v5462
    %v5468 = vmul.f32 %v5394, %v5451
    %v5469 = vmul.f32 %v5396, %v5455
    %v5470 = vmul.f32 %v5437, %v5459
    %v5471 = vmul.f32 %v5439, %v5463
    %v5472 = vmul.f32 %v5398, %v5451
    %v5473 = vmul.f32 %v5400, %v5455
    %v5474 = vmul.f32 %v5441, %v5459
    %v5475 = vmul.f32 %v5443, %v5463
    %s5476 = scalar_lea.vmem %s15, 24
    %v5477 = vld [vmem:[%s5476] ss:$2 sm:$0xf]
    %v5479 = vlaneseq
    %v5480 = vshrl.u32 %v5479, 7
    %v5481 = vsub.s32 0, %v5480
    %v5482 = vrot.slane %v5477, %v5481
    %v5483 = vlaneseq
    %v5484 = vshrl.u32 %v5483, 7
    %v5485 = vsub.s32 1, %v5484
    %v5486 = vrot.slane %v5477, %v5485
    %v5487 = vlaneseq
    %v5488 = vshrl.u32 %v5487, 7
    %v5489 = vsub.s32 2, %v5488
    %v5490 = vrot.slane %v5477, %v5489
    %v5491 = vlaneseq
    %v5492 = vshrl.u32 %v5491, 7
    %v5493 = vsub.s32 3, %v5492
    %v5494 = vrot.slane %v5477, %v5493
    %v5499 = vadd.f32 %v5468, %v5482
    %v5500 = vadd.f32 %v5469, %v5486
    %v5501 = vadd.f32 %v5470, %v5490
    %v5502 = vadd.f32 %v5471, %v5494
    %v5503 = vadd.f32 %v5472, %v5482
    %v5504 = vadd.f32 %v5473, %v5486
    %v5505 = vadd.f32 %v5474, %v5490
    %v5506 = vadd.f32 %v5475, %v5494
    %v5507 = vmax.f32 %v5499, 0.0
    %v5508 = vmax.f32 %v5500, 0.0
    %v5509 = vmax.f32 %v5501, 0.0
    %v5510 = vmax.f32 %v5502, 0.0
    %v5511 = vmax.f32 %v5503, 0.0
    %v5512 = vmax.f32 %v5504, 0.0
    %v5513 = vmax.f32 %v5505, 0.0
    %v5514 = vmax.f32 %v5506, 0.0
    %v5515 = vld [vmem:[#allocation3 + $0x180] sm:$0xff]
    %v5516 = vld [vmem:[#allocation3 + $0x188] sm:$0xff]
    %v5517 = vld [vmem:[#allocation3 + $0x190] sm:$0xff]
    %v5518 = vld [vmem:[#allocation3 + $0x198] sm:$0xff]
    %v5519 = vld [vmem:[#allocation3 + $0x1a0] sm:$0xff]
    %v5520 = vld [vmem:[#allocation3 + $0x1a8] sm:$0xff]
    %v5521 = vld [vmem:[#allocation3 + $0x1b0] sm:$0xff]
    %v5522 = vld [vmem:[#allocation3 + $0x1b8] sm:$0xff]
    %v5523 = vld [vmem:[#allocation3 + $0x1c0] sm:$0xff]
    %v5524 = vld [vmem:[#allocation3 + $0x1c8] sm:$0xff]
    %v5525 = vld [vmem:[#allocation3 + $0x1d0] sm:$0xff]
    %v5526 = vld [vmem:[#allocation3 + $0x1d8] sm:$0xff]
    %v5527 = vld [vmem:[#allocation3 + $0x1e0] sm:$0xff]
    %v5528 = vld [vmem:[#allocation3 + $0x1e8] sm:$0xff]
    %v5529 = vld [vmem:[#allocation3 + $0x1f0] sm:$0xff]
    %v5530 = vld [vmem:[#allocation3 + $0x1f8] sm:$0xff]
    %v5531 = vunpack.c.l.s8.bf16 %v5515
    %v5532 = vunpack.c.h.s8.bf16 %v5515
    %v5533 = vunpack.c.l.s8.bf16 %v5516
    %v5534 = vunpack.c.h.s8.bf16 %v5516
    %v5535 = vunpack.c.l.s8.bf16 %v5517
    %v5536 = vunpack.c.h.s8.bf16 %v5517
    %v5537 = vunpack.c.l.s8.bf16 %v5518
    %v5538 = vunpack.c.h.s8.bf16 %v5518
    %v5539 = vunpack.c.l.s8.bf16 %v5519
    %v5540 = vunpack.c.h.s8.bf16 %v5519
    %v5541 = vunpack.c.l.s8.bf16 %v5520
    %v5542 = vunpack.c.h.s8.bf16 %v5520
    %v5543 = vunpack.c.l.s8.bf16 %v5521
    %v5544 = vunpack.c.h.s8.bf16 %v5521
    %v5545 = vunpack.c.l.s8.bf16 %v5522
    %v5546 = vunpack.c.h.s8.bf16 %v5522
    %v5547 = vunpack.c.l.s8.bf16 %v5523
    %v5548 = vunpack.c.h.s8.bf16 %v5523
    %v5549 = vunpack.c.l.s8.bf16 %v5524
    %v5550 = vunpack.c.h.s8.bf16 %v5524
    %v5551 = vunpack.c.l.s8.bf16 %v5525
    %v5552 = vunpack.c.h.s8.bf16 %v5525
    %v5553 = vunpack.c.l.s8.bf16 %v5526
    %v5554 = vunpack.c.h.s8.bf16 %v5526
    %v5555 = vunpack.c.l.s8.bf16 %v5527
    %v5556 = vunpack.c.h.s8.bf16 %v5527
    %v5557 = vunpack.c.l.s8.bf16 %v5528
    %v5558 = vunpack.c.h.s8.bf16 %v5528
    %v5559 = vunpack.c.l.s8.bf16 %v5529
    %v5560 = vunpack.c.h.s8.bf16 %v5529
    %v5561 = vunpack.c.l.s8.bf16 %v5530
    %v5562 = vunpack.c.h.s8.bf16 %v5530
    %v5563 = vpack.c.bf16 %v5511, %v5507
    %v5564 = vpack.c.bf16 %v5512, %v5508
    %v5565 = vpack.c.bf16 %v5513, %v5509
    %v5566 = vpack.c.bf16 %v5514, %v5510
    %5567 = vmatprep.subr.bf16.mxu0 0
    %5568 = vmatpush1.bf16.msra.mxu0 %v5531
    %5569 = vmatprep.subr.bf16.mxu0 0
    %5570 = vmatpush1.bf16.msra.mxu0 %v5532
    %5571 = vmatprep.subr.bf16.mxu0 0
    %5572 = vmatpush1.bf16.msra.mxu0 %v5533
    %5573 = vmatprep.subr.bf16.mxu0 0
    %5574 = vmatpush1.bf16.msra.mxu0 %v5534
    %5575 = vmatprep.subr.bf16.mxu0 0
    %5576 = vmatpush1.bf16.msra.mxu0 %v5535
    %5577 = vmatprep.subr.bf16.mxu0 0
    %5578 = vmatpush1.bf16.msra.mxu0 %v5536
    %5579 = vmatprep.subr.bf16.mxu0 0
    %5580 = vmatpush1.bf16.msra.mxu0 %v5537
    %5581 = vmatprep.subr.bf16.mxu0 0
    %5582 = vmatpush1.bf16.msra.mxu0 %v5538
    %5583 = vmatprep.subr.bf16.mxu0 0
    %5584 = vmatpush1.bf16.msra.mxu0 %v5539
    %5585 = vmatprep.subr.bf16.mxu0 0
    %5586 = vmatpush1.bf16.msra.mxu0 %v5540
    %5587 = vmatprep.subr.bf16.mxu0 0
    %5588 = vmatpush1.bf16.msra.mxu0 %v5541
    %5589 = vmatprep.subr.bf16.mxu0 0
    %5590 = vmatpush1.bf16.msra.mxu0 %v5542
    %5591 = vmatprep.subr.bf16.mxu0 0
    %5592 = vmatpush1.bf16.msra.mxu0 %v5543
    %5593 = vmatprep.subr.bf16.mxu0 0
    %5594 = vmatpush1.bf16.msra.mxu0 %v5544
    %5595 = vmatprep.subr.bf16.mxu0 0
    %5596 = vmatpush1.bf16.msra.mxu0 %v5545
    %5597 = vmatprep.subr.bf16.mxu0 0
    %5598 = vmatpush1.bf16.msra.mxu0 %v5546
    %5599 = vmatprep.mubr.bf16.mxu0 %v5564
    %5600 = vmatmul.mubr.bf16.gmra.mrb[0].mxu0 %v5563
    %v5601 = vpop.f32.mrb[0].mxu0
    %v5602 = vadd.f32 0.0, %v5601
    %v5603 = vpop.f32.mrb[0].mxu0
    %v5604 = vpop.f32.mrb[0].mxu0
    %v5605 = vadd.f32 0.0, %v5604
    %v5606 = vpop.f32.mrb[0].mxu0
    %5607 = vdwg.mxu0
    %5608 = vmatprep.subr.bf16.mxu0 0
    %5609 = vmatpush1.bf16.msra.mxu0 %v5547
    %5610 = vmatprep.subr.bf16.mxu0 0
    %5611 = vmatpush1.bf16.msra.mxu0 %v5548
    %5612 = vmatprep.subr.bf16.mxu0 0
    %5613 = vmatpush1.bf16.msra.mxu0 %v5549
    %5614 = vmatprep.subr.bf16.mxu0 0
    %5615 = vmatpush1.bf16.msra.mxu0 %v5550
    %5616 = vmatprep.subr.bf16.mxu0 0
    %5617 = vmatpush1.bf16.msra.mxu0 %v5551
    %5618 = vmatprep.subr.bf16.mxu0 0
    %5619 = vmatpush1.bf16.msra.mxu0 %v5552
    %5620 = vmatprep.subr.bf16.mxu0 0
    %5621 = vmatpush1.bf16.msra.mxu0 %v5553
    %5622 = vmatprep.subr.bf16.mxu0 0
    %5623 = vmatpush1.bf16.msra.mxu0 %v5554
    %5624 = vmatprep.subr.bf16.mxu0 0
    %5625 = vmatpush1.bf16.msra.mxu0 %v5555
    %5626 = vmatprep.subr.bf16.mxu0 0
    %5627 = vmatpush1.bf16.msra.mxu0 %v5556
    %5628 = vmatprep.subr.bf16.mxu0 0
    %5629 = vmatpush1.bf16.msra.mxu0 %v5557
    %5630 = vmatprep.subr.bf16.mxu0 0
    %5631 = vmatpush1.bf16.msra.mxu0 %v5558
    %5632 = vmatprep.subr.bf16.mxu0 0
    %5633 = vmatpush1.bf16.msra.mxu0 %v5559
    %5634 = vmatprep.subr.bf16.mxu0 0
    %5635 = vmatpush1.bf16.msra.mxu0 %v5560
    %5636 = vmatprep.subr.bf16.mxu0 0
    %5637 = vmatpush1.bf16.msra.mxu0 %v5561
    %5638 = vmatprep.subr.bf16.mxu0 0
    %5639 = vmatpush1.bf16.msra.mxu0 %v5562
    %5640 = vmatprep.mubr.bf16.mxu0 %v5566
    %5641 = vmatmul.mubr.bf16.gmra.mrb[0].mxu0 %v5565
    %v5642 = vpop.f32.mrb[0].mxu0
    %v5643 = vadd.f32 %v5602, %v5642
    %v5644 = vpop.f32.mrb[0].mxu0
    %v5645 = vpop.f32.mrb[0].mxu0
    %v5646 = vadd.f32 %v5605, %v5645
    %v5647 = vpop.f32.mrb[0].mxu0
    %5648 = vdwg.mxu0
    %v5649 = vadd.f32 %v5345, %v5643
    %v5650 = vadd.f32 %v5346, %v5646
    %v5651 = vld [vmem:[%s17] sm:$0x1]
    %v5652 = vlaneseq
    %v5653 = vshrl.u32 %v5652, 7
    %v5654 = vsub.s32 0, %v5653
    %v5655 = vrot.slane %v5651, %v5654
    %v5656 = vmul.f32 %v5649, %v5655
    %v5657 = vmul.f32 %v5650, %v5655
    %v5658 = vlaneseq
    %v5659 = vshrl.u32 %v5658, 7
    %v5660 = vsub.s32 0, %v5659
    %v5661 = vrot.slane %v4388, %v5660
    %v5662 = vadd.f32 %v5656, %v5661
    %v5663 = vadd.f32 %v5657, %v5661
    %v5664 = vadd.f32 %v4435, %v5662
    %v5665 = vadd.f32 %v4436, %v5663
    %v5666 = vsel %vm479, %v5664, 0.0
    %5667 = vadd.xlane.f32.xlu0 %v5666
    %v5668 = vpop.xlane.xlu0 %5667
    %v5669 = vsel %vm479, %v5665, 0.0
    %5670 = vadd.xlane.f32.xlu0 %v5669
    %v5671 = vpop.xlane.xlu0 %5670
    %v5672 = vmul.f32 %v5668, %v492
    %v5673 = vmul.f32 %v5671, %v492
    %v5674 = vsub.f32 %v5664, %v5672
    %v5675 = vsub.f32 %v5665, %v5673
    %v5676 = vmul.f32 %v5674, %v5674
    %v5677 = vmul.f32 %v5675, %v5675
    %v5678 = vsel %vm479, %v5676, 0.0
    %5679 = vadd.xlane.f32.xlu0 %v5678
    %v5680 = vpop.xlane.xlu0 %5679
    %v5681 = vsel %vm479, %v5677, 0.0
    %5682 = vadd.xlane.f32.xlu0 %v5681
    %v5683 = vpop.xlane.xlu0 %5682
    %v5684 = vmul.f32 %v5680, %v492
    %v5685 = vmul.f32 %v5683, %v492
    %v5686 = vadd.f32 %v5684, 1e-05
    %v5687 = vadd.f32 %v5685, 1e-05
    %v5688 = vrsqrt.pop %v5686
    %v5689 = vrsqrt.pop %v5687
    %v5690 = vmul.f32 %v5674, %v5688
    %v5691 = vmul.f32 %v5675, %v5689
    %v5692 = vlaneseq
    %v5693 = vshrl.u32 %v5692, 7
    %v5694 = vsub.s32 0, %v5693
    %v5695 = vrot.slane %v4389, %v5694
    %v5696 = vmul.f32 %v5690, %v5695
    %v5697 = vmul.f32 %v5691, %v5695
    %v5698 = vlaneseq
    %v5699 = vshrl.u32 %v5698, 7
    %v5700 = vsub.s32 0, %v5699
    %v5701 = vrot.slane %v4390, %v5700
    %v5702 = vadd.f32 %v5696, %v5701
    %v5703 = vadd.f32 %v5697, %v5701
    %v5706 = vrot.slane %v5703, 7
    %vm5709 = vcmask 261127
    %5710 = vst.msk [vmem:[%s23 - $0x7] sm:$0x80] %vm5709, %v5702
    %vm5711 = vcmask 253952
    %5712 = vst.msk [vmem:[%s23 + $0x1] sm:$0x1] %vm5711, %v5706
    %s5713 = scalar_lea.vmem %s10, 16
    %v5714 = vld [vmem:[%s5713] sm:$0xff]
    %v5715 = vld [vmem:[%s5713 + $0x8] sm:$0xff]
    %v5716 = vpack.c.bf16 %v5715, %v5714
    %s5717 = scalar_lea.vmem %s11, 96
    %v5718 = vld [vmem:[%s5717] sm:$0xf]
    %v5719 = vld [vmem:[%s5717 + $0x4] sm:$0xf]
    %v5720 = vld [vmem:[%s5717 + $0x8] sm:$0xf]
    %v5721 = vld [vmem:[%s5717 + $0xc] sm:$0xf]
    %s5722 = scalar_lea.vmem %s12, 8
    %v5723 = vld [vmem:[%s5722] sm:$0x1]
    %v5724 = vlaneseq
    %v5725 = vshrl.u32 %v5724, 7
    %v5726 = vsub.s32 0, %v5725
    %v5727 = vrot.slane %v5723, %v5726
    %v5732 = vunpack.c.l.b16 %v5718
    %v5733 = vunpack.c.l.b16 %v5719
    %v5734 = vunpack.c.l.b16 %v5720
    %v5735 = vunpack.c.l.b16 %v5721
    %v5736 = vpack.c.b16 %v5733, %v5732
    %v5737 = vpack.c.b16 %v5735, %v5734
    %v5741 = vsel %vm479, %v5716, 0
    %5743 = vmatprep.subr.bf16.mxu0 0
    %5744 = vmatpush1.bf16.msra.mxu0 %v5736
    %5745 = vmatprep.subr.bf16.mxu0 0
    %5746 = vmatpush1.bf16.msra.mxu0 %v5737
    %5747 = vmatprep.subr.bf16.mxu0 0
    %5748 = vmatpush1.bf16.msra.mxu0 0
    %5749 = vmatprep.subr.bf16.mxu0 0
    %5750 = vmatpush1.bf16.msra.mxu0 0
    %5751 = vmatprep.subr.bf16.mxu0 0
    %5752 = vmatpush1.bf16.msra.mxu0 0
    %5753 = vmatprep.subr.bf16.mxu0 0
    %5754 = vmatpush1.bf16.msra.mxu0 0
    %5755 = vmatprep.subr.bf16.mxu0 0
    %5756 = vmatpush1.bf16.msra.mxu0 0
    %5757 = vmatprep.subr.bf16.mxu0 0
    %5758 = vmatpush1.bf16.msra.mxu0 0
    %5759 = vmatprep.subr.bf16.mxu0 0
    %5760 = vmatpush1.bf16.msra.mxu0 0
    %5761 = vmatprep.subr.bf16.mxu0 0
    %5762 = vmatpush1.bf16.msra.mxu0 0
    %5763 = vmatprep.subr.bf16.mxu0 0
    %5764 = vmatpush1.bf16.msra.mxu0 0
    %5765 = vmatprep.subr.bf16.mxu0 0
    %5766 = vmatpush1.bf16.msra.mxu0 0
    %5767 = vmatprep.subr.bf16.mxu0 0
    %5768 = vmatpush1.bf16.msra.mxu0 0
    %5769 = vmatprep.subr.bf16.mxu0 0
    %5770 = vmatpush1.bf16.msra.mxu0 0
    %5771 = vmatprep.subr.bf16.mxu0 0
    %5772 = vmatpush1.bf16.msra.mxu0 0
    %5773 = vmatprep.subr.bf16.mxu0 0
    %5774 = vmatpush1.bf16.msra.mxu0 0
    %5775 = vmatprep.mubr.bf16.mxu0 0
    %5776 = vmatmul.mubr.bf16.gmra.mrb[0].mxu0 %v5741
    %v5777 = vpop.f32.mrb[0].mxu0
    %v5778 = vadd.f32 %v5727, %v5777
    %v5779 = vpop.f32.mrb[0].mxu0
    %v5780 = vpop.f32.mrb[0].mxu0
    %v5781 = vadd.f32 %v5727, %v5780
    %v5782 = vpop.f32.mrb[0].mxu0
    %5783 = vdwg.mxu0
    %s5784 = scalar_lea.vmem %s11, 128
    %v5785 = vld [vmem:[%s5784] sm:$0xf]
    %v5786 = vld [vmem:[%s5784 + $0x4] sm:$0xf]
    %v5787 = vld [vmem:[%s5784 + $0x8] sm:$0xf]
    %v5788 = vld [vmem:[%s5784 + $0xc] sm:$0xf]
    %v5789 = vld [vmem:[%s5722 + $0x2] sm:$0x1]
    %v5790 = vlaneseq
    %v5791 = vshrl.u32 %v5790, 7
    %v5792 = vsub.s32 0, %v5791
    %v5793 = vrot.slane %v5789, %v5792
    %v5798 = vunpack.c.l.b16 %v5785
    %v5799 = vunpack.c.l.b16 %v5786
    %v5800 = vunpack.c.l.b16 %v5787
    %v5801 = vunpack.c.l.b16 %v5788
    %v5802 = vpack.c.b16 %v5799, %v5798
    %v5803 = vpack.c.b16 %v5801, %v5800
    %5806 = vmatprep.subr.bf16.mxu0 0
    %5807 = vmatpush1.bf16.msra.mxu0 %v5802
    %5808 = vmatprep.subr.bf16.mxu0 0
    %5809 = vmatpush1.bf16.msra.mxu0 %v5803
    %5810 = vmatprep.subr.bf16.mxu0 0
    %5811 = vmatpush1.bf16.msra.mxu0 0
    %5812 = vmatprep.subr.bf16.mxu0 0
    %5813 = vmatpush1.bf16.msra.mxu0 0
    %5814 = vmatprep.subr.bf16.mxu0 0
    %5815 = vmatpush1.bf16.msra.mxu0 0
    %5816 = vmatprep.subr.bf16.mxu0 0
    %5817 = vmatpush1.bf16.msra.mxu0 0
    %5818 = vmatprep.subr.bf16.mxu0 0
    %5819 = vmatpush1.bf16.msra.mxu0 0
    %5820 = vmatprep.subr.bf16.mxu0 0
    %5821 = vmatpush1.bf16.msra.mxu0 0
    %5822 = vmatprep.subr.bf16.mxu0 0
    %5823 = vmatpush1.bf16.msra.mxu0 0
    %5824 = vmatprep.subr.bf16.mxu0 0
    %5825 = vmatpush1.bf16.msra.mxu0 0
    %5826 = vmatprep.subr.bf16.mxu0 0
    %5827 = vmatpush1.bf16.msra.mxu0 0
    %5828 = vmatprep.subr.bf16.mxu0 0
    %5829 = vmatpush1.bf16.msra.mxu0 0
    %5830 = vmatprep.subr.bf16.mxu0 0
    %5831 = vmatpush1.bf16.msra.mxu0 0
    %5832 = vmatprep.subr.bf16.mxu0 0
    %5833 = vmatpush1.bf16.msra.mxu0 0
    %5834 = vmatprep.subr.bf16.mxu0 0
    %5835 = vmatpush1.bf16.msra.mxu0 0
    %5836 = vmatprep.subr.bf16.mxu0 0
    %5837 = vmatpush1.bf16.msra.mxu0 0
    %5838 = vmatprep.mubr.bf16.mxu0 0
    %5839 = vmatmul.mubr.bf16.gmra.mrb[0].mxu0 %v5741
    %v5840 = vpop.f32.mrb[0].mxu0
    %v5841 = vadd.f32 %v5793, %v5840
    %v5842 = vpop.f32.mrb[0].mxu0
    %v5843 = vpop.f32.mrb[0].mxu0
    %v5844 = vadd.f32 %v5793, %v5843
    %v5845 = vpop.f32.mrb[0].mxu0
    %5846 = vdwg.mxu0
    %s5847 = scalar_lea.vmem %s11, 160
    %v5848 = vld [vmem:[%s5847] sm:$0xf]
    %v5849 = vld [vmem:[%s5847 + $0x4] sm:$0xf]
    %v5850 = vld [vmem:[%s5847 + $0x8] sm:$0xf]
    %v5851 = vld [vmem:[%s5847 + $0xc] sm:$0xf]
    %v5852 = vld [vmem:[%s5722 + $0x4] sm:$0x1]
    %v5853 = vlaneseq
    %v5854 = vshrl.u32 %v5853, 7
    %v5855 = vsub.s32 0, %v5854
    %v5856 = vrot.slane %v5852, %v5855
    %v5861 = vunpack.c.l.b16 %v5848
    %v5862 = vunpack.c.l.b16 %v5849
    %v5863 = vunpack.c.l.b16 %v5850
    %v5864 = vunpack.c.l.b16 %v5851
    %v5865 = vpack.c.b16 %v5862, %v5861
    %v5866 = vpack.c.b16 %v5864, %v5863
    %5869 = vmatprep.subr.bf16.mxu0 0
    %5870 = vmatpush1.bf16.msra.mxu0 %v5865
    %5871 = vmatprep.subr.bf16.mxu0 0
    %5872 = vmatpush1.bf16.msra.mxu0 %v5866
    %5873 = vmatprep.subr.bf16.mxu0 0
    %5874 = vmatpush1.bf16.msra.mxu0 0
    %5875 = vmatprep.subr.bf16.mxu0 0
    %5876 = vmatpush1.bf16.msra.mxu0 0
    %5877 = vmatprep.subr.bf16.mxu0 0
    %5878 = vmatpush1.bf16.msra.mxu0 0
    %5879 = vmatprep.subr.bf16.mxu0 0
    %5880 = vmatpush1.bf16.msra.mxu0 0
    %5881 = vmatprep.subr.bf16.mxu0 0
    %5882 = vmatpush1.bf16.msra.mxu0 0
    %5883 = vmatprep.subr.bf16.mxu0 0
    %5884 = vmatpush1.bf16.msra.mxu0 0
    %5885 = vmatprep.subr.bf16.mxu0 0
    %5886 = vmatpush1.bf16.msra.mxu0 0
    %5887 = vmatprep.subr.bf16.mxu0 0
    %5888 = vmatpush1.bf16.msra.mxu0 0
    %5889 = vmatprep.subr.bf16.mxu0 0
    %5890 = vmatpush1.bf16.msra.mxu0 0
    %5891 = vmatprep.subr.bf16.mxu0 0
    %5892 = vmatpush1.bf16.msra.mxu0 0
    %5893 = vmatprep.subr.bf16.mxu0 0
    %5894 = vmatpush1.bf16.msra.mxu0 0
    %5895 = vmatprep.subr.bf16.mxu0 0
    %5896 = vmatpush1.bf16.msra.mxu0 0
    %5897 = vmatprep.subr.bf16.mxu0 0
    %5898 = vmatpush1.bf16.msra.mxu0 0
    %5899 = vmatprep.subr.bf16.mxu0 0
    %5900 = vmatpush1.bf16.msra.mxu0 0
    %5901 = vmatprep.mubr.bf16.mxu0 0
    %5902 = vmatmul.mubr.bf16.gmra.mrb[0].mxu0 %v5741
    %v5903 = vpop.f32.mrb[0].mxu0
    %v5904 = vadd.f32 %v5856, %v5903
    %v5905 = vpop.f32.mrb[0].mxu0
    %v5906 = vpop.f32.mrb[0].mxu0
    %v5907 = vadd.f32 %v5856, %v5906
    %v5908 = vpop.f32.mrb[0].mxu0
    %5909 = vdwg.mxu0
    %v5910 = vpack.c.bf16 %v5778, %v5778
    %v5911 = vpack.c.bf16 %v5781, %v5781
    %v5912 = vpack.c.bf16 %v5841, %v5841
    %v5913 = vpack.c.bf16 %v5844, %v5844
    %v5914 = vpack.c.bf16 %v5904, %v5904
    %v5915 = vpack.c.bf16 %v5907, %v5907
    %v5917 = vsel %vm777, %v5910, 0
    %v5920 = vsel %vm777, %v5912, 0
    %5922 = vmatprep.subr.bf16.mxu0 0
    %5923 = vmatpush1.bf16.xpose.msra.mxu0 %v5920
    %5924 = vmatprep.subr.bf16.mxu0 0
    %5925 = vmatpush1.bf16.xpose.msra.mxu0 0
    %5926 = vmatprep.subr.bf16.mxu0 0
    %5927 = vmatpush1.bf16.xpose.msra.mxu0 0
    %5928 = vmatprep.subr.bf16.mxu0 0
    %5929 = vmatpush1.bf16.xpose.msra.mxu0 0
    %5930 = vmatprep.subr.bf16.mxu0 0
    %5931 = vmatpush1.bf16.xpose.msra.mxu0 0
    %5932 = vmatprep.subr.bf16.mxu0 0
    %5933 = vmatpush1.bf16.xpose.msra.mxu0 0
    %5934 = vmatprep.subr.bf16.mxu0 0
    %5935 = vmatpush1.bf16.xpose.msra.mxu0 0
    %5936 = vmatprep.subr.bf16.mxu0 0
    %5937 = vmatpush1.bf16.xpose.msra.mxu0 0
    %5938 = vmatprep.subr.bf16.mxu0 0
    %5939 = vmatpush1.bf16.xpose.msra.mxu0 0
    %5940 = vmatprep.subr.bf16.mxu0 0
    %5941 = vmatpush1.bf16.xpose.msra.mxu0 0
    %5942 = vmatprep.subr.bf16.mxu0 0
    %5943 = vmatpush1.bf16.xpose.msra.mxu0 0
    %5944 = vmatprep.subr.bf16.mxu0 0
    %5945 = vmatpush1.bf16.xpose.msra.mxu0 0
    %5946 = vmatprep.subr.bf16.mxu0 0
    %5947 = vmatpush1.bf16.xpose.msra.mxu0 0
    %5948 = vmatprep.subr.bf16.mxu0 0
    %5949 = vmatpush1.bf16.xpose.msra.mxu0 0
    %5950 = vmatprep.subr.bf16.mxu0 0
    %5951 = vmatpush1.bf16.xpose.msra.mxu0 0
    %5952 = vmatprep.subr.bf16.mxu0 0
    %5953 = vmatpush1.bf16.xpose.msra.mxu0 0
    %5954 = vmatprep.mubr.bf16.mxu0 0
    %5955 = vmatmul.mubr.bf16.gmra.mrb[0].mxu0 %v5917
    %v5956 = vpop.f32.mrb[0].mxu0
    %v5957 = vadd.f32 0.0, %v5956
    %v5958 = vpop.f32.mrb[0].mxu0
    %v5959 = vpop.f32.mrb[0].mxu0
    %v5960 = vpop.f32.mrb[0].mxu0
    %5961 = vdwg.mxu0
    %v5963 = vsel %vm777, %v5911, 0
    %v5966 = vsel %vm777, %v5913, 0
    %5968 = vmatprep.subr.bf16.mxu0 0
    %5969 = vmatpush1.bf16.xpose.msra.mxu0 %v5966
    %5970 = vmatprep.subr.bf16.mxu0 0
    %5971 = vmatpush1.bf16.xpose.msra.mxu0 0
    %5972 = vmatprep.subr.bf16.mxu0 0
    %5973 = vmatpush1.bf16.xpose.msra.mxu0 0
    %5974 = vmatprep.subr.bf16.mxu0 0
    %5975 = vmatpush1.bf16.xpose.msra.mxu0 0
    %5976 = vmatprep.subr.bf16.mxu0 0
    %5977 = vmatpush1.bf16.xpose.msra.mxu0 0
    %5978 = vmatprep.subr.bf16.mxu0 0
    %5979 = vmatpush1.bf16.xpose.msra.mxu0 0
    %5980 = vmatprep.subr.bf16.mxu0 0
    %5981 = vmatpush1.bf16.xpose.msra.mxu0 0
    %5982 = vmatprep.subr.bf16.mxu0 0
    %5983 = vmatpush1.bf16.xpose.msra.mxu0 0
    %5984 = vmatprep.subr.bf16.mxu0 0
    %5985 = vmatpush1.bf16.xpose.msra.mxu0 0
    %5986 = vmatprep.subr.bf16.mxu0 0
    %5987 = vmatpush1.bf16.xpose.msra.mxu0 0
    %5988 = vmatprep.subr.bf16.mxu0 0
    %5989 = vmatpush1.bf16.xpose.msra.mxu0 0
    %5990 = vmatprep.subr.bf16.mxu0 0
    %5991 = vmatpush1.bf16.xpose.msra.mxu0 0
    %5992 = vmatprep.subr.bf16.mxu0 0
    %5993 = vmatpush1.bf16.xpose.msra.mxu0 0
    %5994 = vmatprep.subr.bf16.mxu0 0
    %5995 = vmatpush1.bf16.xpose.msra.mxu0 0
    %5996 = vmatprep.subr.bf16.mxu0 0
    %5997 = vmatpush1.bf16.xpose.msra.mxu0 0
    %5998 = vmatprep.subr.bf16.mxu0 0
    %5999 = vmatpush1.bf16.xpose.msra.mxu0 0
    %6000 = vmatprep.mubr.bf16.mxu0 0
    %6001 = vmatmul.mubr.bf16.gmra.mrb[0].mxu0 %v5963
    %v6002 = vpop.f32.mrb[0].mxu0
    %v6003 = vadd.f32 0.0, %v6002
    %v6004 = vpop.f32.mrb[0].mxu0
    %v6005 = vpop.f32.mrb[0].mxu0
    %v6006 = vpop.f32.mrb[0].mxu0
    %6007 = vdwg.mxu0
    %v6008 = vmul.f32 %v5957, 0.25
    %v6009 = vmul.f32 %v6003, 0.25
    %v6010 = vsel %vm3755, %v6008, -inf
    %6011 = vmax.xlane.f32.xlu0 %v6010
    %v6012 = vpop.xlane.xlu0 %6011
    %v6013 = vsel %vm3755, %v6009, -inf
    %6014 = vmax.xlane.f32.xlu0 %v6013
    %v6015 = vpop.xlane.xlu0 %6014
    %v6016 = vsub.f32 %v6008, %v6012
    %v6017 = vsub.f32 %v6009, %v6015
    %v6018 = vmul.f32 %v6016, 1.442695
    %v6019 = vpow.pop %v6018
    %v6020 = vmul.f32 %v6017, 1.442695
    %v6021 = vpow.pop %v6020
    %v6022 = vsel %vm3755, %v6019, 0.0
    %6023 = vadd.xlane.f32.xlu0 %v6022
    %v6024 = vpop.xlane.xlu0 %6023
    %v6025 = vsel %vm3755, %v6021, 0.0
    %6026 = vadd.xlane.f32.xlu0 %v6025
    %v6027 = vpop.xlane.xlu0 %6026
    %v6028 = vrcp.pop %v6024
    %v6029 = vrcp.pop %v6027
    %v6030 = vmul.f32 %v6019, %v6028
    %v6031 = vmul.f32 %v6021, %v6029
    %v6032 = vpack.c.bf16 %v6030, %v6030
    %v6033 = vpack.c.bf16 %v6031, %v6031
    %v6035 = vsel %vm3755, %v6032, 0
    %v6038 = vsel %vm3783, %v5914, 0
    %6040 = vmatprep.subr.bf16.mxu0 0
    %6041 = vmatpush1.bf16.msra.mxu0 %v6038
    %6042 = vmatprep.subr.bf16.mxu0 0
    %6043 = vmatpush1.bf16.msra.mxu0 0
    %6044 = vmatprep.subr.bf16.mxu0 0
    %6045 = vmatpush1.bf16.msra.mxu0 0
    %6046 = vmatprep.subr.bf16.mxu0 0
    %6047 = vmatpush1.bf16.msra.mxu0 0
    %6048 = vmatprep.subr.bf16.mxu0 0
    %6049 = vmatpush1.bf16.msra.mxu0 0
    %6050 = vmatprep.subr.bf16.mxu0 0
    %6051 = vmatpush1.bf16.msra.mxu0 0
    %6052 = vmatprep.subr.bf16.mxu0 0
    %6053 = vmatpush1.bf16.msra.mxu0 0
    %6054 = vmatprep.subr.bf16.mxu0 0
    %6055 = vmatpush1.bf16.msra.mxu0 0
    %6056 = vmatprep.subr.bf16.mxu0 0
    %6057 = vmatpush1.bf16.msra.mxu0 0
    %6058 = vmatprep.subr.bf16.mxu0 0
    %6059 = vmatpush1.bf16.msra.mxu0 0
    %6060 = vmatprep.subr.bf16.mxu0 0
    %6061 = vmatpush1.bf16.msra.mxu0 0
    %6062 = vmatprep.subr.bf16.mxu0 0
    %6063 = vmatpush1.bf16.msra.mxu0 0
    %6064 = vmatprep.subr.bf16.mxu0 0
    %6065 = vmatpush1.bf16.msra.mxu0 0
    %6066 = vmatprep.subr.bf16.mxu0 0
    %6067 = vmatpush1.bf16.msra.mxu0 0
    %6068 = vmatprep.subr.bf16.mxu0 0
    %6069 = vmatpush1.bf16.msra.mxu0 0
    %6070 = vmatprep.subr.bf16.mxu0 0
    %6071 = vmatpush1.bf16.msra.mxu0 0
    %6072 = vmatprep.mubr.bf16.mxu0 0
    %6073 = vmatmul.mubr.bf16.gmra.mrb[0].mxu0 %v6035
    %v6074 = vpop.f32.mrb[0].mxu0
    %v6075 = vadd.f32 0.0, %v6074
    %v6076 = vpop.f32.mrb[0].mxu0
    %v6077 = vpop.f32.mrb[0].mxu0
    %v6078 = vpop.f32.mrb[0].mxu0
    %6079 = vdwg.mxu0
    %v6081 = vsel %vm3755, %v6033, 0
    %v6084 = vsel %vm3783, %v5915, 0
    %6086 = vmatprep.subr.bf16.mxu0 0
    %6087 = vmatpush1.bf16.msra.mxu0 %v6084
    %6088 = vmatprep.subr.bf16.mxu0 0
    %6089 = vmatpush1.bf16.msra.mxu0 0
    %6090 = vmatprep.subr.bf16.mxu0 0
    %6091 = vmatpush1.bf16.msra.mxu0 0
    %6092 = vmatprep.subr.bf16.mxu0 0
    %6093 = vmatpush1.bf16.msra.mxu0 0
    %6094 = vmatprep.subr.bf16.mxu0 0
    %6095 = vmatpush1.bf16.msra.mxu0 0
    %6096 = vmatprep.subr.bf16.mxu0 0
    %6097 = vmatpush1.bf16.msra.mxu0 0
    %6098 = vmatprep.subr.bf16.mxu0 0
    %6099 = vmatpush1.bf16.msra.mxu0 0
    %6100 = vmatprep.subr.bf16.mxu0 0
    %6101 = vmatpush1.bf16.msra.mxu0 0
    %6102 = vmatprep.subr.bf16.mxu0 0
    %6103 = vmatpush1.bf16.msra.mxu0 0
    %6104 = vmatprep.subr.bf16.mxu0 0
    %6105 = vmatpush1.bf16.msra.mxu0 0
    %6106 = vmatprep.subr.bf16.mxu0 0
    %6107 = vmatpush1.bf16.msra.mxu0 0
    %6108 = vmatprep.subr.bf16.mxu0 0
    %6109 = vmatpush1.bf16.msra.mxu0 0
    %6110 = vmatprep.subr.bf16.mxu0 0
    %6111 = vmatpush1.bf16.msra.mxu0 0
    %6112 = vmatprep.subr.bf16.mxu0 0
    %6113 = vmatpush1.bf16.msra.mxu0 0
    %6114 = vmatprep.subr.bf16.mxu0 0
    %6115 = vmatpush1.bf16.msra.mxu0 0
    %6116 = vmatprep.subr.bf16.mxu0 0
    %6117 = vmatpush1.bf16.msra.mxu0 0
    %6118 = vmatprep.mubr.bf16.mxu0 0
    %6119 = vmatmul.mubr.bf16.gmra.mrb[0].mxu0 %v6081
    %v6120 = vpop.f32.mrb[0].mxu0
    %v6121 = vadd.f32 0.0, %v6120
    %v6122 = vpop.f32.mrb[0].mxu0
    %v6123 = vpop.f32.mrb[0].mxu0
    %v6124 = vpop.f32.mrb[0].mxu0
    %6125 = vdwg.mxu0
    %v6126 = vpack.c.bf16 %v6121, %v6075
    %s6127 = scalar_lea.vmem %s13, 16
    %v6128 = vld [vmem:[%s6127] sm:$0xf]
    %v6129 = vld [vmem:[%s6127 + $0x4] sm:$0xf]
    %s6130 = scalar_lea.vmem %s11, 112
    %v6131 = vld [vmem:[%s6130] sm:$0xf]
    %v6132 = vld [vmem:[%s6130 + $0x4] sm:$0xf]
    %v6133 = vld [vmem:[%s6130 + $0x8] sm:$0xf]
    %v6134 = vld [vmem:[%s6130 + $0xc] sm:$0xf]
    %v6135 = vld [vmem:[%s5722 + $0x1] sm:$0x1]
    %v6136 = vlaneseq
    %v6137 = vshrl.u32 %v6136, 7
    %v6138 = vsub.s32 0, %v6137
    %v6139 = vrot.slane %v6135, %v6138
    %v6144 = vunpack.c.l.b16 %v6131
    %v6145 = vunpack.c.l.b16 %v6132
    %v6146 = vunpack.c.l.b16 %v6133
    %v6147 = vunpack.c.l.b16 %v6134
    %v6148 = vpack.c.b16 %v6145, %v6144
    %v6149 = vpack.c.b16 %v6147, %v6146
    %6152 = vmatprep.subr.bf16.mxu0 0
    %6153 = vmatpush1.bf16.msra.mxu0 %v6148
    %6154 = vmatprep.subr.bf16.mxu0 0
    %6155 = vmatpush1.bf16.msra.mxu0 %v6149
    %6156 = vmatprep.subr.bf16.mxu0 0
    %6157 = vmatpush1.bf16.msra.mxu0 0
    %6158 = vmatprep.subr.bf16.mxu0 0
    %6159 = vmatpush1.bf16.msra.mxu0 0
    %6160 = vmatprep.subr.bf16.mxu0 0
    %6161 = vmatpush1.bf16.msra.mxu0 0
    %6162 = vmatprep.subr.bf16.mxu0 0
    %6163 = vmatpush1.bf16.msra.mxu0 0
    %6164 = vmatprep.subr.bf16.mxu0 0
    %6165 = vmatpush1.bf16.msra.mxu0 0
    %6166 = vmatprep.subr.bf16.mxu0 0
    %6167 = vmatpush1.bf16.msra.mxu0 0
    %6168 = vmatprep.subr.bf16.mxu0 0
    %6169 = vmatpush1.bf16.msra.mxu0 0
    %6170 = vmatprep.subr.bf16.mxu0 0
    %6171 = vmatpush1.bf16.msra.mxu0 0
    %6172 = vmatprep.subr.bf16.mxu0 0
    %6173 = vmatpush1.bf16.msra.mxu0 0
    %6174 = vmatprep.subr.bf16.mxu0 0
    %6175 = vmatpush1.bf16.msra.mxu0 0
    %6176 = vmatprep.subr.bf16.mxu0 0
    %6177 = vmatpush1.bf16.msra.mxu0 0
    %6178 = vmatprep.subr.bf16.mxu0 0
    %6179 = vmatpush1.bf16.msra.mxu0 0
    %6180 = vmatprep.subr.bf16.mxu0 0
    %6181 = vmatpush1.bf16.msra.mxu0 0
    %6182 = vmatprep.subr.bf16.mxu0 0
    %6183 = vmatpush1.bf16.msra.mxu0 0
    %6184 = vmatprep.mubr.bf16.mxu0 0
    %6185 = vmatmul.mubr.bf16.gmra.mrb[0].mxu0 %v5741
    %v6186 = vpop.f32.mrb[0].mxu0
    %v6187 = vadd.f32 %v6139, %v6186
    %v6188 = vpop.f32.mrb[0].mxu0
    %v6189 = vpop.f32.mrb[0].mxu0
    %v6190 = vadd.f32 %v6139, %v6189
    %v6191 = vpop.f32.mrb[0].mxu0
    %6192 = vdwg.mxu0
    %s6193 = scalar_lea.vmem %s11, 144
    %v6194 = vld [vmem:[%s6193] sm:$0xf]
    %v6195 = vld [vmem:[%s6193 + $0x4] sm:$0xf]
    %v6196 = vld [vmem:[%s6193 + $0x8] sm:$0xf]
    %v6197 = vld [vmem:[%s6193 + $0xc] sm:$0xf]
    %v6198 = vld [vmem:[%s5722 + $0x3] sm:$0x1]
    %v6199 = vlaneseq
    %v6200 = vshrl.u32 %v6199, 7
    %v6201 = vsub.s32 0, %v6200
    %v6202 = vrot.slane %v6198, %v6201
    %v6207 = vunpack.c.l.b16 %v6194
    %v6208 = vunpack.c.l.b16 %v6195
    %v6209 = vunpack.c.l.b16 %v6196
    %v6210 = vunpack.c.l.b16 %v6197
    %v6211 = vpack.c.b16 %v6208, %v6207
    %v6212 = vpack.c.b16 %v6210, %v6209
    %6215 = vmatprep.subr.bf16.mxu0 0
    %6216 = vmatpush1.bf16.msra.mxu0 %v6211
    %6217 = vmatprep.subr.bf16.mxu0 0
    %6218 = vmatpush1.bf16.msra.mxu0 %v6212
    %6219 = vmatprep.subr.bf16.mxu0 0
    %6220 = vmatpush1.bf16.msra.mxu0 0
    %6221 = vmatprep.subr.bf16.mxu0 0
    %6222 = vmatpush1.bf16.msra.mxu0 0
    %6223 = vmatprep.subr.bf16.mxu0 0
    %6224 = vmatpush1.bf16.msra.mxu0 0
    %6225 = vmatprep.subr.bf16.mxu0 0
    %6226 = vmatpush1.bf16.msra.mxu0 0
    %6227 = vmatprep.subr.bf16.mxu0 0
    %6228 = vmatpush1.bf16.msra.mxu0 0
    %6229 = vmatprep.subr.bf16.mxu0 0
    %6230 = vmatpush1.bf16.msra.mxu0 0
    %6231 = vmatprep.subr.bf16.mxu0 0
    %6232 = vmatpush1.bf16.msra.mxu0 0
    %6233 = vmatprep.subr.bf16.mxu0 0
    %6234 = vmatpush1.bf16.msra.mxu0 0
    %6235 = vmatprep.subr.bf16.mxu0 0
    %6236 = vmatpush1.bf16.msra.mxu0 0
    %6237 = vmatprep.subr.bf16.mxu0 0
    %6238 = vmatpush1.bf16.msra.mxu0 0
    %6239 = vmatprep.subr.bf16.mxu0 0
    %6240 = vmatpush1.bf16.msra.mxu0 0
    %6241 = vmatprep.subr.bf16.mxu0 0
    %6242 = vmatpush1.bf16.msra.mxu0 0
    %6243 = vmatprep.subr.bf16.mxu0 0
    %6244 = vmatpush1.bf16.msra.mxu0 0
    %6245 = vmatprep.subr.bf16.mxu0 0
    %6246 = vmatpush1.bf16.msra.mxu0 0
    %6247 = vmatprep.mubr.bf16.mxu0 0
    %6248 = vmatmul.mubr.bf16.gmra.mrb[0].mxu0 %v5741
    %v6249 = vpop.f32.mrb[0].mxu0
    %v6250 = vadd.f32 %v6202, %v6249
    %v6251 = vpop.f32.mrb[0].mxu0
    %v6252 = vpop.f32.mrb[0].mxu0
    %v6253 = vadd.f32 %v6202, %v6252
    %v6254 = vpop.f32.mrb[0].mxu0
    %6255 = vdwg.mxu0
    %s6256 = scalar_lea.vmem %s11, 176
    %v6257 = vld [vmem:[%s6256] sm:$0xf]
    %v6258 = vld [vmem:[%s6256 + $0x4] sm:$0xf]
    %v6259 = vld [vmem:[%s6256 + $0x8] sm:$0xf]
    %v6260 = vld [vmem:[%s6256 + $0xc] sm:$0xf]
    %v6261 = vld [vmem:[%s5722 + $0x5] sm:$0x1]
    %v6262 = vlaneseq
    %v6263 = vshrl.u32 %v6262, 7
    %v6264 = vsub.s32 0, %v6263
    %v6265 = vrot.slane %v6261, %v6264
    %v6270 = vunpack.c.l.b16 %v6257
    %v6271 = vunpack.c.l.b16 %v6258
    %v6272 = vunpack.c.l.b16 %v6259
    %v6273 = vunpack.c.l.b16 %v6260
    %v6274 = vpack.c.b16 %v6271, %v6270
    %v6275 = vpack.c.b16 %v6273, %v6272
    %6278 = vmatprep.subr.bf16.mxu0 0
    %6279 = vmatpush1.bf16.msra.mxu0 %v6274
    %6280 = vmatprep.subr.bf16.mxu0 0
    %6281 = vmatpush1.bf16.msra.mxu0 %v6275
    %6282 = vmatprep.subr.bf16.mxu0 0
    %6283 = vmatpush1.bf16.msra.mxu0 0
    %6284 = vmatprep.subr.bf16.mxu0 0
    %6285 = vmatpush1.bf16.msra.mxu0 0
    %6286 = vmatprep.subr.bf16.mxu0 0
    %6287 = vmatpush1.bf16.msra.mxu0 0
    %6288 = vmatprep.subr.bf16.mxu0 0
    %6289 = vmatpush1.bf16.msra.mxu0 0
    %6290 = vmatprep.subr.bf16.mxu0 0
    %6291 = vmatpush1.bf16.msra.mxu0 0
    %6292 = vmatprep.subr.bf16.mxu0 0
    %6293 = vmatpush1.bf16.msra.mxu0 0
    %6294 = vmatprep.subr.bf16.mxu0 0
    %6295 = vmatpush1.bf16.msra.mxu0 0
    %6296 = vmatprep.subr.bf16.mxu0 0
    %6297 = vmatpush1.bf16.msra.mxu0 0
    %6298 = vmatprep.subr.bf16.mxu0 0
    %6299 = vmatpush1.bf16.msra.mxu0 0
    %6300 = vmatprep.subr.bf16.mxu0 0
    %6301 = vmatpush1.bf16.msra.mxu0 0
    %6302 = vmatprep.subr.bf16.mxu0 0
    %6303 = vmatpush1.bf16.msra.mxu0 0
    %6304 = vmatprep.subr.bf16.mxu0 0
    %6305 = vmatpush1.bf16.msra.mxu0 0
    %6306 = vmatprep.subr.bf16.mxu0 0
    %6307 = vmatpush1.bf16.msra.mxu0 0
    %6308 = vmatprep.subr.bf16.mxu0 0
    %6309 = vmatpush1.bf16.msra.mxu0 0
    %6310 = vmatprep.mubr.bf16.mxu0 0
    %6311 = vmatmul.mubr.bf16.gmra.mrb[0].mxu0 %v5741
    %v6312 = vpop.f32.mrb[0].mxu0
    %v6313 = vadd.f32 %v6265, %v6312
    %v6314 = vpop.f32.mrb[0].mxu0
    %v6315 = vpop.f32.mrb[0].mxu0
    %v6316 = vadd.f32 %v6265, %v6315
    %v6317 = vpop.f32.mrb[0].mxu0
    %6318 = vdwg.mxu0
    %v6319 = vpack.c.bf16 %v6187, %v6187
    %v6320 = vpack.c.bf16 %v6190, %v6190
    %v6321 = vpack.c.bf16 %v6250, %v6250
    %v6322 = vpack.c.bf16 %v6253, %v6253
    %v6323 = vpack.c.bf16 %v6313, %v6313
    %v6324 = vpack.c.bf16 %v6316, %v6316
    %v6326 = vsel %vm777, %v6319, 0
    %v6329 = vsel %vm777, %v6321, 0
    %6331 = vmatprep.subr.bf16.mxu0 0
    %6332 = vmatpush1.bf16.xpose.msra.mxu0 %v6329
    %6333 = vmatprep.subr.bf16.mxu0 0
    %6334 = vmatpush1.bf16.xpose.msra.mxu0 0
    %6335 = vmatprep.subr.bf16.mxu0 0
    %6336 = vmatpush1.bf16.xpose.msra.mxu0 0
    %6337 = vmatprep.subr.bf16.mxu0 0
    %6338 = vmatpush1.bf16.xpose.msra.mxu0 0
    %6339 = vmatprep.subr.bf16.mxu0 0
    %6340 = vmatpush1.bf16.xpose.msra.mxu0 0
    %6341 = vmatprep.subr.bf16.mxu0 0
    %6342 = vmatpush1.bf16.xpose.msra.mxu0 0
    %6343 = vmatprep.subr.bf16.mxu0 0
    %6344 = vmatpush1.bf16.xpose.msra.mxu0 0
    %6345 = vmatprep.subr.bf16.mxu0 0
    %6346 = vmatpush1.bf16.xpose.msra.mxu0 0
    %6347 = vmatprep.subr.bf16.mxu0 0
    %6348 = vmatpush1.bf16.xpose.msra.mxu0 0
    %6349 = vmatprep.subr.bf16.mxu0 0
    %6350 = vmatpush1.bf16.xpose.msra.mxu0 0
    %6351 = vmatprep.subr.bf16.mxu0 0
    %6352 = vmatpush1.bf16.xpose.msra.mxu0 0
    %6353 = vmatprep.subr.bf16.mxu0 0
    %6354 = vmatpush1.bf16.xpose.msra.mxu0 0
    %6355 = vmatprep.subr.bf16.mxu0 0
    %6356 = vmatpush1.bf16.xpose.msra.mxu0 0
    %6357 = vmatprep.subr.bf16.mxu0 0
    %6358 = vmatpush1.bf16.xpose.msra.mxu0 0
    %6359 = vmatprep.subr.bf16.mxu0 0
    %6360 = vmatpush1.bf16.xpose.msra.mxu0 0
    %6361 = vmatprep.subr.bf16.mxu0 0
    %6362 = vmatpush1.bf16.xpose.msra.mxu0 0
    %6363 = vmatprep.mubr.bf16.mxu0 0
    %6364 = vmatmul.mubr.bf16.gmra.mrb[0].mxu0 %v6326
    %v6365 = vpop.f32.mrb[0].mxu0
    %v6366 = vadd.f32 0.0, %v6365
    %v6367 = vpop.f32.mrb[0].mxu0
    %v6368 = vpop.f32.mrb[0].mxu0
    %v6369 = vpop.f32.mrb[0].mxu0
    %6370 = vdwg.mxu0
    %v6372 = vsel %vm777, %v6320, 0
    %v6375 = vsel %vm777, %v6322, 0
    %6377 = vmatprep.subr.bf16.mxu0 0
    %6378 = vmatpush1.bf16.xpose.msra.mxu0 %v6375
    %6379 = vmatprep.subr.bf16.mxu0 0
    %6380 = vmatpush1.bf16.xpose.msra.mxu0 0
    %6381 = vmatprep.subr.bf16.mxu0 0
    %6382 = vmatpush1.bf16.xpose.msra.mxu0 0
    %6383 = vmatprep.subr.bf16.mxu0 0
    %6384 = vmatpush1.bf16.xpose.msra.mxu0 0
    %6385 = vmatprep.subr.bf16.mxu0 0
    %6386 = vmatpush1.bf16.xpose.msra.mxu0 0
    %6387 = vmatprep.subr.bf16.mxu0 0
    %6388 = vmatpush1.bf16.xpose.msra.mxu0 0
    %6389 = vmatprep.subr.bf16.mxu0 0
    %6390 = vmatpush1.bf16.xpose.msra.mxu0 0
    %6391 = vmatprep.subr.bf16.mxu0 0
    %6392 = vmatpush1.bf16.xpose.msra.mxu0 0
    %6393 = vmatprep.subr.bf16.mxu0 0
    %6394 = vmatpush1.bf16.xpose.msra.mxu0 0
    %6395 = vmatprep.subr.bf16.mxu0 0
    %6396 = vmatpush1.bf16.xpose.msra.mxu0 0
    %6397 = vmatprep.subr.bf16.mxu0 0
    %6398 = vmatpush1.bf16.xpose.msra.mxu0 0
    %6399 = vmatprep.subr.bf16.mxu0 0
    %6400 = vmatpush1.bf16.xpose.msra.mxu0 0
    %6401 = vmatprep.subr.bf16.mxu0 0
    %6402 = vmatpush1.bf16.xpose.msra.mxu0 0
    %6403 = vmatprep.subr.bf16.mxu0 0
    %6404 = vmatpush1.bf16.xpose.msra.mxu0 0
    %6405 = vmatprep.subr.bf16.mxu0 0
    %6406 = vmatpush1.bf16.xpose.msra.mxu0 0
    %6407 = vmatprep.subr.bf16.mxu0 0
    %6408 = vmatpush1.bf16.xpose.msra.mxu0 0
    %6409 = vmatprep.mubr.bf16.mxu0 0
    %6410 = vmatmul.mubr.bf16.gmra.mrb[0].mxu0 %v6372
    %v6411 = vpop.f32.mrb[0].mxu0
    %v6412 = vadd.f32 0.0, %v6411
    %v6413 = vpop.f32.mrb[0].mxu0
    %v6414 = vpop.f32.mrb[0].mxu0
    %v6415 = vpop.f32.mrb[0].mxu0
    %6416 = vdwg.mxu0
    %v6417 = vmul.f32 %v6366, 0.25
    %v6418 = vmul.f32 %v6412, 0.25
    %v6419 = vsel %vm3755, %v6417, -inf
    %6420 = vmax.xlane.f32.xlu0 %v6419
    %v6421 = vpop.xlane.xlu0 %6420
    %v6422 = vsel %vm3755, %v6418, -inf
    %6423 = vmax.xlane.f32.xlu0 %v6422
    %v6424 = vpop.xlane.xlu0 %6423
    %v6425 = vsub.f32 %v6417, %v6421
    %v6426 = vsub.f32 %v6418, %v6424
    %v6427 = vmul.f32 %v6425, 1.442695
    %v6428 = vpow.pop %v6427
    %v6429 = vmul.f32 %v6426, 1.442695
    %v6430 = vpow.pop %v6429
    %v6431 = vsel %vm3755, %v6428, 0.0
    %6432 = vadd.xlane.f32.xlu0 %v6431
    %v6433 = vpop.xlane.xlu0 %6432
    %v6434 = vsel %vm3755, %v6430, 0.0
    %6435 = vadd.xlane.f32.xlu0 %v6434
    %v6436 = vpop.xlane.xlu0 %6435
    %v6437 = vrcp.pop %v6433
    %v6438 = vrcp.pop %v6436
    %v6439 = vmul.f32 %v6428, %v6437
    %v6440 = vmul.f32 %v6430, %v6438
    %v6441 = vpack.c.bf16 %v6439, %v6439
    %v6442 = vpack.c.bf16 %v6440, %v6440
    %v6444 = vsel %vm3755, %v6441, 0
    %v6447 = vsel %vm3783, %v6323, 0
    %6449 = vmatprep.subr.bf16.mxu0 0
    %6450 = vmatpush1.bf16.msra.mxu0 %v6447
    %6451 = vmatprep.subr.bf16.mxu0 0
    %6452 = vmatpush1.bf16.msra.mxu0 0
    %6453 = vmatprep.subr.bf16.mxu0 0
    %6454 = vmatpush1.bf16.msra.mxu0 0
    %6455 = vmatprep.subr.bf16.mxu0 0
    %6456 = vmatpush1.bf16.msra.mxu0 0
    %6457 = vmatprep.subr.bf16.mxu0 0
    %6458 = vmatpush1.bf16.msra.mxu0 0
    %6459 = vmatprep.subr.bf16.mxu0 0
    %6460 = vmatpush1.bf16.msra.mxu0 0
    %6461 = vmatprep.subr.bf16.mxu0 0
    %6462 = vmatpush1.bf16.msra.mxu0 0
    %6463 = vmatprep.subr.bf16.mxu0 0
    %6464 = vmatpush1.bf16.msra.mxu0 0
    %6465 = vmatprep.subr.bf16.mxu0 0
    %6466 = vmatpush1.bf16.msra.mxu0 0
    %6467 = vmatprep.subr.bf16.mxu0 0
    %6468 = vmatpush1.bf16.msra.mxu0 0
    %6469 = vmatprep.subr.bf16.mxu0 0
    %6470 = vmatpush1.bf16.msra.mxu0 0
    %6471 = vmatprep.subr.bf16.mxu0 0
    %6472 = vmatpush1.bf16.msra.mxu0 0
    %6473 = vmatprep.subr.bf16.mxu0 0
    %6474 = vmatpush1.bf16.msra.mxu0 0
    %6475 = vmatprep.subr.bf16.mxu0 0
    %6476 = vmatpush1.bf16.msra.mxu0 0
    %6477 = vmatprep.subr.bf16.mxu0 0
    %6478 = vmatpush1.bf16.msra.mxu0 0
    %6479 = vmatprep.subr.bf16.mxu0 0
    %6480 = vmatpush1.bf16.msra.mxu0 0
    %6481 = vmatprep.mubr.bf16.mxu0 0
    %6482 = vmatmul.mubr.bf16.gmra.mrb[0].mxu0 %v6444
    %v6483 = vpop.f32.mrb[0].mxu0
    %v6484 = vadd.f32 0.0, %v6483
    %v6485 = vpop.f32.mrb[0].mxu0
    %v6486 = vpop.f32.mrb[0].mxu0
    %v6487 = vpop.f32.mrb[0].mxu0
    %6488 = vdwg.mxu0
    %v6490 = vsel %vm3755, %v6442, 0
    %v6493 = vsel %vm3783, %v6324, 0
    %6495 = vmatprep.subr.bf16.mxu0 0
    %6496 = vmatpush1.bf16.msra.mxu0 %v6493
    %6497 = vmatprep.subr.bf16.mxu0 0
    %6498 = vmatpush1.bf16.msra.mxu0 0
    %6499 = vmatprep.subr.bf16.mxu0 0
    %6500 = vmatpush1.bf16.msra.mxu0 0
    %6501 = vmatprep.subr.bf16.mxu0 0
    %6502 = vmatpush1.bf16.msra.mxu0 0
    %6503 = vmatprep.subr.bf16.mxu0 0
    %6504 = vmatpush1.bf16.msra.mxu0 0
    %6505 = vmatprep.subr.bf16.mxu0 0
    %6506 = vmatpush1.bf16.msra.mxu0 0
    %6507 = vmatprep.subr.bf16.mxu0 0
    %6508 = vmatpush1.bf16.msra.mxu0 0
    %6509 = vmatprep.subr.bf16.mxu0 0
    %6510 = vmatpush1.bf16.msra.mxu0 0
    %6511 = vmatprep.subr.bf16.mxu0 0
    %6512 = vmatpush1.bf16.msra.mxu0 0
    %6513 = vmatprep.subr.bf16.mxu0 0
    %6514 = vmatpush1.bf16.msra.mxu0 0
    %6515 = vmatprep.subr.bf16.mxu0 0
    %6516 = vmatpush1.bf16.msra.mxu0 0
    %6517 = vmatprep.subr.bf16.mxu0 0
    %6518 = vmatpush1.bf16.msra.mxu0 0
    %6519 = vmatprep.subr.bf16.mxu0 0
    %6520 = vmatpush1.bf16.msra.mxu0 0
    %6521 = vmatprep.subr.bf16.mxu0 0
    %6522 = vmatpush1.bf16.msra.mxu0 0
    %6523 = vmatprep.subr.bf16.mxu0 0
    %6524 = vmatpush1.bf16.msra.mxu0 0
    %6525 = vmatprep.subr.bf16.mxu0 0
    %6526 = vmatpush1.bf16.msra.mxu0 0
    %6527 = vmatprep.mubr.bf16.mxu0 0
    %6528 = vmatmul.mubr.bf16.gmra.mrb[0].mxu0 %v6490
    %v6529 = vpop.f32.mrb[0].mxu0
    %v6530 = vadd.f32 0.0, %v6529
    %v6531 = vpop.f32.mrb[0].mxu0
    %v6532 = vpop.f32.mrb[0].mxu0
    %v6533 = vpop.f32.mrb[0].mxu0
    %6534 = vdwg.mxu0
    %v6535 = vpack.c.bf16 %v6530, %v6484
    %s6536 = scalar_lea.vmem %s13, 24
    %v6537 = vld [vmem:[%s6536] sm:$0xf]
    %v6538 = vld [vmem:[%s6536 + $0x4] sm:$0xf]
    %v6541 = vunpack.c.l.b16 %v6537
    %v6542 = vunpack.c.l.b16 %v6538
    %v6543 = vpack.c.b16 %v6542, %v6541
    %v6546 = vsel %vm777, %v6535, 0
    %6548 = vmatprep.subr.bf16.mxu0 0
    %6549 = vmatpush1.bf16.msra.mxu0 %v6543
    %6550 = vmatprep.subr.bf16.mxu0 0
    %6551 = vmatpush1.bf16.msra.mxu0 0
    %6552 = vmatprep.subr.bf16.mxu0 0
    %6553 = vmatpush1.bf16.msra.mxu0 0
    %6554 = vmatprep.subr.bf16.mxu0 0
    %6555 = vmatpush1.bf16.msra.mxu0 0
    %6556 = vmatprep.subr.bf16.mxu0 0
    %6557 = vmatpush1.bf16.msra.mxu0 0
    %6558 = vmatprep.subr.bf16.mxu0 0
    %6559 = vmatpush1.bf16.msra.mxu0 0
    %6560 = vmatprep.subr.bf16.mxu0 0
    %6561 = vmatpush1.bf16.msra.mxu0 0
    %6562 = vmatprep.subr.bf16.mxu0 0
    %6563 = vmatpush1.bf16.msra.mxu0 0
    %6564 = vmatprep.subr.bf16.mxu0 0
    %6565 = vmatpush1.bf16.msra.mxu0 0
    %6566 = vmatprep.subr.bf16.mxu0 0
    %6567 = vmatpush1.bf16.msra.mxu0 0
    %6568 = vmatprep.subr.bf16.mxu0 0
    %6569 = vmatpush1.bf16.msra.mxu0 0
    %6570 = vmatprep.subr.bf16.mxu0 0
    %6571 = vmatpush1.bf16.msra.mxu0 0
    %6572 = vmatprep.subr.bf16.mxu0 0
    %6573 = vmatpush1.bf16.msra.mxu0 0
    %6574 = vmatprep.subr.bf16.mxu0 0
    %6575 = vmatpush1.bf16.msra.mxu0 0
    %6576 = vmatprep.subr.bf16.mxu0 0
    %6577 = vmatpush1.bf16.msra.mxu0 0
    %6578 = vmatprep.subr.bf16.mxu0 0
    %6579 = vmatpush1.bf16.msra.mxu0 0
    %6580 = vmatprep.mubr.bf16.mxu0 0
    %6581 = vmatmul.mubr.bf16.gmra.mrb[0].mxu0 %v6546
    %v6582 = vpop.f32.mrb[0].mxu0
    %v6583 = vadd.f32 0.0, %v6582
    %v6584 = vpop.f32.mrb[0].mxu0
    %v6585 = vpop.f32.mrb[0].mxu0
    %v6586 = vadd.f32 0.0, %v6585
    %v6587 = vpop.f32.mrb[0].mxu0
    %6588 = vdwg.mxu0
    %v6591 = vunpack.c.l.b16 %v6128
    %v6592 = vunpack.c.l.b16 %v6129
    %v6593 = vpack.c.b16 %v6592, %v6591
    %v6596 = vsel %vm777, %v6126, 0
    %6598 = vmatprep.subr.bf16.mxu0 0
    %6599 = vmatpush1.bf16.msra.mxu0 %v6593
    %6600 = vmatprep.subr.bf16.mxu0 0
    %6601 = vmatpush1.bf16.msra.mxu0 0
    %6602 = vmatprep.subr.bf16.mxu0 0
    %6603 = vmatpush1.bf16.msra.mxu0 0
    %6604 = vmatprep.subr.bf16.mxu0 0
    %6605 = vmatpush1.bf16.msra.mxu0 0
    %6606 = vmatprep.subr.bf16.mxu0 0
    %6607 = vmatpush1.bf16.msra.mxu0 0
    %6608 = vmatprep.subr.bf16.mxu0 0
    %6609 = vmatpush1.bf16.msra.mxu0 0
    %6610 = vmatprep.subr.bf16.mxu0 0
    %6611 = vmatpush1.bf16.msra.mxu0 0
    %6612 = vmatprep.subr.bf16.mxu0 0
    %6613 = vmatpush1.bf16.msra.mxu0 0
    %6614 = vmatprep.subr.bf16.mxu0 0
    %6615 = vmatpush1.bf16.msra.mxu0 0
    %6616 = vmatprep.subr.bf16.mxu0 0
    %6617 = vmatpush1.bf16.msra.mxu0 0
    %6618 = vmatprep.subr.bf16.mxu0 0
    %6619 = vmatpush1.bf16.msra.mxu0 0
    %6620 = vmatprep.subr.bf16.mxu0 0
    %6621 = vmatpush1.bf16.msra.mxu0 0
    %6622 = vmatprep.subr.bf16.mxu0 0
    %6623 = vmatpush1.bf16.msra.mxu0 0
    %6624 = vmatprep.subr.bf16.mxu0 0
    %6625 = vmatpush1.bf16.msra.mxu0 0
    %6626 = vmatprep.subr.bf16.mxu0 0
    %6627 = vmatpush1.bf16.msra.mxu0 0
    %6628 = vmatprep.subr.bf16.mxu0 0
    %6629 = vmatpush1.bf16.msra.mxu0 0
    %6630 = vmatprep.mubr.bf16.mxu0 0
    %6631 = vmatmul.mubr.bf16.gmra.mrb[0].mxu0 %v6596
    %v6632 = vpop.f32.mrb[0].mxu0
    %v6633 = vadd.f32 %v6583, %v6632
    %v6634 = vpop.f32.mrb[0].mxu0
    %v6635 = vpop.f32.mrb[0].mxu0
    %v6636 = vadd.f32 %v6586, %v6635
    %v6637 = vpop.f32.mrb[0].mxu0
    %6638 = vdwg.mxu0
    %s6639 = scalar_lea.vmem %s14, 8
    %v6640 = vld [vmem:[%s6639] sm:$0x1]
    %v6641 = vld [vmem:[%s6639 + $0x1] sm:$0x1]
    %v6642 = vld [vmem:[%s6639 + $0x2] sm:$0x1]
    %v6643 = vld [vmem:[%s6639 + $0x3] sm:$0x1]
    %v6644 = vld [vmem:[%s6639 + $0x4] sm:$0x1]
    %v6645 = vld [vmem:[%s6639 + $0x5] sm:$0x1]
    %v6646 = vadd.f32 %v5714, %v6633
    %v6647 = vadd.f32 %v5715, %v6636
    %v6648 = vlaneseq
    %v6649 = vshrl.u32 %v6648, 7
    %v6650 = vsub.s32 0, %v6649
    %v6651 = vrot.slane %v6640, %v6650
    %v6652 = vadd.f32 %v6646, %v6651
    %v6653 = vadd.f32 %v6647, %v6651
    %v6654 = vsel %vm479, %v6652, 0.0
    %6655 = vadd.xlane.f32.xlu0 %v6654
    %v6656 = vpop.xlane.xlu0 %6655
    %v6657 = vsel %vm479, %v6653, 0.0
    %6658 = vadd.xlane.f32.xlu0 %v6657
    %v6659 = vpop.xlane.xlu0 %6658
    %v6660 = vmul.f32 %v6656, %v492
    %v6661 = vmul.f32 %v6659, %v492
    %v6662 = vsub.f32 %v6652, %v6660
    %v6663 = vsub.f32 %v6653, %v6661
    %v6664 = vmul.f32 %v6662, %v6662
    %v6665 = vmul.f32 %v6663, %v6663
    %v6666 = vsel %vm479, %v6664, 0.0
    %6667 = vadd.xlane.f32.xlu0 %v6666
    %v6668 = vpop.xlane.xlu0 %6667
    %v6669 = vsel %vm479, %v6665, 0.0
    %6670 = vadd.xlane.f32.xlu0 %v6669
    %v6671 = vpop.xlane.xlu0 %6670
    %v6672 = vmul.f32 %v6668, %v492
    %v6673 = vmul.f32 %v6671, %v492
    %v6674 = vadd.f32 %v6672, 1e-05
    %v6675 = vadd.f32 %v6673, 1e-05
    %v6676 = vrsqrt.pop %v6674
    %v6677 = vrsqrt.pop %v6675
    %v6678 = vmul.f32 %v6662, %v6676
    %v6679 = vmul.f32 %v6663, %v6677
    %v6680 = vlaneseq
    %v6681 = vshrl.u32 %v6680, 7
    %v6682 = vsub.s32 0, %v6681
    %v6683 = vrot.slane %v6641, %v6682
    %v6684 = vmul.f32 %v6678, %v6683
    %v6685 = vmul.f32 %v6679, %v6683
    %v6686 = vlaneseq
    %v6687 = vshrl.u32 %v6686, 7
    %v6688 = vsub.s32 0, %v6687
    %v6689 = vrot.slane %v6642, %v6688
    %v6690 = vadd.f32 %v6684, %v6689
    %v6691 = vadd.f32 %v6685, %v6689
    %v6692 = vpack.c.bf16 %v6691, %v6690
    %s6693 = scalar_lea.vmem [#allocation2], 128
    %v6694 = vld [vmem:[%s6693] sm:$0xff]
    %v6695 = vld [vmem:[%s6693 + $0x8] sm:$0xff]
    %v6696 = vld [vmem:[%s6693 + $0x10] sm:$0xff]
    %v6697 = vld [vmem:[%s6693 + $0x18] sm:$0xff]
    %v6698 = vunpack.c.l.s8.bf16 %v6694
    %v6699 = vunpack.c.l.s8.bf16 %v6695
    %v6700 = vunpack.c.l.s8.bf16 %v6696
    %v6701 = vunpack.c.l.s8.bf16 %v6697
    %v6702 = vunpack.c.h.s8.bf16 %v6694
    %v6703 = vunpack.c.h.s8.bf16 %v6695
    %v6704 = vunpack.c.h.s8.bf16 %v6696
    %v6705 = vunpack.c.h.s8.bf16 %v6697
    %v6707 = vsel %vm479, %v6692, 0
    %6709 = vmatprep.subr.bf16.mxu0 %v6699
    %6710 = vmatpush1.bf16.msra.mxu0 %v6698
    %6711 = vmatprep.subr.bf16.mxu0 %v6703
    %6712 = vmatpush1.bf16.msra.mxu0 %v6702
    %6713 = vmatprep.subr.bf16.mxu0 0
    %6714 = vmatpush1.bf16.msra.mxu0 0
    %6715 = vmatprep.subr.bf16.mxu0 0
    %6716 = vmatpush1.bf16.msra.mxu0 0
    %6717 = vmatprep.subr.bf16.mxu0 0
    %6718 = vmatpush1.bf16.msra.mxu0 0
    %6719 = vmatprep.subr.bf16.mxu0 0
    %6720 = vmatpush1.bf16.msra.mxu0 0
    %6721 = vmatprep.subr.bf16.mxu0 0
    %6722 = vmatpush1.bf16.msra.mxu0 0
    %6723 = vmatprep.subr.bf16.mxu0 0
    %6724 = vmatpush1.bf16.msra.mxu0 0
    %6725 = vmatprep.subr.bf16.mxu0 0
    %6726 = vmatpush1.bf16.msra.mxu0 0
    %6727 = vmatprep.subr.bf16.mxu0 0
    %6728 = vmatpush1.bf16.msra.mxu0 0
    %6729 = vmatprep.subr.bf16.mxu0 0
    %6730 = vmatpush1.bf16.msra.mxu0 0
    %6731 = vmatprep.subr.bf16.mxu0 0
    %6732 = vmatpush1.bf16.msra.mxu0 0
    %6733 = vmatprep.subr.bf16.mxu0 0
    %6734 = vmatpush1.bf16.msra.mxu0 0
    %6735 = vmatprep.subr.bf16.mxu0 0
    %6736 = vmatpush1.bf16.msra.mxu0 0
    %6737 = vmatprep.subr.bf16.mxu0 0
    %6738 = vmatpush1.bf16.msra.mxu0 0
    %6739 = vmatprep.subr.bf16.mxu0 0
    %6740 = vmatpush1.bf16.msra.mxu0 0
    %6741 = vmatprep.mubr.bf16.mxu0 0
    %6742 = vmatmul.mubr.bf16.gmra.mrb[0].mxu0 %v6707
    %v6743 = vpop.f32.mrb[0].mxu0
    %v6744 = vadd.f32 0.0, %v6743
    %v6745 = vpop.f32.mrb[0].mxu0
    %v6746 = vadd.f32 0.0, %v6745
    %v6747 = vpop.f32.mrb[0].mxu0
    %v6748 = vadd.f32 0.0, %v6747
    %v6749 = vpop.f32.mrb[0].mxu0
    %v6750 = vadd.f32 0.0, %v6749
    %6751 = vdwg.mxu0
    %6752 = vmatprep.subr.bf16.mxu0 %v6701
    %6753 = vmatpush1.bf16.msra.mxu0 %v6700
    %6754 = vmatprep.subr.bf16.mxu0 %v6705
    %6755 = vmatpush1.bf16.msra.mxu0 %v6704
    %6756 = vmatprep.subr.bf16.mxu0 0
    %6757 = vmatpush1.bf16.msra.mxu0 0
    %6758 = vmatprep.subr.bf16.mxu0 0
    %6759 = vmatpush1.bf16.msra.mxu0 0
    %6760 = vmatprep.subr.bf16.mxu0 0
    %6761 = vmatpush1.bf16.msra.mxu0 0
    %6762 = vmatprep.subr.bf16.mxu0 0
    %6763 = vmatpush1.bf16.msra.mxu0 0
    %6764 = vmatprep.subr.bf16.mxu0 0
    %6765 = vmatpush1.bf16.msra.mxu0 0
    %6766 = vmatprep.subr.bf16.mxu0 0
    %6767 = vmatpush1.bf16.msra.mxu0 0
    %6768 = vmatprep.subr.bf16.mxu0 0
    %6769 = vmatpush1.bf16.msra.mxu0 0
    %6770 = vmatprep.subr.bf16.mxu0 0
    %6771 = vmatpush1.bf16.msra.mxu0 0
    %6772 = vmatprep.subr.bf16.mxu0 0
    %6773 = vmatpush1.bf16.msra.mxu0 0
    %6774 = vmatprep.subr.bf16.mxu0 0
    %6775 = vmatpush1.bf16.msra.mxu0 0
    %6776 = vmatprep.subr.bf16.mxu0 0
    %6777 = vmatpush1.bf16.msra.mxu0 0
    %6778 = vmatprep.subr.bf16.mxu0 0
    %6779 = vmatpush1.bf16.msra.mxu0 0
    %6780 = vmatprep.subr.bf16.mxu0 0
    %6781 = vmatpush1.bf16.msra.mxu0 0
    %6782 = vmatprep.subr.bf16.mxu0 0
    %6783 = vmatpush1.bf16.msra.mxu0 0
    %6784 = vmatprep.mubr.bf16.mxu0 0
    %6785 = vmatmul.mubr.bf16.gmra.mrb[0].mxu0 %v6707
    %v6786 = vpop.f32.mrb[0].mxu0
    %v6787 = vadd.f32 0.0, %v6786
    %v6788 = vpop.f32.mrb[0].mxu0
    %v6789 = vadd.f32 0.0, %v6788
    %v6790 = vpop.f32.mrb[0].mxu0
    %v6791 = vadd.f32 0.0, %v6790
    %v6792 = vpop.f32.mrb[0].mxu0
    %v6793 = vadd.f32 0.0, %v6792
    %6794 = vdwg.mxu0
    %s6795 = scalar_lea.vmem %s16, 1
    %v6796 = vld [vmem:[%s6795] ss:$2 sm:$0xf]
    %v6798 = vlaneseq
    %v6799 = vshrl.u32 %v6798, 7
    %v6800 = vsub.s32 0, %v6799
    %v6801 = vrot.slane %v6796, %v6800
    %v6802 = vlaneseq
    %v6803 = vshrl.u32 %v6802, 7
    %v6804 = vsub.s32 1, %v6803
    %v6805 = vrot.slane %v6796, %v6804
    %v6806 = vlaneseq
    %v6807 = vshrl.u32 %v6806, 7
    %v6808 = vsub.s32 2, %v6807
    %v6809 = vrot.slane %v6796, %v6808
    %v6810 = vlaneseq
    %v6811 = vshrl.u32 %v6810, 7
    %v6812 = vsub.s32 3, %v6811
    %v6813 = vrot.slane %v6796, %v6812
    %v6818 = vmul.f32 %v6744, %v6801
    %v6819 = vmul.f32 %v6746, %v6805
    %v6820 = vmul.f32 %v6787, %v6809
    %v6821 = vmul.f32 %v6789, %v6813
    %v6822 = vmul.f32 %v6748, %v6801
    %v6823 = vmul.f32 %v6750, %v6805
    %v6824 = vmul.f32 %v6791, %v6809
    %v6825 = vmul.f32 %v6793, %v6813
    %s6826 = scalar_lea.vmem %s15, 1
    %v6827 = vld [vmem:[%s6826] ss:$2 sm:$0xf]
    %v6829 = vlaneseq
    %v6830 = vshrl.u32 %v6829, 7
    %v6831 = vsub.s32 0, %v6830
    %v6832 = vrot.slane %v6827, %v6831
    %v6833 = vlaneseq
    %v6834 = vshrl.u32 %v6833, 7
    %v6835 = vsub.s32 1, %v6834
    %v6836 = vrot.slane %v6827, %v6835
    %v6837 = vlaneseq
    %v6838 = vshrl.u32 %v6837, 7
    %v6839 = vsub.s32 2, %v6838
    %v6840 = vrot.slane %v6827, %v6839
    %v6841 = vlaneseq
    %v6842 = vshrl.u32 %v6841, 7
    %v6843 = vsub.s32 3, %v6842
    %v6844 = vrot.slane %v6827, %v6843
    %v6849 = vadd.f32 %v6818, %v6832
    %v6850 = vadd.f32 %v6819, %v6836
    %v6851 = vadd.f32 %v6820, %v6840
    %v6852 = vadd.f32 %v6821, %v6844
    %v6853 = vadd.f32 %v6822, %v6832
    %v6854 = vadd.f32 %v6823, %v6836
    %v6855 = vadd.f32 %v6824, %v6840
    %v6856 = vadd.f32 %v6825, %v6844
    %v6857 = vmax.f32 %v6849, 0.0
    %v6858 = vmax.f32 %v6850, 0.0
    %v6859 = vmax.f32 %v6851, 0.0
    %v6860 = vmax.f32 %v6852, 0.0
    %v6861 = vmax.f32 %v6853, 0.0
    %v6862 = vmax.f32 %v6854, 0.0
    %v6863 = vmax.f32 %v6855, 0.0
    %v6864 = vmax.f32 %v6856, 0.0
    %s6865 = scalar_lea.vmem [#allocation3], 512
    %v6866 = vld [vmem:[%s6865] sm:$0xff]
    %v6867 = vld [vmem:[%s6865 + $0x8] sm:$0xff]
    %v6868 = vld [vmem:[%s6865 + $0x10] sm:$0xff]
    %v6869 = vld [vmem:[%s6865 + $0x18] sm:$0xff]
    %v6870 = vld [vmem:[%s6865 + $0x20] sm:$0xff]
    %v6871 = vld [vmem:[%s6865 + $0x28] sm:$0xff]
    %v6872 = vld [vmem:[%s6865 + $0x30] sm:$0xff]
    %v6873 = vld [vmem:[%s6865 + $0x38] sm:$0xff]
    %v6874 = vld [vmem:[%s6865 + $0x40] sm:$0xff]
    %v6875 = vld [vmem:[%s6865 + $0x48] sm:$0xff]
    %v6876 = vld [vmem:[%s6865 + $0x50] sm:$0xff]
    %v6877 = vld [vmem:[%s6865 + $0x58] sm:$0xff]
    %v6878 = vld [vmem:[%s6865 + $0x60] sm:$0xff]
    %v6879 = vld [vmem:[%s6865 + $0x68] sm:$0xff]
    %v6880 = vld [vmem:[%s6865 + $0x70] sm:$0xff]
    %v6881 = vld [vmem:[%s6865 + $0x78] sm:$0xff]
    %v6882 = vunpack.c.l.s8.bf16 %v6866
    %v6883 = vunpack.c.h.s8.bf16 %v6866
    %v6884 = vunpack.c.l.s8.bf16 %v6867
    %v6885 = vunpack.c.h.s8.bf16 %v6867
    %v6886 = vunpack.c.l.s8.bf16 %v6868
    %v6887 = vunpack.c.h.s8.bf16 %v6868
    %v6888 = vunpack.c.l.s8.bf16 %v6869
    %v6889 = vunpack.c.h.s8.bf16 %v6869
    %v6890 = vunpack.c.l.s8.bf16 %v6870
    %v6891 = vunpack.c.h.s8.bf16 %v6870
    %v6892 = vunpack.c.l.s8.bf16 %v6871
    %v6893 = vunpack.c.h.s8.bf16 %v6871
    %v6894 = vunpack.c.l.s8.bf16 %v6872
    %v6895 = vunpack.c.h.s8.bf16 %v6872
    %v6896 = vunpack.c.l.s8.bf16 %v6873
    %v6897 = vunpack.c.h.s8.bf16 %v6873
    %v6898 = vunpack.c.l.s8.bf16 %v6874
    %v6899 = vunpack.c.h.s8.bf16 %v6874
    %v6900 = vunpack.c.l.s8.bf16 %v6875
    %v6901 = vunpack.c.h.s8.bf16 %v6875
    %v6902 = vunpack.c.l.s8.bf16 %v6876
    %v6903 = vunpack.c.h.s8.bf16 %v6876
    %v6904 = vunpack.c.l.s8.bf16 %v6877
    %v6905 = vunpack.c.h.s8.bf16 %v6877
    %v6906 = vunpack.c.l.s8.bf16 %v6878
    %v6907 = vunpack.c.h.s8.bf16 %v6878
    %v6908 = vunpack.c.l.s8.bf16 %v6879
    %v6909 = vunpack.c.h.s8.bf16 %v6879
    %v6910 = vunpack.c.l.s8.bf16 %v6880
    %v6911 = vunpack.c.h.s8.bf16 %v6880
    %v6912 = vunpack.c.l.s8.bf16 %v6881
    %v6913 = vunpack.c.h.s8.bf16 %v6881
    %v6914 = vpack.c.bf16 %v6861, %v6857
    %v6915 = vpack.c.bf16 %v6862, %v6858
    %v6916 = vpack.c.bf16 %v6863, %v6859
    %v6917 = vpack.c.bf16 %v6864, %v6860
    %v6918 = vld [vmem:[%s6693 + $0x20] sm:$0xff]
    %v6919 = vld [vmem:[%s6693 + $0x28] sm:$0xff]
    %v6920 = vld [vmem:[%s6693 + $0x30] sm:$0xff]
    %v6921 = vld [vmem:[%s6693 + $0x38] sm:$0xff]
    %v6922 = vunpack.c.l.s8.bf16 %v6918
    %v6923 = vunpack.c.l.s8.bf16 %v6919
    %v6924 = vunpack.c.l.s8.bf16 %v6920
    %v6925 = vunpack.c.l.s8.bf16 %v6921
    %v6926 = vunpack.c.h.s8.bf16 %v6918
    %v6927 = vunpack.c.h.s8.bf16 %v6919
    %v6928 = vunpack.c.h.s8.bf16 %v6920
    %v6929 = vunpack.c.h.s8.bf16 %v6921
    %6930 = vmatprep.subr.bf16.mxu0 %v6923
    %6931 = vmatpush1.bf16.msra.mxu0 %v6922
    %6932 = vmatprep.subr.bf16.mxu0 %v6927
    %6933 = vmatpush1.bf16.msra.mxu0 %v6926
    %6934 = vmatprep.subr.bf16.mxu0 0
    %6935 = vmatpush1.bf16.msra.mxu0 0
    %6936 = vmatprep.subr.bf16.mxu0 0
    %6937 = vmatpush1.bf16.msra.mxu0 0
    %6938 = vmatprep.subr.bf16.mxu0 0
    %6939 = vmatpush1.bf16.msra.mxu0 0
    %6940 = vmatprep.subr.bf16.mxu0 0
    %6941 = vmatpush1.bf16.msra.mxu0 0
    %6942 = vmatprep.subr.bf16.mxu0 0
    %6943 = vmatpush1.bf16.msra.mxu0 0
    %6944 = vmatprep.subr.bf16.mxu0 0
    %6945 = vmatpush1.bf16.msra.mxu0 0
    %6946 = vmatprep.subr.bf16.mxu0 0
    %6947 = vmatpush1.bf16.msra.mxu0 0
    %6948 = vmatprep.subr.bf16.mxu0 0
    %6949 = vmatpush1.bf16.msra.mxu0 0
    %6950 = vmatprep.subr.bf16.mxu0 0
    %6951 = vmatpush1.bf16.msra.mxu0 0
    %6952 = vmatprep.subr.bf16.mxu0 0
    %6953 = vmatpush1.bf16.msra.mxu0 0
    %6954 = vmatprep.subr.bf16.mxu0 0
    %6955 = vmatpush1.bf16.msra.mxu0 0
    %6956 = vmatprep.subr.bf16.mxu0 0
    %6957 = vmatpush1.bf16.msra.mxu0 0
    %6958 = vmatprep.subr.bf16.mxu0 0
    %6959 = vmatpush1.bf16.msra.mxu0 0
    %6960 = vmatprep.subr.bf16.mxu0 0
    %6961 = vmatpush1.bf16.msra.mxu0 0
    %6962 = vmatprep.mubr.bf16.mxu0 0
    %6963 = vmatmul.mubr.bf16.gmra.mrb[0].mxu0 %v6707
    %v6964 = vpop.f32.mrb[0].mxu0
    %v6965 = vadd.f32 0.0, %v6964
    %v6966 = vpop.f32.mrb[0].mxu0
    %v6967 = vadd.f32 0.0, %v6966
    %v6968 = vpop.f32.mrb[0].mxu0
    %v6969 = vadd.f32 0.0, %v6968
    %v6970 = vpop.f32.mrb[0].mxu0
    %v6971 = vadd.f32 0.0, %v6970
    %6972 = vdwg.mxu0
    %6973 = vmatprep.subr.bf16.mxu0 %v6925
    %6974 = vmatpush1.bf16.msra.mxu0 %v6924
    %6975 = vmatprep.subr.bf16.mxu0 %v6929
    %6976 = vmatpush1.bf16.msra.mxu0 %v6928
    %6977 = vmatprep.subr.bf16.mxu0 0
    %6978 = vmatpush1.bf16.msra.mxu0 0
    %6979 = vmatprep.subr.bf16.mxu0 0
    %6980 = vmatpush1.bf16.msra.mxu0 0
    %6981 = vmatprep.subr.bf16.mxu0 0
    %6982 = vmatpush1.bf16.msra.mxu0 0
    %6983 = vmatprep.subr.bf16.mxu0 0
    %6984 = vmatpush1.bf16.msra.mxu0 0
    %6985 = vmatprep.subr.bf16.mxu0 0
    %6986 = vmatpush1.bf16.msra.mxu0 0
    %6987 = vmatprep.subr.bf16.mxu0 0
    %6988 = vmatpush1.bf16.msra.mxu0 0
    %6989 = vmatprep.subr.bf16.mxu0 0
    %6990 = vmatpush1.bf16.msra.mxu0 0
    %6991 = vmatprep.subr.bf16.mxu0 0
    %6992 = vmatpush1.bf16.msra.mxu0 0
    %6993 = vmatprep.subr.bf16.mxu0 0
    %6994 = vmatpush1.bf16.msra.mxu0 0
    %6995 = vmatprep.subr.bf16.mxu0 0
    %6996 = vmatpush1.bf16.msra.mxu0 0
    %6997 = vmatprep.subr.bf16.mxu0 0
    %6998 = vmatpush1.bf16.msra.mxu0 0
    %6999 = vmatprep.subr.bf16.mxu0 0
    %7000 = vmatpush1.bf16.msra.mxu0 0
    %7001 = vmatprep.subr.bf16.mxu0 0
    %7002 = vmatpush1.bf16.msra.mxu0 0
    %7003 = vmatprep.subr.bf16.mxu0 0
    %7004 = vmatpush1.bf16.msra.mxu0 0
    %7005 = vmatprep.mubr.bf16.mxu0 0
    %7006 = vmatmul.mubr.bf16.gmra.mrb[0].mxu0 %v6707
    %v7007 = vpop.f32.mrb[0].mxu0
    %v7008 = vadd.f32 0.0, %v7007
    %v7009 = vpop.f32.mrb[0].mxu0
    %v7010 = vadd.f32 0.0, %v7009
    %v7011 = vpop.f32.mrb[0].mxu0
    %v7012 = vadd.f32 0.0, %v7011
    %v7013 = vpop.f32.mrb[0].mxu0
    %v7014 = vadd.f32 0.0, %v7013
    %7015 = vdwg.mxu0
    %s7016 = scalar_lea.vmem %s16, 9
    %v7017 = vld [vmem:[%s7016] ss:$2 sm:$0xf]
    %v7019 = vlaneseq
    %v7020 = vshrl.u32 %v7019, 7
    %v7021 = vsub.s32 0, %v7020
    %v7022 = vrot.slane %v7017, %v7021
    %v7023 = vlaneseq
    %v7024 = vshrl.u32 %v7023, 7
    %v7025 = vsub.s32 1, %v7024
    %v7026 = vrot.slane %v7017, %v7025
    %v7027 = vlaneseq
    %v7028 = vshrl.u32 %v7027, 7
    %v7029 = vsub.s32 2, %v7028
    %v7030 = vrot.slane %v7017, %v7029
    %v7031 = vlaneseq
    %v7032 = vshrl.u32 %v7031, 7
    %v7033 = vsub.s32 3, %v7032
    %v7034 = vrot.slane %v7017, %v7033
    %v7039 = vmul.f32 %v6965, %v7022
    %v7040 = vmul.f32 %v6967, %v7026
    %v7041 = vmul.f32 %v7008, %v7030
    %v7042 = vmul.f32 %v7010, %v7034
    %v7043 = vmul.f32 %v6969, %v7022
    %v7044 = vmul.f32 %v6971, %v7026
    %v7045 = vmul.f32 %v7012, %v7030
    %v7046 = vmul.f32 %v7014, %v7034
    %s7047 = scalar_lea.vmem %s15, 9
    %v7048 = vld [vmem:[%s7047] ss:$2 sm:$0xf]
    %v7050 = vlaneseq
    %v7051 = vshrl.u32 %v7050, 7
    %v7052 = vsub.s32 0, %v7051
    %v7053 = vrot.slane %v7048, %v7052
    %v7054 = vlaneseq
    %v7055 = vshrl.u32 %v7054, 7
    %v7056 = vsub.s32 1, %v7055
    %v7057 = vrot.slane %v7048, %v7056
    %v7058 = vlaneseq
    %v7059 = vshrl.u32 %v7058, 7
    %v7060 = vsub.s32 2, %v7059
    %v7061 = vrot.slane %v7048, %v7060
    %v7062 = vlaneseq
    %v7063 = vshrl.u32 %v7062, 7
    %v7064 = vsub.s32 3, %v7063
    %v7065 = vrot.slane %v7048, %v7064
    %v7070 = vadd.f32 %v7039, %v7053
    %v7071 = vadd.f32 %v7040, %v7057
    %v7072 = vadd.f32 %v7041, %v7061
    %v7073 = vadd.f32 %v7042, %v7065
    %v7074 = vadd.f32 %v7043, %v7053
    %v7075 = vadd.f32 %v7044, %v7057
    %v7076 = vadd.f32 %v7045, %v7061
    %v7077 = vadd.f32 %v7046, %v7065
    %v7078 = vmax.f32 %v7070, 0.0
    %v7079 = vmax.f32 %v7071, 0.0
    %v7080 = vmax.f32 %v7072, 0.0
    %v7081 = vmax.f32 %v7073, 0.0
    %v7082 = vmax.f32 %v7074, 0.0
    %v7083 = vmax.f32 %v7075, 0.0
    %v7084 = vmax.f32 %v7076, 0.0
    %v7085 = vmax.f32 %v7077, 0.0
    %v7086 = vld [vmem:[%s6865 + $0x80] sm:$0xff]
    %v7087 = vld [vmem:[%s6865 + $0x88] sm:$0xff]
    %v7088 = vld [vmem:[%s6865 + $0x90] sm:$0xff]
    %v7089 = vld [vmem:[%s6865 + $0x98] sm:$0xff]
    %v7090 = vld [vmem:[%s6865 + $0xa0] sm:$0xff]
    %v7091 = vld [vmem:[%s6865 + $0xa8] sm:$0xff]
    %v7092 = vld [vmem:[%s6865 + $0xb0] sm:$0xff]
    %v7093 = vld [vmem:[%s6865 + $0xb8] sm:$0xff]
    %v7094 = vld [vmem:[%s6865 + $0xc0] sm:$0xff]
    %v7095 = vld [vmem:[%s6865 + $0xc8] sm:$0xff]
    %v7096 = vld [vmem:[%s6865 + $0xd0] sm:$0xff]
    %v7097 = vld [vmem:[%s6865 + $0xd8] sm:$0xff]
    %v7098 = vld [vmem:[%s6865 + $0xe0] sm:$0xff]
    %v7099 = vld [vmem:[%s6865 + $0xe8] sm:$0xff]
    %v7100 = vld [vmem:[%s6865 + $0xf0] sm:$0xff]
    %v7101 = vld [vmem:[%s6865 + $0xf8] sm:$0xff]
    %v7102 = vunpack.c.l.s8.bf16 %v7086
    %v7103 = vunpack.c.h.s8.bf16 %v7086
    %v7104 = vunpack.c.l.s8.bf16 %v7087
    %v7105 = vunpack.c.h.s8.bf16 %v7087
    %v7106 = vunpack.c.l.s8.bf16 %v7088
    %v7107 = vunpack.c.h.s8.bf16 %v7088
    %v7108 = vunpack.c.l.s8.bf16 %v7089
    %v7109 = vunpack.c.h.s8.bf16 %v7089
    %v7110 = vunpack.c.l.s8.bf16 %v7090
    %v7111 = vunpack.c.h.s8.bf16 %v7090
    %v7112 = vunpack.c.l.s8.bf16 %v7091
    %v7113 = vunpack.c.h.s8.bf16 %v7091
    %v7114 = vunpack.c.l.s8.bf16 %v7092
    %v7115 = vunpack.c.h.s8.bf16 %v7092
    %v7116 = vunpack.c.l.s8.bf16 %v7093
    %v7117 = vunpack.c.h.s8.bf16 %v7093
    %v7118 = vunpack.c.l.s8.bf16 %v7094
    %v7119 = vunpack.c.h.s8.bf16 %v7094
    %v7120 = vunpack.c.l.s8.bf16 %v7095
    %v7121 = vunpack.c.h.s8.bf16 %v7095
    %v7122 = vunpack.c.l.s8.bf16 %v7096
    %v7123 = vunpack.c.h.s8.bf16 %v7096
    %v7124 = vunpack.c.l.s8.bf16 %v7097
    %v7125 = vunpack.c.h.s8.bf16 %v7097
    %v7126 = vunpack.c.l.s8.bf16 %v7098
    %v7127 = vunpack.c.h.s8.bf16 %v7098
    %v7128 = vunpack.c.l.s8.bf16 %v7099
    %v7129 = vunpack.c.h.s8.bf16 %v7099
    %v7130 = vunpack.c.l.s8.bf16 %v7100
    %v7131 = vunpack.c.h.s8.bf16 %v7100
    %v7132 = vunpack.c.l.s8.bf16 %v7101
    %v7133 = vunpack.c.h.s8.bf16 %v7101
    %v7134 = vpack.c.bf16 %v7082, %v7078
    %v7135 = vpack.c.bf16 %v7083, %v7079
    %v7136 = vpack.c.bf16 %v7084, %v7080
    %v7137 = vpack.c.bf16 %v7085, %v7081
    %7138 = vmatprep.subr.bf16.mxu0 0
    %7139 = vmatpush1.bf16.msra.mxu0 %v7102
    %7140 = vmatprep.subr.bf16.mxu0 0
    %7141 = vmatpush1.bf16.msra.mxu0 %v7103
    %7142 = vmatprep.subr.bf16.mxu0 0
    %7143 = vmatpush1.bf16.msra.mxu0 %v7104
    %7144 = vmatprep.subr.bf16.mxu0 0
    %7145 = vmatpush1.bf16.msra.mxu0 %v7105
    %7146 = vmatprep.subr.bf16.mxu0 0
    %7147 = vmatpush1.bf16.msra.mxu0 %v7106
    %7148 = vmatprep.subr.bf16.mxu0 0
    %7149 = vmatpush1.bf16.msra.mxu0 %v7107
    %7150 = vmatprep.subr.bf16.mxu0 0
    %7151 = vmatpush1.bf16.msra.mxu0 %v7108
    %7152 = vmatprep.subr.bf16.mxu0 0
    %7153 = vmatpush1.bf16.msra.mxu0 %v7109
    %7154 = vmatprep.subr.bf16.mxu0 0
    %7155 = vmatpush1.bf16.msra.mxu0 %v7110
    %7156 = vmatprep.subr.bf16.mxu0 0
    %7157 = vmatpush1.bf16.msra.mxu0 %v7111
    %7158 = vmatprep.subr.bf16.mxu0 0
    %7159 = vmatpush1.bf16.msra.mxu0 %v7112
    %7160 = vmatprep.subr.bf16.mxu0 0
    %7161 = vmatpush1.bf16.msra.mxu0 %v7113
    %7162 = vmatprep.subr.bf16.mxu0 0
    %7163 = vmatpush1.bf16.msra.mxu0 %v7114
    %7164 = vmatprep.subr.bf16.mxu0 0
    %7165 = vmatpush1.bf16.msra.mxu0 %v7115
    %7166 = vmatprep.subr.bf16.mxu0 0
    %7167 = vmatpush1.bf16.msra.mxu0 %v7116
    %7168 = vmatprep.subr.bf16.mxu0 0
    %7169 = vmatpush1.bf16.msra.mxu0 %v7117
    %7170 = vmatprep.mubr.bf16.mxu0 %v7135
    %7171 = vmatmul.mubr.bf16.gmra.mrb[0].mxu0 %v7134
    %v7172 = vpop.f32.mrb[0].mxu0
    %v7173 = vadd.f32 0.0, %v7172
    %v7174 = vpop.f32.mrb[0].mxu0
    %v7175 = vpop.f32.mrb[0].mxu0
    %v7176 = vadd.f32 0.0, %v7175
    %v7177 = vpop.f32.mrb[0].mxu0
    %7178 = vdwg.mxu0
    %7179 = vmatprep.subr.bf16.mxu0 0
    %7180 = vmatpush1.bf16.msra.mxu0 %v7118
    %7181 = vmatprep.subr.bf16.mxu0 0
    %7182 = vmatpush1.bf16.msra.mxu0 %v7119
    %7183 = vmatprep.subr.bf16.mxu0 0
    %7184 = vmatpush1.bf16.msra.mxu0 %v7120
    %7185 = vmatprep.subr.bf16.mxu0 0
    %7186 = vmatpush1.bf16.msra.mxu0 %v7121
    %7187 = vmatprep.subr.bf16.mxu0 0
    %7188 = vmatpush1.bf16.msra.mxu0 %v7122
    %7189 = vmatprep.subr.bf16.mxu0 0
    %7190 = vmatpush1.bf16.msra.mxu0 %v7123
    %7191 = vmatprep.subr.bf16.mxu0 0
    %7192 = vmatpush1.bf16.msra.mxu0 %v7124
    %7193 = vmatprep.subr.bf16.mxu0 0
    %7194 = vmatpush1.bf16.msra.mxu0 %v7125
    %7195 = vmatprep.subr.bf16.mxu0 0
    %7196 = vmatpush1.bf16.msra.mxu0 %v7126
    %7197 = vmatprep.subr.bf16.mxu0 0
    %7198 = vmatpush1.bf16.msra.mxu0 %v7127
    %7199 = vmatprep.subr.bf16.mxu0 0
    %7200 = vmatpush1.bf16.msra.mxu0 %v7128
    %7201 = vmatprep.subr.bf16.mxu0 0
    %7202 = vmatpush1.bf16.msra.mxu0 %v7129
    %7203 = vmatprep.subr.bf16.mxu0 0
    %7204 = vmatpush1.bf16.msra.mxu0 %v7130
    %7205 = vmatprep.subr.bf16.mxu0 0
    %7206 = vmatpush1.bf16.msra.mxu0 %v7131
    %7207 = vmatprep.subr.bf16.mxu0 0
    %7208 = vmatpush1.bf16.msra.mxu0 %v7132
    %7209 = vmatprep.subr.bf16.mxu0 0
    %7210 = vmatpush1.bf16.msra.mxu0 %v7133
    %7211 = vmatprep.mubr.bf16.mxu0 %v7137
    %7212 = vmatmul.mubr.bf16.gmra.mrb[0].mxu0 %v7136
    %v7213 = vpop.f32.mrb[0].mxu0
    %v7214 = vadd.f32 %v7173, %v7213
    %v7215 = vpop.f32.mrb[0].mxu0
    %v7216 = vpop.f32.mrb[0].mxu0
    %v7217 = vadd.f32 %v7176, %v7216
    %v7218 = vpop.f32.mrb[0].mxu0
    %7219 = vdwg.mxu0
    %7220 = vmatprep.subr.bf16.mxu0 0
    %7221 = vmatpush1.bf16.msra.mxu0 %v6882
    %7222 = vmatprep.subr.bf16.mxu0 0
    %7223 = vmatpush1.bf16.msra.mxu0 %v6883
    %7224 = vmatprep.subr.bf16.mxu0 0
    %7225 = vmatpush1.bf16.msra.mxu0 %v6884
    %7226 = vmatprep.subr.bf16.mxu0 0
    %7227 = vmatpush1.bf16.msra.mxu0 %v6885
    %7228 = vmatprep.subr.bf16.mxu0 0
    %7229 = vmatpush1.bf16.msra.mxu0 %v6886
    %7230 = vmatprep.subr.bf16.mxu0 0
    %7231 = vmatpush1.bf16.msra.mxu0 %v6887
    %7232 = vmatprep.subr.bf16.mxu0 0
    %7233 = vmatpush1.bf16.msra.mxu0 %v6888
    %7234 = vmatprep.subr.bf16.mxu0 0
    %7235 = vmatpush1.bf16.msra.mxu0 %v6889
    %7236 = vmatprep.subr.bf16.mxu0 0
    %7237 = vmatpush1.bf16.msra.mxu0 %v6890
    %7238 = vmatprep.subr.bf16.mxu0 0
    %7239 = vmatpush1.bf16.msra.mxu0 %v6891
    %7240 = vmatprep.subr.bf16.mxu0 0
    %7241 = vmatpush1.bf16.msra.mxu0 %v6892
    %7242 = vmatprep.subr.bf16.mxu0 0
    %7243 = vmatpush1.bf16.msra.mxu0 %v6893
    %7244 = vmatprep.subr.bf16.mxu0 0
    %7245 = vmatpush1.bf16.msra.mxu0 %v6894
    %7246 = vmatprep.subr.bf16.mxu0 0
    %7247 = vmatpush1.bf16.msra.mxu0 %v6895
    %7248 = vmatprep.subr.bf16.mxu0 0
    %7249 = vmatpush1.bf16.msra.mxu0 %v6896
    %7250 = vmatprep.subr.bf16.mxu0 0
    %7251 = vmatpush1.bf16.msra.mxu0 %v6897
    %7252 = vmatprep.mubr.bf16.mxu0 %v6915
    %7253 = vmatmul.mubr.bf16.gmra.mrb[0].mxu0 %v6914
    %v7254 = vpop.f32.mrb[0].mxu0
    %v7255 = vadd.f32 %v7214, %v7254
    %v7256 = vpop.f32.mrb[0].mxu0
    %v7257 = vpop.f32.mrb[0].mxu0
    %v7258 = vadd.f32 %v7217, %v7257
    %v7259 = vpop.f32.mrb[0].mxu0
    %7260 = vdwg.mxu0
    %7261 = vmatprep.subr.bf16.mxu0 0
    %7262 = vmatpush1.bf16.msra.mxu0 %v6898
    %7263 = vmatprep.subr.bf16.mxu0 0
    %7264 = vmatpush1.bf16.msra.mxu0 %v6899
    %7265 = vmatprep.subr.bf16.mxu0 0
    %7266 = vmatpush1.bf16.msra.mxu0 %v6900
    %7267 = vmatprep.subr.bf16.mxu0 0
    %7268 = vmatpush1.bf16.msra.mxu0 %v6901
    %7269 = vmatprep.subr.bf16.mxu0 0
    %7270 = vmatpush1.bf16.msra.mxu0 %v6902
    %7271 = vmatprep.subr.bf16.mxu0 0
    %7272 = vmatpush1.bf16.msra.mxu0 %v6903
    %7273 = vmatprep.subr.bf16.mxu0 0
    %7274 = vmatpush1.bf16.msra.mxu0 %v6904
    %7275 = vmatprep.subr.bf16.mxu0 0
    %7276 = vmatpush1.bf16.msra.mxu0 %v6905
    %7277 = vmatprep.subr.bf16.mxu0 0
    %7278 = vmatpush1.bf16.msra.mxu0 %v6906
    %7279 = vmatprep.subr.bf16.mxu0 0
    %7280 = vmatpush1.bf16.msra.mxu0 %v6907
    %7281 = vmatprep.subr.bf16.mxu0 0
    %7282 = vmatpush1.bf16.msra.mxu0 %v6908
    %7283 = vmatprep.subr.bf16.mxu0 0
    %7284 = vmatpush1.bf16.msra.mxu0 %v6909
    %7285 = vmatprep.subr.bf16.mxu0 0
    %7286 = vmatpush1.bf16.msra.mxu0 %v6910
    %7287 = vmatprep.subr.bf16.mxu0 0
    %7288 = vmatpush1.bf16.msra.mxu0 %v6911
    %7289 = vmatprep.subr.bf16.mxu0 0
    %7290 = vmatpush1.bf16.msra.mxu0 %v6912
    %7291 = vmatprep.subr.bf16.mxu0 0
    %7292 = vmatpush1.bf16.msra.mxu0 %v6913
    %7293 = vmatprep.mubr.bf16.mxu0 %v6917
    %7294 = vmatmul.mubr.bf16.gmra.mrb[0].mxu0 %v6916
    %v7295 = vpop.f32.mrb[0].mxu0
    %v7296 = vadd.f32 %v7255, %v7295
    %v7297 = vpop.f32.mrb[0].mxu0
    %v7298 = vpop.f32.mrb[0].mxu0
    %v7299 = vadd.f32 %v7258, %v7298
    %v7300 = vpop.f32.mrb[0].mxu0
    %7301 = vdwg.mxu0
    %v7302 = vld [vmem:[%s6693 + $0x40] sm:$0xff]
    %v7303 = vld [vmem:[%s6693 + $0x48] sm:$0xff]
    %v7304 = vld [vmem:[%s6693 + $0x50] sm:$0xff]
    %v7305 = vld [vmem:[%s6693 + $0x58] sm:$0xff]
    %v7306 = vunpack.c.l.s8.bf16 %v7302
    %v7307 = vunpack.c.l.s8.bf16 %v7303
    %v7308 = vunpack.c.l.s8.bf16 %v7304
    %v7309 = vunpack.c.l.s8.bf16 %v7305
    %v7310 = vunpack.c.h.s8.bf16 %v7302
    %v7311 = vunpack.c.h.s8.bf16 %v7303
    %v7312 = vunpack.c.h.s8.bf16 %v7304
    %v7313 = vunpack.c.h.s8.bf16 %v7305
    %7314 = vmatprep.subr.bf16.mxu0 %v7307
    %7315 = vmatpush1.bf16.msra.mxu0 %v7306
    %7316 = vmatprep.subr.bf16.mxu0 %v7311
    %7317 = vmatpush1.bf16.msra.mxu0 %v7310
    %7318 = vmatprep.subr.bf16.mxu0 0
    %7319 = vmatpush1.bf16.msra.mxu0 0
    %7320 = vmatprep.subr.bf16.mxu0 0
    %7321 = vmatpush1.bf16.msra.mxu0 0
    %7322 = vmatprep.subr.bf16.mxu0 0
    %7323 = vmatpush1.bf16.msra.mxu0 0
    %7324 = vmatprep.subr.bf16.mxu0 0
    %7325 = vmatpush1.bf16.msra.mxu0 0
    %7326 = vmatprep.subr.bf16.mxu0 0
    %7327 = vmatpush1.bf16.msra.mxu0 0
    %7328 = vmatprep.subr.bf16.mxu0 0
    %7329 = vmatpush1.bf16.msra.mxu0 0
    %7330 = vmatprep.subr.bf16.mxu0 0
    %7331 = vmatpush1.bf16.msra.mxu0 0
    %7332 = vmatprep.subr.bf16.mxu0 0
    %7333 = vmatpush1.bf16.msra.mxu0 0
    %7334 = vmatprep.subr.bf16.mxu0 0
    %7335 = vmatpush1.bf16.msra.mxu0 0
    %7336 = vmatprep.subr.bf16.mxu0 0
    %7337 = vmatpush1.bf16.msra.mxu0 0
    %7338 = vmatprep.subr.bf16.mxu0 0
    %7339 = vmatpush1.bf16.msra.mxu0 0
    %7340 = vmatprep.subr.bf16.mxu0 0
    %7341 = vmatpush1.bf16.msra.mxu0 0
    %7342 = vmatprep.subr.bf16.mxu0 0
    %7343 = vmatpush1.bf16.msra.mxu0 0
    %7344 = vmatprep.subr.bf16.mxu0 0
    %7345 = vmatpush1.bf16.msra.mxu0 0
    %7346 = vmatprep.mubr.bf16.mxu0 0
    %7347 = vmatmul.mubr.bf16.gmra.mrb[0].mxu0 %v6707
    %v7348 = vpop.f32.mrb[0].mxu0
    %v7349 = vadd.f32 0.0, %v7348
    %v7350 = vpop.f32.mrb[0].mxu0
    %v7351 = vadd.f32 0.0, %v7350
    %v7352 = vpop.f32.mrb[0].mxu0
    %v7353 = vadd.f32 0.0, %v7352
    %v7354 = vpop.f32.mrb[0].mxu0
    %v7355 = vadd.f32 0.0, %v7354
    %7356 = vdwg.mxu0
    %7357 = vmatprep.subr.bf16.mxu0 %v7309
    %7358 = vmatpush1.bf16.msra.mxu0 %v7308
    %7359 = vmatprep.subr.bf16.mxu0 %v7313
    %7360 = vmatpush1.bf16.msra.mxu0 %v7312
    %7361 = vmatprep.subr.bf16.mxu0 0
    %7362 = vmatpush1.bf16.msra.mxu0 0
    %7363 = vmatprep.subr.bf16.mxu0 0
    %7364 = vmatpush1.bf16.msra.mxu0 0
    %7365 = vmatprep.subr.bf16.mxu0 0
    %7366 = vmatpush1.bf16.msra.mxu0 0
    %7367 = vmatprep.subr.bf16.mxu0 0
    %7368 = vmatpush1.bf16.msra.mxu0 0
    %7369 = vmatprep.subr.bf16.mxu0 0
    %7370 = vmatpush1.bf16.msra.mxu0 0
    %7371 = vmatprep.subr.bf16.mxu0 0
    %7372 = vmatpush1.bf16.msra.mxu0 0
    %7373 = vmatprep.subr.bf16.mxu0 0
    %7374 = vmatpush1.bf16.msra.mxu0 0
    %7375 = vmatprep.subr.bf16.mxu0 0
    %7376 = vmatpush1.bf16.msra.mxu0 0
    %7377 = vmatprep.subr.bf16.mxu0 0
    %7378 = vmatpush1.bf16.msra.mxu0 0
    %7379 = vmatprep.subr.bf16.mxu0 0
    %7380 = vmatpush1.bf16.msra.mxu0 0
    %7381 = vmatprep.subr.bf16.mxu0 0
    %7382 = vmatpush1.bf16.msra.mxu0 0
    %7383 = vmatprep.subr.bf16.mxu0 0
    %7384 = vmatpush1.bf16.msra.mxu0 0
    %7385 = vmatprep.subr.bf16.mxu0 0
    %7386 = vmatpush1.bf16.msra.mxu0 0
    %7387 = vmatprep.subr.bf16.mxu0 0
    %7388 = vmatpush1.bf16.msra.mxu0 0
    %7389 = vmatprep.mubr.bf16.mxu0 0
    %7390 = vmatmul.mubr.bf16.gmra.mrb[0].mxu0 %v6707
    %v7391 = vpop.f32.mrb[0].mxu0
    %v7392 = vadd.f32 0.0, %v7391
    %v7393 = vpop.f32.mrb[0].mxu0
    %v7394 = vadd.f32 0.0, %v7393
    %v7395 = vpop.f32.mrb[0].mxu0
    %v7396 = vadd.f32 0.0, %v7395
    %v7397 = vpop.f32.mrb[0].mxu0
    %v7398 = vadd.f32 0.0, %v7397
    %7399 = vdwg.mxu0
    %s7400 = scalar_lea.vmem %s16, 17
    %v7401 = vld [vmem:[%s7400] ss:$2 sm:$0xf]
    %v7403 = vlaneseq
    %v7404 = vshrl.u32 %v7403, 7
    %v7405 = vsub.s32 0, %v7404
    %v7406 = vrot.slane %v7401, %v7405
    %v7407 = vlaneseq
    %v7408 = vshrl.u32 %v7407, 7
    %v7409 = vsub.s32 1, %v7408
    %v7410 = vrot.slane %v7401, %v7409
    %v7411 = vlaneseq
    %v7412 = vshrl.u32 %v7411, 7
    %v7413 = vsub.s32 2, %v7412
    %v7414 = vrot.slane %v7401, %v7413
    %v7415 = vlaneseq
    %v7416 = vshrl.u32 %v7415, 7
    %v7417 = vsub.s32 3, %v7416
    %v7418 = vrot.slane %v7401, %v7417
    %v7423 = vmul.f32 %v7349, %v7406
    %v7424 = vmul.f32 %v7351, %v7410
    %v7425 = vmul.f32 %v7392, %v7414
    %v7426 = vmul.f32 %v7394, %v7418
    %v7427 = vmul.f32 %v7353, %v7406
    %v7428 = vmul.f32 %v7355, %v7410
    %v7429 = vmul.f32 %v7396, %v7414
    %v7430 = vmul.f32 %v7398, %v7418
    %s7431 = scalar_lea.vmem %s15, 17
    %v7432 = vld [vmem:[%s7431] ss:$2 sm:$0xf]
    %v7434 = vlaneseq
    %v7435 = vshrl.u32 %v7434, 7
    %v7436 = vsub.s32 0, %v7435
    %v7437 = vrot.slane %v7432, %v7436
    %v7438 = vlaneseq
    %v7439 = vshrl.u32 %v7438, 7
    %v7440 = vsub.s32 1, %v7439
    %v7441 = vrot.slane %v7432, %v7440
    %v7442 = vlaneseq
    %v7443 = vshrl.u32 %v7442, 7
    %v7444 = vsub.s32 2, %v7443
    %v7445 = vrot.slane %v7432, %v7444
    %v7446 = vlaneseq
    %v7447 = vshrl.u32 %v7446, 7
    %v7448 = vsub.s32 3, %v7447
    %v7449 = vrot.slane %v7432, %v7448
    %v7454 = vadd.f32 %v7423, %v7437
    %v7455 = vadd.f32 %v7424, %v7441
    %v7456 = vadd.f32 %v7425, %v7445
    %v7457 = vadd.f32 %v7426, %v7449
    %v7458 = vadd.f32 %v7427, %v7437
    %v7459 = vadd.f32 %v7428, %v7441
    %v7460 = vadd.f32 %v7429, %v7445
    %v7461 = vadd.f32 %v7430, %v7449
    %v7462 = vmax.f32 %v7454, 0.0
    %v7463 = vmax.f32 %v7455, 0.0
    %v7464 = vmax.f32 %v7456, 0.0
    %v7465 = vmax.f32 %v7457, 0.0
    %v7466 = vmax.f32 %v7458, 0.0
    %v7467 = vmax.f32 %v7459, 0.0
    %v7468 = vmax.f32 %v7460, 0.0
    %v7469 = vmax.f32 %v7461, 0.0
    %v7470 = vld [vmem:[%s6865 + $0x100] sm:$0xff]
    %v7471 = vld [vmem:[%s6865 + $0x108] sm:$0xff]
    %v7472 = vld [vmem:[%s6865 + $0x110] sm:$0xff]
    %v7473 = vld [vmem:[%s6865 + $0x118] sm:$0xff]
    %v7474 = vld [vmem:[%s6865 + $0x120] sm:$0xff]
    %v7475 = vld [vmem:[%s6865 + $0x128] sm:$0xff]
    %v7476 = vld [vmem:[%s6865 + $0x130] sm:$0xff]
    %v7477 = vld [vmem:[%s6865 + $0x138] sm:$0xff]
    %v7478 = vld [vmem:[%s6865 + $0x140] sm:$0xff]
    %v7479 = vld [vmem:[%s6865 + $0x148] sm:$0xff]
    %v7480 = vld [vmem:[%s6865 + $0x150] sm:$0xff]
    %v7481 = vld [vmem:[%s6865 + $0x158] sm:$0xff]
    %v7482 = vld [vmem:[%s6865 + $0x160] sm:$0xff]
    %v7483 = vld [vmem:[%s6865 + $0x168] sm:$0xff]
    %v7484 = vld [vmem:[%s6865 + $0x170] sm:$0xff]
    %v7485 = vld [vmem:[%s6865 + $0x178] sm:$0xff]
    %v7486 = vunpack.c.l.s8.bf16 %v7470
    %v7487 = vunpack.c.h.s8.bf16 %v7470
    %v7488 = vunpack.c.l.s8.bf16 %v7471
    %v7489 = vunpack.c.h.s8.bf16 %v7471
    %v7490 = vunpack.c.l.s8.bf16 %v7472
    %v7491 = vunpack.c.h.s8.bf16 %v7472
    %v7492 = vunpack.c.l.s8.bf16 %v7473
    %v7493 = vunpack.c.h.s8.bf16 %v7473
    %v7494 = vunpack.c.l.s8.bf16 %v7474
    %v7495 = vunpack.c.h.s8.bf16 %v7474
    %v7496 = vunpack.c.l.s8.bf16 %v7475
    %v7497 = vunpack.c.h.s8.bf16 %v7475
    %v7498 = vunpack.c.l.s8.bf16 %v7476
    %v7499 = vunpack.c.h.s8.bf16 %v7476
    %v7500 = vunpack.c.l.s8.bf16 %v7477
    %v7501 = vunpack.c.h.s8.bf16 %v7477
    %v7502 = vunpack.c.l.s8.bf16 %v7478
    %v7503 = vunpack.c.h.s8.bf16 %v7478
    %v7504 = vunpack.c.l.s8.bf16 %v7479
    %v7505 = vunpack.c.h.s8.bf16 %v7479
    %v7506 = vunpack.c.l.s8.bf16 %v7480
    %v7507 = vunpack.c.h.s8.bf16 %v7480
    %v7508 = vunpack.c.l.s8.bf16 %v7481
    %v7509 = vunpack.c.h.s8.bf16 %v7481
    %v7510 = vunpack.c.l.s8.bf16 %v7482
    %v7511 = vunpack.c.h.s8.bf16 %v7482
    %v7512 = vunpack.c.l.s8.bf16 %v7483
    %v7513 = vunpack.c.h.s8.bf16 %v7483
    %v7514 = vunpack.c.l.s8.bf16 %v7484
    %v7515 = vunpack.c.h.s8.bf16 %v7484
    %v7516 = vunpack.c.l.s8.bf16 %v7485
    %v7517 = vunpack.c.h.s8.bf16 %v7485
    %v7518 = vpack.c.bf16 %v7466, %v7462
    %v7519 = vpack.c.bf16 %v7467, %v7463
    %v7520 = vpack.c.bf16 %v7468, %v7464
    %v7521 = vpack.c.bf16 %v7469, %v7465
    %7522 = vmatprep.subr.bf16.mxu0 0
    %7523 = vmatpush1.bf16.msra.mxu0 %v7486
    %7524 = vmatprep.subr.bf16.mxu0 0
    %7525 = vmatpush1.bf16.msra.mxu0 %v7487
    %7526 = vmatprep.subr.bf16.mxu0 0
    %7527 = vmatpush1.bf16.msra.mxu0 %v7488
    %7528 = vmatprep.subr.bf16.mxu0 0
    %7529 = vmatpush1.bf16.msra.mxu0 %v7489
    %7530 = vmatprep.subr.bf16.mxu0 0
    %7531 = vmatpush1.bf16.msra.mxu0 %v7490
    %7532 = vmatprep.subr.bf16.mxu0 0
    %7533 = vmatpush1.bf16.msra.mxu0 %v7491
    %7534 = vmatprep.subr.bf16.mxu0 0
    %7535 = vmatpush1.bf16.msra.mxu0 %v7492
    %7536 = vmatprep.subr.bf16.mxu0 0
    %7537 = vmatpush1.bf16.msra.mxu0 %v7493
    %7538 = vmatprep.subr.bf16.mxu0 0
    %7539 = vmatpush1.bf16.msra.mxu0 %v7494
    %7540 = vmatprep.subr.bf16.mxu0 0
    %7541 = vmatpush1.bf16.msra.mxu0 %v7495
    %7542 = vmatprep.subr.bf16.mxu0 0
    %7543 = vmatpush1.bf16.msra.mxu0 %v7496
    %7544 = vmatprep.subr.bf16.mxu0 0
    %7545 = vmatpush1.bf16.msra.mxu0 %v7497
    %7546 = vmatprep.subr.bf16.mxu0 0
    %7547 = vmatpush1.bf16.msra.mxu0 %v7498
    %7548 = vmatprep.subr.bf16.mxu0 0
    %7549 = vmatpush1.bf16.msra.mxu0 %v7499
    %7550 = vmatprep.subr.bf16.mxu0 0
    %7551 = vmatpush1.bf16.msra.mxu0 %v7500
    %7552 = vmatprep.subr.bf16.mxu0 0
    %7553 = vmatpush1.bf16.msra.mxu0 %v7501
    %7554 = vmatprep.mubr.bf16.mxu0 %v7519
    %7555 = vmatmul.mubr.bf16.gmra.mrb[0].mxu0 %v7518
    %v7556 = vpop.f32.mrb[0].mxu0
    %v7557 = vadd.f32 0.0, %v7556
    %v7558 = vpop.f32.mrb[0].mxu0
    %v7559 = vpop.f32.mrb[0].mxu0
    %v7560 = vadd.f32 0.0, %v7559
    %v7561 = vpop.f32.mrb[0].mxu0
    %7562 = vdwg.mxu0
    %7563 = vmatprep.subr.bf16.mxu0 0
    %7564 = vmatpush1.bf16.msra.mxu0 %v7502
    %7565 = vmatprep.subr.bf16.mxu0 0
    %7566 = vmatpush1.bf16.msra.mxu0 %v7503
    %7567 = vmatprep.subr.bf16.mxu0 0
    %7568 = vmatpush1.bf16.msra.mxu0 %v7504
    %7569 = vmatprep.subr.bf16.mxu0 0
    %7570 = vmatpush1.bf16.msra.mxu0 %v7505
    %7571 = vmatprep.subr.bf16.mxu0 0
    %7572 = vmatpush1.bf16.msra.mxu0 %v7506
    %7573 = vmatprep.subr.bf16.mxu0 0
    %7574 = vmatpush1.bf16.msra.mxu0 %v7507
    %7575 = vmatprep.subr.bf16.mxu0 0
    %7576 = vmatpush1.bf16.msra.mxu0 %v7508
    %7577 = vmatprep.subr.bf16.mxu0 0
    %7578 = vmatpush1.bf16.msra.mxu0 %v7509
    %7579 = vmatprep.subr.bf16.mxu0 0
    %7580 = vmatpush1.bf16.msra.mxu0 %v7510
    %7581 = vmatprep.subr.bf16.mxu0 0
    %7582 = vmatpush1.bf16.msra.mxu0 %v7511
    %7583 = vmatprep.subr.bf16.mxu0 0
    %7584 = vmatpush1.bf16.msra.mxu0 %v7512
    %7585 = vmatprep.subr.bf16.mxu0 0
    %7586 = vmatpush1.bf16.msra.mxu0 %v7513
    %7587 = vmatprep.subr.bf16.mxu0 0
    %7588 = vmatpush1.bf16.msra.mxu0 %v7514
    %7589 = vmatprep.subr.bf16.mxu0 0
    %7590 = vmatpush1.bf16.msra.mxu0 %v7515
    %7591 = vmatprep.subr.bf16.mxu0 0
    %7592 = vmatpush1.bf16.msra.mxu0 %v7516
    %7593 = vmatprep.subr.bf16.mxu0 0
    %7594 = vmatpush1.bf16.msra.mxu0 %v7517
    %7595 = vmatprep.mubr.bf16.mxu0 %v7521
    %7596 = vmatmul.mubr.bf16.gmra.mrb[0].mxu0 %v7520
    %v7597 = vpop.f32.mrb[0].mxu0
    %v7598 = vadd.f32 %v7557, %v7597
    %v7599 = vpop.f32.mrb[0].mxu0
    %v7600 = vpop.f32.mrb[0].mxu0
    %v7601 = vadd.f32 %v7560, %v7600
    %v7602 = vpop.f32.mrb[0].mxu0
    %7603 = vdwg.mxu0
    %v7604 = vadd.f32 %v7296, %v7598
    %v7605 = vadd.f32 %v7299, %v7601
    %v7606 = vld [vmem:[%s6693 + $0x60] sm:$0xff]
    %v7607 = vld [vmem:[%s6693 + $0x68] sm:$0xff]
    %v7608 = vld [vmem:[%s6693 + $0x70] sm:$0xff]
    %v7609 = vld [vmem:[%s6693 + $0x78] sm:$0xff]
    %v7610 = vunpack.c.l.s8.bf16 %v7606
    %v7611 = vunpack.c.l.s8.bf16 %v7607
    %v7612 = vunpack.c.l.s8.bf16 %v7608
    %v7613 = vunpack.c.l.s8.bf16 %v7609
    %v7614 = vunpack.c.h.s8.bf16 %v7606
    %v7615 = vunpack.c.h.s8.bf16 %v7607
    %v7616 = vunpack.c.h.s8.bf16 %v7608
    %v7617 = vunpack.c.h.s8.bf16 %v7609
    %7618 = vmatprep.subr.bf16.mxu0 %v7611
    %7619 = vmatpush1.bf16.msra.mxu0 %v7610
    %7620 = vmatprep.subr.bf16.mxu0 %v7615
    %7621 = vmatpush1.bf16.msra.mxu0 %v7614
    %7622 = vmatprep.subr.bf16.mxu0 0
    %7623 = vmatpush1.bf16.msra.mxu0 0
    %7624 = vmatprep.subr.bf16.mxu0 0
    %7625 = vmatpush1.bf16.msra.mxu0 0
    %7626 = vmatprep.subr.bf16.mxu0 0
    %7627 = vmatpush1.bf16.msra.mxu0 0
    %7628 = vmatprep.subr.bf16.mxu0 0
    %7629 = vmatpush1.bf16.msra.mxu0 0
    %7630 = vmatprep.subr.bf16.mxu0 0
    %7631 = vmatpush1.bf16.msra.mxu0 0
    %7632 = vmatprep.subr.bf16.mxu0 0
    %7633 = vmatpush1.bf16.msra.mxu0 0
    %7634 = vmatprep.subr.bf16.mxu0 0
    %7635 = vmatpush1.bf16.msra.mxu0 0
    %7636 = vmatprep.subr.bf16.mxu0 0
    %7637 = vmatpush1.bf16.msra.mxu0 0
    %7638 = vmatprep.subr.bf16.mxu0 0
    %7639 = vmatpush1.bf16.msra.mxu0 0
    %7640 = vmatprep.subr.bf16.mxu0 0
    %7641 = vmatpush1.bf16.msra.mxu0 0
    %7642 = vmatprep.subr.bf16.mxu0 0
    %7643 = vmatpush1.bf16.msra.mxu0 0
    %7644 = vmatprep.subr.bf16.mxu0 0
    %7645 = vmatpush1.bf16.msra.mxu0 0
    %7646 = vmatprep.subr.bf16.mxu0 0
    %7647 = vmatpush1.bf16.msra.mxu0 0
    %7648 = vmatprep.subr.bf16.mxu0 0
    %7649 = vmatpush1.bf16.msra.mxu0 0
    %7650 = vmatprep.mubr.bf16.mxu0 0
    %7651 = vmatmul.mubr.bf16.gmra.mrb[0].mxu0 %v6707
    %v7652 = vpop.f32.mrb[0].mxu0
    %v7653 = vadd.f32 0.0, %v7652
    %v7654 = vpop.f32.mrb[0].mxu0
    %v7655 = vadd.f32 0.0, %v7654
    %v7656 = vpop.f32.mrb[0].mxu0
    %v7657 = vadd.f32 0.0, %v7656
    %v7658 = vpop.f32.mrb[0].mxu0
    %v7659 = vadd.f32 0.0, %v7658
    %7660 = vdwg.mxu0
    %7661 = vmatprep.subr.bf16.mxu0 %v7613
    %7662 = vmatpush1.bf16.msra.mxu0 %v7612
    %7663 = vmatprep.subr.bf16.mxu0 %v7617
    %7664 = vmatpush1.bf16.msra.mxu0 %v7616
    %7665 = vmatprep.subr.bf16.mxu0 0
    %7666 = vmatpush1.bf16.msra.mxu0 0
    %7667 = vmatprep.subr.bf16.mxu0 0
    %7668 = vmatpush1.bf16.msra.mxu0 0
    %7669 = vmatprep.subr.bf16.mxu0 0
    %7670 = vmatpush1.bf16.msra.mxu0 0
    %7671 = vmatprep.subr.bf16.mxu0 0
    %7672 = vmatpush1.bf16.msra.mxu0 0
    %7673 = vmatprep.subr.bf16.mxu0 0
    %7674 = vmatpush1.bf16.msra.mxu0 0
    %7675 = vmatprep.subr.bf16.mxu0 0
    %7676 = vmatpush1.bf16.msra.mxu0 0
    %7677 = vmatprep.subr.bf16.mxu0 0
    %7678 = vmatpush1.bf16.msra.mxu0 0
    %7679 = vmatprep.subr.bf16.mxu0 0
    %7680 = vmatpush1.bf16.msra.mxu0 0
    %7681 = vmatprep.subr.bf16.mxu0 0
    %7682 = vmatpush1.bf16.msra.mxu0 0
    %7683 = vmatprep.subr.bf16.mxu0 0
    %7684 = vmatpush1.bf16.msra.mxu0 0
    %7685 = vmatprep.subr.bf16.mxu0 0
    %7686 = vmatpush1.bf16.msra.mxu0 0
    %7687 = vmatprep.subr.bf16.mxu0 0
    %7688 = vmatpush1.bf16.msra.mxu0 0
    %7689 = vmatprep.subr.bf16.mxu0 0
    %7690 = vmatpush1.bf16.msra.mxu0 0
    %7691 = vmatprep.subr.bf16.mxu0 0
    %7692 = vmatpush1.bf16.msra.mxu0 0
    %7693 = vmatprep.mubr.bf16.mxu0 0
    %7694 = vmatmul.mubr.bf16.gmra.mrb[0].mxu0 %v6707
    %v7695 = vpop.f32.mrb[0].mxu0
    %v7696 = vadd.f32 0.0, %v7695
    %v7697 = vpop.f32.mrb[0].mxu0
    %v7698 = vadd.f32 0.0, %v7697
    %v7699 = vpop.f32.mrb[0].mxu0
    %v7700 = vadd.f32 0.0, %v7699
    %v7701 = vpop.f32.mrb[0].mxu0
    %v7702 = vadd.f32 0.0, %v7701
    %7703 = vdwg.mxu0
    %s7704 = scalar_lea.vmem %s16, 25
    %v7705 = vld [vmem:[%s7704] ss:$2 sm:$0xf]
    %v7707 = vlaneseq
    %v7708 = vshrl.u32 %v7707, 7
    %v7709 = vsub.s32 0, %v7708
    %v7710 = vrot.slane %v7705, %v7709
    %v7711 = vlaneseq
    %v7712 = vshrl.u32 %v7711, 7
    %v7713 = vsub.s32 1, %v7712
    %v7714 = vrot.slane %v7705, %v7713
    %v7715 = vlaneseq
    %v7716 = vshrl.u32 %v7715, 7
    %v7717 = vsub.s32 2, %v7716
    %v7718 = vrot.slane %v7705, %v7717
    %v7719 = vlaneseq
    %v7720 = vshrl.u32 %v7719, 7
    %v7721 = vsub.s32 3, %v7720
    %v7722 = vrot.slane %v7705, %v7721
    %v7727 = vmul.f32 %v7653, %v7710
    %v7728 = vmul.f32 %v7655, %v7714
    %v7729 = vmul.f32 %v7696, %v7718
    %v7730 = vmul.f32 %v7698, %v7722
    %v7731 = vmul.f32 %v7657, %v7710
    %v7732 = vmul.f32 %v7659, %v7714
    %v7733 = vmul.f32 %v7700, %v7718
    %v7734 = vmul.f32 %v7702, %v7722
    %s7735 = scalar_lea.vmem %s15, 25
    %v7736 = vld [vmem:[%s7735] ss:$2 sm:$0xf]
    %v7738 = vlaneseq
    %v7739 = vshrl.u32 %v7738, 7
    %v7740 = vsub.s32 0, %v7739
    %v7741 = vrot.slane %v7736, %v7740
    %v7742 = vlaneseq
    %v7743 = vshrl.u32 %v7742, 7
    %v7744 = vsub.s32 1, %v7743
    %v7745 = vrot.slane %v7736, %v7744
    %v7746 = vlaneseq
    %v7747 = vshrl.u32 %v7746, 7
    %v7748 = vsub.s32 2, %v7747
    %v7749 = vrot.slane %v7736, %v7748
    %v7750 = vlaneseq
    %v7751 = vshrl.u32 %v7750, 7
    %v7752 = vsub.s32 3, %v7751
    %v7753 = vrot.slane %v7736, %v7752
    %v7758 = vadd.f32 %v7727, %v7741
    %v7759 = vadd.f32 %v7728, %v7745
    %v7760 = vadd.f32 %v7729, %v7749
    %v7761 = vadd.f32 %v7730, %v7753
    %v7762 = vadd.f32 %v7731, %v7741
    %v7763 = vadd.f32 %v7732, %v7745
    %v7764 = vadd.f32 %v7733, %v7749
    %v7765 = vadd.f32 %v7734, %v7753
    %v7766 = vmax.f32 %v7758, 0.0
    %v7767 = vmax.f32 %v7759, 0.0
    %v7768 = vmax.f32 %v7760, 0.0
    %v7769 = vmax.f32 %v7761, 0.0
    %v7770 = vmax.f32 %v7762, 0.0
    %v7771 = vmax.f32 %v7763, 0.0
    %v7772 = vmax.f32 %v7764, 0.0
    %v7773 = vmax.f32 %v7765, 0.0
    %v7774 = vld [vmem:[%s6865 + $0x180] sm:$0xff]
    %v7775 = vld [vmem:[%s6865 + $0x188] sm:$0xff]
    %v7776 = vld [vmem:[%s6865 + $0x190] sm:$0xff]
    %v7777 = vld [vmem:[%s6865 + $0x198] sm:$0xff]
    %v7778 = vld [vmem:[%s6865 + $0x1a0] sm:$0xff]
    %v7779 = vld [vmem:[%s6865 + $0x1a8] sm:$0xff]
    %v7780 = vld [vmem:[%s6865 + $0x1b0] sm:$0xff]
    %v7781 = vld [vmem:[%s6865 + $0x1b8] sm:$0xff]
    %v7782 = vld [vmem:[%s6865 + $0x1c0] sm:$0xff]
    %v7783 = vld [vmem:[%s6865 + $0x1c8] sm:$0xff]
    %v7784 = vld [vmem:[%s6865 + $0x1d0] sm:$0xff]
    %v7785 = vld [vmem:[%s6865 + $0x1d8] sm:$0xff]
    %v7786 = vld [vmem:[%s6865 + $0x1e0] sm:$0xff]
    %v7787 = vld [vmem:[%s6865 + $0x1e8] sm:$0xff]
    %v7788 = vld [vmem:[%s6865 + $0x1f0] sm:$0xff]
    %v7789 = vld [vmem:[%s6865 + $0x1f8] sm:$0xff]
    %v7790 = vunpack.c.l.s8.bf16 %v7774
    %v7791 = vunpack.c.h.s8.bf16 %v7774
    %v7792 = vunpack.c.l.s8.bf16 %v7775
    %v7793 = vunpack.c.h.s8.bf16 %v7775
    %v7794 = vunpack.c.l.s8.bf16 %v7776
    %v7795 = vunpack.c.h.s8.bf16 %v7776
    %v7796 = vunpack.c.l.s8.bf16 %v7777
    %v7797 = vunpack.c.h.s8.bf16 %v7777
    %v7798 = vunpack.c.l.s8.bf16 %v7778
    %v7799 = vunpack.c.h.s8.bf16 %v7778
    %v7800 = vunpack.c.l.s8.bf16 %v7779
    %v7801 = vunpack.c.h.s8.bf16 %v7779
    %v7802 = vunpack.c.l.s8.bf16 %v7780
    %v7803 = vunpack.c.h.s8.bf16 %v7780
    %v7804 = vunpack.c.l.s8.bf16 %v7781
    %v7805 = vunpack.c.h.s8.bf16 %v7781
    %v7806 = vunpack.c.l.s8.bf16 %v7782
    %v7807 = vunpack.c.h.s8.bf16 %v7782
    %v7808 = vunpack.c.l.s8.bf16 %v7783
    %v7809 = vunpack.c.h.s8.bf16 %v7783
    %v7810 = vunpack.c.l.s8.bf16 %v7784
    %v7811 = vunpack.c.h.s8.bf16 %v7784
    %v7812 = vunpack.c.l.s8.bf16 %v7785
    %v7813 = vunpack.c.h.s8.bf16 %v7785
    %v7814 = vunpack.c.l.s8.bf16 %v7786
    %v7815 = vunpack.c.h.s8.bf16 %v7786
    %v7816 = vunpack.c.l.s8.bf16 %v7787
    %v7817 = vunpack.c.h.s8.bf16 %v7787
    %v7818 = vunpack.c.l.s8.bf16 %v7788
    %v7819 = vunpack.c.h.s8.bf16 %v7788
    %v7820 = vunpack.c.l.s8.bf16 %v7789
    %v7821 = vunpack.c.h.s8.bf16 %v7789
    %v7822 = vpack.c.bf16 %v7770, %v7766
    %v7823 = vpack.c.bf16 %v7771, %v7767
    %v7824 = vpack.c.bf16 %v7772, %v7768
    %v7825 = vpack.c.bf16 %v7773, %v7769
    %7826 = vmatprep.subr.bf16.mxu0 0
    %7827 = vmatpush1.bf16.msra.mxu0 %v7790
    %7828 = vmatprep.subr.bf16.mxu0 0
    %7829 = vmatpush1.bf16.msra.mxu0 %v7791
    %7830 = vmatprep.subr.bf16.mxu0 0
    %7831 = vmatpush1.bf16.msra.mxu0 %v7792
    %7832 = vmatprep.subr.bf16.mxu0 0
    %7833 = vmatpush1.bf16.msra.mxu0 %v7793
    %7834 = vmatprep.subr.bf16.mxu0 0
    %7835 = vmatpush1.bf16.msra.mxu0 %v7794
    %7836 = vmatprep.subr.bf16.mxu0 0
    %7837 = vmatpush1.bf16.msra.mxu0 %v7795
    %7838 = vmatprep.subr.bf16.mxu0 0
    %7839 = vmatpush1.bf16.msra.mxu0 %v7796
    %7840 = vmatprep.subr.bf16.mxu0 0
    %7841 = vmatpush1.bf16.msra.mxu0 %v7797
    %7842 = vmatprep.subr.bf16.mxu0 0
    %7843 = vmatpush1.bf16.msra.mxu0 %v7798
    %7844 = vmatprep.subr.bf16.mxu0 0
    %7845 = vmatpush1.bf16.msra.mxu0 %v7799
    %7846 = vmatprep.subr.bf16.mxu0 0
    %7847 = vmatpush1.bf16.msra.mxu0 %v7800
    %7848 = vmatprep.subr.bf16.mxu0 0
    %7849 = vmatpush1.bf16.msra.mxu0 %v7801
    %7850 = vmatprep.subr.bf16.mxu0 0
    %7851 = vmatpush1.bf16.msra.mxu0 %v7802
    %7852 = vmatprep.subr.bf16.mxu0 0
    %7853 = vmatpush1.bf16.msra.mxu0 %v7803
    %7854 = vmatprep.subr.bf16.mxu0 0
    %7855 = vmatpush1.bf16.msra.mxu0 %v7804
    %7856 = vmatprep.subr.bf16.mxu0 0
    %7857 = vmatpush1.bf16.msra.mxu0 %v7805
    %7858 = vmatprep.mubr.bf16.mxu0 %v7823
    %7859 = vmatmul.mubr.bf16.gmra.mrb[0].mxu0 %v7822
    %v7860 = vpop.f32.mrb[0].mxu0
    %v7861 = vadd.f32 0.0, %v7860
    %v7862 = vpop.f32.mrb[0].mxu0
    %v7863 = vpop.f32.mrb[0].mxu0
    %v7864 = vadd.f32 0.0, %v7863
    %v7865 = vpop.f32.mrb[0].mxu0
    %7866 = vdwg.mxu0
    %7867 = vmatprep.subr.bf16.mxu0 0
    %7868 = vmatpush1.bf16.msra.mxu0 %v7806
    %7869 = vmatprep.subr.bf16.mxu0 0
    %7870 = vmatpush1.bf16.msra.mxu0 %v7807
    %7871 = vmatprep.subr.bf16.mxu0 0
    %7872 = vmatpush1.bf16.msra.mxu0 %v7808
    %7873 = vmatprep.subr.bf16.mxu0 0
    %7874 = vmatpush1.bf16.msra.mxu0 %v7809
    %7875 = vmatprep.subr.bf16.mxu0 0
    %7876 = vmatpush1.bf16.msra.mxu0 %v7810
    %7877 = vmatprep.subr.bf16.mxu0 0
    %7878 = vmatpush1.bf16.msra.mxu0 %v7811
    %7879 = vmatprep.subr.bf16.mxu0 0
    %7880 = vmatpush1.bf16.msra.mxu0 %v7812
    %7881 = vmatprep.subr.bf16.mxu0 0
    %7882 = vmatpush1.bf16.msra.mxu0 %v7813
    %7883 = vmatprep.subr.bf16.mxu0 0
    %7884 = vmatpush1.bf16.msra.mxu0 %v7814
    %7885 = vmatprep.subr.bf16.mxu0 0
    %7886 = vmatpush1.bf16.msra.mxu0 %v7815
    %7887 = vmatprep.subr.bf16.mxu0 0
    %7888 = vmatpush1.bf16.msra.mxu0 %v7816
    %7889 = vmatprep.subr.bf16.mxu0 0
    %7890 = vmatpush1.bf16.msra.mxu0 %v7817
    %7891 = vmatprep.subr.bf16.mxu0 0
    %7892 = vmatpush1.bf16.msra.mxu0 %v7818
    %7893 = vmatprep.subr.bf16.mxu0 0
    %7894 = vmatpush1.bf16.msra.mxu0 %v7819
    %7895 = vmatprep.subr.bf16.mxu0 0
    %7896 = vmatpush1.bf16.msra.mxu0 %v7820
    %7897 = vmatprep.subr.bf16.mxu0 0
    %7898 = vmatpush1.bf16.msra.mxu0 %v7821
    %7899 = vmatprep.mubr.bf16.mxu0 %v7825
    %7900 = vmatmul.mubr.bf16.gmra.mrb[0].mxu0 %v7824
    %v7901 = vpop.f32.mrb[0].mxu0
    %v7902 = vadd.f32 %v7861, %v7901
    %v7903 = vpop.f32.mrb[0].mxu0
    %v7904 = vpop.f32.mrb[0].mxu0
    %v7905 = vadd.f32 %v7864, %v7904
    %v7906 = vpop.f32.mrb[0].mxu0
    %7907 = vdwg.mxu0
    %v7908 = vadd.f32 %v7604, %v7902
    %v7909 = vadd.f32 %v7605, %v7905
    %v7910 = vld [vmem:[%s17 + $0x1] sm:$0x1]
    %v7911 = vlaneseq
    %v7912 = vshrl.u32 %v7911, 7
    %v7913 = vsub.s32 0, %v7912
    %v7914 = vrot.slane %v7910, %v7913
    %v7915 = vmul.f32 %v7908, %v7914
    %v7916 = vmul.f32 %v7909, %v7914
    %v7917 = vlaneseq
    %v7918 = vshrl.u32 %v7917, 7
    %v7919 = vsub.s32 0, %v7918
    %v7920 = vrot.slane %v6643, %v7919
    %v7921 = vadd.f32 %v7915, %v7920
    %v7922 = vadd.f32 %v7916, %v7920
    %v7923 = vadd.f32 %v6690, %v7921
    %v7924 = vadd.f32 %v6691, %v7922
    %v7925 = vsel %vm479, %v7923, 0.0
    %7926 = vadd.xlane.f32.xlu0 %v7925
    %v7927 = vpop.xlane.xlu0 %7926
    %v7928 = vsel %vm479, %v7924, 0.0
    %7929 = vadd.xlane.f32.xlu0 %v7928
    %v7930 = vpop.xlane.xlu0 %7929
    %v7931 = vmul.f32 %v7927, %v492
    %v7932 = vmul.f32 %v7930, %v492
    %v7933 = vsub.f32 %v7923, %v7931
    %v7934 = vsub.f32 %v7924, %v7932
    %v7935 = vmul.f32 %v7933, %v7933
    %v7936 = vmul.f32 %v7934, %v7934
    %v7937 = vsel %vm479, %v7935, 0.0
    %7938 = vadd.xlane.f32.xlu0 %v7937
    %v7939 = vpop.xlane.xlu0 %7938
    %v7940 = vsel %vm479, %v7936, 0.0
    %7941 = vadd.xlane.f32.xlu0 %v7940
    %v7942 = vpop.xlane.xlu0 %7941
    %v7943 = vmul.f32 %v7939, %v492
    %v7944 = vmul.f32 %v7942, %v492
    %v7945 = vadd.f32 %v7943, 1e-05
    %v7946 = vadd.f32 %v7944, 1e-05
    %v7947 = vrsqrt.pop %v7945
    %v7948 = vrsqrt.pop %v7946
    %v7949 = vmul.f32 %v7933, %v7947
    %v7950 = vmul.f32 %v7934, %v7948
    %v7951 = vlaneseq
    %v7952 = vshrl.u32 %v7951, 7
    %v7953 = vsub.s32 0, %v7952
    %v7954 = vrot.slane %v6644, %v7953
    %v7955 = vmul.f32 %v7949, %v7954
    %v7956 = vmul.f32 %v7950, %v7954
    %v7957 = vlaneseq
    %v7958 = vshrl.u32 %v7957, 7
    %v7959 = vsub.s32 0, %v7958
    %v7960 = vrot.slane %v6645, %v7959
    %v7961 = vadd.f32 %v7955, %v7960
    %v7962 = vadd.f32 %v7956, %v7960
    %v7965 = vrot.slane %v7962, 7
    %s7968 = scalar_lea.vmem %s23, 2
    %7969 = vst.msk [vmem:[%s7968 - $0x7] sm:$0x80] %vm5709, %v7961
    %7970 = vst.msk [vmem:[%s7968 + $0x1] sm:$0x1] %vm5711, %v7965
    %v7971 = vpack.c.bf16 %v7961, %v7961
    %v7972 = vpack.c.bf16 %v7962, %v7962
    %v7973 = vld [vmem:[%s18] sm:$0xf]
    %v7974 = vld [vmem:[%s18 + $0x4] sm:$0xf]
    %v7975 = vld [vmem:[%s18 + $0x8] sm:$0xf]
    %v7976 = vld [vmem:[%s18 + $0xc] sm:$0xf]
    %v7977 = vld [vmem:[%s19] sm:$0x1]
    %v7979 = vlaneseq
    %v7980 = vshrl.u32 %v7979, 7
    %v7981 = vsub.s32 0, %v7980
    %v7982 = vrot.slane %v7977, %v7981
    %v7986 = vunpack.c.l.b16 %v7971
    %v7987 = vunpack.c.l.b16 %v7972
    %v7988 = vrot.slane %v7986, 7
    %v7989 = vrot.slane %v7987, 6
    %vm7990 = vcmask 1041409
    %v7991 = vsel %vm7990, %v7989, %v7988
    %v7992 = vpack.c.b16 %v7991, %v7991
    %v7997 = vunpack.c.l.b16 %v7973
    %v7998 = vunpack.c.l.b16 %v7974
    %v7999 = vunpack.c.l.b16 %v7975
    %v8000 = vunpack.c.l.b16 %v7976
    %v8001 = vpack.c.b16 %v7998, %v7997
    %v8002 = vpack.c.b16 %v8000, %v7999
    %v8006 = vsel %vm479, %v7992, 0
    %8008 = vmatprep.subr.bf16.mxu0 0
    %8009 = vmatpush1.bf16.msra.mxu0 %v8001
    %8010 = vmatprep.subr.bf16.mxu0 0
    %8011 = vmatpush1.bf16.msra.mxu0 %v8002
    %8012 = vmatprep.subr.bf16.mxu0 0
    %8013 = vmatpush1.bf16.msra.mxu0 0
    %8014 = vmatprep.subr.bf16.mxu0 0
    %8015 = vmatpush1.bf16.msra.mxu0 0
    %8016 = vmatprep.subr.bf16.mxu0 0
    %8017 = vmatpush1.bf16.msra.mxu0 0
    %8018 = vmatprep.subr.bf16.mxu0 0
    %8019 = vmatpush1.bf16.msra.mxu0 0
    %8020 = vmatprep.subr.bf16.mxu0 0
    %8021 = vmatpush1.bf16.msra.mxu0 0
    %8022 = vmatprep.subr.bf16.mxu0 0
    %8023 = vmatpush1.bf16.msra.mxu0 0
    %8024 = vmatprep.subr.bf16.mxu0 0
    %8025 = vmatpush1.bf16.msra.mxu0 0
    %8026 = vmatprep.subr.bf16.mxu0 0
    %8027 = vmatpush1.bf16.msra.mxu0 0
    %8028 = vmatprep.subr.bf16.mxu0 0
    %8029 = vmatpush1.bf16.msra.mxu0 0
    %8030 = vmatprep.subr.bf16.mxu0 0
    %8031 = vmatpush1.bf16.msra.mxu0 0
    %8032 = vmatprep.subr.bf16.mxu0 0
    %8033 = vmatpush1.bf16.msra.mxu0 0
    %8034 = vmatprep.subr.bf16.mxu0 0
    %8035 = vmatpush1.bf16.msra.mxu0 0
    %8036 = vmatprep.subr.bf16.mxu0 0
    %8037 = vmatpush1.bf16.msra.mxu0 0
    %8038 = vmatprep.subr.bf16.mxu0 0
    %8039 = vmatpush1.bf16.msra.mxu0 0
    %8040 = vmatprep.mubr.bf16.mxu0 0
    %8041 = vmatmul.mubr.bf16.gmra.mrb[0].mxu0 %v8006
    %v8042 = vpop.f32.mrb[0].mxu0
    %v8043 = vadd.f32 %v7982, %v8042
    %v8044 = vpop.f32.mrb[0].mxu0
    %v8045 = vpop.f32.mrb[0].mxu0
    %v8046 = vpop.f32.mrb[0].mxu0
    %8047 = vdwg.mxu0
    %v8048 = vsub.f32 0.0, %v8043
    %v8049 = vmul.f32 %v8048, 1.442695
    %v8050 = vpow.pop %v8049
    %v8051 = vadd.f32 %v8050, 1.0
    %v8052 = vrcp.pop %v8051
    %v8053 = vmul.f32 1.0, %v8052
    %8054 = vst [vmem:[%s24] sm:$0x3] %v8053
    // Predicated region
    $region150: #{multi_source_encoder_forward.1} parent=1 // pred_check
      _
    $region151: #{multi_source_encoder_forward.1} parent=1 // pred_check_branch
      %8056 = sbr.rel (0) target = $region153
    $region152: #{multi_source_encoder_forward.1} parent=1 // pred_region
      %s8058 = ssub.s32 512, 512
      %8059 = vsyncadd [#allocation6], %s8058
      %s8060 = sshll.u32 [#allocation5], 4
      %s8061 = int_to_ptr.vmem [resolvable:$true] %s8060
      %8066 = dma.vmem_to_hbm [thread:$0]  %s8061, 512, %s22, [#allocation6], 128, 128, 8
    $region153: #{multi_source_encoder_forward.1} parent=1 // pred_fallthru
      _
    // Predicated region
    $region154: #{multi_source_encoder_forward.1} parent=1 // pred_check
      _
    $region155: #{multi_source_encoder_forward.1} parent=1 // pred_check_branch
      %8068 = sbr.rel (0) target = $region157
    $region156: #{multi_source_encoder_forward.1} parent=1 // pred_region
      _
    $region157: #{multi_source_encoder_forward.1} parent=1 // pred_fallthru
      _
    // Predicated region
    $region158: #{multi_source_encoder_forward.1} parent=1 // pred_check
      _
    $region159: #{multi_source_encoder_forward.1} parent=1 // pred_check_branch
      %8070 = sbr.rel (0) target = $region161
    $region160: #{multi_source_encoder_forward.1} parent=1 // pred_region
      _
    $region161: #{multi_source_encoder_forward.1} parent=1 // pred_fallthru
      _
    // Predicated region
    $region162: #{multi_source_encoder_forward.1} parent=1 // pred_check
      _
    $region163: #{multi_source_encoder_forward.1} parent=1 // pred_check_branch
      %8072 = sbr.rel (0) target = $region165
    $region164: #{multi_source_encoder_forward.1} parent=1 // pred_region
      %8073 = dma.done [#allocation6], 512
    $region165: #{multi_source_encoder_forward.1} parent=1 // pred_fallthru
      _
    // Predicated region
    $region166: #{multi_source_encoder_forward.1} parent=1 // pred_check
      _
    $region167: #{multi_source_encoder_forward.1} parent=1 // pred_check_branch
      %8075 = sbr.rel (0) target = $region169
    $region168: #{multi_source_encoder_forward.1} parent=1 // pred_region
      _
    $region169: #{multi_source_encoder_forward.1} parent=1 // pred_fallthru
      _
    // Predicated region
    $region170: #{multi_source_encoder_forward.1} parent=1 // pred_check
      _
    $region171: #{multi_source_encoder_forward.1} parent=1 // pred_check_branch
      %8077 = sbr.rel (0) target = $region173
    $region172: #{multi_source_encoder_forward.1} parent=1 // pred_region
      _
    $region173: #{multi_source_encoder_forward.1} parent=1 // pred_fallthru
      _
    %8078 = vsyncpa [#allocation6], 1
  %8079 = vsyncmov [#allocation4]
  %s8080 = vpop.sfrf %8079
  %p8081 = scmp.eq.s32.totalorder %s8080, 0
  %p8082 = pneg %p8081
  %8084 = shalt.err (%p8082)
  %s8085 = scalar_lea.sflag [#allocation4], 1
  %8086 = vsyncmov %s8085
  %s8087 = vpop.sfrf %8086
  %p8088 = scmp.eq.s32.totalorder %s8087, 0
  %p8089 = pneg %p8088
  %8091 = shalt.err (%p8089)

</llo_original>
